<compile_context>
chip_gen: v7x
topology: tpu7x:2x2x1
jax: 0.10.0
libtpu: 0.0.40
codegen_flags: <defaults>
</compile_context>

<pallas_src>
import functools
import math

import jax
import jax.numpy as jnp
from jax.experimental import pallas as pl
from jax.experimental.pallas import tpu as pltpu

_VMEM_LIMIT = 48 * 1024 * 1024   # scoped-VMEM budget; fits v7x (64 MiB) with headroom


def _softplus(x):
    # numerically stable softplus using only exp/log (EUP slot)
    return jnp.maximum(x, 0.0) + jnp.log(1.0 + jnp.exp(-jnp.abs(x)))


def _pick_tile(n, cap, align=128):
    """Largest `align`-aligned tile <= cap that divides n; returns n if none exists."""
    if n <= cap:
        return n
    t = (cap // align) * align
    while t >= align:
        if n % t == 0:
            return t
        t -= align
    return n


# ----------------------------------------------------------------------------
# Fused local encoder: conv3x3 'same' -> ReLU -> conv3x3 'same' -> NCHW flatten
# (in-kernel zero padding, bf16 matmul operands, intermediate fmap stays in VMEM)
# ----------------------------------------------------------------------------
def _local_encoder_kernel(x_ref, w1_ref, b1_ref, w2_ref, b2_ref, o_ref,
                          slab1_ref, slab2_ref, *, H, W):
    # x_ref  : (BB, Cin, H*W)  bf16   NCHW-flat input rows (lane-dense)
    # w1_ref : (C1, 9*Cin)     bf16   tap k = dy*3 + dx major, cin minor
    # b1_ref : (C1, 1)         f32
    # w2_ref : (C2, 9*C1)      bf16
    # b2_ref : (C2, 1)         f32
    # o_ref  : (BB, C2, H*W)   bf16   NCHW-flat conv2 output (lane-dense)
    # slab1  : (BB, Cin, S_in) bf16   zero-padded conv1 input, flat (H+2)*(W+2)+2
    # slab2  : (BB, C1, S_in)  bf16   zero-padded conv2 input (built in VMEM)
    Wp = W + 2
    M = H * Wp
    BB, Cin, _ = x_ref.shape
    C1 = slab2_ref.shape[1]
    C2 = o_ref.shape[1]
    f32 = jnp.float32

    # borders / tails must be zero; interiors are overwritten below
    slab1_ref[...] = jnp.zeros_like(slab1_ref)
    slab2_ref[...] = jnp.zeros_like(slab2_ref)
    for h in range(H):                                  # in-kernel zero padding
        dst = (h + 1) * Wp + 1
        slab1_ref[:, :, dst:dst + W] = x_ref[:, :, h * W:(h + 1) * W]

    w1 = w1_ref[...]
    w2 = w2_ref[...]
    b1 = b1_ref[...]
    b2 = b2_ref[...]
    offs = tuple(dy * Wp + dx for dy in range(3) for dx in range(3))

    # ---- conv1 + bias + ReLU: write straight into the zero-bordered conv2 slab ----
    for b in range(BB):
        img = slab1_ref[b]                              # (Cin, S_in) bf16
        acc = jnp.zeros((C1, M), f32)
        # TODO(synk): 9 shifted K=Cin matmuls; a single (C1, 9*Cin) x (9*Cin, M) matmul
        # (patches concatenated along sublanes) would fill the MXU K dim better.
        for k, off in enumerate(offs):
            acc = acc + jnp.dot(w1[:, k * Cin:(k + 1) * Cin], img[:, off:off + M],
                                preferred_element_type=f32)
        h1 = jnp.maximum(acc + b1, 0.0).astype(slab2_ref.dtype)     # (C1, M)
        for h in range(H):
            dst = (h + 1) * Wp + 1
            slab2_ref[b, :, dst:dst + W] = h1[:, h * Wp:h * Wp + W]

    # ---- conv2 + bias, junk-column drop + NCHW flatten (lane-dense output rows) ----
    for b in range(BB):
        img = slab2_ref[b]                              # (C1, S_in) bf16
        acc = jnp.zeros((C2, M), f32)
        for k, off in enumerate(offs):
            acc = acc + jnp.dot(w2[:, k * C1:(k + 1) * C1], img[:, off:off + M],
                                preferred_element_type=f32)
        h2 = acc + b2                                   # (C2, M), no ReLU
        for h in range(H):
            o_ref[b, :, h * W:(h + 1) * W] = h2[:, h * Wp:h * Wp + W].astype(o_ref.dtype)


def local_encoder(x_nchw, conv1_w, conv1_b, conv2_w, conv2_b, *, block_b=8):
    """conv3x3 'same' -> ReLU -> conv3x3 'same'; returns NCHW-flattened (B, C2*H*W) bf16."""
    B, Cin, H, W = x_nchw.shape
    C1 = conv1_w.shape[0]
    C2 = conv2_w.shape[0]
    HW = H * W
    S_in = (H + 2) * (W + 2) + 2
    bf16 = jnp.bfloat16

    BB = B if B <= block_b else block_b
    nb = pl.cdiv(B, BB)

    x = x_nchw.reshape(B, Cin, HW).astype(bf16)                       # free reshape
    # PyTorch OIHW -> (Cout, 9*Cin), tap k = dy*3 + dx major, cin minor
    w1 = jnp.transpose(conv1_w, (0, 2, 3, 1)).reshape(C1, 9 * Cin).astype(bf16)
    w2 = jnp.transpose(conv2_w, (0, 2, 3, 1)).reshape(C2, 9 * C1).astype(bf16)
    b1 = conv1_b.reshape(C1, 1).astype(jnp.float32)
    b2 = conv2_b.reshape(C2, 1).astype(jnp.float32)

    fmap = pl.pallas_call(
        functools.partial(_local_encoder_kernel, H=H, W=W),
        out_shape=jax.ShapeDtypeStruct((B, C2, HW), bf16),
        grid=(nb,),
        in_specs=[
            pl.BlockSpec((BB, Cin, HW), lambda i: (i, 0, 0)),
            pl.BlockSpec((C1, 9 * Cin), lambda i: (0, 0)),
            pl.BlockSpec((C1, 1), lambda i: (0, 0)),
            pl.BlockSpec((C2, 9 * C1), lambda i: (0, 0)),
            pl.BlockSpec((C2, 1), lambda i: (0, 0)),
        ],
        out_specs=pl.BlockSpec((BB, C2, HW), lambda i: (i, 0, 0)),
        scratch_shapes=[pltpu.VMEM((BB, Cin, S_in), bf16),
                        pltpu.VMEM((BB, C1, S_in), bf16)],
        compiler_params=pltpu.CompilerParams(
            dimension_semantics=("parallel",),
            vmem_limit_bytes=_VMEM_LIMIT),
    )(x, w1, b1, w2, b2)
    return fmap.reshape(B, C2 * HW)          # free contiguous reshape (already NCHW order)


# ----------------------------------------------------------------------------
# One K-tiled pass over the local features C: E = C @ fc_w + fc_b  AND
# h1c = C @ t1_w[G:]  accumulated together (C streams from HBM exactly once).
# ----------------------------------------------------------------------------
def _stream_c_kernel(c_ref, w1c_ref, fcw_ref, fcb_ref, e_ref, h1c_ref):
    k = pl.program_id(1)

    @pl.when(k == 0)
    def _init():
        e_ref[...] = jnp.zeros_like(e_ref) + fcb_ref[...]
        h1c_ref[...] = jnp.zeros_like(h1c_ref)

    c = c_ref[...]
    h1c_ref[...] += jnp.dot(c, w1c_ref[...], preferred_element_type=jnp.float32)
    e_ref[...] += jnp.dot(c, fcw_ref[...], preferred_element_type=jnp.float32)


def stream_c_fused(C, fc_w, fc_b, w1_C, *, tb_cap=256, tk_cap=2048):
    B, L = C.shape
    G = fc_w.shape[1]
    H1 = w1_C.shape[1]
    bf16 = jnp.bfloat16

    # TODO(synk): per-chip tuning — on v7x pick TB so nb >= 2 (keep both TensorCores
    # busy) and re-check the double-buffered VMEM budget against its 64 MiB.
    TB = B if B <= tb_cap else tb_cap
    if L <= tk_cap:
        TK, Lp = L, L
    else:
        TK = _pick_tile(L, tk_cap)
        if TK == L:              # no aligned divisor: zero-pad K (guards v7x VMEM OOM)
            TK = tk_cap
            Lp = ((L + TK - 1) // TK) * TK
        else:
            Lp = L
    Cp = C if Lp == L else jnp.pad(C, ((0, 0), (0, Lp - L)))
    fcw = fc_w if Lp == L else jnp.pad(fc_w, ((0, Lp - L), (0, 0)))
    w1c = w1_C if Lp == L else jnp.pad(w1_C, ((0, Lp - L), (0, 0)))

    nb = pl.cdiv(B, TB)
    nk = Lp // TK

    E, h1c = pl.pallas_call(
        _stream_c_kernel,
        out_shape=(jax.ShapeDtypeStruct((B, G), jnp.float32),
                   jax.ShapeDtypeStruct((B, H1), jnp.float32)),
        grid=(nb, nk),
        in_specs=[
            pl.BlockSpec((TB, TK), lambda i, k: (i, k)),   # local features C
            pl.BlockSpec((TK, H1), lambda i, k: (k, 0)),   # t1_w rows acting on C
            pl.BlockSpec((TK, G), lambda i, k: (k, 0)),    # fc_w
            pl.BlockSpec((1, G), lambda i, k: (0, 0)),     # fc_b
        ],
        out_specs=(pl.BlockSpec((TB, G), lambda i, k: (i, 0)),
                   pl.BlockSpec((TB, H1), lambda i, k: (i, 0))),
        compiler_params=pltpu.CompilerParams(
            dimension_semantics=("parallel", "arbitrary"),
            vmem_limit_bytes=_VMEM_LIMIT),
    )(Cp.astype(bf16), w1c.astype(bf16), fcw.astype(bf16),
      fc_b.reshape(1, G).astype(jnp.float32))
    return E, h1c


# ----------------------------------------------------------------------------
# T head: shared-h1c positive/negative pairs stacked so the dominant
# (2B,512)x(512,512) matmul runs once; Linear(512,1) is a lane reduction; the
# softplus of the JSD estimator is fused.
# ----------------------------------------------------------------------------
def _head_jsd_kernel(e_ref, eneg_ref, h1c_ref, w1e_ref, b1_ref,
                     w2_ref, b2_ref, w3_ref, b3_ref,
                     sp_pos_ref, sp_neg_ref, h1_ref):
    TB = e_ref.shape[0]
    bf16 = w1e_ref.dtype
    f32 = jnp.float32

    h1c = h1c_ref[...]
    b1 = b1_ref[...]
    w1e = w1e_ref[...]

    h_pos = jnp.maximum(h1c + jnp.dot(e_ref[...].astype(bf16), w1e,
                                      preferred_element_type=f32) + b1, 0.0)
    h_neg = jnp.maximum(h1c + jnp.dot(eneg_ref[...].astype(bf16), w1e,
                                      preferred_element_type=f32) + b1, 0.0)
    h1_ref[:TB, :] = h_pos
    h1_ref[TB:2 * TB, :] = h_neg

    h2 = jnp.dot(h1_ref[...].astype(bf16), w2_ref[...],
                 preferred_element_type=f32) + b2_ref[...]
    h2 = jnp.maximum(h2, 0.0)
    # final Linear(512, 1) as a VPU/XLU lane reduction (no N=1 matmul)
    t = jnp.sum(h2 * w3_ref[...], axis=-1, keepdims=True) + b3_ref[...]   # (2TB, 1)
    sp_pos_ref[...] = _softplus(-t[:TB])
    sp_neg_ref[...] = _softplus(t[TB:2 * TB])


def head_jsd(E, E_neg, h1c, w1_E, t1_b, t2_w, t2_b, t3_w, t3_b, *, tb_cap=128):
    B, G = E.shape
    H1, H2 = t2_w.shape
    bf16 = jnp.bfloat16
    TB = B if B <= tb_cap else tb_cap
    nb = pl.cdiv(B, TB)

    sp_pos, sp_neg = pl.pallas_call(
        _head_jsd_kernel,
        out_shape=(jax.ShapeDtypeStruct((B, 1), jnp.float32),
                   jax.ShapeDtypeStruct((B, 1), jnp.float32)),
        grid=(nb,),
        in_specs=[
            pl.BlockSpec((TB, G), lambda i: (i, 0)),    # E (positive pairing)
            pl.BlockSpec((TB, G), lambda i: (i, 0)),    # E[argsort(idx)] (negative pairing)
            pl.BlockSpec((TB, H1), lambda i: (i, 0)),   # shared C @ t1_w[G:] contribution
            pl.BlockSpec((G, H1), lambda i: (0, 0)),    # t1_w rows acting on E
            pl.BlockSpec((1, H1), lambda i: (0, 0)),    # t1_b
            pl.BlockSpec((H1, H2), lambda i: (0, 0)),   # t2_w
            pl.BlockSpec((1, H2), lambda i: (0, 0)),    # t2_b
            pl.BlockSpec((1, H2), lambda i: (0, 0)),    # t3_w as a row
            pl.BlockSpec((1, 1), lambda i: (0, 0)),     # t3_b
        ],
        out_specs=(pl.BlockSpec((TB, 1), lambda i: (i, 0)),
                   pl.BlockSpec((TB, 1), lambda i: (i, 0))),
        scratch_shapes=[pltpu.VMEM((2 * TB, H1), jnp.float32)],
        compiler_params=pltpu.CompilerParams(
            dimension_semantics=("parallel",),
            vmem_limit_bytes=_VMEM_LIMIT),
    )(E, E_neg, h1c,
      w1_E.astype(bf16), t1_b.reshape(1, H1).astype(jnp.float32),
      t2_w.astype(bf16), t2_b.reshape(1, H2).astype(jnp.float32),
      t3_w.reshape(1, H2).astype(jnp.float32), t3_b.reshape(1, 1).astype(jnp.float32))
    return sp_pos, sp_neg


# ----------------------------------------------------------------------------
# Parameters + forward pass
# ----------------------------------------------------------------------------
def init_params(key, in_ch, conv_ch, out_ch, H, W, global_dim, t_hidden=512):
    local_feat = out_ch * H * W                      # local_encoder.output_size
    input_size = local_feat + global_dim             # nn.Linear(input_size, 512)

    def uni(k, shape, fan_in):
        s = 1.0 / math.sqrt(fan_in)
        return jax.random.uniform(k, shape, jnp.float32, -s, s)

    ks = jax.random.split(key, 12)
    p = {}
    # conv weights kept in PyTorch OIHW layout; re-laid out per call (tiny tensors)
    p["conv1_w"] = uni(ks[0], (conv_ch, in_ch, 3, 3), 9 * in_ch)
    p["conv1_b"] = uni(ks[1], (conv_ch,), 9 * in_ch)
    p["conv2_w"] = uni(ks[2], (out_ch, conv_ch, 3, 3), 9 * conv_ch)
    p["conv2_b"] = uni(ks[3], (out_ch,), 9 * conv_ch)
    p["fc_w"] = uni(ks[4], (local_feat, global_dim), local_feat)          # (in, out)
    p["fc_b"] = uni(ks[5], (global_dim,), local_feat)
    p["t1_w"] = uni(ks[6], (input_size, t_hidden), input_size)
    p["t1_b"] = uni(ks[7], (t_hidden,), input_size)
    p["t2_w"] = uni(ks[8], (t_hidden, t_hidden), t_hidden)
    p["t2_b"] = uni(ks[9], (t_hidden,), t_hidden)
    p["t3_w"] = uni(ks[10], (t_hidden, 1), t_hidden)
    p["t3_b"] = uni(ks[11], (1,), t_hidden)
    return p


def global_dim_forward(params, x_nchw, perm_key):
    B = x_nchw.shape[0]
    G = params["fc_w"].shape[1]

    # ---- local_encoder(X): fused conv -> ReLU -> conv -> NCHW flatten -------------
    # TODO(synk): the reference local_encoder returns (C, FC, output); it is not given
    # in the snippet, so C is taken to be the flattened conv features (= output).
    output = local_encoder(x_nchw, params["conv1_w"], params["conv1_b"],
                           params["conv2_w"], params["conv2_b"])        # (B, L) bf16

    # ---- E = fc_net(output) and h1c = output @ t1_w[G:] in ONE pass over output ----
    E, h1c = stream_c_fused(output, params["fc_w"], params["fc_b"],
                            params["t1_w"][G:])

    # ---- positive / negative pairs + T head + JSD softplus -------------------------
    # EC_neg rows are (E_i, C[idx]_i); the estimator only uses the mean over rows, so
    # pair (E[argsort(idx)]_j, C_j) instead: C streams once, in natural order.
    idx = jax.random.permutation(perm_key, B)          # torch.randperm(C.shape[0])
    E_neg = E[jnp.argsort(idx)]
    sp_pos, sp_neg = head_jsd(E, E_neg, h1c,
                              params["t1_w"][:G], params["t1_b"],
                              params["t2_w"], params["t2_b"],
                              params["t3_w"], params["t3_b"])

    # ---- mi_fn ('jsd') --------------------------------------------------------------
    # TODO(synk): mi_fn is not defined in the reference snippet; standard DIM JSD
    # estimator (Hjelm et al.) is used: E_pos[log2 - sp(-T)] - E_neg[sp(T) - log2].
    ln2 = math.log(2.0)
    return (ln2 - jnp.mean(sp_pos)) - (jnp.mean(sp_neg) - ln2)


# ----------------------------------------------------------------------------
# Pure-JAX reference (same bf16/f32 policy) for correctness checking
# ----------------------------------------------------------------------------
def reference_forward(params, x_nchw, perm_key):
    bf16, f32 = jnp.bfloat16, jnp.float32
    B, Cin, H, W = x_nchw.shape
    x = jnp.transpose(x_nchw, (0, 2, 3, 1)).astype(bf16)                # NHWC

    def conv(xin, w_oihw, b, relu):
        k = jnp.transpose(w_oihw, (2, 3, 1, 0)).astype(bf16)            # HWIO
        y = jax.lax.conv_general_dilated(
            xin, k, (1, 1), "SAME",
            dimension_numbers=("NHWC", "HWIO", "NHWC"),
            preferred_element_type=f32)
        y = y + b.reshape(1, 1, 1, -1)
        if relu:
            y = jnp.maximum(y, 0.0)
        return y.astype(bf16)

    h = conv(x, params["conv1_w"], params["conv1_b"], True)
    fmap = conv(h, params["conv2_w"], params["conv2_b"], False)
    output = jnp.transpose(fmap, (0, 3, 1, 2)).reshape(B, -1)           # NCHW flatten
    Cfeat = output

    def mm(a, w):
        return jnp.dot(a.astype(bf16), w.astype(bf16), preferred_element_type=f32)

    E = mm(output, params["fc_w"]) + params["fc_b"]                     # f32

    def T(e, c):
        ec = jnp.concatenate([e.astype(bf16), c.astype(bf16)], axis=1)
        h1 = jnp.maximum(mm(ec, params["t1_w"]) + params["t1_b"], 0.0)
        h2 = jnp.maximum(mm(h1, params["t2_w"]) + params["t2_b"], 0.0)
        return jnp.dot(h2, params["t3_w"].astype(f32)) + params["t3_b"]

    pos_T = T(E, Cfeat)
    idx = jax.random.permutation(perm_key, B)
    neg_T = T(E, Cfeat[idx])
    ln2 = math.log(2.0)
    return jnp.mean(ln2 - _softplus(-pos_T)) - jnp.mean(_softplus(neg_T) - ln2)


if __name__ == "__main__":
    B, Cin, H, W = 2, 4, 16, 16
    conv_ch, out_ch, global_dim = 8, 4, 32

    key = jax.random.PRNGKey(0)
    kx, kperm, kparams = jax.random.split(key, 3)
    x = jax.random.normal(kx, (B, Cin, H, W), jnp.float32)
    params = init_params(kparams, Cin, conv_ch, out_ch, H, W, global_dim)

    mi = jax.jit(global_dim_forward)(params, x, kperm)
    jax.block_until_ready(mi)
    mi_ref = jax.jit(reference_forward)(params, x, kperm)
    jax.block_until_ready(mi_ref)

    assert mi.shape == () and bool(jnp.isfinite(mi))
    assert abs(float(mi) - float(mi_ref)) < 1e-2, (float(mi), float(mi_ref))
    print("KERNEL_OK")
</pallas_src>

<mosaic_0001>
module attributes {stable_mosaic.version = 11 : i64} {
  func.func @_stream_c_kernel(%arg0: i32, %arg1: i32, %arg2: memref<2x1024xbf16, #tpu.memory_space<vmem>>, %arg3: memref<1024x512xbf16, #tpu.memory_space<vmem>>, %arg4: memref<1024x32xbf16, #tpu.memory_space<vmem>>, %arg5: memref<1x32xf32, #tpu.memory_space<vmem>>, %arg6: memref<2x32xf32, #tpu.memory_space<vmem>>, %arg7: memref<2x512xf32, #tpu.memory_space<vmem>>) attributes {dimension_semantics = [#tpu.dimension_semantics<parallel>, #tpu.dimension_semantics<arbitrary>], iteration_bounds = array<i64: 1, 1>, scalar_prefetch = 0 : i64, scratch_operands = 0 : i64, tpu.core_type = #tpu.core_type<tc>, window_params = [{transform_indices = @transform_0, window_bounds = array<i64: 2, 1024>}, {transform_indices = @transform_1, window_bounds = array<i64: 1024, 512>}, {transform_indices = @transform_2, window_bounds = array<i64: 1024, 32>}, {pipeline_mode = #tpu.pipeline_mode<synchronous>, transform_indices = @transform_3, window_bounds = array<i64: 1, 32>}, {transform_indices = @transform_4, window_bounds = array<i64: 2, 32>}, {transform_indices = @transform_5, window_bounds = array<i64: 2, 512>}]} {
    %c0_i32 = arith.constant 0 : i32
    %0 = arith.cmpi eq, %arg1, %c0_i32 : i32
    %1 = arith.extui %0 : i1 to i32
    %c0_i32_0 = arith.constant 0 : i32
    %2 = arith.cmpi ne, %1, %c0_i32_0 : i32
    scf.if %2 {
      %cst_15 = arith.constant 0.000000e+00 : f32
      %14 = vector.broadcast %cst_15 : f32 to vector<2x32xf32>
      %c0_16 = arith.constant 0 : index
      %c0_17 = arith.constant 0 : index
      %15 = vector.load %arg5[%c0_16, %c0_17] : memref<1x32xf32, #tpu.memory_space<vmem>>, vector<1x32xf32>
      %16 = vector.broadcast %15 : vector<1x32xf32> to vector<2x32xf32>
      %17 = arith.addf %14, %16 : vector<2x32xf32>
      %c0_18 = arith.constant 0 : index
      %c0_19 = arith.constant 0 : index
      %18 = vector.load %arg6[%c0_18, %c0_19] : memref<2x32xf32, #tpu.memory_space<vmem>>, vector<2x32xf32>
      tpu.vector_store %arg6[%c0_18, %c0_19], %17 {strides = array<i32>} : memref<2x32xf32, #tpu.memory_space<vmem>>, vector<2x32xf32>,
      %cst_20 = arith.constant 0.000000e+00 : f32
      %19 = vector.broadcast %cst_20 : f32 to vector<2x512xf32>
      %c0_21 = arith.constant 0 : index
      %c0_22 = arith.constant 0 : index
      %20 = vector.load %arg7[%c0_21, %c0_22] : memref<2x512xf32, #tpu.memory_space<vmem>>, vector<2x512xf32>
      tpu.vector_store %arg7[%c0_21, %c0_22], %19 {strides = array<i32>} : memref<2x512xf32, #tpu.memory_space<vmem>>, vector<2x512xf32>,
    } else {
    }
    %c0 = arith.constant 0 : index
    %c0_1 = arith.constant 0 : index
    %3 = vector.load %arg2[%c0, %c0_1] : memref<2x1024xbf16, #tpu.memory_space<vmem>>, vector<2x1024xbf16>
    %c0_2 = arith.constant 0 : index
    %c0_3 = arith.constant 0 : index
    %4 = vector.load %arg7[%c0_2, %c0_3] : memref<2x512xf32, #tpu.memory_space<vmem>>, vector<2x512xf32>
    %c0_4 = arith.constant 0 : index
    %c0_5 = arith.constant 0 : index
    %5 = vector.load %arg3[%c0_4, %c0_5] : memref<1024x512xbf16, #tpu.memory_space<vmem>>, vector<1024x512xbf16>
    %cst = arith.constant dense<0.000000e+00> : vector<2x512xf32>
    %6 = tpu.matmul %3, %5, %cst {dimension_numbers = #tpu.dot_dimension_numbers<[1], [0], [0], [1], [0, 0, 1, 1], [], []>} : vector<2x1024xbf16>, vector<1024x512xbf16>, vector<2x512xf32> -> vector<2x512xf32>
    %7 = arith.addf %4, %6 : vector<2x512xf32>
    %c0_6 = arith.constant 0 : index
    %c0_7 = arith.constant 0 : index
    %8 = vector.load %arg7[%c0_6, %c0_7] : memref<2x512xf32, #tpu.memory_space<vmem>>, vector<2x512xf32>
    tpu.vector_store %arg7[%c0_6, %c0_7], %7 {strides = array<i32>} : memref<2x512xf32, #tpu.memory_space<vmem>>, vector<2x512xf32>,
    %c0_8 = arith.constant 0 : index
    %c0_9 = arith.constant 0 : index
    %9 = vector.load %arg6[%c0_8, %c0_9] : memref<2x32xf32, #tpu.memory_space<vmem>>, vector<2x32xf32>
    %c0_10 = arith.constant 0 : index
    %c0_11 = arith.constant 0 : index
    %10 = vector.load %arg4[%c0_10, %c0_11] : memref<1024x32xbf16, #tpu.memory_space<vmem>>, vector<1024x32xbf16>
    %cst_12 = arith.constant dense<0.000000e+00> : vector<2x32xf32>
    %11 = tpu.matmul %3, %10, %cst_12 {dimension_numbers = #tpu.dot_dimension_numbers<[1], [0], [0], [1], [0, 0, 1, 1], [], []>} : vector<2x1024xbf16>, vector<1024x32xbf16>, vector<2x32xf32> -> vector<2x32xf32>
    %12 = arith.addf %9, %11 : vector<2x32xf32>
    %c0_13 = arith.constant 0 : index
    %c0_14 = arith.constant 0 : index
    %13 = vector.load %arg6[%c0_13, %c0_14] : memref<2x32xf32, #tpu.memory_space<vmem>>, vector<2x32xf32>
    tpu.vector_store %arg6[%c0_13, %c0_14], %12 {strides = array<i32>} : memref<2x32xf32, #tpu.memory_space<vmem>>, vector<2x32xf32>,
    return
  }
  func.func @transform_0(%arg0: i32, %arg1: i32) -> (i32, i32) {
    %c0_i32 = arith.constant 0 : i32
    return %arg0, %arg1 : i32, i32
  }
  func.func @transform_1(%arg0: i32, %arg1: i32) -> (i32, i32) {
    %c0_i32 = arith.constant 0 : i32
    %c0_i32_0 = arith.constant 0 : i32
    return %arg1, %c0_i32 : i32, i32
  }
  func.func @transform_2(%arg0: i32, %arg1: i32) -> (i32, i32) {
    %c0_i32 = arith.constant 0 : i32
    %c0_i32_0 = arith.constant 0 : i32
    return %arg1, %c0_i32 : i32, i32
  }
  func.func @transform_3(%arg0: i32, %arg1: i32) -> (i32, i32) {
    %c0_i32 = arith.constant 0 : i32
    %c0_i32_0 = arith.constant 0 : i32
    %c0_i32_1 = arith.constant 0 : i32
    return %c0_i32, %c0_i32_0 : i32, i32
  }
  func.func @transform_4(%arg0: i32, %arg1: i32) -> (i32, i32) {
    %c0_i32 = arith.constant 0 : i32
    %c0_i32_0 = arith.constant 0 : i32
    return %arg0, %c0_i32 : i32, i32
  }
  func.func @transform_5(%arg0: i32, %arg1: i32) -> (i32, i32) {
    %c0_i32 = arith.constant 0 : i32
    %c0_i32_0 = arith.constant 0 : i32
    return %arg0, %c0_i32 : i32, i32
  }
}

module attributes {stable_mosaic.version = 11 : i64} {
  func.func @_local_encoder_kernel(%arg0: i32, %arg1: memref<2x4x256xbf16, #tpu.memory_space<vmem>>, %arg2: memref<8x36xbf16, #tpu.memory_space<vmem>>, %arg3: memref<8x1xf32, #tpu.memory_space<vmem>>, %arg4: memref<4x72xbf16, #tpu.memory_space<vmem>>, %arg5: memref<4x1xf32, #tpu.memory_space<vmem>>, %arg6: memref<2x4x256xbf16, #tpu.memory_space<vmem>>, %arg7: memref<2x4x326xbf16, #tpu.memory_space<vmem>>, %arg8: memref<2x8x326xbf16, #tpu.memory_space<vmem>>) attributes {dimension_semantics = [#tpu.dimension_semantics<parallel>], iteration_bounds = array<i64: 1>, scalar_prefetch = 0 : i64, scratch_operands = 2 : i64, tpu.core_type = #tpu.core_type<tc>, window_params = [{transform_indices = @transform_0, window_bounds = array<i64: 2, 4, 256>}, {pipeline_mode = #tpu.pipeline_mode<synchronous>, transform_indices = @transform_1, window_bounds = array<i64: 8, 36>}, {pipeline_mode = #tpu.pipeline_mode<synchronous>, transform_indices = @transform_2, window_bounds = array<i64: 8, 1>}, {pipeline_mode = #tpu.pipeline_mode<synchronous>, transform_indices = @transform_3, window_bounds = array<i64: 4, 72>}, {pipeline_mode = #tpu.pipeline_mode<synchronous>, transform_indices = @transform_4, window_bounds = array<i64: 4, 1>}, {transform_indices = @transform_5, window_bounds = array<i64: 2, 4, 256>}]} {
    %cst = arith.constant 0.000000e+00 : bf16
    %0 = vector.broadcast %cst : bf16 to vector<2x4x326xbf16>
    %c0 = arith.constant 0 : index
    %c0_0 = arith.constant 0 : index
    %c0_1 = arith.constant 0 : index
    %1 = vector.load %arg7[%c0, %c0_0, %c0_1] : memref<2x4x326xbf16, #tpu.memory_space<vmem>>, vector<2x4x326xbf16>
    tpu.vector_store %arg7[%c0, %c0_0, %c0_1], %0 {strides = array<i32>} : memref<2x4x326xbf16, #tpu.memory_space<vmem>>, vector<2x4x326xbf16>,
    %cst_2 = arith.constant 0.000000e+00 : bf16
    %2 = vector.broadcast %cst_2 : bf16 to vector<2x8x326xbf16>
    %c0_3 = arith.constant 0 : index
    %c0_4 = arith.constant 0 : index
    %c0_5 = arith.constant 0 : index
    %3 = vector.load %arg8[%c0_3, %c0_4, %c0_5] : memref<2x8x326xbf16, #tpu.memory_space<vmem>>, vector<2x8x326xbf16>
    tpu.vector_store %arg8[%c0_3, %c0_4, %c0_5], %2 {strides = array<i32>} : memref<2x8x326xbf16, #tpu.memory_space<vmem>>, vector<2x8x326xbf16>,
    %c0_6 = arith.constant 0 : index
    %c0_7 = arith.constant 0 : index
    %c0_8 = arith.constant 0 : index
    %4 = vector.load %arg1[%c0_6, %c0_7, %c0_8] : memref<2x4x256xbf16, #tpu.memory_space<vmem>>, vector<2x4x16xbf16>
    %c0_9 = arith.constant 0 : index
    %c0_10 = arith.constant 0 : index
    %c19 = arith.constant 19 : index
    %5 = vector.load %arg7[%c0_9, %c0_10, %c19] : memref<2x4x326xbf16, #tpu.memory_space<vmem>>, vector<2x4x16xbf16>
    tpu.vector_store %arg7[%c0_9, %c0_10, %c19], %4 {strides = array<i32>} : memref<2x4x326xbf16, #tpu.memory_space<vmem>>, vector<2x4x16xbf16>,
    %c0_11 = arith.constant 0 : index
    %c0_12 = arith.constant 0 : index
    %c16 = arith.constant 16 : index
    %6 = vector.load %arg1[%c0_11, %c0_12, %c16] : memref<2x4x256xbf16, #tpu.memory_space<vmem>>, vector<2x4x16xbf16>
    %c0_13 = arith.constant 0 : index
    %c0_14 = arith.constant 0 : index
    %c37 = arith.constant 37 : index
    %7 = vector.load %arg7[%c0_13, %c0_14, %c37] : memref<2x4x326xbf16, #tpu.memory_space<vmem>>, vector<2x4x16xbf16>
    tpu.vector_store %arg7[%c0_13, %c0_14, %c37], %6 {strides = array<i32>} : memref<2x4x326xbf16, #tpu.memory_space<vmem>>, vector<2x4x16xbf16>,
    %c0_15 = arith.constant 0 : index
    %c0_16 = arith.constant 0 : index
    %c32 = arith.constant 32 : index
    %8 = vector.load %arg1[%c0_15, %c0_16, %c32] : memref<2x4x256xbf16, #tpu.memory_space<vmem>>, vector<2x4x16xbf16>
    %c0_17 = arith.constant 0 : index
    %c0_18 = arith.constant 0 : index
    %c55 = arith.constant 55 : index
    %9 = vector.load %arg7[%c0_17, %c0_18, %c55] : memref<2x4x326xbf16, #tpu.memory_space<vmem>>, vector<2x4x16xbf16>
    tpu.vector_store %arg7[%c0_17, %c0_18, %c55], %8 {strides = array<i32>} : memref<2x4x326xbf16, #tpu.memory_space<vmem>>, vector<2x4x16xbf16>,
    %c0_19 = arith.constant 0 : index
    %c0_20 = arith.constant 0 : index
    %c48 = arith.constant 48 : index
    %10 = vector.load %arg1[%c0_19, %c0_20, %c48] : memref<2x4x256xbf16, #tpu.memory_space<vmem>>, vector<2x4x16xbf16>
    %c0_21 = arith.constant 0 : index
    %c0_22 = arith.constant 0 : index
    %c73 = arith.constant 73 : index
    %11 = vector.load %arg7[%c0_21, %c0_22, %c73] : memref<2x4x326xbf16, #tpu.memory_space<vmem>>, vector<2x4x16xbf16>
    tpu.vector_store %arg7[%c0_21, %c0_22, %c73], %10 {strides = array<i32>} : memref<2x4x326xbf16, #tpu.memory_space<vmem>>, vector<2x4x16xbf16>,
    %c0_23 = arith.constant 0 : index
    %c0_24 = arith.constant 0 : index
    %c64 = arith.constant 64 : index
    %12 = vector.load %arg1[%c0_23, %c0_24, %c64] : memref<2x4x256xbf16, #tpu.memory_space<vmem>>, vector<2x4x16xbf16>
    %c0_25 = arith.constant 0 : index
    %c0_26 = arith.constant 0 : index
    %c91 = arith.constant 91 : index
    %13 = vector.load %arg7[%c0_25, %c0_26, %c91] : memref<2x4x326xbf16, #tpu.memory_space<vmem>>, vector<2x4x16xbf16>
    tpu.vector_store %arg7[%c0_25, %c0_26, %c91], %12 {strides = array<i32>} : memref<2x4x326xbf16, #tpu.memory_space<vmem>>, vector<2x4x16xbf16>,
    %c0_27 = arith.constant 0 : index
    %c0_28 = arith.constant 0 : index
    %c80 = arith.constant 80 : index
    %14 = vector.load %arg1[%c0_27, %c0_28, %c80] : memref<2x4x256xbf16, #tpu.memory_space<vmem>>, vector<2x4x16xbf16>
    %c0_29 = arith.constant 0 : index
    %c0_30 = arith.constant 0 : index
    %c109 = arith.constant 109 : index
    %15 = vector.load %arg7[%c0_29, %c0_30, %c109] : memref<2x4x326xbf16, #tpu.memory_space<vmem>>, vector<2x4x16xbf16>
    tpu.vector_store %arg7[%c0_29, %c0_30, %c109], %14 {strides = array<i32>} : memref<2x4x326xbf16, #tpu.memory_space<vmem>>, vector<2x4x16xbf16>,
    %c0_31 = arith.constant 0 : index
    %c0_32 = arith.constant 0 : index
    %c96 = arith.constant 96 : index
    %16 = vector.load %arg1[%c0_31, %c0_32, %c96] : memref<2x4x256xbf16, #tpu.memory_space<vmem>>, vector<2x4x16xbf16>
    %c0_33 = arith.constant 0 : index
    %c0_34 = arith.constant 0 : index
    %c127 = arith.constant 127 : index
    %17 = vector.load %arg7[%c0_33, %c0_34, %c127] : memref<2x4x326xbf16, #tpu.memory_space<vmem>>, vector<2x4x16xbf16>
    tpu.vector_store %arg7[%c0_33, %c0_34, %c127], %16 {strides = array<i32>} : memref<2x4x326xbf16, #tpu.memory_space<vmem>>, vector<2x4x16xbf16>,
    %c0_35 = arith.constant 0 : index
    %c0_36 = arith.constant 0 : index
    %c112 = arith.constant 112 : index
    %18 = vector.load %arg1[%c0_35, %c0_36, %c112] : memref<2x4x256xbf16, #tpu.memory_space<vmem>>, vector<2x4x16xbf16>
    %c0_37 = arith.constant 0 : index
    %c0_38 = arith.constant 0 : index
    %c145 = arith.constant 145 : index
    %19 = vector.load %arg7[%c0_37, %c0_38, %c145] : memref<2x4x326xbf16, #tpu.memory_space<vmem>>, vector<2x4x16xbf16>
    tpu.vector_store %arg7[%c0_37, %c0_38, %c145], %18 {strides = array<i32>} : memref<2x4x326xbf16, #tpu.memory_space<vmem>>, vector<2x4x16xbf16>,
    %c0_39 = arith.constant 0 : index
    %c0_40 = arith.constant 0 : index
    %c128 = arith.constant 128 : index
    %20 = vector.load %arg1[%c0_39, %c0_40, %c128] : memref<2x4x256xbf16, #tpu.memory_space<vmem>>, vector<2x4x16xbf16>
    %c0_41 = arith.constant 0 : index
    %c0_42 = arith.constant 0 : index
    %c163 = arith.constant 163 : index
    %21 = vector.load %arg7[%c0_41, %c0_42, %c163] : memref<2x4x326xbf16, #tpu.memory_space<vmem>>, vector<2x4x16xbf16>
    tpu.vector_store %arg7[%c0_41, %c0_42, %c163], %20 {strides = array<i32>} : memref<2x4x326xbf16, #tpu.memory_space<vmem>>, vector<2x4x16xbf16>,
    %c0_43 = arith.constant 0 : index
    %c0_44 = arith.constant 0 : index
    %c144 = arith.constant 144 : index
    %22 = vector.load %arg1[%c0_43, %c0_44, %c144] : memref<2x4x256xbf16, #tpu.memory_space<vmem>>, vector<2x4x16xbf16>
    %c0_45 = arith.constant 0 : index
    %c0_46 = arith.constant 0 : index
    %c181 = arith.constant 181 : index
    %23 = vector.load %arg7[%c0_45, %c0_46, %c181] : memref<2x4x326xbf16, #tpu.memory_space<vmem>>, vector<2x4x16xbf16>
    tpu.vector_store %arg7[%c0_45, %c0_46, %c181], %22 {strides = array<i32>} : memref<2x4x326xbf16, #tpu.memory_space<vmem>>, vector<2x4x16xbf16>,
    %c0_47 = arith.constant 0 : index
    %c0_48 = arith.constant 0 : index
    %c160 = arith.constant 160 : index
    %24 = vector.load %arg1[%c0_47, %c0_48, %c160] : memref<2x4x256xbf16, #tpu.memory_space<vmem>>, vector<2x4x16xbf16>
    %c0_49 = arith.constant 0 : index
    %c0_50 = arith.constant 0 : index
    %c199 = arith.constant 199 : index
    %25 = vector.load %arg7[%c0_49, %c0_50, %c199] : memref<2x4x326xbf16, #tpu.memory_space<vmem>>, vector<2x4x16xbf16>
    tpu.vector_store %arg7[%c0_49, %c0_50, %c199], %24 {strides = array<i32>} : memref<2x4x326xbf16, #tpu.memory_space<vmem>>, vector<2x4x16xbf16>,
    %c0_51 = arith.constant 0 : index
    %c0_52 = arith.constant 0 : index
    %c176 = arith.constant 176 : index
    %26 = vector.load %arg1[%c0_51, %c0_52, %c176] : memref<2x4x256xbf16, #tpu.memory_space<vmem>>, vector<2x4x16xbf16>
    %c0_53 = arith.constant 0 : index
    %c0_54 = arith.constant 0 : index
    %c217 = arith.constant 217 : index
    %27 = vector.load %arg7[%c0_53, %c0_54, %c217] : memref<2x4x326xbf16, #tpu.memory_space<vmem>>, vector<2x4x16xbf16>
    tpu.vector_store %arg7[%c0_53, %c0_54, %c217], %26 {strides = array<i32>} : memref<2x4x326xbf16, #tpu.memory_space<vmem>>, vector<2x4x16xbf16>,
    %c0_55 = arith.constant 0 : index
    %c0_56 = arith.constant 0 : index
    %c192 = arith.constant 192 : index
    %28 = vector.load %arg1[%c0_55, %c0_56, %c192] : memref<2x4x256xbf16, #tpu.memory_space<vmem>>, vector<2x4x16xbf16>
    %c0_57 = arith.constant 0 : index
    %c0_58 = arith.constant 0 : index
    %c235 = arith.constant 235 : index
    %29 = vector.load %arg7[%c0_57, %c0_58, %c235] : memref<2x4x326xbf16, #tpu.memory_space<vmem>>, vector<2x4x16xbf16>
    tpu.vector_store %arg7[%c0_57, %c0_58, %c235], %28 {strides = array<i32>} : memref<2x4x326xbf16, #tpu.memory_space<vmem>>, vector<2x4x16xbf16>,
    %c0_59 = arith.constant 0 : index
    %c0_60 = arith.constant 0 : index
    %c208 = arith.constant 208 : index
    %30 = vector.load %arg1[%c0_59, %c0_60, %c208] : memref<2x4x256xbf16, #tpu.memory_space<vmem>>, vector<2x4x16xbf16>
    %c0_61 = arith.constant 0 : index
    %c0_62 = arith.constant 0 : index
    %c253 = arith.constant 253 : index
    %31 = vector.load %arg7[%c0_61, %c0_62, %c253] : memref<2x4x326xbf16, #tpu.memory_space<vmem>>, vector<2x4x16xbf16>
    tpu.vector_store %arg7[%c0_61, %c0_62, %c253], %30 {strides = array<i32>} : memref<2x4x326xbf16, #tpu.memory_space<vmem>>, vector<2x4x16xbf16>,
    %c0_63 = arith.constant 0 : index
    %c0_64 = arith.constant 0 : index
    %c224 = arith.constant 224 : index
    %32 = vector.load %arg1[%c0_63, %c0_64, %c224] : memref<2x4x256xbf16, #tpu.memory_space<vmem>>, vector<2x4x16xbf16>
    %c0_65 = arith.constant 0 : index
    %c0_66 = arith.constant 0 : index
    %c271 = arith.constant 271 : index
    %33 = vector.load %arg7[%c0_65, %c0_66, %c271] : memref<2x4x326xbf16, #tpu.memory_space<vmem>>, vector<2x4x16xbf16>
    tpu.vector_store %arg7[%c0_65, %c0_66, %c271], %32 {strides = array<i32>} : memref<2x4x326xbf16, #tpu.memory_space<vmem>>, vector<2x4x16xbf16>,
    %c0_67 = arith.constant 0 : index
    %c0_68 = arith.constant 0 : index
    %c240 = arith.constant 240 : index
    %34 = vector.load %arg1[%c0_67, %c0_68, %c240] : memref<2x4x256xbf16, #tpu.memory_space<vmem>>, vector<2x4x16xbf16>
    %c0_69 = arith.constant 0 : index
    %c0_70 = arith.constant 0 : index
    %c289 = arith.constant 289 : index
    %35 = vector.load %arg7[%c0_69, %c0_70, %c289] : memref<2x4x326xbf16, #tpu.memory_space<vmem>>, vector<2x4x16xbf16>
    tpu.vector_store %arg7[%c0_69, %c0_70, %c289], %34 {strides = array<i32>} : memref<2x4x326xbf16, #tpu.memory_space<vmem>>, vector<2x4x16xbf16>,
    %c0_71 = arith.constant 0 : index
    %c0_72 = arith.constant 0 : index
    %36 = vector.load %arg2[%c0_71, %c0_72] : memref<8x36xbf16, #tpu.memory_space<vmem>>, vector<8x36xbf16>
    %c0_73 = arith.constant 0 : index
    %c0_74 = arith.constant 0 : index
    %37 = vector.load %arg4[%c0_73, %c0_74] : memref<4x72xbf16, #tpu.memory_space<vmem>>, vector<4x72xbf16>
    %c0_75 = arith.constant 0 : index
    %c0_76 = arith.constant 0 : index
    %38 = vector.load %arg3[%c0_75, %c0_76] : memref<8x1xf32, #tpu.memory_space<vmem>>, vector<8x1xf32>
    %c0_77 = arith.constant 0 : index
    %c0_78 = arith.constant 0 : index
    %39 = vector.load %arg5[%c0_77, %c0_78] : memref<4x1xf32, #tpu.memory_space<vmem>>, vector<4x1xf32>
    %c0_79 = arith.constant 0 : index
    %c0_80 = arith.constant 0 : index
    %c0_81 = arith.constant 0 : index
    %40 = vector.load %arg7[%c0_79, %c0_80, %c0_81] : memref<2x4x326xbf16, #tpu.memory_space<vmem>>, vector<1x4x326xbf16>
    %41 = vector.shape_cast %40 : vector<1x4x326xbf16> to vector<4x326xbf16>
    %cst_82 = arith.constant 0.000000e+00 : f32
    %42 = vector.broadcast %cst_82 : f32 to vector<8x288xf32>
    %43 = vector.extract_strided_slice %36 {offsets = [0, 0], sizes = [8, 4], strides = [1, 1]} : vector<8x36xbf16> to vector<8x4xbf16>
    %44 = vector.extract_strided_slice %41 {offsets = [0, 0], sizes = [4, 288], strides = [1, 1]} : vector<4x326xbf16> to vector<4x288xbf16>
    %cst_83 = arith.constant dense<0.000000e+00> : vector<8x288xf32>
    %45 = tpu.matmul %43, %44, %cst_83 {dimension_numbers = #tpu.dot_dimension_numbers<[1], [0], [0], [1], [0, 0, 1, 1], [], []>} : vector<8x4xbf16>, vector<4x288xbf16>, vector<8x288xf32> -> vector<8x288xf32>
    %46 = arith.addf %42, %45 : vector<8x288xf32>
    %47 = vector.extract_strided_slice %36 {offsets = [0, 4], sizes = [8, 4], strides = [1, 1]} : vector<8x36xbf16> to vector<8x4xbf16>
    %48 = vector.extract_strided_slice %41 {offsets = [0, 1], sizes = [4, 288], strides = [1, 1]} : vector<4x326xbf16> to vector<4x288xbf16>
    %cst_84 = arith.constant dense<0.000000e+00> : vector<8x288xf32>
    %49 = tpu.matmul %47, %48, %cst_84 {dimension_numbers = #tpu.dot_dimension_numbers<[1], [0], [0], [1], [0, 0, 1, 1], [], []>} : vector<8x4xbf16>, vector<4x288xbf16>, vector<8x288xf32> -> vector<8x288xf32>
    %50 = arith.addf %46, %49 : vector<8x288xf32>
    %51 = vector.extract_strided_slice %36 {offsets = [0, 8], sizes = [8, 4], strides = [1, 1]} : vector<8x36xbf16> to vector<8x4xbf16>
    %52 = vector.extract_strided_slice %41 {offsets = [0, 2], sizes = [4, 288], strides = [1, 1]} : vector<4x326xbf16> to vector<4x288xbf16>
    %cst_85 = arith.constant dense<0.000000e+00> : vector<8x288xf32>
    %53 = tpu.matmul %51, %52, %cst_85 {dimension_numbers = #tpu.dot_dimension_numbers<[1], [0], [0], [1], [0, 0, 1, 1], [], []>} : vector<8x4xbf16>, vector<4x288xbf16>, vector<8x288xf32> -> vector<8x288xf32>
    %54 = arith.addf %50, %53 : vector<8x288xf32>
    %55 = vector.extract_strided_slice %36 {offsets = [0, 12], sizes = [8, 4], strides = [1, 1]} : vector<8x36xbf16> to vector<8x4xbf16>
    %56 = vector.extract_strided_slice %41 {offsets = [0, 18], sizes = [4, 288], strides = [1, 1]} : vector<4x326xbf16> to vector<4x288xbf16>
    %cst_86 = arith.constant dense<0.000000e+00> : vector<8x288xf32>
    %57 = tpu.matmul %55, %56, %cst_86 {dimension_numbers = #tpu.dot_dimension_numbers<[1], [0], [0], [1], [0, 0, 1, 1], [], []>} : vector<8x4xbf16>, vector<4x288xbf16>, vector<8x288xf32> -> vector<8x288xf32>
    %58 = arith.addf %54, %57 : vector<8x288xf32>
    %59 = vector.extract_strided_slice %36 {offsets = [0, 16], sizes = [8, 4], strides = [1, 1]} : vector<8x36xbf16> to vector<8x4xbf16>
    %60 = vector.extract_strided_slice %41 {offsets = [0, 19], sizes = [4, 288], strides = [1, 1]} : vector<4x326xbf16> to vector<4x288xbf16>
    %cst_87 = arith.constant dense<0.000000e+00> : vector<8x288xf32>
    %61 = tpu.matmul %59, %60, %cst_87 {dimension_numbers = #tpu.dot_dimension_numbers<[1], [0], [0], [1], [0, 0, 1, 1], [], []>} : vector<8x4xbf16>, vector<4x288xbf16>, vector<8x288xf32> -> vector<8x288xf32>
    %62 = arith.addf %58, %61 : vector<8x288xf32>
    %63 = vector.extract_strided_slice %36 {offsets = [0, 20], sizes = [8, 4], strides = [1, 1]} : vector<8x36xbf16> to vector<8x4xbf16>
    %64 = vector.extract_strided_slice %41 {offsets = [0, 20], sizes = [4, 288], strides = [1, 1]} : vector<4x326xbf16> to vector<4x288xbf16>
    %cst_88 = arith.constant dense<0.000000e+00> : vector<8x288xf32>
    %65 = tpu.matmul %63, %64, %cst_88 {dimension_numbers = #tpu.dot_dimension_numbers<[1], [0], [0], [1], [0, 0, 1, 1], [], []>} : vector<8x4xbf16>, vector<4x288xbf16>, vector<8x288xf32> -> vector<8x288xf32>
    %66 = arith.addf %62, %65 : vector<8x288xf32>
    %67 = vector.extract_strided_slice %36 {offsets = [0, 24], sizes = [8, 4], strides = [1, 1]} : vector<8x36xbf16> to vector<8x4xbf16>
    %68 = vector.extract_strided_slice %41 {offsets = [0, 36], sizes = [4, 288], strides = [1, 1]} : vector<4x326xbf16> to vector<4x288xbf16>
    %cst_89 = arith.constant dense<0.000000e+00> : vector<8x288xf32>
    %69 = tpu.matmul %67, %68, %cst_89 {dimension_numbers = #tpu.dot_dimension_numbers<[1], [0], [0], [1], [0, 0, 1, 1], [], []>} : vector<8x4xbf16>, vector<4x288xbf16>, vector<8x288xf32> -> vector<8x288xf32>
    %70 = arith.addf %66, %69 : vector<8x288xf32>
    %71 = vector.extract_strided_slice %36 {offsets = [0, 28], sizes = [8, 4], strides = [1, 1]} : vector<8x36xbf16> to vector<8x4xbf16>
    %72 = vector.extract_strided_slice %41 {offsets = [0, 37], sizes = [4, 288], strides = [1, 1]} : vector<4x326xbf16> to vector<4x288xbf16>
    %cst_90 = arith.constant dense<0.000000e+00> : vector<8x288xf32>
    %73 = tpu.matmul %71, %72, %cst_90 {dimension_numbers = #tpu.dot_dimension_numbers<[1], [0], [0], [1], [0, 0, 1, 1], [], []>} : vector<8x4xbf16>, vector<4x288xbf16>, vector<8x288xf32> -> vector<8x288xf32>
    %74 = arith.addf %70, %73 : vector<8x288xf32>
    %75 = vector.extract_strided_slice %36 {offsets = [0, 32], sizes = [8, 4], strides = [1, 1]} : vector<8x36xbf16> to vector<8x4xbf16>
    %76 = vector.extract_strided_slice %41 {offsets = [0, 38], sizes = [4, 288], strides = [1, 1]} : vector<4x326xbf16> to vector<4x288xbf16>
    %cst_91 = arith.constant dense<0.000000e+00> : vector<8x288xf32>
    %77 = tpu.matmul %75, %76, %cst_91 {dimension_numbers = #tpu.dot_dimension_numbers<[1], [0], [0], [1], [0, 0, 1, 1], [], []>} : vector<8x4xbf16>, vector<4x288xbf16>, vector<8x288xf32> -> vector<8x288xf32>
    %78 = arith.addf %74, %77 : vector<8x288xf32>
    %79 = vector.broadcast %38 : vector<8x1xf32> to vector<8x288xf32>
    %80 = arith.addf %78, %79 : vector<8x288xf32>
    %cst_92 = arith.constant 0.000000e+00 : f32
    %81 = vector.broadcast %cst_92 : f32 to vector<8x288xf32>
    %82 = arith.maximumf %80, %81 : vector<8x288xf32>
    %83 = arith.truncf %82 : vector<8x288xf32> to vector<8x288xbf16>
    %84 = vector.extract_strided_slice %83 {offsets = [0, 0], sizes = [8, 16], strides = [1, 1]} : vector<8x288xbf16> to vector<8x16xbf16>
    %c0_93 = arith.constant 0 : index
    %c0_94 = arith.constant 0 : index
    %c19_95 = arith.constant 19 : index
    %85 = vector.load %arg8[%c0_93, %c0_94, %c19_95] : memref<2x8x326xbf16, #tpu.memory_space<vmem>>, vector<1x8x16xbf16>
    %86 = vector.shape_cast %85 : vector<1x8x16xbf16> to vector<8x16xbf16>
    %87 = vector.shape_cast %84 : vector<8x16xbf16> to vector<1x8x16xbf16>
    tpu.vector_store %arg8[%c0_93, %c0_94, %c19_95], %87 {strides = array<i32>} : memref<2x8x326xbf16, #tpu.memory_space<vmem>>, vector<1x8x16xbf16>,
    %88 = vector.extract_strided_slice %83 {offsets = [0, 18], sizes = [8, 16], strides = [1, 1]} : vector<8x288xbf16> to vector<8x16xbf16>
    %c0_96 = arith.constant 0 : index
    %c0_97 = arith.constant 0 : index
    %c37_98 = arith.constant 37 : index
    %89 = vector.load %arg8[%c0_96, %c0_97, %c37_98] : memref<2x8x326xbf16, #tpu.memory_space<vmem>>, vector<1x8x16xbf16>
    %90 = vector.shape_cast %89 : vector<1x8x16xbf16> to vector<8x16xbf16>
    %91 = vector.shape_cast %88 : vector<8x16xbf16> to vector<1x8x16xbf16>
    tpu.vector_store %arg8[%c0_96, %c0_97, %c37_98], %91 {strides = array<i32>} : memref<2x8x326xbf16, #tpu.memory_space<vmem>>, vector<1x8x16xbf16>,
    %92 = vector.extract_strided_slice %83 {offsets = [0, 36], sizes = [8, 16], strides = [1, 1]} : vector<8x288xbf16> to vector<8x16xbf16>
    %c0_99 = arith.constant 0 : index
    %c0_100 = arith.constant 0 : index
    %c55_101 = arith.constant 55 : index
    %93 = vector.load %arg8[%c0_99, %c0_100, %c55_101] : memref<2x8x326xbf16, #tpu.memory_space<vmem>>, vector<1x8x16xbf16>
    %94 = vector.shape_cast %93 : vector<1x8x16xbf16> to vector<8x16xbf16>
    %95 = vector.shape_cast %92 : vector<8x16xbf16> to vector<1x8x16xbf16>
    tpu.vector_store %arg8[%c0_99, %c0_100, %c55_101], %95 {strides = array<i32>} : memref<2x8x326xbf16, #tpu.memory_space<vmem>>, vector<1x8x16xbf16>,
    %96 = vector.extract_strided_slice %83 {offsets = [0, 54], sizes = [8, 16], strides = [1, 1]} : vector<8x288xbf16> to vector<8x16xbf16>
    %c0_102 = arith.constant 0 : index
    %c0_103 = arith.constant 0 : index
    %c73_104 = arith.constant 73 : index
    %97 = vector.load %arg8[%c0_102, %c0_103, %c73_104] : memref<2x8x326xbf16, #tpu.memory_space<vmem>>, vector<1x8x16xbf16>
    %98 = vector.shape_cast %97 : vector<1x8x16xbf16> to vector<8x16xbf16>
    %99 = vector.shape_cast %96 : vector<8x16xbf16> to vector<1x8x16xbf16>
    tpu.vector_store %arg8[%c0_102, %c0_103, %c73_104], %99 {strides = array<i32>} : memref<2x8x326xbf16, #tpu.memory_space<vmem>>, vector<1x8x16xbf16>,
    %100 = vector.extract_strided_slice %83 {offsets = [0, 72], sizes = [8, 16], strides = [1, 1]} : vector<8x288xbf16> to vector<8x16xbf16>
    %c0_105 = arith.constant 0 : index
    %c0_106 = arith.constant 0 : index
    %c91_107 = arith.constant 91 : index
    %101 = vector.load %arg8[%c0_105, %c0_106, %c91_107] : memref<2x8x326xbf16, #tpu.memory_space<vmem>>, vector<1x8x16xbf16>
    %102 = vector.shape_cast %101 : vector<1x8x16xbf16> to vector<8x16xbf16>
    %103 = vector.shape_cast %100 : vector<8x16xbf16> to vector<1x8x16xbf16>
    tpu.vector_store %arg8[%c0_105, %c0_106, %c91_107], %103 {strides = array<i32>} : memref<2x8x326xbf16, #tpu.memory_space<vmem>>, vector<1x8x16xbf16>,
    %104 = vector.extract_strided_slice %83 {offsets = [0, 90], sizes = [8, 16], strides = [1, 1]} : vector<8x288xbf16> to vector<8x16xbf16>
    %c0_108 = arith.constant 0 : index
    %c0_109 = arith.constant 0 : index
    %c109_110 = arith.constant 109 : index
    %105 = vector.load %arg8[%c0_108, %c0_109, %c109_110] : memref<2x8x326xbf16, #tpu.memory_space<vmem>>, vector<1x8x16xbf16>
    %106 = vector.shape_cast %105 : vector<1x8x16xbf16> to vector<8x16xbf16>
    %107 = vector.shape_cast %104 : vector<8x16xbf16> to vector<1x8x16xbf16>
    tpu.vector_store %arg8[%c0_108, %c0_109, %c109_110], %107 {strides = array<i32>} : memref<2x8x326xbf16, #tpu.memory_space<vmem>>, vector<1x8x16xbf16>,
    %108 = vector.extract_strided_slice %83 {offsets = [0, 108], sizes = [8, 16], strides = [1, 1]} : vector<8x288xbf16> to vector<8x16xbf16>
    %c0_111 = arith.constant 0 : index
    %c0_112 = arith.constant 0 : index
    %c127_113 = arith.constant 127 : index
    %109 = vector.load %arg8[%c0_111, %c0_112, %c127_113] : memref<2x8x326xbf16, #tpu.memory_space<vmem>>, vector<1x8x16xbf16>
    %110 = vector.shape_cast %109 : vector<1x8x16xbf16> to vector<8x16xbf16>
    %111 = vector.shape_cast %108 : vector<8x16xbf16> to vector<1x8x16xbf16>
    tpu.vector_store %arg8[%c0_111, %c0_112, %c127_113], %111 {strides = array<i32>} : memref<2x8x326xbf16, #tpu.memory_space<vmem>>, vector<1x8x16xbf16>,
    %112 = vector.extract_strided_slice %83 {offsets = [0, 126], sizes = [8, 16], strides = [1, 1]} : vector<8x288xbf16> to vector<8x16xbf16>
    %c0_114 = arith.constant 0 : index
    %c0_115 = arith.constant 0 : index
    %c145_116 = arith.constant 145 : index
    %113 = vector.load %arg8[%c0_114, %c0_115, %c145_116] : memref<2x8x326xbf16, #tpu.memory_space<vmem>>, vector<1x8x16xbf16>
    %114 = vector.shape_cast %113 : vector<1x8x16xbf16> to vector<8x16xbf16>
    %115 = vector.shape_cast %112 : vector<8x16xbf16> to vector<1x8x16xbf16>
    tpu.vector_store %arg8[%c0_114, %c0_115, %c145_116], %115 {strides = array<i32>} : memref<2x8x326xbf16, #tpu.memory_space<vmem>>, vector<1x8x16xbf16>,
    %116 = vector.extract_strided_slice %83 {offsets = [0, 144], sizes = [8, 16], strides = [1, 1]} : vector<8x288xbf16> to vector<8x16xbf16>
    %c0_117 = arith.constant 0 : index
    %c0_118 = arith.constant 0 : index
    %c163_119 = arith.constant 163 : index
    %117 = vector.load %arg8[%c0_117, %c0_118, %c163_119] : memref<2x8x326xbf16, #tpu.memory_space<vmem>>, vector<1x8x16xbf16>
    %118 = vector.shape_cast %117 : vector<1x8x16xbf16> to vector<8x16xbf16>
    %119 = vector.shape_cast %116 : vector<8x16xbf16> to vector<1x8x16xbf16>
    tpu.vector_store %arg8[%c0_117, %c0_118, %c163_119], %119 {strides = array<i32>} : memref<2x8x326xbf16, #tpu.memory_space<vmem>>, vector<1x8x16xbf16>,
    %120 = vector.extract_strided_slice %83 {offsets = [0, 162], sizes = [8, 16], strides = [1, 1]} : vector<8x288xbf16> to vector<8x16xbf16>
    %c0_120 = arith.constant 0 : index
    %c0_121 = arith.constant 0 : index
    %c181_122 = arith.constant 181 : index
    %121 = vector.load %arg8[%c0_120, %c0_121, %c181_122] : memref<2x8x326xbf16, #tpu.memory_space<vmem>>, vector<1x8x16xbf16>
    %122 = vector.shape_cast %121 : vector<1x8x16xbf16> to vector<8x16xbf16>
    %123 = vector.shape_cast %120 : vector<8x16xbf16> to vector<1x8x16xbf16>
    tpu.vector_store %arg8[%c0_120, %c0_121, %c181_122], %123 {strides = array<i32>} : memref<2x8x326xbf16, #tpu.memory_space<vmem>>, vector<1x8x16xbf16>,
    %124 = vector.extract_strided_slice %83 {offsets = [0, 180], sizes = [8, 16], strides = [1, 1]} : vector<8x288xbf16> to vector<8x16xbf16>
    %c0_123 = arith.constant 0 : index
    %c0_124 = arith.constant 0 : index
    %c199_125 = arith.constant 199 : index
    %125 = vector.load %arg8[%c0_123, %c0_124, %c199_125] : memref<2x8x326xbf16, #tpu.memory_space<vmem>>, vector<1x8x16xbf16>
    %126 = vector.shape_cast %125 : vector<1x8x16xbf16> to vector<8x16xbf16>
    %127 = vector.shape_cast %124 : vector<8x16xbf16> to vector<1x8x16xbf16>
    tpu.vector_store %arg8[%c0_123, %c0_124, %c199_125], %127 {strides = array<i32>} : memref<2x8x326xbf16, #tpu.memory_space<vmem>>, vector<1x8x16xbf16>,
    %128 = vector.extract_strided_slice %83 {offsets = [0, 198], sizes = [8, 16], strides = [1, 1]} : vector<8x288xbf16> to vector<8x16xbf16>
    %c0_126 = arith.constant 0 : index
    %c0_127 = arith.constant 0 : index
    %c217_128 = arith.constant 217 : index
    %129 = vector.load %arg8[%c0_126, %c0_127, %c217_128] : memref<2x8x326xbf16, #tpu.memory_space<vmem>>, vector<1x8x16xbf16>
    %130 = vector.shape_cast %129 : vector<1x8x16xbf16> to vector<8x16xbf16>
    %131 = vector.shape_cast %128 : vector<8x16xbf16> to vector<1x8x16xbf16>
    tpu.vector_store %arg8[%c0_126, %c0_127, %c217_128], %131 {strides = array<i32>} : memref<2x8x326xbf16, #tpu.memory_space<vmem>>, vector<1x8x16xbf16>,
    %132 = vector.extract_strided_slice %83 {offsets = [0, 216], sizes = [8, 16], strides = [1, 1]} : vector<8x288xbf16> to vector<8x16xbf16>
    %c0_129 = arith.constant 0 : index
    %c0_130 = arith.constant 0 : index
    %c235_131 = arith.constant 235 : index
    %133 = vector.load %arg8[%c0_129, %c0_130, %c235_131] : memref<2x8x326xbf16, #tpu.memory_space<vmem>>, vector<1x8x16xbf16>
    %134 = vector.shape_cast %133 : vector<1x8x16xbf16> to vector<8x16xbf16>
    %135 = vector.shape_cast %132 : vector<8x16xbf16> to vector<1x8x16xbf16>
    tpu.vector_store %arg8[%c0_129, %c0_130, %c235_131], %135 {strides = array<i32>} : memref<2x8x326xbf16, #tpu.memory_space<vmem>>, vector<1x8x16xbf16>,
    %136 = vector.extract_strided_slice %83 {offsets = [0, 234], sizes = [8, 16], strides = [1, 1]} : vector<8x288xbf16> to vector<8x16xbf16>
    %c0_132 = arith.constant 0 : index
    %c0_133 = arith.constant 0 : index
    %c253_134 = arith.constant 253 : index
    %137 = vector.load %arg8[%c0_132, %c0_133, %c253_134] : memref<2x8x326xbf16, #tpu.memory_space<vmem>>, vector<1x8x16xbf16>
    %138 = vector.shape_cast %137 : vector<1x8x16xbf16> to vector<8x16xbf16>
    %139 = vector.shape_cast %136 : vector<8x16xbf16> to vector<1x8x16xbf16>
    tpu.vector_store %arg8[%c0_132, %c0_133, %c253_134], %139 {strides = array<i32>} : memref<2x8x326xbf16, #tpu.memory_space<vmem>>, vector<1x8x16xbf16>,
    %140 = vector.extract_strided_slice %83 {offsets = [0, 252], sizes = [8, 16], strides = [1, 1]} : vector<8x288xbf16> to vector<8x16xbf16>
    %c0_135 = arith.constant 0 : index
    %c0_136 = arith.constant 0 : index
    %c271_137 = arith.constant 271 : index
    %141 = vector.load %arg8[%c0_135, %c0_136, %c271_137] : memref<2x8x326xbf16, #tpu.memory_space<vmem>>, vector<1x8x16xbf16>
    %142 = vector.shape_cast %141 : vector<1x8x16xbf16> to vector<8x16xbf16>
    %143 = vector.shape_cast %140 : vector<8x16xbf16> to vector<1x8x16xbf16>
    tpu.vector_store %arg8[%c0_135, %c0_136, %c271_137], %143 {strides = array<i32>} : memref<2x8x326xbf16, #tpu.memory_space<vmem>>, vector<1x8x16xbf16>,
    %144 = vector.extract_strided_slice %83 {offsets = [0, 270], sizes = [8, 16], strides = [1, 1]} : vector<8x288xbf16> to vector<8x16xbf16>
    %c0_138 = arith.constant 0 : index
    %c0_139 = arith.constant 0 : index
    %c289_140 = arith.constant 289 : index
    %145 = vector.load %arg8[%c0_138, %c0_139, %c289_140] : memref<2x8x326xbf16, #tpu.memory_space<vmem>>, vector<1x8x16xbf16>
    %146 = vector.shape_cast %145 : vector<1x8x16xbf16> to vector<8x16xbf16>
    %147 = vector.shape_cast %144 : vector<8x16xbf16> to vector<1x8x16xbf16>
    tpu.vector_store %arg8[%c0_138, %c0_139, %c289_140], %147 {strides = array<i32>} : memref<2x8x326xbf16, #tpu.memory_space<vmem>>, vector<1x8x16xbf16>,
    %c1 = arith.constant 1 : index
    %c0_141 = arith.constant 0 : index
    %c0_142 = arith.constant 0 : index
    %148 = vector.load %arg7[%c1, %c0_141, %c0_142] : memref<2x4x326xbf16, #tpu.memory_space<vmem>>, vector<1x4x326xbf16>
    %149 = vector.shape_cast %148 : vector<1x4x326xbf16> to vector<4x326xbf16>
    %cst_143 = arith.constant 0.000000e+00 : f32
    %150 = vector.broadcast %cst_143 : f32 to vector<8x288xf32>
    %151 = vector.extract_strided_slice %36 {offsets = [0, 0], sizes = [8, 4], strides = [1, 1]} : vector<8x36xbf16> to vector<8x4xbf16>
    %152 = vector.extract_strided_slice %149 {offsets = [0, 0], sizes = [4, 288], strides = [1, 1]} : vector<4x326xbf16> to vector<4x288xbf16>
    %cst_144 = arith.constant dense<0.000000e+00> : vector<8x288xf32>
    %153 = tpu.matmul %151, %152, %cst_144 {dimension_numbers = #tpu.dot_dimension_numbers<[1], [0], [0], [1], [0, 0, 1, 1], [], []>} : vector<8x4xbf16>, vector<4x288xbf16>, vector<8x288xf32> -> vector<8x288xf32>
    %154 = arith.addf %150, %153 : vector<8x288xf32>
    %155 = vector.extract_strided_slice %36 {offsets = [0, 4], sizes = [8, 4], strides = [1, 1]} : vector<8x36xbf16> to vector<8x4xbf16>
    %156 = vector.extract_strided_slice %149 {offsets = [0, 1], sizes = [4, 288], strides = [1, 1]} : vector<4x326xbf16> to vector<4x288xbf16>
    %cst_145 = arith.constant dense<0.000000e+00> : vector<8x288xf32>
    %157 = tpu.matmul %155, %156, %cst_145 {dimension_numbers = #tpu.dot_dimension_numbers<[1], [0], [0], [1], [0, 0, 1, 1], [], []>} : vector<8x4xbf16>, vector<4x288xbf16>, vector<8x288xf32> -> vector<8x288xf32>
    %158 = arith.addf %154, %157 : vector<8x288xf32>
    %159 = vector.extract_strided_slice %36 {offsets = [0, 8], sizes = [8, 4], strides = [1, 1]} : vector<8x36xbf16> to vector<8x4xbf16>
    %160 = vector.extract_strided_slice %149 {offsets = [0, 2], sizes = [4, 288], strides = [1, 1]} : vector<4x326xbf16> to vector<4x288xbf16>
    %cst_146 = arith.constant dense<0.000000e+00> : vector<8x288xf32>
    %161 = tpu.matmul %159, %160, %cst_146 {dimension_numbers = #tpu.dot_dimension_numbers<[1], [0], [0], [1], [0, 0, 1, 1], [], []>} : vector<8x4xbf16>, vector<4x288xbf16>, vector<8x288xf32> -> vector<8x288xf32>
    %162 = arith.addf %158, %161 : vector<8x288xf32>
    %163 = vector.extract_strided_slice %36 {offsets = [0, 12], sizes = [8, 4], strides = [1, 1]} : vector<8x36xbf16> to vector<8x4xbf16>
    %164 = vector.extract_strided_slice %149 {offsets = [0, 18], sizes = [4, 288], strides = [1, 1]} : vector<4x326xbf16> to vector<4x288xbf16>
    %cst_147 = arith.constant dense<0.000000e+00> : vector<8x288xf32>
    %165 = tpu.matmul %163, %164, %cst_147 {dimension_numbers = #tpu.dot_dimension_numbers<[1], [0], [0], [1], [0, 0, 1, 1], [], []>} : vector<8x4xbf16>, vector<4x288xbf16>, vector<8x288xf32> -> vector<8x288xf32>
    %166 = arith.addf %162, %165 : vector<8x288xf32>
    %167 = vector.extract_strided_slice %36 {offsets = [0, 16], sizes = [8, 4], strides = [1, 1]} : vector<8x36xbf16> to vector<8x4xbf16>
    %168 = vector.extract_strided_slice %149 {offsets = [0, 19], sizes = [4, 288], strides = [1, 1]} : vector<4x326xbf16> to vector<4x288xbf16>
    %cst_148 = arith.constant dense<0.000000e+00> : vector<8x288xf32>
    %169 = tpu.matmul %167, %168, %cst_148 {dimension_numbers = #tpu.dot_dimension_numbers<[1], [0], [0], [1], [0, 0, 1, 1], [], []>} : vector<8x4xbf16>, vector<4x288xbf16>, vector<8x288xf32> -> vector<8x288xf32>
    %170 = arith.addf %166, %169 : vector<8x288xf32>
    %171 = vector.extract_strided_slice %36 {offsets = [0, 20], sizes = [8, 4], strides = [1, 1]} : vector<8x36xbf16> to vector<8x4xbf16>
    %172 = vector.extract_strided_slice %149 {offsets = [0, 20], sizes = [4, 288], strides = [1, 1]} : vector<4x326xbf16> to vector<4x288xbf16>
    %cst_149 = arith.constant dense<0.000000e+00> : vector<8x288xf32>
    %173 = tpu.matmul %171, %172, %cst_149 {dimension_numbers = #tpu.dot_dimension_numbers<[1], [0], [0], [1], [0, 0, 1, 1], [], []>} : vector<8x4xbf16>, vector<4x288xbf16>, vector<8x288xf32> -> vector<8x288xf32>
    %174 = arith.addf %170, %173 : vector<8x288xf32>
    %175 = vector.extract_strided_slice %36 {offsets = [0, 24], sizes = [8, 4], strides = [1, 1]} : vector<8x36xbf16> to vector<8x4xbf16>
    %176 = vector.extract_strided_slice %149 {offsets = [0, 36], sizes = [4, 288], strides = [1, 1]} : vector<4x326xbf16> to vector<4x288xbf16>
    %cst_150 = arith.constant dense<0.000000e+00> : vector<8x288xf32>
    %177 = tpu.matmul %175, %176, %cst_150 {dimension_numbers = #tpu.dot_dimension_numbers<[1], [0], [0], [1], [0, 0, 1, 1], [], []>} : vector<8x4xbf16>, vector<4x288xbf16>, vector<8x288xf32> -> vector<8x288xf32>
    %178 = arith.addf %174, %177 : vector<8x288xf32>
    %179 = vector.extract_strided_slice %36 {offsets = [0, 28], sizes = [8, 4], strides = [1, 1]} : vector<8x36xbf16> to vector<8x4xbf16>
    %180 = vector.extract_strided_slice %149 {offsets = [0, 37], sizes = [4, 288], strides = [1, 1]} : vector<4x326xbf16> to vector<4x288xbf16>
    %cst_151 = arith.constant dense<0.000000e+00> : vector<8x288xf32>
    %181 = tpu.matmul %179, %180, %cst_151 {dimension_numbers = #tpu.dot_dimension_numbers<[1], [0], [0], [1], [0, 0, 1, 1], [], []>} : vector<8x4xbf16>, vector<4x288xbf16>, vector<8x288xf32> -> vector<8x288xf32>
    %182 = arith.addf %178, %181 : vector<8x288xf32>
    %183 = vector.extract_strided_slice %36 {offsets = [0, 32], sizes = [8, 4], strides = [1, 1]} : vector<8x36xbf16> to vector<8x4xbf16>
    %184 = vector.extract_strided_slice %149 {offsets = [0, 38], sizes = [4, 288], strides = [1, 1]} : vector<4x326xbf16> to vector<4x288xbf16>
    %cst_152 = arith.constant dense<0.000000e+00> : vector<8x288xf32>
    %185 = tpu.matmul %183, %184, %cst_152 {dimension_numbers = #tpu.dot_dimension_numbers<[1], [0], [0], [1], [0, 0, 1, 1], [], []>} : vector<8x4xbf16>, vector<4x288xbf16>, vector<8x288xf32> -> vector<8x288xf32>
    %186 = arith.addf %182, %185 : vector<8x288xf32>
    %187 = vector.broadcast %38 : vector<8x1xf32> to vector<8x288xf32>
    %188 = arith.addf %186, %187 : vector<8x288xf32>
    %cst_153 = arith.constant 0.000000e+00 : f32
    %189 = vector.broadcast %cst_153 : f32 to vector<8x288xf32>
    %190 = arith.maximumf %188, %189 : vector<8x288xf32>
    %191 = arith.truncf %190 : vector<8x288xf32> to vector<8x288xbf16>
    %192 = vector.extract_strided_slice %191 {offsets = [0, 0], sizes = [8, 16], strides = [1, 1]} : vector<8x288xbf16> to vector<8x16xbf16>
    %c1_154 = arith.constant 1 : index
    %c0_155 = arith.constant 0 : index
    %c19_156 = arith.constant 19 : index
    %193 = vector.load %arg8[%c1_154, %c0_155, %c19_156] : memref<2x8x326xbf16, #tpu.memory_space<vmem>>, vector<1x8x16xbf16>
    %194 = vector.shape_cast %193 : vector<1x8x16xbf16> to vector<8x16xbf16>
    %195 = vector.shape_cast %192 : vector<8x16xbf16> to vector<1x8x16xbf16>
    tpu.vector_store %arg8[%c1_154, %c0_155, %c19_156], %195 {strides = array<i32>} : memref<2x8x326xbf16, #tpu.memory_space<vmem>>, vector<1x8x16xbf16>,
    %196 = vector.extract_strided_slice %191 {offsets = [0, 18], sizes = [8, 16], strides = [1, 1]} : vector<8x288xbf16> to vector<8x16xbf16>
    %c1_157 = arith.constant 1 : index
    %c0_158 = arith.constant 0 : index
    %c37_159 = arith.constant 37 : index
    %197 = vector.load %arg8[%c1_157, %c0_158, %c37_159] : memref<2x8x326xbf16, #tpu.memory_space<vmem>>, vector<1x8x16xbf16>
    %198 = vector.shape_cast %197 : vector<1x8x16xbf16> to vector<8x16xbf16>
    %199 = vector.shape_cast %196 : vector<8x16xbf16> to vector<1x8x16xbf16>
    tpu.vector_store %arg8[%c1_157, %c0_158, %c37_159], %199 {strides = array<i32>} : memref<2x8x326xbf16, #tpu.memory_space<vmem>>, vector<1x8x16xbf16>,
    %200 = vector.extract_strided_slice %191 {offsets = [0, 36], sizes = [8, 16], strides = [1, 1]} : vector<8x288xbf16> to vector<8x16xbf16>
    %c1_160 = arith.constant 1 : index
    %c0_161 = arith.constant 0 : index
    %c55_162 = arith.constant 55 : index
    %201 = vector.load %arg8[%c1_160, %c0_161, %c55_162] : memref<2x8x326xbf16, #tpu.memory_space<vmem>>, vector<1x8x16xbf16>
    %202 = vector.shape_cast %201 : vector<1x8x16xbf16> to vector<8x16xbf16>
    %203 = vector.shape_cast %200 : vector<8x16xbf16> to vector<1x8x16xbf16>
    tpu.vector_store %arg8[%c1_160, %c0_161, %c55_162], %203 {strides = array<i32>} : memref<2x8x326xbf16, #tpu.memory_space<vmem>>, vector<1x8x16xbf16>,
    %204 = vector.extract_strided_slice %191 {offsets = [0, 54], sizes = [8, 16], strides = [1, 1]} : vector<8x288xbf16> to vector<8x16xbf16>
    %c1_163 = arith.constant 1 : index
    %c0_164 = arith.constant 0 : index
    %c73_165 = arith.constant 73 : index
    %205 = vector.load %arg8[%c1_163, %c0_164, %c73_165] : memref<2x8x326xbf16, #tpu.memory_space<vmem>>, vector<1x8x16xbf16>
    %206 = vector.shape_cast %205 : vector<1x8x16xbf16> to vector<8x16xbf16>
    %207 = vector.shape_cast %204 : vector<8x16xbf16> to vector<1x8x16xbf16>
    tpu.vector_store %arg8[%c1_163, %c0_164, %c73_165], %207 {strides = array<i32>} : memref<2x8x326xbf16, #tpu.memory_space<vmem>>, vector<1x8x16xbf16>,
    %208 = vector.extract_strided_slice %191 {offsets = [0, 72], sizes = [8, 16], strides = [1, 1]} : vector<8x288xbf16> to vector<8x16xbf16>
    %c1_166 = arith.constant 1 : index
    %c0_167 = arith.constant 0 : index
    %c91_168 = arith.constant 91 : index
    %209 = vector.load %arg8[%c1_166, %c0_167, %c91_168] : memref<2x8x326xbf16, #tpu.memory_space<vmem>>, vector<1x8x16xbf16>
    %210 = vector.shape_cast %209 : vector<1x8x16xbf16> to vector<8x16xbf16>
    %211 = vector.shape_cast %208 : vector<8x16xbf16> to vector<1x8x16xbf16>
    tpu.vector_store %arg8[%c1_166, %c0_167, %c91_168], %211 {strides = array<i32>} : memref<2x8x326xbf16, #tpu.memory_space<vmem>>, vector<1x8x16xbf16>,
    %212 = vector.extract_strided_slice %191 {offsets = [0, 90], sizes = [8, 16], strides = [1, 1]} : vector<8x288xbf16> to vector<8x16xbf16>
    %c1_169 = arith.constant 1 : index
    %c0_170 = arith.constant 0 : index
    %c109_171 = arith.constant 109 : index
    %213 = vector.load %arg8[%c1_169, %c0_170, %c109_171] : memref<2x8x326xbf16, #tpu.memory_space<vmem>>, vector<1x8x16xbf16>
    %214 = vector.shape_cast %213 : vector<1x8x16xbf16> to vector<8x16xbf16>
    %215 = vector.shape_cast %212 : vector<8x16xbf16> to vector<1x8x16xbf16>
    tpu.vector_store %arg8[%c1_169, %c0_170, %c109_171], %215 {strides = array<i32>} : memref<2x8x326xbf16, #tpu.memory_space<vmem>>, vector<1x8x16xbf16>,
    %216 = vector.extract_strided_slice %191 {offsets = [0, 108], sizes = [8, 16], strides = [1, 1]} : vector<8x288xbf16> to vector<8x16xbf16>
    %c1_172 = arith.constant 1 : index
    %c0_173 = arith.constant 0 : index
    %c127_174 = arith.constant 127 : index
    %217 = vector.load %arg8[%c1_172, %c0_173, %c127_174] : memref<2x8x326xbf16, #tpu.memory_space<vmem>>, vector<1x8x16xbf16>
    %218 = vector.shape_cast %217 : vector<1x8x16xbf16> to vector<8x16xbf16>
    %219 = vector.shape_cast %216 : vector<8x16xbf16> to vector<1x8x16xbf16>
    tpu.vector_store %arg8[%c1_172, %c0_173, %c127_174], %219 {strides = array<i32>} : memref<2x8x326xbf16, #tpu.memory_space<vmem>>, vector<1x8x16xbf16>,
    %220 = vector.extract_strided_slice %191 {offsets = [0, 126], sizes = [8, 16], strides = [1, 1]} : vector<8x288xbf16> to vector<8x16xbf16>
    %c1_175 = arith.constant 1 : index
    %c0_176 = arith.constant 0 : index
    %c145_177 = arith.constant 145 : index
    %221 = vector.load %arg8[%c1_175, %c0_176, %c145_177] : memref<2x8x326xbf16, #tpu.memory_space<vmem>>, vector<1x8x16xbf16>
    %222 = vector.shape_cast %221 : vector<1x8x16xbf16> to vector<8x16xbf16>
    %223 = vector.shape_cast %220 : vector<8x16xbf16> to vector<1x8x16xbf16>
    tpu.vector_store %arg8[%c1_175, %c0_176, %c145_177], %223 {strides = array<i32>} : memref<2x8x326xbf16, #tpu.memory_space<vmem>>, vector<1x8x16xbf16>,
    %224 = vector.extract_strided_slice %191 {offsets = [0, 144], sizes = [8, 16], strides = [1, 1]} : vector<8x288xbf16> to vector<8x16xbf16>
    %c1_178 = arith.constant 1 : index
    %c0_179 = arith.constant 0 : index
    %c163_180 = arith.constant 163 : index
    %225 = vector.load %arg8[%c1_178, %c0_179, %c163_180] : memref<2x8x326xbf16, #tpu.memory_space<vmem>>, vector<1x8x16xbf16>
    %226 = vector.shape_cast %225 : vector<1x8x16xbf16> to vector<8x16xbf16>
    %227 = vector.shape_cast %224 : vector<8x16xbf16> to vector<1x8x16xbf16>
    tpu.vector_store %arg8[%c1_178, %c0_179, %c163_180], %227 {strides = array<i32>} : memref<2x8x326xbf16, #tpu.memory_space<vmem>>, vector<1x8x16xbf16>,
    %228 = vector.extract_strided_slice %191 {offsets = [0, 162], sizes = [8, 16], strides = [1, 1]} : vector<8x288xbf16> to vector<8x16xbf16>
    %c1_181 = arith.constant 1 : index
    %c0_182 = arith.constant 0 : index
    %c181_183 = arith.constant 181 : index
    %229 = vector.load %arg8[%c1_181, %c0_182, %c181_183] : memref<2x8x326xbf16, #tpu.memory_space<vmem>>, vector<1x8x16xbf16>
    %230 = vector.shape_cast %229 : vector<1x8x16xbf16> to vector<8x16xbf16>
    %231 = vector.shape_cast %228 : vector<8x16xbf16> to vector<1x8x16xbf16>
    tpu.vector_store %arg8[%c1_181, %c0_182, %c181_183], %231 {strides = array<i32>} : memref<2x8x326xbf16, #tpu.memory_space<vmem>>, vector<1x8x16xbf16>,
    %232 = vector.extract_strided_slice %191 {offsets = [0, 180], sizes = [8, 16], strides = [1, 1]} : vector<8x288xbf16> to vector<8x16xbf16>
    %c1_184 = arith.constant 1 : index
    %c0_185 = arith.constant 0 : index
    %c199_186 = arith.constant 199 : index
    %233 = vector.load %arg8[%c1_184, %c0_185, %c199_186] : memref<2x8x326xbf16, #tpu.memory_space<vmem>>, vector<1x8x16xbf16>
    %234 = vector.shape_cast %233 : vector<1x8x16xbf16> to vector<8x16xbf16>
    %235 = vector.shape_cast %232 : vector<8x16xbf16> to vector<1x8x16xbf16>
    tpu.vector_store %arg8[%c1_184, %c0_185, %c199_186], %235 {strides = array<i32>} : memref<2x8x326xbf16, #tpu.memory_space<vmem>>, vector<1x8x16xbf16>,
    %236 = vector.extract_strided_slice %191 {offsets = [0, 198], sizes = [8, 16], strides = [1, 1]} : vector<8x288xbf16> to vector<8x16xbf16>
    %c1_187 = arith.constant 1 : index
    %c0_188 = arith.constant 0 : index
    %c217_189 = arith.constant 217 : index
    %237 = vector.load %arg8[%c1_187, %c0_188, %c217_189] : memref<2x8x326xbf16, #tpu.memory_space<vmem>>, vector<1x8x16xbf16>
    %238 = vector.shape_cast %237 : vector<1x8x16xbf16> to vector<8x16xbf16>
    %239 = vector.shape_cast %236 : vector<8x16xbf16> to vector<1x8x16xbf16>
    tpu.vector_store %arg8[%c1_187, %c0_188, %c217_189], %239 {strides = array<i32>} : memref<2x8x326xbf16, #tpu.memory_space<vmem>>, vector<1x8x16xbf16>,
    %240 = vector.extract_strided_slice %191 {offsets = [0, 216], sizes = [8, 16], strides = [1, 1]} : vector<8x288xbf16> to vector<8x16xbf16>
    %c1_190 = arith.constant 1 : index
    %c0_191 = arith.constant 0 : index
    %c235_192 = arith.constant 235 : index
    %241 = vector.load %arg8[%c1_190, %c0_191, %c235_192] : memref<2x8x326xbf16, #tpu.memory_space<vmem>>, vector<1x8x16xbf16>
    %242 = vector.shape_cast %241 : vector<1x8x16xbf16> to vector<8x16xbf16>
    %243 = vector.shape_cast %240 : vector<8x16xbf16> to vector<1x8x16xbf16>
    tpu.vector_store %arg8[%c1_190, %c0_191, %c235_192], %243 {strides = array<i32>} : memref<2x8x326xbf16, #tpu.memory_space<vmem>>, vector<1x8x16xbf16>,
    %244 = vector.extract_strided_slice %191 {offsets = [0, 234], sizes = [8, 16], strides = [1, 1]} : vector<8x288xbf16> to vector<8x16xbf16>
    %c1_193 = arith.constant 1 : index
    %c0_194 = arith.constant 0 : index
    %c253_195 = arith.constant 253 : index
    %245 = vector.load %arg8[%c1_193, %c0_194, %c253_195] : memref<2x8x326xbf16, #tpu.memory_space<vmem>>, vector<1x8x16xbf16>
    %246 = vector.shape_cast %245 : vector<1x8x16xbf16> to vector<8x16xbf16>
    %247 = vector.shape_cast %244 : vector<8x16xbf16> to vector<1x8x16xbf16>
    tpu.vector_store %arg8[%c1_193, %c0_194, %c253_195], %247 {strides = array<i32>} : memref<2x8x326xbf16, #tpu.memory_space<vmem>>, vector<1x8x16xbf16>,
    %248 = vector.extract_strided_slice %191 {offsets = [0, 252], sizes = [8, 16], strides = [1, 1]} : vector<8x288xbf16> to vector<8x16xbf16>
    %c1_196 = arith.constant 1 : index
    %c0_197 = arith.constant 0 : index
    %c271_198 = arith.constant 271 : index
    %249 = vector.load %arg8[%c1_196, %c0_197, %c271_198] : memref<2x8x326xbf16, #tpu.memory_space<vmem>>, vector<1x8x16xbf16>
    %250 = vector.shape_cast %249 : vector<1x8x16xbf16> to vector<8x16xbf16>
    %251 = vector.shape_cast %248 : vector<8x16xbf16> to vector<1x8x16xbf16>
    tpu.vector_store %arg8[%c1_196, %c0_197, %c271_198], %251 {strides = array<i32>} : memref<2x8x326xbf16, #tpu.memory_space<vmem>>, vector<1x8x16xbf16>,
    %252 = vector.extract_strided_slice %191 {offsets = [0, 270], sizes = [8, 16], strides = [1, 1]} : vector<8x288xbf16> to vector<8x16xbf16>
    %c1_199 = arith.constant 1 : index
    %c0_200 = arith.constant 0 : index
    %c289_201 = arith.constant 289 : index
    %253 = vector.load %arg8[%c1_199, %c0_200, %c289_201] : memref<2x8x326xbf16, #tpu.memory_space<vmem>>, vector<1x8x16xbf16>
    %254 = vector.shape_cast %253 : vector<1x8x16xbf16> to vector<8x16xbf16>
    %255 = vector.shape_cast %252 : vector<8x16xbf16> to vector<1x8x16xbf16>
    tpu.vector_store %arg8[%c1_199, %c0_200, %c289_201], %255 {strides = array<i32>} : memref<2x8x326xbf16, #tpu.memory_space<vmem>>, vector<1x8x16xbf16>,
    %c0_202 = arith.constant 0 : index
    %c0_203 = arith.constant 0 : index
    %c0_204 = arith.constant 0 : index
    %256 = vector.load %arg8[%c0_202, %c0_203, %c0_204] : memref<2x8x326xbf16, #tpu.memory_space<vmem>>, vector<1x8x326xbf16>
    %257 = vector.shape_cast %256 : vector<1x8x326xbf16> to vector<8x326xbf16>
    %cst_205 = arith.constant 0.000000e+00 : f32
    %258 = vector.broadcast %cst_205 : f32 to vector<4x288xf32>
    %259 = vector.extract_strided_slice %37 {offsets = [0, 0], sizes = [4, 8], strides = [1, 1]} : vector<4x72xbf16> to vector<4x8xbf16>
    %260 = vector.extract_strided_slice %257 {offsets = [0, 0], sizes = [8, 288], strides = [1, 1]} : vector<8x326xbf16> to vector<8x288xbf16>
    %cst_206 = arith.constant dense<0.000000e+00> : vector<4x288xf32>
    %261 = tpu.matmul %259, %260, %cst_206 {dimension_numbers = #tpu.dot_dimension_numbers<[1], [0], [0], [1], [0, 0, 1, 1], [], []>} : vector<4x8xbf16>, vector<8x288xbf16>, vector<4x288xf32> -> vector<4x288xf32>
    %262 = arith.addf %258, %261 : vector<4x288xf32>
    %263 = vector.extract_strided_slice %37 {offsets = [0, 8], sizes = [4, 8], strides = [1, 1]} : vector<4x72xbf16> to vector<4x8xbf16>
    %264 = vector.extract_strided_slice %257 {offsets = [0, 1], sizes = [8, 288], strides = [1, 1]} : vector<8x326xbf16> to vector<8x288xbf16>
    %cst_207 = arith.constant dense<0.000000e+00> : vector<4x288xf32>
    %265 = tpu.matmul %263, %264, %cst_207 {dimension_numbers = #tpu.dot_dimension_numbers<[1], [0], [0], [1], [0, 0, 1, 1], [], []>} : vector<4x8xbf16>, vector<8x288xbf16>, vector<4x288xf32> -> vector<4x288xf32>
    %266 = arith.addf %262, %265 : vector<4x288xf32>
    %267 = vector.extract_strided_slice %37 {offsets = [0, 16], sizes = [4, 8], strides = [1, 1]} : vector<4x72xbf16> to vector<4x8xbf16>
    %268 = vector.extract_strided_slice %257 {offsets = [0, 2], sizes = [8, 288], strides = [1, 1]} : vector<8x326xbf16> to vector<8x288xbf16>
    %cst_208 = arith.constant dense<0.000000e+00> : vector<4x288xf32>
    %269 = tpu.matmul %267, %268, %cst_208 {dimension_numbers = #tpu.dot_dimension_numbers<[1], [0], [0], [1], [0, 0, 1, 1], [], []>} : vector<4x8xbf16>, vector<8x288xbf16>, vector<4x288xf32> -> vector<4x288xf32>
    %270 = arith.addf %266, %269 : vector<4x288xf32>
    %271 = vector.extract_strided_slice %37 {offsets = [0, 24], sizes = [4, 8], strides = [1, 1]} : vector<4x72xbf16> to vector<4x8xbf16>
    %272 = vector.extract_strided_slice %257 {offsets = [0, 18], sizes = [8, 288], strides = [1, 1]} : vector<8x326xbf16> to vector<8x288xbf16>
    %cst_209 = arith.constant dense<0.000000e+00> : vector<4x288xf32>
    %273 = tpu.matmul %271, %272, %cst_209 {dimension_numbers = #tpu.dot_dimension_numbers<[1], [0], [0], [1], [0, 0, 1, 1], [], []>} : vector<4x8xbf16>, vector<8x288xbf16>, vector<4x288xf32> -> vector<4x288xf32>
    %274 = arith.addf %270, %273 : vector<4x288xf32>
    %275 = vector.extract_strided_slice %37 {offsets = [0, 32], sizes = [4, 8], strides = [1, 1]} : vector<4x72xbf16> to vector<4x8xbf16>
    %276 = vector.extract_strided_slice %257 {offsets = [0, 19], sizes = [8, 288], strides = [1, 1]} : vector<8x326xbf16> to vector<8x288xbf16>
    %cst_210 = arith.constant dense<0.000000e+00> : vector<4x288xf32>
    %277 = tpu.matmul %275, %276, %cst_210 {dimension_numbers = #tpu.dot_dimension_numbers<[1], [0], [0], [1], [0, 0, 1, 1], [], []>} : vector<4x8xbf16>, vector<8x288xbf16>, vector<4x288xf32> -> vector<4x288xf32>
    %278 = arith.addf %274, %277 : vector<4x288xf32>
    %279 = vector.extract_strided_slice %37 {offsets = [0, 40], sizes = [4, 8], strides = [1, 1]} : vector<4x72xbf16> to vector<4x8xbf16>
    %280 = vector.extract_strided_slice %257 {offsets = [0, 20], sizes = [8, 288], strides = [1, 1]} : vector<8x326xbf16> to vector<8x288xbf16>
    %cst_211 = arith.constant dense<0.000000e+00> : vector<4x288xf32>
    %281 = tpu.matmul %279, %280, %cst_211 {dimension_numbers = #tpu.dot_dimension_numbers<[1], [0], [0], [1], [0, 0, 1, 1], [], []>} : vector<4x8xbf16>, vector<8x288xbf16>, vector<4x288xf32> -> vector<4x288xf32>
    %282 = arith.addf %278, %281 : vector<4x288xf32>
    %283 = vector.extract_strided_slice %37 {offsets = [0, 48], sizes = [4, 8], strides = [1, 1]} : vector<4x72xbf16> to vector<4x8xbf16>
    %284 = vector.extract_strided_slice %257 {offsets = [0, 36], sizes = [8, 288], strides = [1, 1]} : vector<8x326xbf16> to vector<8x288xbf16>
    %cst_212 = arith.constant dense<0.000000e+00> : vector<4x288xf32>
    %285 = tpu.matmul %283, %284, %cst_212 {dimension_numbers = #tpu.dot_dimension_numbers<[1], [0], [0], [1], [0, 0, 1, 1], [], []>} : vector<4x8xbf16>, vector<8x288xbf16>, vector<4x288xf32> -> vector<4x288xf32>
    %286 = arith.addf %282, %285 : vector<4x288xf32>
    %287 = vector.extract_strided_slice %37 {offsets = [0, 56], sizes = [4, 8], strides = [1, 1]} : vector<4x72xbf16> to vector<4x8xbf16>
    %288 = vector.extract_strided_slice %257 {offsets = [0, 37], sizes = [8, 288], strides = [1, 1]} : vector<8x326xbf16> to vector<8x288xbf16>
    %cst_213 = arith.constant dense<0.000000e+00> : vector<4x288xf32>
    %289 = tpu.matmul %287, %288, %cst_213 {dimension_numbers = #tpu.dot_dimension_numbers<[1], [0], [0], [1], [0, 0, 1, 1], [], []>} : vector<4x8xbf16>, vector<8x288xbf16>, vector<4x288xf32> -> vector<4x288xf32>
    %290 = arith.addf %286, %289 : vector<4x288xf32>
    %291 = vector.extract_strided_slice %37 {offsets = [0, 64], sizes = [4, 8], strides = [1, 1]} : vector<4x72xbf16> to vector<4x8xbf16>
    %292 = vector.extract_strided_slice %257 {offsets = [0, 38], sizes = [8, 288], strides = [1, 1]} : vector<8x326xbf16> to vector<8x288xbf16>
    %cst_214 = arith.constant dense<0.000000e+00> : vector<4x288xf32>
    %293 = tpu.matmul %291, %292, %cst_214 {dimension_numbers = #tpu.dot_dimension_numbers<[1], [0], [0], [1], [0, 0, 1, 1], [], []>} : vector<4x8xbf16>, vector<8x288xbf16>, vector<4x288xf32> -> vector<4x288xf32>
    %294 = arith.addf %290, %293 : vector<4x288xf32>
    %295 = vector.broadcast %39 : vector<4x1xf32> to vector<4x288xf32>
    %296 = arith.addf %294, %295 : vector<4x288xf32>
    %297 = vector.extract_strided_slice %296 {offsets = [0, 0], sizes = [4, 16], strides = [1, 1]} : vector<4x288xf32> to vector<4x16xf32>
    %298 = arith.truncf %297 : vector<4x16xf32> to vector<4x16xbf16>
    %c0_215 = arith.constant 0 : index
    %c0_216 = arith.constant 0 : index
    %c0_217 = arith.constant 0 : index
    %299 = vector.load %arg6[%c0_215, %c0_216, %c0_217] : memref<2x4x256xbf16, #tpu.memory_space<vmem>>, vector<1x4x16xbf16>
    %300 = vector.shape_cast %299 : vector<1x4x16xbf16> to vector<4x16xbf16>
    %301 = vector.shape_cast %298 : vector<4x16xbf16> to vector<1x4x16xbf16>
    tpu.vector_store %arg6[%c0_215, %c0_216, %c0_217], %301 {strides = array<i32>} : memref<2x4x256xbf16, #tpu.memory_space<vmem>>, vector<1x4x16xbf16>,
    %302 = vector.extract_strided_slice %296 {offsets = [0, 18], sizes = [4, 16], strides = [1, 1]} : vector<4x288xf32> to vector<4x16xf32>
    %303 = arith.truncf %302 : vector<4x16xf32> to vector<4x16xbf16>
    %c0_218 = arith.constant 0 : index
    %c0_219 = arith.constant 0 : index
    %c16_220 = arith.constant 16 : index
    %304 = vector.load %arg6[%c0_218, %c0_219, %c16_220] : memref<2x4x256xbf16, #tpu.memory_space<vmem>>, vector<1x4x16xbf16>
    %305 = vector.shape_cast %304 : vector<1x4x16xbf16> to vector<4x16xbf16>
    %306 = vector.shape_cast %303 : vector<4x16xbf16> to vector<1x4x16xbf16>
    tpu.vector_store %arg6[%c0_218, %c0_219, %c16_220], %306 {strides = array<i32>} : memref<2x4x256xbf16, #tpu.memory_space<vmem>>, vector<1x4x16xbf16>,
    %307 = vector.extract_strided_slice %296 {offsets = [0, 36], sizes = [4, 16], strides = [1, 1]} : vector<4x288xf32> to vector<4x16xf32>
    %308 = arith.truncf %307 : vector<4x16xf32> to vector<4x16xbf16>
    %c0_221 = arith.constant 0 : index
    %c0_222 = arith.constant 0 : index
    %c32_223 = arith.constant 32 : index
    %309 = vector.load %arg6[%c0_221, %c0_222, %c32_223] : memref<2x4x256xbf16, #tpu.memory_space<vmem>>, vector<1x4x16xbf16>
    %310 = vector.shape_cast %309 : vector<1x4x16xbf16> to vector<4x16xbf16>
    %311 = vector.shape_cast %308 : vector<4x16xbf16> to vector<1x4x16xbf16>
    tpu.vector_store %arg6[%c0_221, %c0_222, %c32_223], %311 {strides = array<i32>} : memref<2x4x256xbf16, #tpu.memory_space<vmem>>, vector<1x4x16xbf16>,
    %312 = vector.extract_strided_slice %296 {offsets = [0, 54], sizes = [4, 16], strides = [1, 1]} : vector<4x288xf32> to vector<4x16xf32>
    %313 = arith.truncf %312 : vector<4x16xf32> to vector<4x16xbf16>
    %c0_224 = arith.constant 0 : index
    %c0_225 = arith.constant 0 : index
    %c48_226 = arith.constant 48 : index
    %314 = vector.load %arg6[%c0_224, %c0_225, %c48_226] : memref<2x4x256xbf16, #tpu.memory_space<vmem>>, vector<1x4x16xbf16>
    %315 = vector.shape_cast %314 : vector<1x4x16xbf16> to vector<4x16xbf16>
    %316 = vector.shape_cast %313 : vector<4x16xbf16> to vector<1x4x16xbf16>
    tpu.vector_store %arg6[%c0_224, %c0_225, %c48_226], %316 {strides = array<i32>} : memref<2x4x256xbf16, #tpu.memory_space<vmem>>, vector<1x4x16xbf16>,
    %317 = vector.extract_strided_slice %296 {offsets = [0, 72], sizes = [4, 16], strides = [1, 1]} : vector<4x288xf32> to vector<4x16xf32>
    %318 = arith.truncf %317 : vector<4x16xf32> to vector<4x16xbf16>
    %c0_227 = arith.constant 0 : index
    %c0_228 = arith.constant 0 : index
    %c64_229 = arith.constant 64 : index
    %319 = vector.load %arg6[%c0_227, %c0_228, %c64_229] : memref<2x4x256xbf16, #tpu.memory_space<vmem>>, vector<1x4x16xbf16>
    %320 = vector.shape_cast %319 : vector<1x4x16xbf16> to vector<4x16xbf16>
    %321 = vector.shape_cast %318 : vector<4x16xbf16> to vector<1x4x16xbf16>
    tpu.vector_store %arg6[%c0_227, %c0_228, %c64_229], %321 {strides = array<i32>} : memref<2x4x256xbf16, #tpu.memory_space<vmem>>, vector<1x4x16xbf16>,
    %322 = vector.extract_strided_slice %296 {offsets = [0, 90], sizes = [4, 16], strides = [1, 1]} : vector<4x288xf32> to vector<4x16xf32>
    %323 = arith.truncf %322 : vector<4x16xf32> to vector<4x16xbf16>
    %c0_230 = arith.constant 0 : index
    %c0_231 = arith.constant 0 : index
    %c80_232 = arith.constant 80 : index
    %324 = vector.load %arg6[%c0_230, %c0_231, %c80_232] : memref<2x4x256xbf16, #tpu.memory_space<vmem>>, vector<1x4x16xbf16>
    %325 = vector.shape_cast %324 : vector<1x4x16xbf16> to vector<4x16xbf16>
    %326 = vector.shape_cast %323 : vector<4x16xbf16> to vector<1x4x16xbf16>
    tpu.vector_store %arg6[%c0_230, %c0_231, %c80_232], %326 {strides = array<i32>} : memref<2x4x256xbf16, #tpu.memory_space<vmem>>, vector<1x4x16xbf16>,
    %327 = vector.extract_strided_slice %296 {offsets = [0, 108], sizes = [4, 16], strides = [1, 1]} : vector<4x288xf32> to vector<4x16xf32>
    %328 = arith.truncf %327 : vector<4x16xf32> to vector<4x16xbf16>
    %c0_233 = arith.constant 0 : index
    %c0_234 = arith.constant 0 : index
    %c96_235 = arith.constant 96 : index
    %329 = vector.load %arg6[%c0_233, %c0_234, %c96_235] : memref<2x4x256xbf16, #tpu.memory_space<vmem>>, vector<1x4x16xbf16>
    %330 = vector.shape_cast %329 : vector<1x4x16xbf16> to vector<4x16xbf16>
    %331 = vector.shape_cast %328 : vector<4x16xbf16> to vector<1x4x16xbf16>
    tpu.vector_store %arg6[%c0_233, %c0_234, %c96_235], %331 {strides = array<i32>} : memref<2x4x256xbf16, #tpu.memory_space<vmem>>, vector<1x4x16xbf16>,
    %332 = vector.extract_strided_slice %296 {offsets = [0, 126], sizes = [4, 16], strides = [1, 1]} : vector<4x288xf32> to vector<4x16xf32>
    %333 = arith.truncf %332 : vector<4x16xf32> to vector<4x16xbf16>
    %c0_236 = arith.constant 0 : index
    %c0_237 = arith.constant 0 : index
    %c112_238 = arith.constant 112 : index
    %334 = vector.load %arg6[%c0_236, %c0_237, %c112_238] : memref<2x4x256xbf16, #tpu.memory_space<vmem>>, vector<1x4x16xbf16>
    %335 = vector.shape_cast %334 : vector<1x4x16xbf16> to vector<4x16xbf16>
    %336 = vector.shape_cast %333 : vector<4x16xbf16> to vector<1x4x16xbf16>
    tpu.vector_store %arg6[%c0_236, %c0_237, %c112_238], %336 {strides = array<i32>} : memref<2x4x256xbf16, #tpu.memory_space<vmem>>, vector<1x4x16xbf16>,
    %337 = vector.extract_strided_slice %296 {offsets = [0, 144], sizes = [4, 16], strides = [1, 1]} : vector<4x288xf32> to vector<4x16xf32>
    %338 = arith.truncf %337 : vector<4x16xf32> to vector<4x16xbf16>
    %c0_239 = arith.constant 0 : index
    %c0_240 = arith.constant 0 : index
    %c128_241 = arith.constant 128 : index
    %339 = vector.load %arg6[%c0_239, %c0_240, %c128_241] : memref<2x4x256xbf16, #tpu.memory_space<vmem>>, vector<1x4x16xbf16>
    %340 = vector.shape_cast %339 : vector<1x4x16xbf16> to vector<4x16xbf16>
    %341 = vector.shape_cast %338 : vector<4x16xbf16> to vector<1x4x16xbf16>
    tpu.vector_store %arg6[%c0_239, %c0_240, %c128_241], %341 {strides = array<i32>} : memref<2x4x256xbf16, #tpu.memory_space<vmem>>, vector<1x4x16xbf16>,
    %342 = vector.extract_strided_slice %296 {offsets = [0, 162], sizes = [4, 16], strides = [1, 1]} : vector<4x288xf32> to vector<4x16xf32>
    %343 = arith.truncf %342 : vector<4x16xf32> to vector<4x16xbf16>
    %c0_242 = arith.constant 0 : index
    %c0_243 = arith.constant 0 : index
    %c144_244 = arith.constant 144 : index
    %344 = vector.load %arg6[%c0_242, %c0_243, %c144_244] : memref<2x4x256xbf16, #tpu.memory_space<vmem>>, vector<1x4x16xbf16>
    %345 = vector.shape_cast %344 : vector<1x4x16xbf16> to vector<4x16xbf16>
    %346 = vector.shape_cast %343 : vector<4x16xbf16> to vector<1x4x16xbf16>
    tpu.vector_store %arg6[%c0_242, %c0_243, %c144_244], %346 {strides = array<i32>} : memref<2x4x256xbf16, #tpu.memory_space<vmem>>, vector<1x4x16xbf16>,
    %347 = vector.extract_strided_slice %296 {offsets = [0, 180], sizes = [4, 16], strides = [1, 1]} : vector<4x288xf32> to vector<4x16xf32>
    %348 = arith.truncf %347 : vector<4x16xf32> to vector<4x16xbf16>
    %c0_245 = arith.constant 0 : index
    %c0_246 = arith.constant 0 : index
    %c160_247 = arith.constant 160 : index
    %349 = vector.load %arg6[%c0_245, %c0_246, %c160_247] : memref<2x4x256xbf16, #tpu.memory_space<vmem>>, vector<1x4x16xbf16>
    %350 = vector.shape_cast %349 : vector<1x4x16xbf16> to vector<4x16xbf16>
    %351 = vector.shape_cast %348 : vector<4x16xbf16> to vector<1x4x16xbf16>
    tpu.vector_store %arg6[%c0_245, %c0_246, %c160_247], %351 {strides = array<i32>} : memref<2x4x256xbf16, #tpu.memory_space<vmem>>, vector<1x4x16xbf16>,
    %352 = vector.extract_strided_slice %296 {offsets = [0, 198], sizes = [4, 16], strides = [1, 1]} : vector<4x288xf32> to vector<4x16xf32>
    %353 = arith.truncf %352 : vector<4x16xf32> to vector<4x16xbf16>
    %c0_248 = arith.constant 0 : index
    %c0_249 = arith.constant 0 : index
    %c176_250 = arith.constant 176 : index
    %354 = vector.load %arg6[%c0_248, %c0_249, %c176_250] : memref<2x4x256xbf16, #tpu.memory_space<vmem>>, vector<1x4x16xbf16>
    %355 = vector.shape_cast %354 : vector<1x4x16xbf16> to vector<4x16xbf16>
    %356 = vector.shape_cast %353 : vector<4x16xbf16> to vector<1x4x16xbf16>
    tpu.vector_store %arg6[%c0_248, %c0_249, %c176_250], %356 {strides = array<i32>} : memref<2x4x256xbf16, #tpu.memory_space<vmem>>, vector<1x4x16xbf16>,
    %357 = vector.extract_strided_slice %296 {offsets = [0, 216], sizes = [4, 16], strides = [1, 1]} : vector<4x288xf32> to vector<4x16xf32>
    %358 = arith.truncf %357 : vector<4x16xf32> to vector<4x16xbf16>
    %c0_251 = arith.constant 0 : index
    %c0_252 = arith.constant 0 : index
    %c192_253 = arith.constant 192 : index
    %359 = vector.load %arg6[%c0_251, %c0_252, %c192_253] : memref<2x4x256xbf16, #tpu.memory_space<vmem>>, vector<1x4x16xbf16>
    %360 = vector.shape_cast %359 : vector<1x4x16xbf16> to vector<4x16xbf16>
    %361 = vector.shape_cast %358 : vector<4x16xbf16> to vector<1x4x16xbf16>
    tpu.vector_store %arg6[%c0_251, %c0_252, %c192_253], %361 {strides = array<i32>} : memref<2x4x256xbf16, #tpu.memory_space<vmem>>, vector<1x4x16xbf16>,
    %362 = vector.extract_strided_slice %296 {offsets = [0, 234], sizes = [4, 16], strides = [1, 1]} : vector<4x288xf32> to vector<4x16xf32>
    %363 = arith.truncf %362 : vector<4x16xf32> to vector<4x16xbf16>
    %c0_254 = arith.constant 0 : index
    %c0_255 = arith.constant 0 : index
    %c208_256 = arith.constant 208 : index
    %364 = vector.load %arg6[%c0_254, %c0_255, %c208_256] : memref<2x4x256xbf16, #tpu.memory_space<vmem>>, vector<1x4x16xbf16>
    %365 = vector.shape_cast %364 : vector<1x4x16xbf16> to vector<4x16xbf16>
    %366 = vector.shape_cast %363 : vector<4x16xbf16> to vector<1x4x16xbf16>
    tpu.vector_store %arg6[%c0_254, %c0_255, %c208_256], %366 {strides = array<i32>} : memref<2x4x256xbf16, #tpu.memory_space<vmem>>, vector<1x4x16xbf16>,
    %367 = vector.extract_strided_slice %296 {offsets = [0, 252], sizes = [4, 16], strides = [1, 1]} : vector<4x288xf32> to vector<4x16xf32>
    %368 = arith.truncf %367 : vector<4x16xf32> to vector<4x16xbf16>
    %c0_257 = arith.constant 0 : index
    %c0_258 = arith.constant 0 : index
    %c224_259 = arith.constant 224 : index
    %369 = vector.load %arg6[%c0_257, %c0_258, %c224_259] : memref<2x4x256xbf16, #tpu.memory_space<vmem>>, vector<1x4x16xbf16>
    %370 = vector.shape_cast %369 : vector<1x4x16xbf16> to vector<4x16xbf16>
    %371 = vector.shape_cast %368 : vector<4x16xbf16> to vector<1x4x16xbf16>
    tpu.vector_store %arg6[%c0_257, %c0_258, %c224_259], %371 {strides = array<i32>} : memref<2x4x256xbf16, #tpu.memory_space<vmem>>, vector<1x4x16xbf16>,
    %372 = vector.extract_strided_slice %296 {offsets = [0, 270], sizes = [4, 16], strides = [1, 1]} : vector<4x288xf32> to vector<4x16xf32>
    %373 = arith.truncf %372 : vector<4x16xf32> to vector<4x16xbf16>
    %c0_260 = arith.constant 0 : index
    %c0_261 = arith.constant 0 : index
    %c240_262 = arith.constant 240 : index
    %374 = vector.load %arg6[%c0_260, %c0_261, %c240_262] : memref<2x4x256xbf16, #tpu.memory_space<vmem>>, vector<1x4x16xbf16>
    %375 = vector.shape_cast %374 : vector<1x4x16xbf16> to vector<4x16xbf16>
    %376 = vector.shape_cast %373 : vector<4x16xbf16> to vector<1x4x16xbf16>
    tpu.vector_store %arg6[%c0_260, %c0_261, %c240_262], %376 {strides = array<i32>} : memref<2x4x256xbf16, #tpu.memory_space<vmem>>, vector<1x4x16xbf16>,
    %c1_263 = arith.constant 1 : index
    %c0_264 = arith.constant 0 : index
    %c0_265 = arith.constant 0 : index
    %377 = vector.load %arg8[%c1_263, %c0_264, %c0_265] : memref<2x8x326xbf16, #tpu.memory_space<vmem>>, vector<1x8x326xbf16>
    %378 = vector.shape_cast %377 : vector<1x8x326xbf16> to vector<8x326xbf16>
    %cst_266 = arith.constant 0.000000e+00 : f32
    %379 = vector.broadcast %cst_266 : f32 to vector<4x288xf32>
    %380 = vector.extract_strided_slice %37 {offsets = [0, 0], sizes = [4, 8], strides = [1, 1]} : vector<4x72xbf16> to vector<4x8xbf16>
    %381 = vector.extract_strided_slice %378 {offsets = [0, 0], sizes = [8, 288], strides = [1, 1]} : vector<8x326xbf16> to vector<8x288xbf16>
    %cst_267 = arith.constant dense<0.000000e+00> : vector<4x288xf32>
    %382 = tpu.matmul %380, %381, %cst_267 {dimension_numbers = #tpu.dot_dimension_numbers<[1], [0], [0], [1], [0, 0, 1, 1], [], []>} : vector<4x8xbf16>, vector<8x288xbf16>, vector<4x288xf32> -> vector<4x288xf32>
    %383 = arith.addf %379, %382 : vector<4x288xf32>
    %384 = vector.extract_strided_slice %37 {offsets = [0, 8], sizes = [4, 8], strides = [1, 1]} : vector<4x72xbf16> to vector<4x8xbf16>
    %385 = vector.extract_strided_slice %378 {offsets = [0, 1], sizes = [8, 288], strides = [1, 1]} : vector<8x326xbf16> to vector<8x288xbf16>
    %cst_268 = arith.constant dense<0.000000e+00> : vector<4x288xf32>
    %386 = tpu.matmul %384, %385, %cst_268 {dimension_numbers = #tpu.dot_dimension_numbers<[1], [0], [0], [1], [0, 0, 1, 1], [], []>} : vector<4x8xbf16>, vector<8x288xbf16>, vector<4x288xf32> -> vector<4x288xf32>
    %387 = arith.addf %383, %386 : vector<4x288xf32>
    %388 = vector.extract_strided_slice %37 {offsets = [0, 16], sizes = [4, 8], strides = [1, 1]} : vector<4x72xbf16> to vector<4x8xbf16>
    %389 = vector.extract_strided_slice %378 {offsets = [0, 2], sizes = [8, 288], strides = [1, 1]} : vector<8x326xbf16> to vector<8x288xbf16>
    %cst_269 = arith.constant dense<0.000000e+00> : vector<4x288xf32>
    %390 = tpu.matmul %388, %389, %cst_269 {dimension_numbers = #tpu.dot_dimension_numbers<[1], [0], [0], [1], [0, 0, 1, 1], [], []>} : vector<4x8xbf16>, vector<8x288xbf16>, vector<4x288xf32> -> vector<4x288xf32>
    %391 = arith.addf %387, %390 : vector<4x288xf32>
    %392 = vector.extract_strided_slice %37 {offsets = [0, 24], sizes = [4, 8], strides = [1, 1]} : vector<4x72xbf16> to vector<4x8xbf16>
    %393 = vector.extract_strided_slice %378 {offsets = [0, 18], sizes = [8, 288], strides = [1, 1]} : vector<8x326xbf16> to vector<8x288xbf16>
    %cst_270 = arith.constant dense<0.000000e+00> : vector<4x288xf32>
    %394 = tpu.matmul %392, %393, %cst_270 {dimension_numbers = #tpu.dot_dimension_numbers<[1], [0], [0], [1], [0, 0, 1, 1], [], []>} : vector<4x8xbf16>, vector<8x288xbf16>, vector<4x288xf32> -> vector<4x288xf32>
    %395 = arith.addf %391, %394 : vector<4x288xf32>
    %396 = vector.extract_strided_slice %37 {offsets = [0, 32], sizes = [4, 8], strides = [1, 1]} : vector<4x72xbf16> to vector<4x8xbf16>
    %397 = vector.extract_strided_slice %378 {offsets = [0, 19], sizes = [8, 288], strides = [1, 1]} : vector<8x326xbf16> to vector<8x288xbf16>
    %cst_271 = arith.constant dense<0.000000e+00> : vector<4x288xf32>
    %398 = tpu.matmul %396, %397, %cst_271 {dimension_numbers = #tpu.dot_dimension_numbers<[1], [0], [0], [1], [0, 0, 1, 1], [], []>} : vector<4x8xbf16>, vector<8x288xbf16>, vector<4x288xf32> -> vector<4x288xf32>
    %399 = arith.addf %395, %398 : vector<4x288xf32>
    %400 = vector.extract_strided_slice %37 {offsets = [0, 40], sizes = [4, 8], strides = [1, 1]} : vector<4x72xbf16> to vector<4x8xbf16>
    %401 = vector.extract_strided_slice %378 {offsets = [0, 20], sizes = [8, 288], strides = [1, 1]} : vector<8x326xbf16> to vector<8x288xbf16>
    %cst_272 = arith.constant dense<0.000000e+00> : vector<4x288xf32>
    %402 = tpu.matmul %400, %401, %cst_272 {dimension_numbers = #tpu.dot_dimension_numbers<[1], [0], [0], [1], [0, 0, 1, 1], [], []>} : vector<4x8xbf16>, vector<8x288xbf16>, vector<4x288xf32> -> vector<4x288xf32>
    %403 = arith.addf %399, %402 : vector<4x288xf32>
    %404 = vector.extract_strided_slice %37 {offsets = [0, 48], sizes = [4, 8], strides = [1, 1]} : vector<4x72xbf16> to vector<4x8xbf16>
    %405 = vector.extract_strided_slice %378 {offsets = [0, 36], sizes = [8, 288], strides = [1, 1]} : vector<8x326xbf16> to vector<8x288xbf16>
    %cst_273 = arith.constant dense<0.000000e+00> : vector<4x288xf32>
    %406 = tpu.matmul %404, %405, %cst_273 {dimension_numbers = #tpu.dot_dimension_numbers<[1], [0], [0], [1], [0, 0, 1, 1], [], []>} : vector<4x8xbf16>, vector<8x288xbf16>, vector<4x288xf32> -> vector<4x288xf32>
    %407 = arith.addf %403, %406 : vector<4x288xf32>
    %408 = vector.extract_strided_slice %37 {offsets = [0, 56], sizes = [4, 8], strides = [1, 1]} : vector<4x72xbf16> to vector<4x8xbf16>
    %409 = vector.extract_strided_slice %378 {offsets = [0, 37], sizes = [8, 288], strides = [1, 1]} : vector<8x326xbf16> to vector<8x288xbf16>
    %cst_274 = arith.constant dense<0.000000e+00> : vector<4x288xf32>
    %410 = tpu.matmul %408, %409, %cst_274 {dimension_numbers = #tpu.dot_dimension_numbers<[1], [0], [0], [1], [0, 0, 1, 1], [], []>} : vector<4x8xbf16>, vector<8x288xbf16>, vector<4x288xf32> -> vector<4x288xf32>
    %411 = arith.addf %407, %410 : vector<4x288xf32>
    %412 = vector.extract_strided_slice %37 {offsets = [0, 64], sizes = [4, 8], strides = [1, 1]} : vector<4x72xbf16> to vector<4x8xbf16>
    %413 = vector.extract_strided_slice %378 {offsets = [0, 38], sizes = [8, 288], strides = [1, 1]} : vector<8x326xbf16> to vector<8x288xbf16>
    %cst_275 = arith.constant dense<0.000000e+00> : vector<4x288xf32>
    %414 = tpu.matmul %412, %413, %cst_275 {dimension_numbers = #tpu.dot_dimension_numbers<[1], [0], [0], [1], [0, 0, 1, 1], [], []>} : vector<4x8xbf16>, vector<8x288xbf16>, vector<4x288xf32> -> vector<4x288xf32>
    %415 = arith.addf %411, %414 : vector<4x288xf32>
    %416 = vector.broadcast %39 : vector<4x1xf32> to vector<4x288xf32>
    %417 = arith.addf %415, %416 : vector<4x288xf32>
    %418 = vector.extract_strided_slice %417 {offsets = [0, 0], sizes = [4, 16], strides = [1, 1]} : vector<4x288xf32> to vector<4x16xf32>
    %419 = arith.truncf %418 : vector<4x16xf32> to vector<4x16xbf16>
    %c1_276 = arith.constant 1 : index
    %c0_277 = arith.constant 0 : index
    %c0_278 = arith.constant 0 : index
    %420 = vector.load %arg6[%c1_276, %c0_277, %c0_278] : memref<2x4x256xbf16, #tpu.memory_space<vmem>>, vector<1x4x16xbf16>
    %421 = vector.shape_cast %420 : vector<1x4x16xbf16> to vector<4x16xbf16>
    %422 = vector.shape_cast %419 : vector<4x16xbf16> to vector<1x4x16xbf16>
    tpu.vector_store %arg6[%c1_276, %c0_277, %c0_278], %422 {strides = array<i32>} : memref<2x4x256xbf16, #tpu.memory_space<vmem>>, vector<1x4x16xbf16>,
    %423 = vector.extract_strided_slice %417 {offsets = [0, 18], sizes = [4, 16], strides = [1, 1]} : vector<4x288xf32> to vector<4x16xf32>
    %424 = arith.truncf %423 : vector<4x16xf32> to vector<4x16xbf16>
    %c1_279 = arith.constant 1 : index
    %c0_280 = arith.constant 0 : index
    %c16_281 = arith.constant 16 : index
    %425 = vector.load %arg6[%c1_279, %c0_280, %c16_281] : memref<2x4x256xbf16, #tpu.memory_space<vmem>>, vector<1x4x16xbf16>
    %426 = vector.shape_cast %425 : vector<1x4x16xbf16> to vector<4x16xbf16>
    %427 = vector.shape_cast %424 : vector<4x16xbf16> to vector<1x4x16xbf16>
    tpu.vector_store %arg6[%c1_279, %c0_280, %c16_281], %427 {strides = array<i32>} : memref<2x4x256xbf16, #tpu.memory_space<vmem>>, vector<1x4x16xbf16>,
    %428 = vector.extract_strided_slice %417 {offsets = [0, 36], sizes = [4, 16], strides = [1, 1]} : vector<4x288xf32> to vector<4x16xf32>
    %429 = arith.truncf %428 : vector<4x16xf32> to vector<4x16xbf16>
    %c1_282 = arith.constant 1 : index
    %c0_283 = arith.constant 0 : index
    %c32_284 = arith.constant 32 : index
    %430 = vector.load %arg6[%c1_282, %c0_283, %c32_284] : memref<2x4x256xbf16, #tpu.memory_space<vmem>>, vector<1x4x16xbf16>
    %431 = vector.shape_cast %430 : vector<1x4x16xbf16> to vector<4x16xbf16>
    %432 = vector.shape_cast %429 : vector<4x16xbf16> to vector<1x4x16xbf16>
    tpu.vector_store %arg6[%c1_282, %c0_283, %c32_284], %432 {strides = array<i32>} : memref<2x4x256xbf16, #tpu.memory_space<vmem>>, vector<1x4x16xbf16>,
    %433 = vector.extract_strided_slice %417 {offsets = [0, 54], sizes = [4, 16], strides = [1, 1]} : vector<4x288xf32> to vector<4x16xf32>
    %434 = arith.truncf %433 : vector<4x16xf32> to vector<4x16xbf16>
    %c1_285 = arith.constant 1 : index
    %c0_286 = arith.constant 0 : index
    %c48_287 = arith.constant 48 : index
    %435 = vector.load %arg6[%c1_285, %c0_286, %c48_287] : memref<2x4x256xbf16, #tpu.memory_space<vmem>>, vector<1x4x16xbf16>
    %436 = vector.shape_cast %435 : vector<1x4x16xbf16> to vector<4x16xbf16>
    %437 = vector.shape_cast %434 : vector<4x16xbf16> to vector<1x4x16xbf16>
    tpu.vector_store %arg6[%c1_285, %c0_286, %c48_287], %437 {strides = array<i32>} : memref<2x4x256xbf16, #tpu.memory_space<vmem>>, vector<1x4x16xbf16>,
    %438 = vector.extract_strided_slice %417 {offsets = [0, 72], sizes = [4, 16], strides = [1, 1]} : vector<4x288xf32> to vector<4x16xf32>
    %439 = arith.truncf %438 : vector<4x16xf32> to vector<4x16xbf16>
    %c1_288 = arith.constant 1 : index
    %c0_289 = arith.constant 0 : index
    %c64_290 = arith.constant 64 : index
    %440 = vector.load %arg6[%c1_288, %c0_289, %c64_290] : memref<2x4x256xbf16, #tpu.memory_space<vmem>>, vector<1x4x16xbf16>
    %441 = vector.shape_cast %440 : vector<1x4x16xbf16> to vector<4x16xbf16>
    %442 = vector.shape_cast %439 : vector<4x16xbf16> to vector<1x4x16xbf16>
    tpu.vector_store %arg6[%c1_288, %c0_289, %c64_290], %442 {strides = array<i32>} : memref<2x4x256xbf16, #tpu.memory_space<vmem>>, vector<1x4x16xbf16>,
    %443 = vector.extract_strided_slice %417 {offsets = [0, 90], sizes = [4, 16], strides = [1, 1]} : vector<4x288xf32> to vector<4x16xf32>
    %444 = arith.truncf %443 : vector<4x16xf32> to vector<4x16xbf16>
    %c1_291 = arith.constant 1 : index
    %c0_292 = arith.constant 0 : index
    %c80_293 = arith.constant 80 : index
    %445 = vector.load %arg6[%c1_291, %c0_292, %c80_293] : memref<2x4x256xbf16, #tpu.memory_space<vmem>>, vector<1x4x16xbf16>
    %446 = vector.shape_cast %445 : vector<1x4x16xbf16> to vector<4x16xbf16>
    %447 = vector.shape_cast %444 : vector<4x16xbf16> to vector<1x4x16xbf16>
    tpu.vector_store %arg6[%c1_291, %c0_292, %c80_293], %447 {strides = array<i32>} : memref<2x4x256xbf16, #tpu.memory_space<vmem>>, vector<1x4x16xbf16>,
    %448 = vector.extract_strided_slice %417 {offsets = [0, 108], sizes = [4, 16], strides = [1, 1]} : vector<4x288xf32> to vector<4x16xf32>
    %449 = arith.truncf %448 : vector<4x16xf32> to vector<4x16xbf16>
    %c1_294 = arith.constant 1 : index
    %c0_295 = arith.constant 0 : index
    %c96_296 = arith.constant 96 : index
    %450 = vector.load %arg6[%c1_294, %c0_295, %c96_296] : memref<2x4x256xbf16, #tpu.memory_space<vmem>>, vector<1x4x16xbf16>
    %451 = vector.shape_cast %450 : vector<1x4x16xbf16> to vector<4x16xbf16>
    %452 = vector.shape_cast %449 : vector<4x16xbf16> to vector<1x4x16xbf16>
    tpu.vector_store %arg6[%c1_294, %c0_295, %c96_296], %452 {strides = array<i32>} : memref<2x4x256xbf16, #tpu.memory_space<vmem>>, vector<1x4x16xbf16>,
    %453 = vector.extract_strided_slice %417 {offsets = [0, 126], sizes = [4, 16], strides = [1, 1]} : vector<4x288xf32> to vector<4x16xf32>
    %454 = arith.truncf %453 : vector<4x16xf32> to vector<4x16xbf16>
    %c1_297 = arith.constant 1 : index
    %c0_298 = arith.constant 0 : index
    %c112_299 = arith.constant 112 : index
    %455 = vector.load %arg6[%c1_297, %c0_298, %c112_299] : memref<2x4x256xbf16, #tpu.memory_space<vmem>>, vector<1x4x16xbf16>
    %456 = vector.shape_cast %455 : vector<1x4x16xbf16> to vector<4x16xbf16>
    %457 = vector.shape_cast %454 : vector<4x16xbf16> to vector<1x4x16xbf16>
    tpu.vector_store %arg6[%c1_297, %c0_298, %c112_299], %457 {strides = array<i32>} : memref<2x4x256xbf16, #tpu.memory_space<vmem>>, vector<1x4x16xbf16>,
    %458 = vector.extract_strided_slice %417 {offsets = [0, 144], sizes = [4, 16], strides = [1, 1]} : vector<4x288xf32> to vector<4x16xf32>
    %459 = arith.truncf %458 : vector<4x16xf32> to vector<4x16xbf16>
    %c1_300 = arith.constant 1 : index
    %c0_301 = arith.constant 0 : index
    %c128_302 = arith.constant 128 : index
    %460 = vector.load %arg6[%c1_300, %c0_301, %c128_302] : memref<2x4x256xbf16, #tpu.memory_space<vmem>>, vector<1x4x16xbf16>
    %461 = vector.shape_cast %460 : vector<1x4x16xbf16> to vector<4x16xbf16>
    %462 = vector.shape_cast %459 : vector<4x16xbf16> to vector<1x4x16xbf16>
    tpu.vector_store %arg6[%c1_300, %c0_301, %c128_302], %462 {strides = array<i32>} : memref<2x4x256xbf16, #tpu.memory_space<vmem>>, vector<1x4x16xbf16>,
    %463 = vector.extract_strided_slice %417 {offsets = [0, 162], sizes = [4, 16], strides = [1, 1]} : vector<4x288xf32> to vector<4x16xf32>
    %464 = arith.truncf %463 : vector<4x16xf32> to vector<4x16xbf16>
    %c1_303 = arith.constant 1 : index
    %c0_304 = arith.constant 0 : index
    %c144_305 = arith.constant 144 : index
    %465 = vector.load %arg6[%c1_303, %c0_304, %c144_305] : memref<2x4x256xbf16, #tpu.memory_space<vmem>>, vector<1x4x16xbf16>
    %466 = vector.shape_cast %465 : vector<1x4x16xbf16> to vector<4x16xbf16>
    %467 = vector.shape_cast %464 : vector<4x16xbf16> to vector<1x4x16xbf16>
    tpu.vector_store %arg6[%c1_303, %c0_304, %c144_305], %467 {strides = array<i32>} : memref<2x4x256xbf16, #tpu.memory_space<vmem>>, vector<1x4x16xbf16>,
    %468 = vector.extract_strided_slice %417 {offsets = [0, 180], sizes = [4, 16], strides = [1, 1]} : vector<4x288xf32> to vector<4x16xf32>
    %469 = arith.truncf %468 : vector<4x16xf32> to vector<4x16xbf16>
    %c1_306 = arith.constant 1 : index
    %c0_307 = arith.constant 0 : index
    %c160_308 = arith.constant 160 : index
    %470 = vector.load %arg6[%c1_306, %c0_307, %c160_308] : memref<2x4x256xbf16, #tpu.memory_space<vmem>>, vector<1x4x16xbf16>
    %471 = vector.shape_cast %470 : vector<1x4x16xbf16> to vector<4x16xbf16>
    %472 = vector.shape_cast %469 : vector<4x16xbf16> to vector<1x4x16xbf16>
    tpu.vector_store %arg6[%c1_306, %c0_307, %c160_308], %472 {strides = array<i32>} : memref<2x4x256xbf16, #tpu.memory_space<vmem>>, vector<1x4x16xbf16>,
    %473 = vector.extract_strided_slice %417 {offsets = [0, 198], sizes = [4, 16], strides = [1, 1]} : vector<4x288xf32> to vector<4x16xf32>
    %474 = arith.truncf %473 : vector<4x16xf32> to vector<4x16xbf16>
    %c1_309 = arith.constant 1 : index
    %c0_310 = arith.constant 0 : index
    %c176_311 = arith.constant 176 : index
    %475 = vector.load %arg6[%c1_309, %c0_310, %c176_311] : memref<2x4x256xbf16, #tpu.memory_space<vmem>>, vector<1x4x16xbf16>
    %476 = vector.shape_cast %475 : vector<1x4x16xbf16> to vector<4x16xbf16>
    %477 = vector.shape_cast %474 : vector<4x16xbf16> to vector<1x4x16xbf16>
    tpu.vector_store %arg6[%c1_309, %c0_310, %c176_311], %477 {strides = array<i32>} : memref<2x4x256xbf16, #tpu.memory_space<vmem>>, vector<1x4x16xbf16>,
    %478 = vector.extract_strided_slice %417 {offsets = [0, 216], sizes = [4, 16], strides = [1, 1]} : vector<4x288xf32> to vector<4x16xf32>
    %479 = arith.truncf %478 : vector<4x16xf32> to vector<4x16xbf16>
    %c1_312 = arith.constant 1 : index
    %c0_313 = arith.constant 0 : index
    %c192_314 = arith.constant 192 : index
    %480 = vector.load %arg6[%c1_312, %c0_313, %c192_314] : memref<2x4x256xbf16, #tpu.memory_space<vmem>>, vector<1x4x16xbf16>
    %481 = vector.shape_cast %480 : vector<1x4x16xbf16> to vector<4x16xbf16>
    %482 = vector.shape_cast %479 : vector<4x16xbf16> to vector<1x4x16xbf16>
    tpu.vector_store %arg6[%c1_312, %c0_313, %c192_314], %482 {strides = array<i32>} : memref<2x4x256xbf16, #tpu.memory_space<vmem>>, vector<1x4x16xbf16>,
    %483 = vector.extract_strided_slice %417 {offsets = [0, 234], sizes = [4, 16], strides = [1, 1]} : vector<4x288xf32> to vector<4x16xf32>
    %484 = arith.truncf %483 : vector<4x16xf32> to vector<4x16xbf16>
    %c1_315 = arith.constant 1 : index
    %c0_316 = arith.constant 0 : index
    %c208_317 = arith.constant 208 : index
    %485 = vector.load %arg6[%c1_315, %c0_316, %c208_317] : memref<2x4x256xbf16, #tpu.memory_space<vmem>>, vector<1x4x16xbf16>
    %486 = vector.shape_cast %485 : vector<1x4x16xbf16> to vector<4x16xbf16>
    %487 = vector.shape_cast %484 : vector<4x16xbf16> to vector<1x4x16xbf16>
    tpu.vector_store %arg6[%c1_315, %c0_316, %c208_317], %487 {strides = array<i32>} : memref<2x4x256xbf16, #tpu.memory_space<vmem>>, vector<1x4x16xbf16>,
    %488 = vector.extract_strided_slice %417 {offsets = [0, 252], sizes = [4, 16], strides = [1, 1]} : vector<4x288xf32> to vector<4x16xf32>
    %489 = arith.truncf %488 : vector<4x16xf32> to vector<4x16xbf16>
    %c1_318 = arith.constant 1 : index
    %c0_319 = arith.constant 0 : index
    %c224_320 = arith.constant 224 : index
    %490 = vector.load %arg6[%c1_318, %c0_319, %c224_320] : memref<2x4x256xbf16, #tpu.memory_space<vmem>>, vector<1x4x16xbf16>
    %491 = vector.shape_cast %490 : vector<1x4x16xbf16> to vector<4x16xbf16>
    %492 = vector.shape_cast %489 : vector<4x16xbf16> to vector<1x4x16xbf16>
    tpu.vector_store %arg6[%c1_318, %c0_319, %c224_320], %492 {strides = array<i32>} : memref<2x4x256xbf16, #tpu.memory_space<vmem>>, vector<1x4x16xbf16>,
    %493 = vector.extract_strided_slice %417 {offsets = [0, 270], sizes = [4, 16], strides = [1, 1]} : vector<4x288xf32> to vector<4x16xf32>
    %494 = arith.truncf %493 : vector<4x16xf32> to vector<4x16xbf16>
    %c1_321 = arith.constant 1 : index
    %c0_322 = arith.constant 0 : index
    %c240_323 = arith.constant 240 : index
    %495 = vector.load %arg6[%c1_321, %c0_322, %c240_323] : memref<2x4x256xbf16, #tpu.memory_space<vmem>>, vector<1x4x16xbf16>
    %496 = vector.shape_cast %495 : vector<1x4x16xbf16> to vector<4x16xbf16>
    %497 = vector.shape_cast %494 : vector<4x16xbf16> to vector<1x4x16xbf16>
    tpu.vector_store %arg6[%c1_321, %c0_322, %c240_323], %497 {strides = array<i32>} : memref<2x4x256xbf16, #tpu.memory_space<vmem>>, vector<1x4x16xbf16>,
    return
  }
  func.func @transform_0(%arg0: i32) -> (i32, i32, i32) {
    %c0_i32 = arith.constant 0 : i32
    %c0_i32_0 = arith.constant 0 : i32
    %c0_i32_1 = arith.constant 0 : i32
    return %arg0, %c0_i32, %c0_i32_0 : i32, i32, i32
  }
  func.func @transform_1(%arg0: i32) -> (i32, i32) {
    %c0_i32 = arith.constant 0 : i32
    %c0_i32_0 = arith.constant 0 : i32
    %c0_i32_1 = arith.constant 0 : i32
    return %c0_i32, %c0_i32_0 : i32, i32
  }
  func.func @transform_2(%arg0: i32) -> (i32, i32) {
    %c0_i32 = arith.constant 0 : i32
    %c0_i32_0 = arith.constant 0 : i32
    %c0_i32_1 = arith.constant 0 : i32
    return %c0_i32, %c0_i32_0 : i32, i32
  }
  func.func @transform_3(%arg0: i32) -> (i32, i32) {
    %c0_i32 = arith.constant 0 : i32
    %c0_i32_0 = arith.constant 0 : i32
    %c0_i32_1 = arith.constant 0 : i32
    return %c0_i32, %c0_i32_0 : i32, i32
  }
  func.func @transform_4(%arg0: i32) -> (i32, i32) {
    %c0_i32 = arith.constant 0 : i32
    %c0_i32_0 = arith.constant 0 : i32
    %c0_i32_1 = arith.constant 0 : i32
    return %c0_i32, %c0_i32_0 : i32, i32
  }
  func.func @transform_5(%arg0: i32) -> (i32, i32, i32) {
    %c0_i32 = arith.constant 0 : i32
    %c0_i32_0 = arith.constant 0 : i32
    %c0_i32_1 = arith.constant 0 : i32
    return %arg0, %c0_i32, %c0_i32_0 : i32, i32, i32
  }
}

module attributes {stable_mosaic.version = 11 : i64} {
  func.func @_head_jsd_kernel(%arg0: i32, %arg1: memref<2x32xf32, #tpu.memory_space<vmem>>, %arg2: memref<2x32xf32, #tpu.memory_space<vmem>>, %arg3: memref<2x512xf32, #tpu.memory_space<vmem>>, %arg4: memref<32x512xbf16, #tpu.memory_space<vmem>>, %arg5: memref<1x512xf32, #tpu.memory_space<vmem>>, %arg6: memref<512x512xbf16, #tpu.memory_space<vmem>>, %arg7: memref<1x512xf32, #tpu.memory_space<vmem>>, %arg8: memref<1x512xf32, #tpu.memory_space<vmem>>, %arg9: memref<1x1xf32, #tpu.memory_space<vmem>>, %arg10: memref<2x1xf32, #tpu.memory_space<vmem>>, %arg11: memref<2x1xf32, #tpu.memory_space<vmem>>, %arg12: memref<4x512xf32, #tpu.memory_space<vmem>>) attributes {dimension_semantics = [#tpu.dimension_semantics<parallel>], iteration_bounds = array<i64: 1>, scalar_prefetch = 0 : i64, scratch_operands = 1 : i64, tpu.core_type = #tpu.core_type<tc>, window_params = [{transform_indices = @transform_0, window_bounds = array<i64: 2, 32>}, {transform_indices = @transform_1, window_bounds = array<i64: 2, 32>}, {transform_indices = @transform_2, window_bounds = array<i64: 2, 512>}, {pipeline_mode = #tpu.pipeline_mode<synchronous>, transform_indices = @transform_3, window_bounds = array<i64: 32, 512>}, {pipeline_mode = #tpu.pipeline_mode<synchronous>, transform_indices = @transform_4, window_bounds = array<i64: 1, 512>}, {pipeline_mode = #tpu.pipeline_mode<synchronous>, transform_indices = @transform_5, window_bounds = array<i64: 512, 512>}, {pipeline_mode = #tpu.pipeline_mode<synchronous>, transform_indices = @transform_6, window_bounds = array<i64: 1, 512>}, {pipeline_mode = #tpu.pipeline_mode<synchronous>, transform_indices = @transform_7, window_bounds = array<i64: 1, 512>}, {pipeline_mode = #tpu.pipeline_mode<synchronous>, transform_indices = @transform_8, window_bounds = array<i64: 1, 1>}, {transform_indices = @transform_9, window_bounds = array<i64: 2, 1>}, {transform_indices = @transform_10, window_bounds = array<i64: 2, 1>}]} {
    %c0 = arith.constant 0 : index
    %c0_0 = arith.constant 0 : index
    %0 = vector.load %arg3[%c0, %c0_0] : memref<2x512xf32, #tpu.memory_space<vmem>>, vector<2x512xf32>
    %c0_1 = arith.constant 0 : index
    %c0_2 = arith.constant 0 : index
    %1 = vector.load %arg5[%c0_1, %c0_2] : memref<1x512xf32, #tpu.memory_space<vmem>>, vector<1x512xf32>
    %c0_3 = arith.constant 0 : index
    %c0_4 = arith.constant 0 : index
    %2 = vector.load %arg4[%c0_3, %c0_4] : memref<32x512xbf16, #tpu.memory_space<vmem>>, vector<32x512xbf16>
    %c0_5 = arith.constant 0 : index
    %c0_6 = arith.constant 0 : index
    %3 = vector.load %arg1[%c0_5, %c0_6] : memref<2x32xf32, #tpu.memory_space<vmem>>, vector<2x32xf32>
    %4 = arith.truncf %3 : vector<2x32xf32> to vector<2x32xbf16>
    %cst = arith.constant dense<0.000000e+00> : vector<2x512xf32>
    %5 = tpu.matmul %4, %2, %cst {dimension_numbers = #tpu.dot_dimension_numbers<[1], [0], [0], [1], [0, 0, 1, 1], [], []>} : vector<2x32xbf16>, vector<32x512xbf16>, vector<2x512xf32> -> vector<2x512xf32>
    %6 = arith.addf %0, %5 : vector<2x512xf32>
    %7 = vector.broadcast %1 : vector<1x512xf32> to vector<2x512xf32>
    %8 = arith.addf %6, %7 : vector<2x512xf32>
    %cst_7 = arith.constant 0.000000e+00 : f32
    %9 = vector.broadcast %cst_7 : f32 to vector<2x512xf32>
    %10 = arith.maximumf %8, %9 : vector<2x512xf32>
    %c0_8 = arith.constant 0 : index
    %c0_9 = arith.constant 0 : index
    %11 = vector.load %arg2[%c0_8, %c0_9] : memref<2x32xf32, #tpu.memory_space<vmem>>, vector<2x32xf32>
    %12 = arith.truncf %11 : vector<2x32xf32> to vector<2x32xbf16>
    %cst_10 = arith.constant dense<0.000000e+00> : vector<2x512xf32>
    %13 = tpu.matmul %12, %2, %cst_10 {dimension_numbers = #tpu.dot_dimension_numbers<[1], [0], [0], [1], [0, 0, 1, 1], [], []>} : vector<2x32xbf16>, vector<32x512xbf16>, vector<2x512xf32> -> vector<2x512xf32>
    %14 = arith.addf %0, %13 : vector<2x512xf32>
    %15 = vector.broadcast %1 : vector<1x512xf32> to vector<2x512xf32>
    %16 = arith.addf %14, %15 : vector<2x512xf32>
    %cst_11 = arith.constant 0.000000e+00 : f32
    %17 = vector.broadcast %cst_11 : f32 to vector<2x512xf32>
    %18 = arith.maximumf %16, %17 : vector<2x512xf32>
    %c0_12 = arith.constant 0 : index
    %c0_13 = arith.constant 0 : index
    %19 = vector.load %arg12[%c0_12, %c0_13] : memref<4x512xf32, #tpu.memory_space<vmem>>, vector<2x512xf32>
    tpu.vector_store %arg12[%c0_12, %c0_13], %10 {strides = array<i32>} : memref<4x512xf32, #tpu.memory_space<vmem>>, vector<2x512xf32>,
    %c2 = arith.constant 2 : index
    %c0_14 = arith.constant 0 : index
    %20 = vector.load %arg12[%c2, %c0_14] : memref<4x512xf32, #tpu.memory_space<vmem>>, vector<2x512xf32>
    tpu.vector_store %arg12[%c2, %c0_14], %18 {strides = array<i32>} : memref<4x512xf32, #tpu.memory_space<vmem>>, vector<2x512xf32>,
    %c0_15 = arith.constant 0 : index
    %c0_16 = arith.constant 0 : index
    %21 = vector.load %arg12[%c0_15, %c0_16] : memref<4x512xf32, #tpu.memory_space<vmem>>, vector<4x512xf32>
    %22 = arith.truncf %21 : vector<4x512xf32> to vector<4x512xbf16>
    %c0_17 = arith.constant 0 : index
    %c0_18 = arith.constant 0 : index
    %23 = vector.load %arg6[%c0_17, %c0_18] : memref<512x512xbf16, #tpu.memory_space<vmem>>, vector<512x512xbf16>
    %cst_19 = arith.constant dense<0.000000e+00> : vector<4x512xf32>
    %24 = tpu.matmul %22, %23, %cst_19 {dimension_numbers = #tpu.dot_dimension_numbers<[1], [0], [0], [1], [0, 0, 1, 1], [], []>} : vector<4x512xbf16>, vector<512x512xbf16>, vector<4x512xf32> -> vector<4x512xf32>
    %c0_20 = arith.constant 0 : index
    %c0_21 = arith.constant 0 : index
    %25 = vector.load %arg7[%c0_20, %c0_21] : memref<1x512xf32, #tpu.memory_space<vmem>>, vector<1x512xf32>
    %26 = vector.broadcast %25 : vector<1x512xf32> to vector<4x512xf32>
    %27 = arith.addf %24, %26 : vector<4x512xf32>
    %cst_22 = arith.constant 0.000000e+00 : f32
    %28 = vector.broadcast %cst_22 : f32 to vector<4x512xf32>
    %29 = arith.maximumf %27, %28 : vector<4x512xf32>
    %c0_23 = arith.constant 0 : index
    %c0_24 = arith.constant 0 : index
    %30 = vector.load %arg8[%c0_23, %c0_24] : memref<1x512xf32, #tpu.memory_space<vmem>>, vector<1x512xf32>
    %31 = vector.broadcast %30 : vector<1x512xf32> to vector<4x512xf32>
    %32 = arith.mulf %29, %31 : vector<4x512xf32>
    %cst_25 = arith.constant dense<0.000000e+00> : vector<4xf32>
    %33 = vector.multi_reduction <add>, %32, %cst_25 [1] : vector<4x512xf32> to vector<4xf32>
    %34 = vector.shape_cast %33 : vector<4xf32> to vector<4x1xf32>
    %c0_26 = arith.constant 0 : index
    %c0_27 = arith.constant 0 : index
    %35 = vector.load %arg9[%c0_26, %c0_27] : memref<1x1xf32, #tpu.memory_space<vmem>>, vector<1x1xf32>
    %36 = vector.broadcast %35 : vector<1x1xf32> to vector<4x1xf32>
    %37 = arith.addf %34, %36 : vector<4x1xf32>
    %38 = vector.extract_strided_slice %37 {offsets = [0, 0], sizes = [2, 1], strides = [1, 1]} : vector<4x1xf32> to vector<2x1xf32>
    %cst_28 = arith.constant 0.000000e+00 : f32
    %39 = vector.broadcast %cst_28 : f32 to vector<2x1xf32>
    %40 = arith.subf %39, %38 : vector<2x1xf32>
    %cst_29 = arith.constant 0.000000e+00 : f32
    %41 = vector.broadcast %cst_29 : f32 to vector<2x1xf32>
    %42 = arith.maximumf %40, %41 : vector<2x1xf32>
    %43 = math.absf %40 : vector<2x1xf32>
    %cst_30 = arith.constant 0.000000e+00 : f32
    %44 = vector.broadcast %cst_30 : f32 to vector<2x1xf32>
    %45 = arith.subf %44, %43 : vector<2x1xf32>
    %46 = math.exp %45 : vector<2x1xf32>
    %cst_31 = arith.constant 1.000000e+00 : f32
    %47 = vector.broadcast %cst_31 : f32 to vector<2x1xf32>
    %48 = arith.addf %47, %46 : vector<2x1xf32>
    %49 = math.log %48 : vector<2x1xf32>
    %50 = arith.addf %42, %49 : vector<2x1xf32>
    %c0_32 = arith.constant 0 : index
    %c0_33 = arith.constant 0 : index
    %51 = vector.load %arg10[%c0_32, %c0_33] : memref<2x1xf32, #tpu.memory_space<vmem>>, vector<2x1xf32>
    tpu.vector_store %arg10[%c0_32, %c0_33], %50 {strides = array<i32>} : memref<2x1xf32, #tpu.memory_space<vmem>>, vector<2x1xf32>,
    %52 = vector.extract_strided_slice %37 {offsets = [2, 0], sizes = [2, 1], strides = [1, 1]} : vector<4x1xf32> to vector<2x1xf32>
    %cst_34 = arith.constant 0.000000e+00 : f32
    %53 = vector.broadcast %cst_34 : f32 to vector<2x1xf32>
    %54 = arith.maximumf %52, %53 : vector<2x1xf32>
    %55 = math.absf %52 : vector<2x1xf32>
    %cst_35 = arith.constant 0.000000e+00 : f32
    %56 = vector.broadcast %cst_35 : f32 to vector<2x1xf32>
    %57 = arith.subf %56, %55 : vector<2x1xf32>
    %58 = math.exp %57 : vector<2x1xf32>
    %cst_36 = arith.constant 1.000000e+00 : f32
    %59 = vector.broadcast %cst_36 : f32 to vector<2x1xf32>
    %60 = arith.addf %59, %58 : vector<2x1xf32>
    %61 = math.log %60 : vector<2x1xf32>
    %62 = arith.addf %54, %61 : vector<2x1xf32>
    %c0_37 = arith.constant 0 : index
    %c0_38 = arith.constant 0 : index
    %63 = vector.load %arg11[%c0_37, %c0_38] : memref<2x1xf32, #tpu.memory_space<vmem>>, vector<2x1xf32>
    tpu.vector_store %arg11[%c0_37, %c0_38], %62 {strides = array<i32>} : memref<2x1xf32, #tpu.memory_space<vmem>>, vector<2x1xf32>,
    return
  }
  func.func @transform_0(%arg0: i32) -> (i32, i32) {
    %c0_i32 = arith.constant 0 : i32
    %c0_i32_0 = arith.constant 0 : i32
    return %arg0, %c0_i32 : i32, i32
  }
  func.func @transform_1(%arg0: i32) -> (i32, i32) {
    %c0_i32 = arith.constant 0 : i32
    %c0_i32_0 = arith.constant 0 : i32
    return %arg0, %c0_i32 : i32, i32
  }
  func.func @transform_2(%arg0: i32) -> (i32, i32) {
    %c0_i32 = arith.constant 0 : i32
    %c0_i32_0 = arith.constant 0 : i32
    return %arg0, %c0_i32 : i32, i32
  }
  func.func @transform_3(%arg0: i32) -> (i32, i32) {
    %c0_i32 = arith.constant 0 : i32
    %c0_i32_0 = arith.constant 0 : i32
    %c0_i32_1 = arith.constant 0 : i32
    return %c0_i32, %c0_i32_0 : i32, i32
  }
  func.func @transform_4(%arg0: i32) -> (i32, i32) {
    %c0_i32 = arith.constant 0 : i32
    %c0_i32_0 = arith.constant 0 : i32
    %c0_i32_1 = arith.constant 0 : i32
    return %c0_i32, %c0_i32_0 : i32, i32
  }
  func.func @transform_5(%arg0: i32) -> (i32, i32) {
    %c0_i32 = arith.constant 0 : i32
    %c0_i32_0 = arith.constant 0 : i32
    %c0_i32_1 = arith.constant 0 : i32
    return %c0_i32, %c0_i32_0 : i32, i32
  }
  func.func @transform_6(%arg0: i32) -> (i32, i32) {
    %c0_i32 = arith.constant 0 : i32
    %c0_i32_0 = arith.constant 0 : i32
    %c0_i32_1 = arith.constant 0 : i32
    return %c0_i32, %c0_i32_0 : i32, i32
  }
  func.func @transform_7(%arg0: i32) -> (i32, i32) {
    %c0_i32 = arith.constant 0 : i32
    %c0_i32_0 = arith.constant 0 : i32
    %c0_i32_1 = arith.constant 0 : i32
    return %c0_i32, %c0_i32_0 : i32, i32
  }
  func.func @transform_8(%arg0: i32) -> (i32, i32) {
    %c0_i32 = arith.constant 0 : i32
    %c0_i32_0 = arith.constant 0 : i32
    %c0_i32_1 = arith.constant 0 : i32
    return %c0_i32, %c0_i32_0 : i32, i32
  }
  func.func @transform_9(%arg0: i32) -> (i32, i32) {
    %c0_i32 = arith.constant 0 : i32
    %c0_i32_0 = arith.constant 0 : i32
    return %arg0, %c0_i32 : i32, i32
  }
  func.func @transform_10(%arg0: i32) -> (i32, i32) {
    %c0_i32 = arith.constant 0 : i32
    %c0_i32_0 = arith.constant 0 : i32
    return %arg0, %c0_i32 : i32, i32
  }
}

</mosaic_0001>

<llo_original>
// kernel: global_dim_forward.4
$region0: #{global_dim_forward.4}
  #allocation0 [shape = 'u32[]', space=smem, size = 0x4, offset = 0x4, fixed_abs, tag = 'smem constant byte address 0x4 - core index']
  #allocation1 [shape = 'u32[144,128]{1,0:T(1,128)}', space=vmem, size = 0x12000, scoped, tag = 'internal scratch']
  %s0 = inlined_call_operand.vmem [shape: bf16[2,1024], index: 0, kind: input, shape index: {}]
  %s1 = inlined_call_operand.vmem [shape: bf16[1024,512], index: 1, kind: input, shape index: {}]
  %s2 = inlined_call_operand.vmem [shape: bf16[1024,32], index: 2, kind: input, shape index: {}]
  %s3 = inlined_call_operand.vmem [shape: f32[1,32], index: 3, kind: input, shape index: {}]
  %s4 = inlined_call_operand.vmem [shape: f32[2,32], index: 4, kind: output, shape index: {0}]
  %s5 = inlined_call_operand.vmem [shape: f32[2,512], index: 5, kind: output, shape index: {1}]
  %6 = xla_tuple %s4, %s5
  %s7 = sld [smem:[#allocation0]]
  $region38: #{global_dim_forward.4} parent=0
    _
  %s9 = ssub.s32 1, %s7
  %s10 = scalar_select 0, %s9, %s7
  // Predicated region
  $region2: #{global_dim_forward.4} parent=0 // pred_check
    _
  $region3: #{global_dim_forward.4} parent=0 // pred_check_branch
    %12 = sbr.rel (0) target = $region5
  $region4: #{global_dim_forward.4} parent=0 // pred_region
    _
  $region5: #{global_dim_forward.4} parent=0 // pred_fallthru
    _
  // Predicated region
  $region6: #{global_dim_forward.4} parent=0 // pred_check
    _
  $region7: #{global_dim_forward.4} parent=0 // pred_check_branch
    %14 = sbr.rel (0) target = $region9
  $region8: #{global_dim_forward.4} parent=0 // pred_region
    _
  $region9: #{global_dim_forward.4} parent=0 // pred_fallthru
    _
  // Predicated region
  $region10: #{global_dim_forward.4} parent=0 // pred_check
    _
  $region11: #{global_dim_forward.4} parent=0 // pred_check_branch
    %16 = sbr.rel (0) target = $region13
  $region12: #{global_dim_forward.4} parent=0 // pred_region
    _
  $region13: #{global_dim_forward.4} parent=0 // pred_fallthru
    _
  // Predicated region
  $region14: #{global_dim_forward.4} parent=0 // pred_check
    _
  $region15: #{global_dim_forward.4} parent=0 // pred_check_branch
    %18 = sbr.rel (0) target = $region17
  $region16: #{global_dim_forward.4} parent=0 // pred_region
    _
  $region17: #{global_dim_forward.4} parent=0 // pred_fallthru
    _
  %p20 = scmp.eq.s32.totalorder 0, 0
  // Predicated region
  $region18: #{global_dim_forward.4} parent=0 // pred_check
    %p21 = pneg %p20
  $region19: #{global_dim_forward.4} parent=0 // pred_check_branch
    %23 = sbr.rel (%p21) target = $region21
  $region20: #{global_dim_forward.4} parent=0 // pred_region
    %v24 = vld [vmem:[%s3] sm:$0x1]
    %v26 = vlaneseq
    %v27 = vshrl.u32 %v26, 7
    %v28 = vsub.s32 0, %v27
    %v29 = vrot.slane %v24, %v28
    %v31 = vadd.f32 %v29, 0.0
    %vm32 = vcmask 254976
    %33 = vst.msk [vmem:[%s4] sm:$0x3] %vm32, %v31
    %34 = vst [vmem:[%s5] sm:$0xff] 0.0
  $region21: #{global_dim_forward.4} parent=0 // pred_fallthru
    _
  %v35 = vld [vmem:[%s0] sm:$0xff]
  %v36 = vld [vmem:[%s5] sm:$0xff]
  %v37 = vld [vmem:[%s1] sm:$0xff]
  %v38 = vld [vmem:[%s1 + $0x8] sm:$0xff]
  %v39 = vld [vmem:[%s1 + $0x10] sm:$0xff]
  %v40 = vld [vmem:[%s1 + $0x18] sm:$0xff]
  %v41 = vld [vmem:[%s1 + $0x20] sm:$0xff]
  %v42 = vld [vmem:[%s1 + $0x28] sm:$0xff]
  %v43 = vld [vmem:[%s1 + $0x30] sm:$0xff]
  %v44 = vld [vmem:[%s1 + $0x38] sm:$0xff]
  %v45 = vld [vmem:[%s1 + $0x40] sm:$0xff]
  %v46 = vld [vmem:[%s1 + $0x48] sm:$0xff]
  %v47 = vld [vmem:[%s1 + $0x50] sm:$0xff]
  %v48 = vld [vmem:[%s1 + $0x58] sm:$0xff]
  %v49 = vld [vmem:[%s1 + $0x60] sm:$0xff]
  %v50 = vld [vmem:[%s1 + $0x68] sm:$0xff]
  %v51 = vld [vmem:[%s1 + $0x70] sm:$0xff]
  %v52 = vld [vmem:[%s1 + $0x78] sm:$0xff]
  %v53 = vld [vmem:[%s1 + $0x80] sm:$0xff]
  %v54 = vld [vmem:[%s1 + $0x88] sm:$0xff]
  %v55 = vld [vmem:[%s1 + $0x90] sm:$0xff]
  %v56 = vld [vmem:[%s1 + $0x98] sm:$0xff]
  %v57 = vld [vmem:[%s1 + $0xa0] sm:$0xff]
  %v58 = vld [vmem:[%s1 + $0xa8] sm:$0xff]
  %v59 = vld [vmem:[%s1 + $0xb0] sm:$0xff]
  %v60 = vld [vmem:[%s1 + $0xb8] sm:$0xff]
  %v61 = vld [vmem:[%s1 + $0xc0] sm:$0xff]
  %v62 = vld [vmem:[%s1 + $0xc8] sm:$0xff]
  %v63 = vld [vmem:[%s1 + $0xd0] sm:$0xff]
  %v64 = vld [vmem:[%s1 + $0xd8] sm:$0xff]
  %v65 = vld [vmem:[%s1 + $0xe0] sm:$0xff]
  %v66 = vld [vmem:[%s1 + $0xe8] sm:$0xff]
  %v67 = vld [vmem:[%s1 + $0xf0] sm:$0xff]
  %v68 = vld [vmem:[%s1 + $0xf8] sm:$0xff]
  %v69 = vld [vmem:[%s1 + $0x100] sm:$0xff]
  %v70 = vld [vmem:[%s1 + $0x108] sm:$0xff]
  %v71 = vld [vmem:[%s1 + $0x110] sm:$0xff]
  %v72 = vld [vmem:[%s1 + $0x118] sm:$0xff]
  %v73 = vld [vmem:[%s1 + $0x120] sm:$0xff]
  %v74 = vld [vmem:[%s1 + $0x128] sm:$0xff]
  %v75 = vld [vmem:[%s1 + $0x130] sm:$0xff]
  %v76 = vld [vmem:[%s1 + $0x138] sm:$0xff]
  %v77 = vld [vmem:[%s1 + $0x140] sm:$0xff]
  %v78 = vld [vmem:[%s1 + $0x148] sm:$0xff]
  %v79 = vld [vmem:[%s1 + $0x150] sm:$0xff]
  %v80 = vld [vmem:[%s1 + $0x158] sm:$0xff]
  %v81 = vld [vmem:[%s1 + $0x160] sm:$0xff]
  %v82 = vld [vmem:[%s1 + $0x168] sm:$0xff]
  %v83 = vld [vmem:[%s1 + $0x170] sm:$0xff]
  %v84 = vld [vmem:[%s1 + $0x178] sm:$0xff]
  %v85 = vld [vmem:[%s1 + $0x180] sm:$0xff]
  %v86 = vld [vmem:[%s1 + $0x188] sm:$0xff]
  %v87 = vld [vmem:[%s1 + $0x190] sm:$0xff]
  %v88 = vld [vmem:[%s1 + $0x198] sm:$0xff]
  %v89 = vld [vmem:[%s1 + $0x1a0] sm:$0xff]
  %v90 = vld [vmem:[%s1 + $0x1a8] sm:$0xff]
  %v91 = vld [vmem:[%s1 + $0x1b0] sm:$0xff]
  %v92 = vld [vmem:[%s1 + $0x1b8] sm:$0xff]
  %v93 = vld [vmem:[%s1 + $0x1c0] sm:$0xff]
  %v94 = vld [vmem:[%s1 + $0x1c8] sm:$0xff]
  %v95 = vld [vmem:[%s1 + $0x1d0] sm:$0xff]
  %v96 = vld [vmem:[%s1 + $0x1d8] sm:$0xff]
  %v97 = vld [vmem:[%s1 + $0x1e0] sm:$0xff]
  %v98 = vld [vmem:[%s1 + $0x1e8] sm:$0xff]
  %v99 = vld [vmem:[%s1 + $0x1f0] sm:$0xff]
  %v100 = vld [vmem:[%s1 + $0x1f8] sm:$0xff]
  %v101 = vld [vmem:[%s1 + $0x200] sm:$0xff]
  %v102 = vld [vmem:[%s1 + $0x208] sm:$0xff]
  %v103 = vld [vmem:[%s1 + $0x210] sm:$0xff]
  %v104 = vld [vmem:[%s1 + $0x218] sm:$0xff]
  %v105 = vld [vmem:[%s1 + $0x220] sm:$0xff]
  %v106 = vld [vmem:[%s1 + $0x228] sm:$0xff]
  %v107 = vld [vmem:[%s1 + $0x230] sm:$0xff]
  %v108 = vld [vmem:[%s1 + $0x238] sm:$0xff]
  %v109 = vld [vmem:[%s1 + $0x240] sm:$0xff]
  %v110 = vld [vmem:[%s1 + $0x248] sm:$0xff]
  %v111 = vld [vmem:[%s1 + $0x250] sm:$0xff]
  %v112 = vld [vmem:[%s1 + $0x258] sm:$0xff]
  %v113 = vld [vmem:[%s1 + $0x260] sm:$0xff]
  %v114 = vld [vmem:[%s1 + $0x268] sm:$0xff]
  %v115 = vld [vmem:[%s1 + $0x270] sm:$0xff]
  %v116 = vld [vmem:[%s1 + $0x278] sm:$0xff]
  %v117 = vld [vmem:[%s1 + $0x280] sm:$0xff]
  %v118 = vld [vmem:[%s1 + $0x288] sm:$0xff]
  %v119 = vld [vmem:[%s1 + $0x290] sm:$0xff]
  %v120 = vld [vmem:[%s1 + $0x298] sm:$0xff]
  %v121 = vld [vmem:[%s1 + $0x2a0] sm:$0xff]
  %v122 = vld [vmem:[%s1 + $0x2a8] sm:$0xff]
  %v123 = vld [vmem:[%s1 + $0x2b0] sm:$0xff]
  %v124 = vld [vmem:[%s1 + $0x2b8] sm:$0xff]
  %v125 = vld [vmem:[%s1 + $0x2c0] sm:$0xff]
  %v126 = vld [vmem:[%s1 + $0x2c8] sm:$0xff]
  %v127 = vld [vmem:[%s1 + $0x2d0] sm:$0xff]
  %v128 = vld [vmem:[%s1 + $0x2d8] sm:$0xff]
  %v129 = vld [vmem:[%s1 + $0x2e0] sm:$0xff]
  %v130 = vld [vmem:[%s1 + $0x2e8] sm:$0xff]
  %v131 = vld [vmem:[%s1 + $0x2f0] sm:$0xff]
  %v132 = vld [vmem:[%s1 + $0x2f8] sm:$0xff]
  %v133 = vld [vmem:[%s1 + $0x300] sm:$0xff]
  %v134 = vld [vmem:[%s1 + $0x308] sm:$0xff]
  %v135 = vld [vmem:[%s1 + $0x310] sm:$0xff]
  %v136 = vld [vmem:[%s1 + $0x318] sm:$0xff]
  %v137 = vld [vmem:[%s1 + $0x320] sm:$0xff]
  %v138 = vld [vmem:[%s1 + $0x328] sm:$0xff]
  %v139 = vld [vmem:[%s1 + $0x330] sm:$0xff]
  %v140 = vld [vmem:[%s1 + $0x338] sm:$0xff]
  %v141 = vld [vmem:[%s1 + $0x340] sm:$0xff]
  %v142 = vld [vmem:[%s1 + $0x348] sm:$0xff]
  %v143 = vld [vmem:[%s1 + $0x350] sm:$0xff]
  %v144 = vld [vmem:[%s1 + $0x358] sm:$0xff]
  %v145 = vld [vmem:[%s1 + $0x360] sm:$0xff]
  %v146 = vld [vmem:[%s1 + $0x368] sm:$0xff]
  %v147 = vld [vmem:[%s1 + $0x370] sm:$0xff]
  %v148 = vld [vmem:[%s1 + $0x378] sm:$0xff]
  %v149 = vld [vmem:[%s1 + $0x380] sm:$0xff]
  %v150 = vld [vmem:[%s1 + $0x388] sm:$0xff]
  %v151 = vld [vmem:[%s1 + $0x390] sm:$0xff]
  %v152 = vld [vmem:[%s1 + $0x398] sm:$0xff]
  %v153 = vld [vmem:[%s1 + $0x3a0] sm:$0xff]
  %v154 = vld [vmem:[%s1 + $0x3a8] sm:$0xff]
  %v155 = vld [vmem:[%s1 + $0x3b0] sm:$0xff]
  %v156 = vld [vmem:[%s1 + $0x3b8] sm:$0xff]
  %v157 = vld [vmem:[%s1 + $0x3c0] sm:$0xff]
  %v158 = vld [vmem:[%s1 + $0x3c8] sm:$0xff]
  %v159 = vld [vmem:[%s1 + $0x3d0] sm:$0xff]
  %v160 = vld [vmem:[%s1 + $0x3d8] sm:$0xff]
  %v161 = vld [vmem:[%s1 + $0x3e0] sm:$0xff]
  %v162 = vld [vmem:[%s1 + $0x3e8] sm:$0xff]
  %v163 = vld [vmem:[%s1 + $0x3f0] sm:$0xff]
  %v164 = vld [vmem:[%s1 + $0x3f8] sm:$0xff]
  %v165 = vld [vmem:[%s1 + $0x400] sm:$0xff]
  %v166 = vld [vmem:[%s1 + $0x408] sm:$0xff]
  %v167 = vld [vmem:[%s1 + $0x410] sm:$0xff]
  %v168 = vld [vmem:[%s1 + $0x418] sm:$0xff]
  %v169 = vld [vmem:[%s1 + $0x420] sm:$0xff]
  %v170 = vld [vmem:[%s1 + $0x428] sm:$0xff]
  %v171 = vld [vmem:[%s1 + $0x430] sm:$0xff]
  %v172 = vld [vmem:[%s1 + $0x438] sm:$0xff]
  %v173 = vld [vmem:[%s1 + $0x440] sm:$0xff]
  %v174 = vld [vmem:[%s1 + $0x448] sm:$0xff]
  %v175 = vld [vmem:[%s1 + $0x450] sm:$0xff]
  %v176 = vld [vmem:[%s1 + $0x458] sm:$0xff]
  %v177 = vld [vmem:[%s1 + $0x460] sm:$0xff]
  %v178 = vld [vmem:[%s1 + $0x468] sm:$0xff]
  %v179 = vld [vmem:[%s1 + $0x470] sm:$0xff]
  %v180 = vld [vmem:[%s1 + $0x478] sm:$0xff]
  %v181 = vld [vmem:[%s1 + $0x480] sm:$0xff]
  %v182 = vld [vmem:[%s1 + $0x488] sm:$0xff]
  %v183 = vld [vmem:[%s1 + $0x490] sm:$0xff]
  %v184 = vld [vmem:[%s1 + $0x498] sm:$0xff]
  %v185 = vld [vmem:[%s1 + $0x4a0] sm:$0xff]
  %v186 = vld [vmem:[%s1 + $0x4a8] sm:$0xff]
  %v187 = vld [vmem:[%s1 + $0x4b0] sm:$0xff]
  %v188 = vld [vmem:[%s1 + $0x4b8] sm:$0xff]
  %v189 = vld [vmem:[%s1 + $0x4c0] sm:$0xff]
  %v190 = vld [vmem:[%s1 + $0x4c8] sm:$0xff]
  %v191 = vld [vmem:[%s1 + $0x4d0] sm:$0xff]
  %v192 = vld [vmem:[%s1 + $0x4d8] sm:$0xff]
  %v193 = vld [vmem:[%s1 + $0x4e0] sm:$0xff]
  %v194 = vld [vmem:[%s1 + $0x4e8] sm:$0xff]
  %v195 = vld [vmem:[%s1 + $0x4f0] sm:$0xff]
  %v196 = vld [vmem:[%s1 + $0x4f8] sm:$0xff]
  %v197 = vld [vmem:[%s1 + $0x500] sm:$0xff]
  %v198 = vld [vmem:[%s1 + $0x508] sm:$0xff]
  %v199 = vld [vmem:[%s1 + $0x510] sm:$0xff]
  %v200 = vld [vmem:[%s1 + $0x518] sm:$0xff]
  %v201 = vld [vmem:[%s1 + $0x520] sm:$0xff]
  %v202 = vld [vmem:[%s1 + $0x528] sm:$0xff]
  %v203 = vld [vmem:[%s1 + $0x530] sm:$0xff]
  %v204 = vld [vmem:[%s1 + $0x538] sm:$0xff]
  %v205 = vld [vmem:[%s1 + $0x540] sm:$0xff]
  %v206 = vld [vmem:[%s1 + $0x548] sm:$0xff]
  %v207 = vld [vmem:[%s1 + $0x550] sm:$0xff]
  %v208 = vld [vmem:[%s1 + $0x558] sm:$0xff]
  %v209 = vld [vmem:[%s1 + $0x560] sm:$0xff]
  %v210 = vld [vmem:[%s1 + $0x568] sm:$0xff]
  %v211 = vld [vmem:[%s1 + $0x570] sm:$0xff]
  %v212 = vld [vmem:[%s1 + $0x578] sm:$0xff]
  %v213 = vld [vmem:[%s1 + $0x580] sm:$0xff]
  %v214 = vld [vmem:[%s1 + $0x588] sm:$0xff]
  %v215 = vld [vmem:[%s1 + $0x590] sm:$0xff]
  %v216 = vld [vmem:[%s1 + $0x598] sm:$0xff]
  %v217 = vld [vmem:[%s1 + $0x5a0] sm:$0xff]
  %v218 = vld [vmem:[%s1 + $0x5a8] sm:$0xff]
  %v219 = vld [vmem:[%s1 + $0x5b0] sm:$0xff]
  %v220 = vld [vmem:[%s1 + $0x5b8] sm:$0xff]
  %v221 = vld [vmem:[%s1 + $0x5c0] sm:$0xff]
  %v222 = vld [vmem:[%s1 + $0x5c8] sm:$0xff]
  %v223 = vld [vmem:[%s1 + $0x5d0] sm:$0xff]
  %v224 = vld [vmem:[%s1 + $0x5d8] sm:$0xff]
  %v225 = vld [vmem:[%s1 + $0x5e0] sm:$0xff]
  %v226 = vld [vmem:[%s1 + $0x5e8] sm:$0xff]
  %v227 = vld [vmem:[%s1 + $0x5f0] sm:$0xff]
  %v228 = vld [vmem:[%s1 + $0x5f8] sm:$0xff]
  %v229 = vld [vmem:[%s1 + $0x600] sm:$0xff]
  %v230 = vld [vmem:[%s1 + $0x608] sm:$0xff]
  %v231 = vld [vmem:[%s1 + $0x610] sm:$0xff]
  %v232 = vld [vmem:[%s1 + $0x618] sm:$0xff]
  %v233 = vld [vmem:[%s1 + $0x620] sm:$0xff]
  %v234 = vld [vmem:[%s1 + $0x628] sm:$0xff]
  %v235 = vld [vmem:[%s1 + $0x630] sm:$0xff]
  %v236 = vld [vmem:[%s1 + $0x638] sm:$0xff]
  %v237 = vld [vmem:[%s1 + $0x640] sm:$0xff]
  %v238 = vld [vmem:[%s1 + $0x648] sm:$0xff]
  %v239 = vld [vmem:[%s1 + $0x650] sm:$0xff]
  %v240 = vld [vmem:[%s1 + $0x658] sm:$0xff]
  %v241 = vld [vmem:[%s1 + $0x660] sm:$0xff]
  %v242 = vld [vmem:[%s1 + $0x668] sm:$0xff]
  %v243 = vld [vmem:[%s1 + $0x670] sm:$0xff]
  %v244 = vld [vmem:[%s1 + $0x678] sm:$0xff]
  %v245 = vld [vmem:[%s1 + $0x680] sm:$0xff]
  %v246 = vld [vmem:[%s1 + $0x688] sm:$0xff]
  %v247 = vld [vmem:[%s1 + $0x690] sm:$0xff]
  %v248 = vld [vmem:[%s1 + $0x698] sm:$0xff]
  %v249 = vld [vmem:[%s1 + $0x6a0] sm:$0xff]
  %v250 = vld [vmem:[%s1 + $0x6a8] sm:$0xff]
  %v251 = vld [vmem:[%s1 + $0x6b0] sm:$0xff]
  %v252 = vld [vmem:[%s1 + $0x6b8] sm:$0xff]
  %v253 = vld [vmem:[%s1 + $0x6c0] sm:$0xff]
  %v254 = vld [vmem:[%s1 + $0x6c8] sm:$0xff]
  %v255 = vld [vmem:[%s1 + $0x6d0] sm:$0xff]
  %v256 = vld [vmem:[%s1 + $0x6d8] sm:$0xff]
  %v257 = vld [vmem:[%s1 + $0x6e0] sm:$0xff]
  %v258 = vld [vmem:[%s1 + $0x6e8] sm:$0xff]
  %v259 = vld [vmem:[%s1 + $0x6f0] sm:$0xff]
  %v260 = vld [vmem:[%s1 + $0x6f8] sm:$0xff]
  %v261 = vld [vmem:[%s1 + $0x700] sm:$0xff]
  %v262 = vld [vmem:[%s1 + $0x708] sm:$0xff]
  %v263 = vld [vmem:[%s1 + $0x710] sm:$0xff]
  %v264 = vld [vmem:[%s1 + $0x718] sm:$0xff]
  %v265 = vld [vmem:[%s1 + $0x720] sm:$0xff]
  %v266 = vld [vmem:[%s1 + $0x728] sm:$0xff]
  %v267 = vld [vmem:[%s1 + $0x730] sm:$0xff]
  %v268 = vld [vmem:[%s1 + $0x738] sm:$0xff]
  %v269 = vld [vmem:[%s1 + $0x740] sm:$0xff]
  %v270 = vld [vmem:[%s1 + $0x748] sm:$0xff]
  %v271 = vld [vmem:[%s1 + $0x750] sm:$0xff]
  %v272 = vld [vmem:[%s1 + $0x758] sm:$0xff]
  %v273 = vld [vmem:[%s1 + $0x760] sm:$0xff]
  %v274 = vld [vmem:[%s1 + $0x768] sm:$0xff]
  %v275 = vld [vmem:[%s1 + $0x770] sm:$0xff]
  %v276 = vld [vmem:[%s1 + $0x778] sm:$0xff]
  %v277 = vld [vmem:[%s1 + $0x780] sm:$0xff]
  %v278 = vld [vmem:[%s1 + $0x788] sm:$0xff]
  %v279 = vld [vmem:[%s1 + $0x790] sm:$0xff]
  %v280 = vld [vmem:[%s1 + $0x798] sm:$0xff]
  %v281 = vld [vmem:[%s1 + $0x7a0] sm:$0xff]
  %v282 = vld [vmem:[%s1 + $0x7a8] sm:$0xff]
  %v283 = vld [vmem:[%s1 + $0x7b0] sm:$0xff]
  %v284 = vld [vmem:[%s1 + $0x7b8] sm:$0xff]
  %v285 = vld [vmem:[%s1 + $0x7c0] sm:$0xff]
  %v286 = vld [vmem:[%s1 + $0x7c8] sm:$0xff]
  %v287 = vld [vmem:[%s1 + $0x7d0] sm:$0xff]
  %v288 = vld [vmem:[%s1 + $0x7d8] sm:$0xff]
  %v289 = vld [vmem:[%s1 + $0x7e0] sm:$0xff]
  %v290 = vld [vmem:[%s1 + $0x7e8] sm:$0xff]
  %v291 = vld [vmem:[%s1 + $0x7f0] sm:$0xff]
  %v292 = vld [vmem:[%s1 + $0x7f8] sm:$0xff]
  %v294 = vcombine.high %v35, %v35
  %v296 = vunpack.c.l.s4 1966171168
  %v297 = vunpack.c.0.s8 %v296
  %v298 = vlaneseq
  %v299 = vshrl.u32 %v298, 7
  %v300 = vsub.s32 %v297, %v299
  %v301 = vrot.slane %v35, %v300
  %v303 = vunpack.c.l.s4 1966171168
  %v304 = vunpack.c.0.s8 %v303
  %v305 = vlaneseq
  %v306 = vshrl.u32 %v305, 7
  %v307 = vsub.s32 %v304, %v306
  %v308 = vrot.slane %v294, %v307
  %v309 = vcombine.high %v301, %v301
  %v310 = vcombine.high %v308, %v308
  %v312 = vunpack.c.l.s4 1966171168
  %v313 = vunpack.c.0.s8 %v312
  %v314 = vlaneseq
  %v315 = vshrl.u32 %v314, 7
  %v316 = vsub.s32 %v313, %v315
  %v317 = vrot.slane %v301, %v316
  %v319 = vunpack.c.l.s4 1966171168
  %v320 = vunpack.c.0.s8 %v319
  %v321 = vlaneseq
  %v322 = vshrl.u32 %v321, 7
  %v323 = vsub.s32 %v320, %v322
  %v324 = vrot.slane %v308, %v323
  %v326 = vunpack.c.l.s4 1966171168
  %v327 = vunpack.c.0.s8 %v326
  %v328 = vlaneseq
  %v329 = vshrl.u32 %v328, 7
  %v330 = vsub.s32 %v327, %v329
  %v331 = vrot.slane %v309, %v330
  %v333 = vunpack.c.l.s4 1966171168
  %v334 = vunpack.c.0.s8 %v333
  %v335 = vlaneseq
  %v336 = vshrl.u32 %v335, 7
  %v337 = vsub.s32 %v334, %v336
  %v338 = vrot.slane %v310, %v337
  %v339 = vcombine.high %v317, %v317
  %v340 = vcombine.high %v324, %v324
  %v341 = vcombine.high %v331, %v331
  %v342 = vcombine.high %v338, %v338
  %v607 = vunpack.c.l.b16 %v37
  %v608 = vunpack.c.h.b16 %v37
  %v609 = vunpack.c.l.b16 %v38
  %v610 = vunpack.c.h.b16 %v38
  %v611 = vunpack.c.l.b16 %v39
  %v612 = vunpack.c.h.b16 %v39
  %v613 = vunpack.c.l.b16 %v40
  %v614 = vunpack.c.h.b16 %v40
  %v615 = vunpack.c.l.b16 %v41
  %v616 = vunpack.c.h.b16 %v41
  %v617 = vunpack.c.l.b16 %v42
  %v618 = vunpack.c.h.b16 %v42
  %v619 = vunpack.c.l.b16 %v43
  %v620 = vunpack.c.h.b16 %v43
  %v621 = vunpack.c.l.b16 %v44
  %v622 = vunpack.c.h.b16 %v44
  %v623 = vunpack.c.l.b16 %v45
  %v624 = vunpack.c.h.b16 %v45
  %v625 = vunpack.c.l.b16 %v46
  %v626 = vunpack.c.h.b16 %v46
  %v627 = vunpack.c.l.b16 %v47
  %v628 = vunpack.c.h.b16 %v47
  %v629 = vunpack.c.l.b16 %v48
  %v630 = vunpack.c.h.b16 %v48
  %v631 = vunpack.c.l.b16 %v49
  %v632 = vunpack.c.h.b16 %v49
  %v633 = vunpack.c.l.b16 %v50
  %v634 = vunpack.c.h.b16 %v50
  %v635 = vunpack.c.l.b16 %v51
  %v636 = vunpack.c.h.b16 %v51
  %v637 = vunpack.c.l.b16 %v52
  %v638 = vunpack.c.h.b16 %v52
  %v639 = vunpack.c.l.b16 %v53
  %v640 = vunpack.c.h.b16 %v53
  %v641 = vunpack.c.l.b16 %v54
  %v642 = vunpack.c.h.b16 %v54
  %v643 = vunpack.c.l.b16 %v55
  %v644 = vunpack.c.h.b16 %v55
  %v645 = vunpack.c.l.b16 %v56
  %v646 = vunpack.c.h.b16 %v56
  %v647 = vunpack.c.l.b16 %v57
  %v648 = vunpack.c.h.b16 %v57
  %v649 = vunpack.c.l.b16 %v58
  %v650 = vunpack.c.h.b16 %v58
  %v651 = vunpack.c.l.b16 %v59
  %v652 = vunpack.c.h.b16 %v59
  %v653 = vunpack.c.l.b16 %v60
  %v654 = vunpack.c.h.b16 %v60
  %v655 = vunpack.c.l.b16 %v61
  %v656 = vunpack.c.h.b16 %v61
  %v657 = vunpack.c.l.b16 %v62
  %v658 = vunpack.c.h.b16 %v62
  %v659 = vunpack.c.l.b16 %v63
  %v660 = vunpack.c.h.b16 %v63
  %v661 = vunpack.c.l.b16 %v64
  %v662 = vunpack.c.h.b16 %v64
  %v663 = vunpack.c.l.b16 %v65
  %v664 = vunpack.c.h.b16 %v65
  %v665 = vunpack.c.l.b16 %v66
  %v666 = vunpack.c.h.b16 %v66
  %v667 = vunpack.c.l.b16 %v67
  %v668 = vunpack.c.h.b16 %v67
  %v669 = vunpack.c.l.b16 %v68
  %v670 = vunpack.c.h.b16 %v68
  %v671 = vunpack.c.l.b16 %v69
  %v672 = vunpack.c.h.b16 %v69
  %v673 = vunpack.c.l.b16 %v70
  %v674 = vunpack.c.h.b16 %v70
  %v675 = vunpack.c.l.b16 %v71
  %v676 = vunpack.c.h.b16 %v71
  %v677 = vunpack.c.l.b16 %v72
  %v678 = vunpack.c.h.b16 %v72
  %v679 = vunpack.c.l.b16 %v73
  %v680 = vunpack.c.h.b16 %v73
  %v681 = vunpack.c.l.b16 %v74
  %v682 = vunpack.c.h.b16 %v74
  %v683 = vunpack.c.l.b16 %v75
  %v684 = vunpack.c.h.b16 %v75
  %v685 = vunpack.c.l.b16 %v76
  %v686 = vunpack.c.h.b16 %v76
  %v687 = vunpack.c.l.b16 %v77
  %v688 = vunpack.c.h.b16 %v77
  %v689 = vunpack.c.l.b16 %v78
  %v690 = vunpack.c.h.b16 %v78
  %v691 = vunpack.c.l.b16 %v79
  %v692 = vunpack.c.h.b16 %v79
  %v693 = vunpack.c.l.b16 %v80
  %v694 = vunpack.c.h.b16 %v80
  %v695 = vunpack.c.l.b16 %v81
  %v696 = vunpack.c.h.b16 %v81
  %v697 = vunpack.c.l.b16 %v82
  %v698 = vunpack.c.h.b16 %v82
  %v699 = vunpack.c.l.b16 %v83
  %v700 = vunpack.c.h.b16 %v83
  %v701 = vunpack.c.l.b16 %v84
  %v702 = vunpack.c.h.b16 %v84
  %v703 = vunpack.c.l.b16 %v85
  %v704 = vunpack.c.h.b16 %v85
  %v705 = vunpack.c.l.b16 %v86
  %v706 = vunpack.c.h.b16 %v86
  %v707 = vunpack.c.l.b16 %v87
  %v708 = vunpack.c.h.b16 %v87
  %v709 = vunpack.c.l.b16 %v88
  %v710 = vunpack.c.h.b16 %v88
  %v711 = vunpack.c.l.b16 %v89
  %v712 = vunpack.c.h.b16 %v89
  %v713 = vunpack.c.l.b16 %v90
  %v714 = vunpack.c.h.b16 %v90
  %v715 = vunpack.c.l.b16 %v91
  %v716 = vunpack.c.h.b16 %v91
  %v717 = vunpack.c.l.b16 %v92
  %v718 = vunpack.c.h.b16 %v92
  %v719 = vunpack.c.l.b16 %v93
  %v720 = vunpack.c.h.b16 %v93
  %v721 = vunpack.c.l.b16 %v94
  %v722 = vunpack.c.h.b16 %v94
  %v723 = vunpack.c.l.b16 %v95
  %v724 = vunpack.c.h.b16 %v95
  %v725 = vunpack.c.l.b16 %v96
  %v726 = vunpack.c.h.b16 %v96
  %v727 = vunpack.c.l.b16 %v97
  %v728 = vunpack.c.h.b16 %v97
  %v729 = vunpack.c.l.b16 %v98
  %v730 = vunpack.c.h.b16 %v98
  %v731 = vunpack.c.l.b16 %v99
  %v732 = vunpack.c.h.b16 %v99
  %v733 = vunpack.c.l.b16 %v100
  %v734 = vunpack.c.h.b16 %v100
  %v735 = vunpack.c.l.b16 %v101
  %v736 = vunpack.c.h.b16 %v101
  %v737 = vunpack.c.l.b16 %v102
  %v738 = vunpack.c.h.b16 %v102
  %v739 = vunpack.c.l.b16 %v103
  %v740 = vunpack.c.h.b16 %v103
  %v741 = vunpack.c.l.b16 %v104
  %v742 = vunpack.c.h.b16 %v104
  %v743 = vunpack.c.l.b16 %v105
  %v744 = vunpack.c.h.b16 %v105
  %v745 = vunpack.c.l.b16 %v106
  %v746 = vunpack.c.h.b16 %v106
  %v747 = vunpack.c.l.b16 %v107
  %v748 = vunpack.c.h.b16 %v107
  %v749 = vunpack.c.l.b16 %v108
  %v750 = vunpack.c.h.b16 %v108
  %v751 = vunpack.c.l.b16 %v109
  %v752 = vunpack.c.h.b16 %v109
  %v753 = vunpack.c.l.b16 %v110
  %v754 = vunpack.c.h.b16 %v110
  %v755 = vunpack.c.l.b16 %v111
  %v756 = vunpack.c.h.b16 %v111
  %v757 = vunpack.c.l.b16 %v112
  %v758 = vunpack.c.h.b16 %v112
  %v759 = vunpack.c.l.b16 %v113
  %v760 = vunpack.c.h.b16 %v113
  %v761 = vunpack.c.l.b16 %v114
  %v762 = vunpack.c.h.b16 %v114
  %v763 = vunpack.c.l.b16 %v115
  %v764 = vunpack.c.h.b16 %v115
  %v765 = vunpack.c.l.b16 %v116
  %v766 = vunpack.c.h.b16 %v116
  %v767 = vunpack.c.l.b16 %v117
  %v768 = vunpack.c.h.b16 %v117
  %v769 = vunpack.c.l.b16 %v118
  %v770 = vunpack.c.h.b16 %v118
  %v771 = vunpack.c.l.b16 %v119
  %v772 = vunpack.c.h.b16 %v119
  %v773 = vunpack.c.l.b16 %v120
  %v774 = vunpack.c.h.b16 %v120
  %v775 = vunpack.c.l.b16 %v121
  %v776 = vunpack.c.h.b16 %v121
  %v777 = vunpack.c.l.b16 %v122
  %v778 = vunpack.c.h.b16 %v122
  %v779 = vunpack.c.l.b16 %v123
  %v780 = vunpack.c.h.b16 %v123
  %v781 = vunpack.c.l.b16 %v124
  %v782 = vunpack.c.h.b16 %v124
  %v783 = vunpack.c.l.b16 %v125
  %v784 = vunpack.c.h.b16 %v125
  %v785 = vunpack.c.l.b16 %v126
  %v786 = vunpack.c.h.b16 %v126
  %v787 = vunpack.c.l.b16 %v127
  %v788 = vunpack.c.h.b16 %v127
  %v789 = vunpack.c.l.b16 %v128
  %v790 = vunpack.c.h.b16 %v128
  %v791 = vunpack.c.l.b16 %v129
  %v792 = vunpack.c.h.b16 %v129
  %v793 = vunpack.c.l.b16 %v130
  %v794 = vunpack.c.h.b16 %v130
  %v795 = vunpack.c.l.b16 %v131
  %v796 = vunpack.c.h.b16 %v131
  %v797 = vunpack.c.l.b16 %v132
  %v798 = vunpack.c.h.b16 %v132
  %v799 = vunpack.c.l.b16 %v133
  %v800 = vunpack.c.h.b16 %v133
  %v801 = vunpack.c.l.b16 %v134
  %v802 = vunpack.c.h.b16 %v134
  %v803 = vunpack.c.l.b16 %v135
  %v804 = vunpack.c.h.b16 %v135
  %v805 = vunpack.c.l.b16 %v136
  %v806 = vunpack.c.h.b16 %v136
  %v807 = vunpack.c.l.b16 %v137
  %v808 = vunpack.c.h.b16 %v137
  %v809 = vunpack.c.l.b16 %v138
  %v810 = vunpack.c.h.b16 %v138
  %v811 = vunpack.c.l.b16 %v139
  %v812 = vunpack.c.h.b16 %v139
  %v813 = vunpack.c.l.b16 %v140
  %v814 = vunpack.c.h.b16 %v140
  %v815 = vunpack.c.l.b16 %v141
  %v816 = vunpack.c.h.b16 %v141
  %v817 = vunpack.c.l.b16 %v142
  %v818 = vunpack.c.h.b16 %v142
  %v819 = vunpack.c.l.b16 %v143
  %v820 = vunpack.c.h.b16 %v143
  %v821 = vunpack.c.l.b16 %v144
  %v822 = vunpack.c.h.b16 %v144
  %v823 = vunpack.c.l.b16 %v145
  %v824 = vunpack.c.h.b16 %v145
  %v825 = vunpack.c.l.b16 %v146
  %v826 = vunpack.c.h.b16 %v146
  %v827 = vunpack.c.l.b16 %v147
  %v828 = vunpack.c.h.b16 %v147
  %v829 = vunpack.c.l.b16 %v148
  %v830 = vunpack.c.h.b16 %v148
  %v831 = vunpack.c.l.b16 %v149
  %v832 = vunpack.c.h.b16 %v149
  %v833 = vunpack.c.l.b16 %v150
  %v834 = vunpack.c.h.b16 %v150
  %v835 = vunpack.c.l.b16 %v151
  %v836 = vunpack.c.h.b16 %v151
  %v837 = vunpack.c.l.b16 %v152
  %v838 = vunpack.c.h.b16 %v152
  %v839 = vunpack.c.l.b16 %v153
  %v840 = vunpack.c.h.b16 %v153
  %v841 = vunpack.c.l.b16 %v154
  %v842 = vunpack.c.h.b16 %v154
  %v843 = vunpack.c.l.b16 %v155
  %v844 = vunpack.c.h.b16 %v155
  %v845 = vunpack.c.l.b16 %v156
  %v846 = vunpack.c.h.b16 %v156
  %v847 = vunpack.c.l.b16 %v157
  %v848 = vunpack.c.h.b16 %v157
  %v849 = vunpack.c.l.b16 %v158
  %v850 = vunpack.c.h.b16 %v158
  %v851 = vunpack.c.l.b16 %v159
  %v852 = vunpack.c.h.b16 %v159
  %v853 = vunpack.c.l.b16 %v160
  %v854 = vunpack.c.h.b16 %v160
  %v855 = vunpack.c.l.b16 %v161
  %v856 = vunpack.c.h.b16 %v161
  %v857 = vunpack.c.l.b16 %v162
  %v858 = vunpack.c.h.b16 %v162
  %v859 = vunpack.c.l.b16 %v163
  %v860 = vunpack.c.h.b16 %v163
  %v861 = vunpack.c.l.b16 %v164
  %v862 = vunpack.c.h.b16 %v164
  %v863 = vunpack.c.l.b16 %v165
  %v864 = vunpack.c.h.b16 %v165
  %v865 = vunpack.c.l.b16 %v166
  %v866 = vunpack.c.h.b16 %v166
  %v867 = vunpack.c.l.b16 %v167
  %v868 = vunpack.c.h.b16 %v167
  %v869 = vunpack.c.l.b16 %v168
  %v870 = vunpack.c.h.b16 %v168
  %v871 = vunpack.c.l.b16 %v169
  %v872 = vunpack.c.h.b16 %v169
  %v873 = vunpack.c.l.b16 %v170
  %v874 = vunpack.c.h.b16 %v170
  %v875 = vunpack.c.l.b16 %v171
  %v876 = vunpack.c.h.b16 %v171
  %v877 = vunpack.c.l.b16 %v172
  %v878 = vunpack.c.h.b16 %v172
  %v879 = vunpack.c.l.b16 %v173
  %v880 = vunpack.c.h.b16 %v173
  %v881 = vunpack.c.l.b16 %v174
  %v882 = vunpack.c.h.b16 %v174
  %v883 = vunpack.c.l.b16 %v175
  %v884 = vunpack.c.h.b16 %v175
  %v885 = vunpack.c.l.b16 %v176
  %v886 = vunpack.c.h.b16 %v176
  %v887 = vunpack.c.l.b16 %v177
  %v888 = vunpack.c.h.b16 %v177
  %v889 = vunpack.c.l.b16 %v178
  %v890 = vunpack.c.h.b16 %v178
  %v891 = vunpack.c.l.b16 %v179
  %v892 = vunpack.c.h.b16 %v179
  %v893 = vunpack.c.l.b16 %v180
  %v894 = vunpack.c.h.b16 %v180
  %v895 = vunpack.c.l.b16 %v181
  %v896 = vunpack.c.h.b16 %v181
  %v897 = vunpack.c.l.b16 %v182
  %v898 = vunpack.c.h.b16 %v182
  %v899 = vunpack.c.l.b16 %v183
  %v900 = vunpack.c.h.b16 %v183
  %v901 = vunpack.c.l.b16 %v184
  %v902 = vunpack.c.h.b16 %v184
  %v903 = vunpack.c.l.b16 %v185
  %v904 = vunpack.c.h.b16 %v185
  %v905 = vunpack.c.l.b16 %v186
  %v906 = vunpack.c.h.b16 %v186
  %v907 = vunpack.c.l.b16 %v187
  %v908 = vunpack.c.h.b16 %v187
  %v909 = vunpack.c.l.b16 %v188
  %v910 = vunpack.c.h.b16 %v188
  %v911 = vunpack.c.l.b16 %v189
  %v912 = vunpack.c.h.b16 %v189
  %v913 = vunpack.c.l.b16 %v190
  %v914 = vunpack.c.h.b16 %v190
  %v915 = vunpack.c.l.b16 %v191
  %v916 = vunpack.c.h.b16 %v191
  %v917 = vunpack.c.l.b16 %v192
  %v918 = vunpack.c.h.b16 %v192
  %v919 = vunpack.c.l.b16 %v193
  %v920 = vunpack.c.h.b16 %v193
  %v921 = vunpack.c.l.b16 %v194
  %v922 = vunpack.c.h.b16 %v194
  %v923 = vunpack.c.l.b16 %v195
  %v924 = vunpack.c.h.b16 %v195
  %v925 = vunpack.c.l.b16 %v196
  %v926 = vunpack.c.h.b16 %v196
  %v927 = vunpack.c.l.b16 %v197
  %v928 = vunpack.c.h.b16 %v197
  %v929 = vunpack.c.l.b16 %v198
  %v930 = vunpack.c.h.b16 %v198
  %v931 = vunpack.c.l.b16 %v199
  %v932 = vunpack.c.h.b16 %v199
  %v933 = vunpack.c.l.b16 %v200
  %v934 = vunpack.c.h.b16 %v200
  %v935 = vunpack.c.l.b16 %v201
  %v936 = vunpack.c.h.b16 %v201
  %v937 = vunpack.c.l.b16 %v202
  %v938 = vunpack.c.h.b16 %v202
  %v939 = vunpack.c.l.b16 %v203
  %v940 = vunpack.c.h.b16 %v203
  %v941 = vunpack.c.l.b16 %v204
  %v942 = vunpack.c.h.b16 %v204
  %v943 = vunpack.c.l.b16 %v205
  %v944 = vunpack.c.h.b16 %v205
  %v945 = vunpack.c.l.b16 %v206
  %v946 = vunpack.c.h.b16 %v206
  %v947 = vunpack.c.l.b16 %v207
  %v948 = vunpack.c.h.b16 %v207
  %v949 = vunpack.c.l.b16 %v208
  %v950 = vunpack.c.h.b16 %v208
  %v951 = vunpack.c.l.b16 %v209
  %v952 = vunpack.c.h.b16 %v209
  %v953 = vunpack.c.l.b16 %v210
  %v954 = vunpack.c.h.b16 %v210
  %v955 = vunpack.c.l.b16 %v211
  %v956 = vunpack.c.h.b16 %v211
  %v957 = vunpack.c.l.b16 %v212
  %v958 = vunpack.c.h.b16 %v212
  %v959 = vunpack.c.l.b16 %v213
  %v960 = vunpack.c.h.b16 %v213
  %v961 = vunpack.c.l.b16 %v214
  %v962 = vunpack.c.h.b16 %v214
  %v963 = vunpack.c.l.b16 %v215
  %v964 = vunpack.c.h.b16 %v215
  %v965 = vunpack.c.l.b16 %v216
  %v966 = vunpack.c.h.b16 %v216
  %v967 = vunpack.c.l.b16 %v217
  %v968 = vunpack.c.h.b16 %v217
  %v969 = vunpack.c.l.b16 %v218
  %v970 = vunpack.c.h.b16 %v218
  %v971 = vunpack.c.l.b16 %v219
  %v972 = vunpack.c.h.b16 %v219
  %v973 = vunpack.c.l.b16 %v220
  %v974 = vunpack.c.h.b16 %v220
  %v975 = vunpack.c.l.b16 %v221
  %v976 = vunpack.c.h.b16 %v221
  %v977 = vunpack.c.l.b16 %v222
  %v978 = vunpack.c.h.b16 %v222
  %v979 = vunpack.c.l.b16 %v223
  %v980 = vunpack.c.h.b16 %v223
  %v981 = vunpack.c.l.b16 %v224
  %v982 = vunpack.c.h.b16 %v224
  %v983 = vunpack.c.l.b16 %v225
  %v984 = vunpack.c.h.b16 %v225
  %v985 = vunpack.c.l.b16 %v226
  %v986 = vunpack.c.h.b16 %v226
  %v987 = vunpack.c.l.b16 %v227
  %v988 = vunpack.c.h.b16 %v227
  %v989 = vunpack.c.l.b16 %v228
  %v990 = vunpack.c.h.b16 %v228
  %v991 = vunpack.c.l.b16 %v229
  %v992 = vunpack.c.h.b16 %v229
  %v993 = vunpack.c.l.b16 %v230
  %v994 = vunpack.c.h.b16 %v230
  %v995 = vunpack.c.l.b16 %v231
  %v996 = vunpack.c.h.b16 %v231
  %v997 = vunpack.c.l.b16 %v232
  %v998 = vunpack.c.h.b16 %v232
  %v999 = vunpack.c.l.b16 %v233
  %v1000 = vunpack.c.h.b16 %v233
  %v1001 = vunpack.c.l.b16 %v234
  %v1002 = vunpack.c.h.b16 %v234
  %v1003 = vunpack.c.l.b16 %v235
  %v1004 = vunpack.c.h.b16 %v235
  %v1005 = vunpack.c.l.b16 %v236
  %v1006 = vunpack.c.h.b16 %v236
  %v1007 = vunpack.c.l.b16 %v237
  %v1008 = vunpack.c.h.b16 %v237
  %v1009 = vunpack.c.l.b16 %v238
  %v1010 = vunpack.c.h.b16 %v238
  %v1011 = vunpack.c.l.b16 %v239
  %v1012 = vunpack.c.h.b16 %v239
  %v1013 = vunpack.c.l.b16 %v240
  %v1014 = vunpack.c.h.b16 %v240
  %v1015 = vunpack.c.l.b16 %v241
  %v1016 = vunpack.c.h.b16 %v241
  %v1017 = vunpack.c.l.b16 %v242
  %v1018 = vunpack.c.h.b16 %v242
  %v1019 = vunpack.c.l.b16 %v243
  %v1020 = vunpack.c.h.b16 %v243
  %v1021 = vunpack.c.l.b16 %v244
  %v1022 = vunpack.c.h.b16 %v244
  %v1023 = vunpack.c.l.b16 %v245
  %v1024 = vunpack.c.h.b16 %v245
  %v1025 = vunpack.c.l.b16 %v246
  %v1026 = vunpack.c.h.b16 %v246
  %v1027 = vunpack.c.l.b16 %v247
  %v1028 = vunpack.c.h.b16 %v247
  %v1029 = vunpack.c.l.b16 %v248
  %v1030 = vunpack.c.h.b16 %v248
  %v1031 = vunpack.c.l.b16 %v249
  %v1032 = vunpack.c.h.b16 %v249
  %v1033 = vunpack.c.l.b16 %v250
  %v1034 = vunpack.c.h.b16 %v250
  %v1035 = vunpack.c.l.b16 %v251
  %v1036 = vunpack.c.h.b16 %v251
  %v1037 = vunpack.c.l.b16 %v252
  %v1038 = vunpack.c.h.b16 %v252
  %v1039 = vunpack.c.l.b16 %v253
  %v1040 = vunpack.c.h.b16 %v253
  %v1041 = vunpack.c.l.b16 %v254
  %v1042 = vunpack.c.h.b16 %v254
  %v1043 = vunpack.c.l.b16 %v255
  %v1044 = vunpack.c.h.b16 %v255
  %v1045 = vunpack.c.l.b16 %v256
  %v1046 = vunpack.c.h.b16 %v256
  %v1047 = vunpack.c.l.b16 %v257
  %v1048 = vunpack.c.h.b16 %v257
  %v1049 = vunpack.c.l.b16 %v258
  %v1050 = vunpack.c.h.b16 %v258
  %v1051 = vunpack.c.l.b16 %v259
  %v1052 = vunpack.c.h.b16 %v259
  %v1053 = vunpack.c.l.b16 %v260
  %v1054 = vunpack.c.h.b16 %v260
  %v1055 = vunpack.c.l.b16 %v261
  %v1056 = vunpack.c.h.b16 %v261
  %v1057 = vunpack.c.l.b16 %v262
  %v1058 = vunpack.c.h.b16 %v262
  %v1059 = vunpack.c.l.b16 %v263
  %v1060 = vunpack.c.h.b16 %v263
  %v1061 = vunpack.c.l.b16 %v264
  %v1062 = vunpack.c.h.b16 %v264
  %v1063 = vunpack.c.l.b16 %v265
  %v1064 = vunpack.c.h.b16 %v265
  %v1065 = vunpack.c.l.b16 %v266
  %v1066 = vunpack.c.h.b16 %v266
  %v1067 = vunpack.c.l.b16 %v267
  %v1068 = vunpack.c.h.b16 %v267
  %v1069 = vunpack.c.l.b16 %v268
  %v1070 = vunpack.c.h.b16 %v268
  %v1071 = vunpack.c.l.b16 %v269
  %v1072 = vunpack.c.h.b16 %v269
  %v1073 = vunpack.c.l.b16 %v270
  %v1074 = vunpack.c.h.b16 %v270
  %v1075 = vunpack.c.l.b16 %v271
  %v1076 = vunpack.c.h.b16 %v271
  %v1077 = vunpack.c.l.b16 %v272
  %v1078 = vunpack.c.h.b16 %v272
  %v1079 = vunpack.c.l.b16 %v273
  %v1080 = vunpack.c.h.b16 %v273
  %v1081 = vunpack.c.l.b16 %v274
  %v1082 = vunpack.c.h.b16 %v274
  %v1083 = vunpack.c.l.b16 %v275
  %v1084 = vunpack.c.h.b16 %v275
  %v1085 = vunpack.c.l.b16 %v276
  %v1086 = vunpack.c.h.b16 %v276
  %v1087 = vunpack.c.l.b16 %v277
  %v1088 = vunpack.c.h.b16 %v277
  %v1089 = vunpack.c.l.b16 %v278
  %v1090 = vunpack.c.h.b16 %v278
  %v1091 = vunpack.c.l.b16 %v279
  %v1092 = vunpack.c.h.b16 %v279
  %v1093 = vunpack.c.l.b16 %v280
  %v1094 = vunpack.c.h.b16 %v280
  %v1095 = vunpack.c.l.b16 %v281
  %v1096 = vunpack.c.h.b16 %v281
  %v1097 = vunpack.c.l.b16 %v282
  %v1098 = vunpack.c.h.b16 %v282
  %v1099 = vunpack.c.l.b16 %v283
  %v1100 = vunpack.c.h.b16 %v283
  %v1101 = vunpack.c.l.b16 %v284
  %v1102 = vunpack.c.h.b16 %v284
  %v1103 = vunpack.c.l.b16 %v285
  %v1104 = vunpack.c.h.b16 %v285
  %v1105 = vunpack.c.l.b16 %v286
  %v1106 = vunpack.c.h.b16 %v286
  %v1107 = vunpack.c.l.b16 %v287
  %v1108 = vunpack.c.h.b16 %v287
  %v1109 = vunpack.c.l.b16 %v288
  %v1110 = vunpack.c.h.b16 %v288
  %v1111 = vunpack.c.l.b16 %v289
  %v1112 = vunpack.c.h.b16 %v289
  %v1113 = vunpack.c.l.b16 %v290
  %v1114 = vunpack.c.h.b16 %v290
  %v1115 = vunpack.c.l.b16 %v291
  %v1116 = vunpack.c.h.b16 %v291
  %v1117 = vunpack.c.l.b16 %v292
  %v1118 = vunpack.c.h.b16 %v292
  %v1119 = vpack.c.b16 %v611, %v607
  %v1120 = vpack.c.b16 %v612, %v608
  %v1121 = vpack.c.b16 %v613, %v609
  %v1122 = vpack.c.b16 %v614, %v610
  %v1123 = vpack.c.b16 %v619, %v615
  %v1124 = vpack.c.b16 %v620, %v616
  %v1125 = vpack.c.b16 %v621, %v617
  %v1126 = vpack.c.b16 %v622, %v618
  %v1127 = vpack.c.b16 %v627, %v623
  %v1128 = vpack.c.b16 %v628, %v624
  %v1129 = vpack.c.b16 %v629, %v625
  %v1130 = vpack.c.b16 %v630, %v626
  %v1131 = vpack.c.b16 %v635, %v631
  %v1132 = vpack.c.b16 %v636, %v632
  %v1133 = vpack.c.b16 %v637, %v633
  %v1134 = vpack.c.b16 %v638, %v634
  %v1135 = vpack.c.b16 %v643, %v639
  %v1136 = vpack.c.b16 %v644, %v640
  %v1137 = vpack.c.b16 %v645, %v641
  %v1138 = vpack.c.b16 %v646, %v642
  %v1139 = vpack.c.b16 %v651, %v647
  %v1140 = vpack.c.b16 %v652, %v648
  %v1141 = vpack.c.b16 %v653, %v649
  %v1142 = vpack.c.b16 %v654, %v650
  %v1143 = vpack.c.b16 %v659, %v655
  %v1144 = vpack.c.b16 %v660, %v656
  %v1145 = vpack.c.b16 %v661, %v657
  %v1146 = vpack.c.b16 %v662, %v658
  %v1147 = vpack.c.b16 %v667, %v663
  %v1148 = vpack.c.b16 %v668, %v664
  %v1149 = vpack.c.b16 %v669, %v665
  %v1150 = vpack.c.b16 %v670, %v666
  %v1151 = vpack.c.b16 %v675, %v671
  %v1152 = vpack.c.b16 %v676, %v672
  %v1153 = vpack.c.b16 %v677, %v673
  %v1154 = vpack.c.b16 %v678, %v674
  %v1155 = vpack.c.b16 %v683, %v679
  %v1156 = vpack.c.b16 %v684, %v680
  %v1157 = vpack.c.b16 %v685, %v681
  %v1158 = vpack.c.b16 %v686, %v682
  %v1159 = vpack.c.b16 %v691, %v687
  %v1160 = vpack.c.b16 %v692, %v688
  %v1161 = vpack.c.b16 %v693, %v689
  %v1162 = vpack.c.b16 %v694, %v690
  %v1163 = vpack.c.b16 %v699, %v695
  %v1164 = vpack.c.b16 %v700, %v696
  %v1165 = vpack.c.b16 %v701, %v697
  %v1166 = vpack.c.b16 %v702, %v698
  %v1167 = vpack.c.b16 %v707, %v703
  %v1168 = vpack.c.b16 %v708, %v704
  %v1169 = vpack.c.b16 %v709, %v705
  %v1170 = vpack.c.b16 %v710, %v706
  %v1171 = vpack.c.b16 %v715, %v711
  %v1172 = vpack.c.b16 %v716, %v712
  %v1173 = vpack.c.b16 %v717, %v713
  %v1174 = vpack.c.b16 %v718, %v714
  %v1175 = vpack.c.b16 %v723, %v719
  %v1176 = vpack.c.b16 %v724, %v720
  %v1177 = vpack.c.b16 %v725, %v721
  %v1178 = vpack.c.b16 %v726, %v722
  %v1179 = vpack.c.b16 %v731, %v727
  %v1180 = vpack.c.b16 %v732, %v728
  %v1181 = vpack.c.b16 %v733, %v729
  %v1182 = vpack.c.b16 %v734, %v730
  %v1183 = vpack.c.b16 %v739, %v735
  %v1184 = vpack.c.b16 %v740, %v736
  %v1185 = vpack.c.b16 %v741, %v737
  %v1186 = vpack.c.b16 %v742, %v738
  %v1187 = vpack.c.b16 %v747, %v743
  %v1188 = vpack.c.b16 %v748, %v744
  %v1189 = vpack.c.b16 %v749, %v745
  %v1190 = vpack.c.b16 %v750, %v746
  %v1191 = vpack.c.b16 %v755, %v751
  %v1192 = vpack.c.b16 %v756, %v752
  %v1193 = vpack.c.b16 %v757, %v753
  %v1194 = vpack.c.b16 %v758, %v754
  %v1195 = vpack.c.b16 %v763, %v759
  %v1196 = vpack.c.b16 %v764, %v760
  %v1197 = vpack.c.b16 %v765, %v761
  %v1198 = vpack.c.b16 %v766, %v762
  %v1199 = vpack.c.b16 %v771, %v767
  %v1200 = vpack.c.b16 %v772, %v768
  %v1201 = vpack.c.b16 %v773, %v769
  %v1202 = vpack.c.b16 %v774, %v770
  %v1203 = vpack.c.b16 %v779, %v775
  %v1204 = vpack.c.b16 %v780, %v776
  %v1205 = vpack.c.b16 %v781, %v777
  %v1206 = vpack.c.b16 %v782, %v778
  %v1207 = vpack.c.b16 %v787, %v783
  %v1208 = vpack.c.b16 %v788, %v784
  %v1209 = vpack.c.b16 %v789, %v785
  %v1210 = vpack.c.b16 %v790, %v786
  %v1211 = vpack.c.b16 %v795, %v791
  %v1212 = vpack.c.b16 %v796, %v792
  %v1213 = vpack.c.b16 %v797, %v793
  %v1214 = vpack.c.b16 %v798, %v794
  %v1215 = vpack.c.b16 %v803, %v799
  %v1216 = vpack.c.b16 %v804, %v800
  %v1217 = vpack.c.b16 %v805, %v801
  %v1218 = vpack.c.b16 %v806, %v802
  %v1219 = vpack.c.b16 %v811, %v807
  %v1220 = vpack.c.b16 %v812, %v808
  %v1221 = vpack.c.b16 %v813, %v809
  %v1222 = vpack.c.b16 %v814, %v810
  %v1223 = vpack.c.b16 %v819, %v815
  %v1224 = vpack.c.b16 %v820, %v816
  %v1225 = vpack.c.b16 %v821, %v817
  %v1226 = vpack.c.b16 %v822, %v818
  %v1227 = vpack.c.b16 %v827, %v823
  %v1228 = vpack.c.b16 %v828, %v824
  %v1229 = vpack.c.b16 %v829, %v825
  %v1230 = vpack.c.b16 %v830, %v826
  %v1231 = vpack.c.b16 %v835, %v831
  %v1232 = vpack.c.b16 %v836, %v832
  %v1233 = vpack.c.b16 %v837, %v833
  %v1234 = vpack.c.b16 %v838, %v834
  %v1235 = vpack.c.b16 %v843, %v839
  %v1236 = vpack.c.b16 %v844, %v840
  %v1237 = vpack.c.b16 %v845, %v841
  %v1238 = vpack.c.b16 %v846, %v842
  %v1239 = vpack.c.b16 %v851, %v847
  %v1240 = vpack.c.b16 %v852, %v848
  %v1241 = vpack.c.b16 %v853, %v849
  %v1242 = vpack.c.b16 %v854, %v850
  %v1243 = vpack.c.b16 %v859, %v855
  %v1244 = vpack.c.b16 %v860, %v856
  %v1245 = vpack.c.b16 %v861, %v857
  %v1246 = vpack.c.b16 %v862, %v858
  %v1247 = vpack.c.b16 %v867, %v863
  %v1248 = vpack.c.b16 %v868, %v864
  %v1249 = vpack.c.b16 %v869, %v865
  %v1250 = vpack.c.b16 %v870, %v866
  %v1251 = vpack.c.b16 %v875, %v871
  %v1252 = vpack.c.b16 %v876, %v872
  %v1253 = vpack.c.b16 %v877, %v873
  %v1254 = vpack.c.b16 %v878, %v874
  %v1255 = vpack.c.b16 %v883, %v879
  %v1256 = vpack.c.b16 %v884, %v880
  %v1257 = vpack.c.b16 %v885, %v881
  %v1258 = vpack.c.b16 %v886, %v882
  %v1259 = vpack.c.b16 %v891, %v887
  %v1260 = vpack.c.b16 %v892, %v888
  %v1261 = vpack.c.b16 %v893, %v889
  %v1262 = vpack.c.b16 %v894, %v890
  %v1263 = vpack.c.b16 %v899, %v895
  %v1264 = vpack.c.b16 %v900, %v896
  %v1265 = vpack.c.b16 %v901, %v897
  %v1266 = vpack.c.b16 %v902, %v898
  %v1267 = vpack.c.b16 %v907, %v903
  %v1268 = vpack.c.b16 %v908, %v904
  %v1269 = vpack.c.b16 %v909, %v905
  %v1270 = vpack.c.b16 %v910, %v906
  %v1271 = vpack.c.b16 %v915, %v911
  %v1272 = vpack.c.b16 %v916, %v912
  %v1273 = vpack.c.b16 %v917, %v913
  %v1274 = vpack.c.b16 %v918, %v914
  %v1275 = vpack.c.b16 %v923, %v919
  %v1276 = vpack.c.b16 %v924, %v920
  %v1277 = vpack.c.b16 %v925, %v921
  %v1278 = vpack.c.b16 %v926, %v922
  %v1279 = vpack.c.b16 %v931, %v927
  %v1280 = vpack.c.b16 %v932, %v928
  %v1281 = vpack.c.b16 %v933, %v929
  %v1282 = vpack.c.b16 %v934, %v930
  %v1283 = vpack.c.b16 %v939, %v935
  %v1284 = vpack.c.b16 %v940, %v936
  %v1285 = vpack.c.b16 %v941, %v937
  %v1286 = vpack.c.b16 %v942, %v938
  %v1287 = vpack.c.b16 %v947, %v943
  %v1288 = vpack.c.b16 %v948, %v944
  %v1289 = vpack.c.b16 %v949, %v945
  %v1290 = vpack.c.b16 %v950, %v946
  %v1291 = vpack.c.b16 %v955, %v951
  %v1292 = vpack.c.b16 %v956, %v952
  %v1293 = vpack.c.b16 %v957, %v953
  %v1294 = vpack.c.b16 %v958, %v954
  %v1295 = vpack.c.b16 %v963, %v959
  %v1296 = vpack.c.b16 %v964, %v960
  %v1297 = vpack.c.b16 %v965, %v961
  %v1298 = vpack.c.b16 %v966, %v962
  %v1299 = vpack.c.b16 %v971, %v967
  %v1300 = vpack.c.b16 %v972, %v968
  %v1301 = vpack.c.b16 %v973, %v969
  %v1302 = vpack.c.b16 %v974, %v970
  %v1303 = vpack.c.b16 %v979, %v975
  %v1304 = vpack.c.b16 %v980, %v976
  %v1305 = vpack.c.b16 %v981, %v977
  %v1306 = vpack.c.b16 %v982, %v978
  %v1307 = vpack.c.b16 %v987, %v983
  %v1308 = vpack.c.b16 %v988, %v984
  %v1309 = vpack.c.b16 %v989, %v985
  %v1310 = vpack.c.b16 %v990, %v986
  %v1311 = vpack.c.b16 %v995, %v991
  %v1312 = vpack.c.b16 %v996, %v992
  %v1313 = vpack.c.b16 %v997, %v993
  %v1314 = vpack.c.b16 %v998, %v994
  %v1315 = vpack.c.b16 %v1003, %v999
  %v1316 = vpack.c.b16 %v1004, %v1000
  %v1317 = vpack.c.b16 %v1005, %v1001
  %v1318 = vpack.c.b16 %v1006, %v1002
  %v1319 = vpack.c.b16 %v1011, %v1007
  %v1320 = vpack.c.b16 %v1012, %v1008
  %v1321 = vpack.c.b16 %v1013, %v1009
  %v1322 = vpack.c.b16 %v1014, %v1010
  %v1323 = vpack.c.b16 %v1019, %v1015
  %v1324 = vpack.c.b16 %v1020, %v1016
  %v1325 = vpack.c.b16 %v1021, %v1017
  %v1326 = vpack.c.b16 %v1022, %v1018
  %v1327 = vpack.c.b16 %v1027, %v1023
  %v1328 = vpack.c.b16 %v1028, %v1024
  %v1329 = vpack.c.b16 %v1029, %v1025
  %v1330 = vpack.c.b16 %v1030, %v1026
  %v1331 = vpack.c.b16 %v1035, %v1031
  %v1332 = vpack.c.b16 %v1036, %v1032
  %v1333 = vpack.c.b16 %v1037, %v1033
  %v1334 = vpack.c.b16 %v1038, %v1034
  %v1335 = vpack.c.b16 %v1043, %v1039
  %v1336 = vpack.c.b16 %v1044, %v1040
  %v1337 = vpack.c.b16 %v1045, %v1041
  %v1338 = vpack.c.b16 %v1046, %v1042
  %v1339 = vpack.c.b16 %v1051, %v1047
  %v1340 = vpack.c.b16 %v1052, %v1048
  %v1341 = vpack.c.b16 %v1053, %v1049
  %v1342 = vpack.c.b16 %v1054, %v1050
  %v1343 = vpack.c.b16 %v1059, %v1055
  %v1344 = vpack.c.b16 %v1060, %v1056
  %v1345 = vpack.c.b16 %v1061, %v1057
  %v1346 = vpack.c.b16 %v1062, %v1058
  %v1347 = vpack.c.b16 %v1067, %v1063
  %v1348 = vpack.c.b16 %v1068, %v1064
  %v1349 = vpack.c.b16 %v1069, %v1065
  %v1350 = vpack.c.b16 %v1070, %v1066
  %v1351 = vpack.c.b16 %v1075, %v1071
  %v1352 = vpack.c.b16 %v1076, %v1072
  %v1353 = vpack.c.b16 %v1077, %v1073
  %v1354 = vpack.c.b16 %v1078, %v1074
  %v1355 = vpack.c.b16 %v1083, %v1079
  %v1356 = vpack.c.b16 %v1084, %v1080
  %v1357 = vpack.c.b16 %v1085, %v1081
  %v1358 = vpack.c.b16 %v1086, %v1082
  %v1359 = vpack.c.b16 %v1091, %v1087
  %v1360 = vpack.c.b16 %v1092, %v1088
  %v1361 = vpack.c.b16 %v1093, %v1089
  %v1362 = vpack.c.b16 %v1094, %v1090
  %v1363 = vpack.c.b16 %v1099, %v1095
  %v1364 = vpack.c.b16 %v1100, %v1096
  %v1365 = vpack.c.b16 %v1101, %v1097
  %v1366 = vpack.c.b16 %v1102, %v1098
  %v1367 = vpack.c.b16 %v1107, %v1103
  %v1368 = vpack.c.b16 %v1108, %v1104
  %v1369 = vpack.c.b16 %v1109, %v1105
  %v1370 = vpack.c.b16 %v1110, %v1106
  %v1371 = vpack.c.b16 %v1115, %v1111
  %v1372 = vpack.c.b16 %v1116, %v1112
  %v1373 = vpack.c.b16 %v1117, %v1113
  %v1374 = vpack.c.b16 %v1118, %v1114
  %1631 = vmatprep.subr.bf16.mxu0 %v1120
  %1632 = vmatpush1.bf16.msra.mxu0 %v1119
  %1633 = vmatprep.subr.bf16.mxu0 %v1124
  %1634 = vmatpush1.bf16.msra.mxu0 %v1123
  %1635 = vmatprep.subr.bf16.mxu0 %v1128
  %1636 = vmatpush1.bf16.msra.mxu0 %v1127
  %1637 = vmatprep.subr.bf16.mxu0 %v1132
  %1638 = vmatpush1.bf16.msra.mxu0 %v1131
  %1639 = vmatprep.subr.bf16.mxu0 %v1136
  %1640 = vmatpush1.bf16.msra.mxu0 %v1135
  %1641 = vmatprep.subr.bf16.mxu0 %v1140
  %1642 = vmatpush1.bf16.msra.mxu0 %v1139
  %1643 = vmatprep.subr.bf16.mxu0 %v1144
  %1644 = vmatpush1.bf16.msra.mxu0 %v1143
  %1645 = vmatprep.subr.bf16.mxu0 %v1148
  %1646 = vmatpush1.bf16.msra.mxu0 %v1147
  %1647 = vmatprep.subr.bf16.mxu0 %v1152
  %1648 = vmatpush1.bf16.msra.mxu0 %v1151
  %1649 = vmatprep.subr.bf16.mxu0 %v1156
  %1650 = vmatpush1.bf16.msra.mxu0 %v1155
  %1651 = vmatprep.subr.bf16.mxu0 %v1160
  %1652 = vmatpush1.bf16.msra.mxu0 %v1159
  %1653 = vmatprep.subr.bf16.mxu0 %v1164
  %1654 = vmatpush1.bf16.msra.mxu0 %v1163
  %1655 = vmatprep.subr.bf16.mxu0 %v1168
  %1656 = vmatpush1.bf16.msra.mxu0 %v1167
  %1657 = vmatprep.subr.bf16.mxu0 %v1172
  %1658 = vmatpush1.bf16.msra.mxu0 %v1171
  %1659 = vmatprep.subr.bf16.mxu0 %v1176
  %1660 = vmatpush1.bf16.msra.mxu0 %v1175
  %1661 = vmatprep.subr.bf16.mxu0 %v1180
  %1662 = vmatpush1.bf16.msra.mxu0 %v1179
  %1663 = vmatprep.mubr.bf16.mxu0 %v331
  %1664 = vmatmul.mubr.bf16.gmra.mrb[0].mxu0 %v317
  %v1665 = vpop.f32.mrb[0].mxu0
  %v1666 = vadd.f32 0.0, %v1665
  %v1667 = vpop.f32.mrb[0].mxu0
  %v1668 = vadd.f32 0.0, %v1667
  %v1669 = vpop.f32.mrb[0].mxu0
  %v1670 = vpop.f32.mrb[0].mxu0
  %1671 = vdwg.mxu0
  %1672 = vmatprep.subr.bf16.mxu0 %v1184
  %1673 = vmatpush1.bf16.msra.mxu0 %v1183
  %1674 = vmatprep.subr.bf16.mxu0 %v1188
  %1675 = vmatpush1.bf16.msra.mxu0 %v1187
  %1676 = vmatprep.subr.bf16.mxu0 %v1192
  %1677 = vmatpush1.bf16.msra.mxu0 %v1191
  %1678 = vmatprep.subr.bf16.mxu0 %v1196
  %1679 = vmatpush1.bf16.msra.mxu0 %v1195
  %1680 = vmatprep.subr.bf16.mxu0 %v1200
  %1681 = vmatpush1.bf16.msra.mxu0 %v1199
  %1682 = vmatprep.subr.bf16.mxu0 %v1204
  %1683 = vmatpush1.bf16.msra.mxu0 %v1203
  %1684 = vmatprep.subr.bf16.mxu0 %v1208
  %1685 = vmatpush1.bf16.msra.mxu0 %v1207
  %1686 = vmatprep.subr.bf16.mxu0 %v1212
  %1687 = vmatpush1.bf16.msra.mxu0 %v1211
  %1688 = vmatprep.subr.bf16.mxu0 %v1216
  %1689 = vmatpush1.bf16.msra.mxu0 %v1215
  %1690 = vmatprep.subr.bf16.mxu0 %v1220
  %1691 = vmatpush1.bf16.msra.mxu0 %v1219
  %1692 = vmatprep.subr.bf16.mxu0 %v1224
  %1693 = vmatpush1.bf16.msra.mxu0 %v1223
  %1694 = vmatprep.subr.bf16.mxu0 %v1228
  %1695 = vmatpush1.bf16.msra.mxu0 %v1227
  %1696 = vmatprep.subr.bf16.mxu0 %v1232
  %1697 = vmatpush1.bf16.msra.mxu0 %v1231
  %1698 = vmatprep.subr.bf16.mxu0 %v1236
  %1699 = vmatpush1.bf16.msra.mxu0 %v1235
  %1700 = vmatprep.subr.bf16.mxu0 %v1240
  %1701 = vmatpush1.bf16.msra.mxu0 %v1239
  %1702 = vmatprep.subr.bf16.mxu0 %v1244
  %1703 = vmatpush1.bf16.msra.mxu0 %v1243
  %1704 = vmatprep.mubr.bf16.mxu0 %v341
  %1705 = vmatmul.mubr.bf16.gmra.mrb[0].mxu0 %v339
  %v1706 = vpop.f32.mrb[0].mxu0
  %v1707 = vadd.f32 %v1666, %v1706
  %v1708 = vpop.f32.mrb[0].mxu0
  %v1709 = vadd.f32 %v1668, %v1708
  %v1710 = vpop.f32.mrb[0].mxu0
  %v1711 = vpop.f32.mrb[0].mxu0
  %1712 = vdwg.mxu0
  %1713 = vmatprep.subr.bf16.mxu0 %v1248
  %1714 = vmatpush1.bf16.msra.mxu0 %v1247
  %1715 = vmatprep.subr.bf16.mxu0 %v1252
  %1716 = vmatpush1.bf16.msra.mxu0 %v1251
  %1717 = vmatprep.subr.bf16.mxu0 %v1256
  %1718 = vmatpush1.bf16.msra.mxu0 %v1255
  %1719 = vmatprep.subr.bf16.mxu0 %v1260
  %1720 = vmatpush1.bf16.msra.mxu0 %v1259
  %1721 = vmatprep.subr.bf16.mxu0 %v1264
  %1722 = vmatpush1.bf16.msra.mxu0 %v1263
  %1723 = vmatprep.subr.bf16.mxu0 %v1268
  %1724 = vmatpush1.bf16.msra.mxu0 %v1267
  %1725 = vmatprep.subr.bf16.mxu0 %v1272
  %1726 = vmatpush1.bf16.msra.mxu0 %v1271
  %1727 = vmatprep.subr.bf16.mxu0 %v1276
  %1728 = vmatpush1.bf16.msra.mxu0 %v1275
  %1729 = vmatprep.subr.bf16.mxu0 %v1280
  %1730 = vmatpush1.bf16.msra.mxu0 %v1279
  %1731 = vmatprep.subr.bf16.mxu0 %v1284
  %1732 = vmatpush1.bf16.msra.mxu0 %v1283
  %1733 = vmatprep.subr.bf16.mxu0 %v1288
  %1734 = vmatpush1.bf16.msra.mxu0 %v1287
  %1735 = vmatprep.subr.bf16.mxu0 %v1292
  %1736 = vmatpush1.bf16.msra.mxu0 %v1291
  %1737 = vmatprep.subr.bf16.mxu0 %v1296
  %1738 = vmatpush1.bf16.msra.mxu0 %v1295
  %1739 = vmatprep.subr.bf16.mxu0 %v1300
  %1740 = vmatpush1.bf16.msra.mxu0 %v1299
  %1741 = vmatprep.subr.bf16.mxu0 %v1304
  %1742 = vmatpush1.bf16.msra.mxu0 %v1303
  %1743 = vmatprep.subr.bf16.mxu0 %v1308
  %1744 = vmatpush1.bf16.msra.mxu0 %v1307
  %1745 = vmatprep.mubr.bf16.mxu0 %v338
  %1746 = vmatmul.mubr.bf16.gmra.mrb[0].mxu0 %v324
  %v1747 = vpop.f32.mrb[0].mxu0
  %v1748 = vadd.f32 %v1707, %v1747
  %v1749 = vpop.f32.mrb[0].mxu0
  %v1750 = vadd.f32 %v1709, %v1749
  %v1751 = vpop.f32.mrb[0].mxu0
  %v1752 = vpop.f32.mrb[0].mxu0
  %1753 = vdwg.mxu0
  %1754 = vmatprep.subr.bf16.mxu0 %v1312
  %1755 = vmatpush1.bf16.msra.mxu0 %v1311
  %1756 = vmatprep.subr.bf16.mxu0 %v1316
  %1757 = vmatpush1.bf16.msra.mxu0 %v1315
  %1758 = vmatprep.subr.bf16.mxu0 %v1320
  %1759 = vmatpush1.bf16.msra.mxu0 %v1319
  %1760 = vmatprep.subr.bf16.mxu0 %v1324
  %1761 = vmatpush1.bf16.msra.mxu0 %v1323
  %1762 = vmatprep.subr.bf16.mxu0 %v1328
  %1763 = vmatpush1.bf16.msra.mxu0 %v1327
  %1764 = vmatprep.subr.bf16.mxu0 %v1332
  %1765 = vmatpush1.bf16.msra.mxu0 %v1331
  %1766 = vmatprep.subr.bf16.mxu0 %v1336
  %1767 = vmatpush1.bf16.msra.mxu0 %v1335
  %1768 = vmatprep.subr.bf16.mxu0 %v1340
  %1769 = vmatpush1.bf16.msra.mxu0 %v1339
  %1770 = vmatprep.subr.bf16.mxu0 %v1344
  %1771 = vmatpush1.bf16.msra.mxu0 %v1343
  %1772 = vmatprep.subr.bf16.mxu0 %v1348
  %1773 = vmatpush1.bf16.msra.mxu0 %v1347
  %1774 = vmatprep.subr.bf16.mxu0 %v1352
  %1775 = vmatpush1.bf16.msra.mxu0 %v1351
  %1776 = vmatprep.subr.bf16.mxu0 %v1356
  %1777 = vmatpush1.bf16.msra.mxu0 %v1355
  %1778 = vmatprep.subr.bf16.mxu0 %v1360
  %1779 = vmatpush1.bf16.msra.mxu0 %v1359
  %1780 = vmatprep.subr.bf16.mxu0 %v1364
  %1781 = vmatpush1.bf16.msra.mxu0 %v1363
  %1782 = vmatprep.subr.bf16.mxu0 %v1368
  %1783 = vmatpush1.bf16.msra.mxu0 %v1367
  %1784 = vmatprep.subr.bf16.mxu0 %v1372
  %1785 = vmatpush1.bf16.msra.mxu0 %v1371
  %1786 = vmatprep.mubr.bf16.mxu0 %v342
  %1787 = vmatmul.mubr.bf16.gmra.mrb[0].mxu0 %v340
  %v1788 = vpop.f32.mrb[0].mxu0
  %v1789 = vadd.f32 %v1748, %v1788
  %v1790 = vpop.f32.mrb[0].mxu0
  %v1791 = vadd.f32 %v1750, %v1790
  %v1792 = vpop.f32.mrb[0].mxu0
  %v1793 = vpop.f32.mrb[0].mxu0
  %1794 = vdwg.mxu0
  %1795 = vmatprep.subr.bf16.mxu0 %v1122
  %1796 = vmatpush1.bf16.msra.mxu0 %v1121
  %1797 = vmatprep.subr.bf16.mxu0 %v1126
  %1798 = vmatpush1.bf16.msra.mxu0 %v1125
  %1799 = vmatprep.subr.bf16.mxu0 %v1130
  %1800 = vmatpush1.bf16.msra.mxu0 %v1129
  %1801 = vmatprep.subr.bf16.mxu0 %v1134
  %1802 = vmatpush1.bf16.msra.mxu0 %v1133
  %1803 = vmatprep.subr.bf16.mxu0 %v1138
  %1804 = vmatpush1.bf16.msra.mxu0 %v1137
  %1805 = vmatprep.subr.bf16.mxu0 %v1142
  %1806 = vmatpush1.bf16.msra.mxu0 %v1141
  %1807 = vmatprep.subr.bf16.mxu0 %v1146
  %1808 = vmatpush1.bf16.msra.mxu0 %v1145
  %1809 = vmatprep.subr.bf16.mxu0 %v1150
  %1810 = vmatpush1.bf16.msra.mxu0 %v1149
  %1811 = vmatprep.subr.bf16.mxu0 %v1154
  %1812 = vmatpush1.bf16.msra.mxu0 %v1153
  %1813 = vmatprep.subr.bf16.mxu0 %v1158
  %1814 = vmatpush1.bf16.msra.mxu0 %v1157
  %1815 = vmatprep.subr.bf16.mxu0 %v1162
  %1816 = vmatpush1.bf16.msra.mxu0 %v1161
  %1817 = vmatprep.subr.bf16.mxu0 %v1166
  %1818 = vmatpush1.bf16.msra.mxu0 %v1165
  %1819 = vmatprep.subr.bf16.mxu0 %v1170
  %1820 = vmatpush1.bf16.msra.mxu0 %v1169
  %1821 = vmatprep.subr.bf16.mxu0 %v1174
  %1822 = vmatpush1.bf16.msra.mxu0 %v1173
  %1823 = vmatprep.subr.bf16.mxu0 %v1178
  %1824 = vmatpush1.bf16.msra.mxu0 %v1177
  %1825 = vmatprep.subr.bf16.mxu0 %v1182
  %1826 = vmatpush1.bf16.msra.mxu0 %v1181
  %1827 = vmatprep.mubr.bf16.mxu0 %v331
  %1828 = vmatmul.mubr.bf16.gmra.mrb[0].mxu0 %v317
  %v1829 = vpop.f32.mrb[0].mxu0
  %v1830 = vadd.f32 0.0, %v1829
  %v1831 = vpop.f32.mrb[0].mxu0
  %v1832 = vadd.f32 0.0, %v1831
  %v1833 = vpop.f32.mrb[0].mxu0
  %v1834 = vpop.f32.mrb[0].mxu0
  %1835 = vdwg.mxu0
  %1836 = vmatprep.subr.bf16.mxu0 %v1186
  %1837 = vmatpush1.bf16.msra.mxu0 %v1185
  %1838 = vmatprep.subr.bf16.mxu0 %v1190
  %1839 = vmatpush1.bf16.msra.mxu0 %v1189
  %1840 = vmatprep.subr.bf16.mxu0 %v1194
  %1841 = vmatpush1.bf16.msra.mxu0 %v1193
  %1842 = vmatprep.subr.bf16.mxu0 %v1198
  %1843 = vmatpush1.bf16.msra.mxu0 %v1197
  %1844 = vmatprep.subr.bf16.mxu0 %v1202
  %1845 = vmatpush1.bf16.msra.mxu0 %v1201
  %1846 = vmatprep.subr.bf16.mxu0 %v1206
  %1847 = vmatpush1.bf16.msra.mxu0 %v1205
  %1848 = vmatprep.subr.bf16.mxu0 %v1210
  %1849 = vmatpush1.bf16.msra.mxu0 %v1209
  %1850 = vmatprep.subr.bf16.mxu0 %v1214
  %1851 = vmatpush1.bf16.msra.mxu0 %v1213
  %1852 = vmatprep.subr.bf16.mxu0 %v1218
  %1853 = vmatpush1.bf16.msra.mxu0 %v1217
  %1854 = vmatprep.subr.bf16.mxu0 %v1222
  %1855 = vmatpush1.bf16.msra.mxu0 %v1221
  %1856 = vmatprep.subr.bf16.mxu0 %v1226
  %1857 = vmatpush1.bf16.msra.mxu0 %v1225
  %1858 = vmatprep.subr.bf16.mxu0 %v1230
  %1859 = vmatpush1.bf16.msra.mxu0 %v1229
  %1860 = vmatprep.subr.bf16.mxu0 %v1234
  %1861 = vmatpush1.bf16.msra.mxu0 %v1233
  %1862 = vmatprep.subr.bf16.mxu0 %v1238
  %1863 = vmatpush1.bf16.msra.mxu0 %v1237
  %1864 = vmatprep.subr.bf16.mxu0 %v1242
  %1865 = vmatpush1.bf16.msra.mxu0 %v1241
  %1866 = vmatprep.subr.bf16.mxu0 %v1246
  %1867 = vmatpush1.bf16.msra.mxu0 %v1245
  %1868 = vmatprep.mubr.bf16.mxu0 %v341
  %1869 = vmatmul.mubr.bf16.gmra.mrb[0].mxu0 %v339
  %v1870 = vpop.f32.mrb[0].mxu0
  %v1871 = vadd.f32 %v1830, %v1870
  %v1872 = vpop.f32.mrb[0].mxu0
  %v1873 = vadd.f32 %v1832, %v1872
  %v1874 = vpop.f32.mrb[0].mxu0
  %v1875 = vpop.f32.mrb[0].mxu0
  %1876 = vdwg.mxu0
  %1877 = vmatprep.subr.bf16.mxu0 %v1250
  %1878 = vmatpush1.bf16.msra.mxu0 %v1249
  %1879 = vmatprep.subr.bf16.mxu0 %v1254
  %1880 = vmatpush1.bf16.msra.mxu0 %v1253
  %1881 = vmatprep.subr.bf16.mxu0 %v1258
  %1882 = vmatpush1.bf16.msra.mxu0 %v1257
  %1883 = vmatprep.subr.bf16.mxu0 %v1262
  %1884 = vmatpush1.bf16.msra.mxu0 %v1261
  %1885 = vmatprep.subr.bf16.mxu0 %v1266
  %1886 = vmatpush1.bf16.msra.mxu0 %v1265
  %1887 = vmatprep.subr.bf16.mxu0 %v1270
  %1888 = vmatpush1.bf16.msra.mxu0 %v1269
  %1889 = vmatprep.subr.bf16.mxu0 %v1274
  %1890 = vmatpush1.bf16.msra.mxu0 %v1273
  %1891 = vmatprep.subr.bf16.mxu0 %v1278
  %1892 = vmatpush1.bf16.msra.mxu0 %v1277
  %1893 = vmatprep.subr.bf16.mxu0 %v1282
  %1894 = vmatpush1.bf16.msra.mxu0 %v1281
  %1895 = vmatprep.subr.bf16.mxu0 %v1286
  %1896 = vmatpush1.bf16.msra.mxu0 %v1285
  %1897 = vmatprep.subr.bf16.mxu0 %v1290
  %1898 = vmatpush1.bf16.msra.mxu0 %v1289
  %1899 = vmatprep.subr.bf16.mxu0 %v1294
  %1900 = vmatpush1.bf16.msra.mxu0 %v1293
  %1901 = vmatprep.subr.bf16.mxu0 %v1298
  %1902 = vmatpush1.bf16.msra.mxu0 %v1297
  %1903 = vmatprep.subr.bf16.mxu0 %v1302
  %1904 = vmatpush1.bf16.msra.mxu0 %v1301
  %1905 = vmatprep.subr.bf16.mxu0 %v1306
  %1906 = vmatpush1.bf16.msra.mxu0 %v1305
  %1907 = vmatprep.subr.bf16.mxu0 %v1310
  %1908 = vmatpush1.bf16.msra.mxu0 %v1309
  %1909 = vmatprep.mubr.bf16.mxu0 %v338
  %1910 = vmatmul.mubr.bf16.gmra.mrb[0].mxu0 %v324
  %v1911 = vpop.f32.mrb[0].mxu0
  %v1912 = vadd.f32 %v1871, %v1911
  %v1913 = vpop.f32.mrb[0].mxu0
  %v1914 = vadd.f32 %v1873, %v1913
  %v1915 = vpop.f32.mrb[0].mxu0
  %v1916 = vpop.f32.mrb[0].mxu0
  %1917 = vdwg.mxu0
  %1918 = vmatprep.subr.bf16.mxu0 %v1314
  %1919 = vmatpush1.bf16.msra.mxu0 %v1313
  %1920 = vmatprep.subr.bf16.mxu0 %v1318
  %1921 = vmatpush1.bf16.msra.mxu0 %v1317
  %1922 = vmatprep.subr.bf16.mxu0 %v1322
  %1923 = vmatpush1.bf16.msra.mxu0 %v1321
  %1924 = vmatprep.subr.bf16.mxu0 %v1326
  %1925 = vmatpush1.bf16.msra.mxu0 %v1325
  %1926 = vmatprep.subr.bf16.mxu0 %v1330
  %1927 = vmatpush1.bf16.msra.mxu0 %v1329
  %1928 = vmatprep.subr.bf16.mxu0 %v1334
  %1929 = vmatpush1.bf16.msra.mxu0 %v1333
  %1930 = vmatprep.subr.bf16.mxu0 %v1338
  %1931 = vmatpush1.bf16.msra.mxu0 %v1337
  %1932 = vmatprep.subr.bf16.mxu0 %v1342
  %1933 = vmatpush1.bf16.msra.mxu0 %v1341
  %1934 = vmatprep.subr.bf16.mxu0 %v1346
  %1935 = vmatpush1.bf16.msra.mxu0 %v1345
  %1936 = vmatprep.subr.bf16.mxu0 %v1350
  %1937 = vmatpush1.bf16.msra.mxu0 %v1349
  %1938 = vmatprep.subr.bf16.mxu0 %v1354
  %1939 = vmatpush1.bf16.msra.mxu0 %v1353
  %1940 = vmatprep.subr.bf16.mxu0 %v1358
  %1941 = vmatpush1.bf16.msra.mxu0 %v1357
  %1942 = vmatprep.subr.bf16.mxu0 %v1362
  %1943 = vmatpush1.bf16.msra.mxu0 %v1361
  %1944 = vmatprep.subr.bf16.mxu0 %v1366
  %1945 = vmatpush1.bf16.msra.mxu0 %v1365
  %1946 = vmatprep.subr.bf16.mxu0 %v1370
  %1947 = vmatpush1.bf16.msra.mxu0 %v1369
  %1948 = vmatprep.subr.bf16.mxu0 %v1374
  %1949 = vmatpush1.bf16.msra.mxu0 %v1373
  %1950 = vmatprep.mubr.bf16.mxu0 %v342
  %1951 = vmatmul.mubr.bf16.gmra.mrb[0].mxu0 %v340
  %v1952 = vpop.f32.mrb[0].mxu0
  %v1953 = vadd.f32 %v1912, %v1952
  %v1954 = vpop.f32.mrb[0].mxu0
  %v1955 = vadd.f32 %v1914, %v1954
  %v1956 = vpop.f32.mrb[0].mxu0
  %v1957 = vpop.f32.mrb[0].mxu0
  %1958 = vdwg.mxu0
  %v1963 = vcombine.low %v1789, %v1791
  %v1964 = vcombine.low %v1953, %v1955
  %v1966 = vunpack.c.l.s4 1983009808
  %v1967 = vunpack.c.0.s8 %v1966
  %v1968 = vlaneseq
  %v1969 = vshrl.u32 %v1968, 7
  %v1970 = vsub.s32 %v1967, %v1969
  %v1971 = vrot.slane %v1963, %v1970
  %v1973 = vunpack.c.l.s4 1983009808
  %v1974 = vunpack.c.0.s8 %v1973
  %v1975 = vlaneseq
  %v1976 = vshrl.u32 %v1975, 7
  %v1977 = vsub.s32 %v1974, %v1976
  %v1978 = vrot.slane %v1964, %v1977
  %v1979 = vcombine.low %v1971, %v1978
  %v1981 = vadd.f32 %v36, %v1979
  %1982 = vst [vmem:[%s5] sm:$0xff] %v1981
  %v1983 = vld [vmem:[%s4] sm:$0x3]
  %v1984 = vld [vmem:[%s2] sm:$0xf]
  %v1985 = vld [vmem:[%s2 + $0x4] sm:$0xf]
  %v1986 = vld [vmem:[%s2 + $0x8] sm:$0xf]
  %v1987 = vld [vmem:[%s2 + $0xc] sm:$0xf]
  %v1988 = vld [vmem:[%s2 + $0x10] sm:$0xf]
  %v1989 = vld [vmem:[%s2 + $0x14] sm:$0xf]
  %v1990 = vld [vmem:[%s2 + $0x18] sm:$0xf]
  %v1991 = vld [vmem:[%s2 + $0x1c] sm:$0xf]
  %v1992 = vld [vmem:[%s2 + $0x20] sm:$0xf]
  %v1993 = vld [vmem:[%s2 + $0x24] sm:$0xf]
  %v1994 = vld [vmem:[%s2 + $0x28] sm:$0xf]
  %v1995 = vld [vmem:[%s2 + $0x2c] sm:$0xf]
  %v1996 = vld [vmem:[%s2 + $0x30] sm:$0xf]
  %v1997 = vld [vmem:[%s2 + $0x34] sm:$0xf]
  %v1998 = vld [vmem:[%s2 + $0x38] sm:$0xf]
  %v1999 = vld [vmem:[%s2 + $0x3c] sm:$0xf]
  %v2000 = vld [vmem:[%s2 + $0x40] sm:$0xf]
  %v2001 = vld [vmem:[%s2 + $0x44] sm:$0xf]
  %v2002 = vld [vmem:[%s2 + $0x48] sm:$0xf]
  %v2003 = vld [vmem:[%s2 + $0x4c] sm:$0xf]
  %v2004 = vld [vmem:[%s2 + $0x50] sm:$0xf]
  %v2005 = vld [vmem:[%s2 + $0x54] sm:$0xf]
  %v2006 = vld [vmem:[%s2 + $0x58] sm:$0xf]
  %v2007 = vld [vmem:[%s2 + $0x5c] sm:$0xf]
  %v2008 = vld [vmem:[%s2 + $0x60] sm:$0xf]
  %v2009 = vld [vmem:[%s2 + $0x64] sm:$0xf]
  %v2010 = vld [vmem:[%s2 + $0x68] sm:$0xf]
  %v2011 = vld [vmem:[%s2 + $0x6c] sm:$0xf]
  %v2012 = vld [vmem:[%s2 + $0x70] sm:$0xf]
  %v2013 = vld [vmem:[%s2 + $0x74] sm:$0xf]
  %v2014 = vld [vmem:[%s2 + $0x78] sm:$0xf]
  %v2015 = vld [vmem:[%s2 + $0x7c] sm:$0xf]
  %v2016 = vld [vmem:[%s2 + $0x80] sm:$0xf]
  %v2017 = vld [vmem:[%s2 + $0x84] sm:$0xf]
  %v2018 = vld [vmem:[%s2 + $0x88] sm:$0xf]
  %v2019 = vld [vmem:[%s2 + $0x8c] sm:$0xf]
  %v2020 = vld [vmem:[%s2 + $0x90] sm:$0xf]
  %v2021 = vld [vmem:[%s2 + $0x94] sm:$0xf]
  %v2022 = vld [vmem:[%s2 + $0x98] sm:$0xf]
  %v2023 = vld [vmem:[%s2 + $0x9c] sm:$0xf]
  %v2024 = vld [vmem:[%s2 + $0xa0] sm:$0xf]
  %v2025 = vld [vmem:[%s2 + $0xa4] sm:$0xf]
  %v2026 = vld [vmem:[%s2 + $0xa8] sm:$0xf]
  %v2027 = vld [vmem:[%s2 + $0xac] sm:$0xf]
  %v2028 = vld [vmem:[%s2 + $0xb0] sm:$0xf]
  %v2029 = vld [vmem:[%s2 + $0xb4] sm:$0xf]
  %v2030 = vld [vmem:[%s2 + $0xb8] sm:$0xf]
  %v2031 = vld [vmem:[%s2 + $0xbc] sm:$0xf]
  %v2032 = vld [vmem:[%s2 + $0xc0] sm:$0xf]
  %v2033 = vld [vmem:[%s2 + $0xc4] sm:$0xf]
  %v2034 = vld [vmem:[%s2 + $0xc8] sm:$0xf]
  %v2035 = vld [vmem:[%s2 + $0xcc] sm:$0xf]
  %v2036 = vld [vmem:[%s2 + $0xd0] sm:$0xf]
  %v2037 = vld [vmem:[%s2 + $0xd4] sm:$0xf]
  %v2038 = vld [vmem:[%s2 + $0xd8] sm:$0xf]
  %v2039 = vld [vmem:[%s2 + $0xdc] sm:$0xf]
  %v2040 = vld [vmem:[%s2 + $0xe0] sm:$0xf]
  %v2041 = vld [vmem:[%s2 + $0xe4] sm:$0xf]
  %v2042 = vld [vmem:[%s2 + $0xe8] sm:$0xf]
  %v2043 = vld [vmem:[%s2 + $0xec] sm:$0xf]
  %v2044 = vld [vmem:[%s2 + $0xf0] sm:$0xf]
  %v2045 = vld [vmem:[%s2 + $0xf4] sm:$0xf]
  %v2046 = vld [vmem:[%s2 + $0xf8] sm:$0xf]
  %v2047 = vld [vmem:[%s2 + $0xfc] sm:$0xf]
  %v2048 = vld [vmem:[%s2 + $0x100] sm:$0xf]
  %v2049 = vld [vmem:[%s2 + $0x104] sm:$0xf]
  %v2050 = vld [vmem:[%s2 + $0x108] sm:$0xf]
  %v2051 = vld [vmem:[%s2 + $0x10c] sm:$0xf]
  %v2052 = vld [vmem:[%s2 + $0x110] sm:$0xf]
  %v2053 = vld [vmem:[%s2 + $0x114] sm:$0xf]
  %v2054 = vld [vmem:[%s2 + $0x118] sm:$0xf]
  %v2055 = vld [vmem:[%s2 + $0x11c] sm:$0xf]
  %v2056 = vld [vmem:[%s2 + $0x120] sm:$0xf]
  %v2057 = vld [vmem:[%s2 + $0x124] sm:$0xf]
  %v2058 = vld [vmem:[%s2 + $0x128] sm:$0xf]
  %v2059 = vld [vmem:[%s2 + $0x12c] sm:$0xf]
  %v2060 = vld [vmem:[%s2 + $0x130] sm:$0xf]
  %v2061 = vld [vmem:[%s2 + $0x134] sm:$0xf]
  %v2062 = vld [vmem:[%s2 + $0x138] sm:$0xf]
  %v2063 = vld [vmem:[%s2 + $0x13c] sm:$0xf]
  %v2064 = vld [vmem:[%s2 + $0x140] sm:$0xf]
  %v2065 = vld [vmem:[%s2 + $0x144] sm:$0xf]
  %v2066 = vld [vmem:[%s2 + $0x148] sm:$0xf]
  %v2067 = vld [vmem:[%s2 + $0x14c] sm:$0xf]
  %v2068 = vld [vmem:[%s2 + $0x150] sm:$0xf]
  %v2069 = vld [vmem:[%s2 + $0x154] sm:$0xf]
  %v2070 = vld [vmem:[%s2 + $0x158] sm:$0xf]
  %v2071 = vld [vmem:[%s2 + $0x15c] sm:$0xf]
  %v2072 = vld [vmem:[%s2 + $0x160] sm:$0xf]
  %v2073 = vld [vmem:[%s2 + $0x164] sm:$0xf]
  %v2074 = vld [vmem:[%s2 + $0x168] sm:$0xf]
  %v2075 = vld [vmem:[%s2 + $0x16c] sm:$0xf]
  %v2076 = vld [vmem:[%s2 + $0x170] sm:$0xf]
  %v2077 = vld [vmem:[%s2 + $0x174] sm:$0xf]
  %v2078 = vld [vmem:[%s2 + $0x178] sm:$0xf]
  %v2079 = vld [vmem:[%s2 + $0x17c] sm:$0xf]
  %v2080 = vld [vmem:[%s2 + $0x180] sm:$0xf]
  %v2081 = vld [vmem:[%s2 + $0x184] sm:$0xf]
  %v2082 = vld [vmem:[%s2 + $0x188] sm:$0xf]
  %v2083 = vld [vmem:[%s2 + $0x18c] sm:$0xf]
  %v2084 = vld [vmem:[%s2 + $0x190] sm:$0xf]
  %v2085 = vld [vmem:[%s2 + $0x194] sm:$0xf]
  %v2086 = vld [vmem:[%s2 + $0x198] sm:$0xf]
  %v2087 = vld [vmem:[%s2 + $0x19c] sm:$0xf]
  %v2088 = vld [vmem:[%s2 + $0x1a0] sm:$0xf]
  %v2089 = vld [vmem:[%s2 + $0x1a4] sm:$0xf]
  %v2090 = vld [vmem:[%s2 + $0x1a8] sm:$0xf]
  %v2091 = vld [vmem:[%s2 + $0x1ac] sm:$0xf]
  %v2092 = vld [vmem:[%s2 + $0x1b0] sm:$0xf]
  %v2093 = vld [vmem:[%s2 + $0x1b4] sm:$0xf]
  %v2094 = vld [vmem:[%s2 + $0x1b8] sm:$0xf]
  %v2095 = vld [vmem:[%s2 + $0x1bc] sm:$0xf]
  %v2096 = vld [vmem:[%s2 + $0x1c0] sm:$0xf]
  %v2097 = vld [vmem:[%s2 + $0x1c4] sm:$0xf]
  %v2098 = vld [vmem:[%s2 + $0x1c8] sm:$0xf]
  %v2099 = vld [vmem:[%s2 + $0x1cc] sm:$0xf]
  %v2100 = vld [vmem:[%s2 + $0x1d0] sm:$0xf]
  %v2101 = vld [vmem:[%s2 + $0x1d4] sm:$0xf]
  %v2102 = vld [vmem:[%s2 + $0x1d8] sm:$0xf]
  %v2103 = vld [vmem:[%s2 + $0x1dc] sm:$0xf]
  %v2104 = vld [vmem:[%s2 + $0x1e0] sm:$0xf]
  %v2105 = vld [vmem:[%s2 + $0x1e4] sm:$0xf]
  %v2106 = vld [vmem:[%s2 + $0x1e8] sm:$0xf]
  %v2107 = vld [vmem:[%s2 + $0x1ec] sm:$0xf]
  %v2108 = vld [vmem:[%s2 + $0x1f0] sm:$0xf]
  %v2109 = vld [vmem:[%s2 + $0x1f4] sm:$0xf]
  %v2110 = vld [vmem:[%s2 + $0x1f8] sm:$0xf]
  %v2111 = vld [vmem:[%s2 + $0x1fc] sm:$0xf]
  %v2240 = vunpack.c.l.b16 %v1984
  %v2241 = vunpack.c.l.b16 %v1985
  %v2242 = vunpack.c.l.b16 %v1986
  %v2243 = vunpack.c.l.b16 %v1987
  %v2244 = vunpack.c.l.b16 %v1988
  %v2245 = vunpack.c.l.b16 %v1989
  %v2246 = vunpack.c.l.b16 %v1990
  %v2247 = vunpack.c.l.b16 %v1991
  %v2248 = vunpack.c.l.b16 %v1992
  %v2249 = vunpack.c.l.b16 %v1993
  %v2250 = vunpack.c.l.b16 %v1994
  %v2251 = vunpack.c.l.b16 %v1995
  %v2252 = vunpack.c.l.b16 %v1996
  %v2253 = vunpack.c.l.b16 %v1997
  %v2254 = vunpack.c.l.b16 %v1998
  %v2255 = vunpack.c.l.b16 %v1999
  %v2256 = vunpack.c.l.b16 %v2000
  %v2257 = vunpack.c.l.b16 %v2001
  %v2258 = vunpack.c.l.b16 %v2002
  %v2259 = vunpack.c.l.b16 %v2003
  %v2260 = vunpack.c.l.b16 %v2004
  %v2261 = vunpack.c.l.b16 %v2005
  %v2262 = vunpack.c.l.b16 %v2006
  %v2263 = vunpack.c.l.b16 %v2007
  %v2264 = vunpack.c.l.b16 %v2008
  %v2265 = vunpack.c.l.b16 %v2009
  %v2266 = vunpack.c.l.b16 %v2010
  %v2267 = vunpack.c.l.b16 %v2011
  %v2268 = vunpack.c.l.b16 %v2012
  %v2269 = vunpack.c.l.b16 %v2013
  %v2270 = vunpack.c.l.b16 %v2014
  %v2271 = vunpack.c.l.b16 %v2015
  %v2272 = vunpack.c.l.b16 %v2016
  %v2273 = vunpack.c.l.b16 %v2017
  %v2274 = vunpack.c.l.b16 %v2018
  %v2275 = vunpack.c.l.b16 %v2019
  %v2276 = vunpack.c.l.b16 %v2020
  %v2277 = vunpack.c.l.b16 %v2021
  %v2278 = vunpack.c.l.b16 %v2022
  %v2279 = vunpack.c.l.b16 %v2023
  %v2280 = vunpack.c.l.b16 %v2024
  %v2281 = vunpack.c.l.b16 %v2025
  %v2282 = vunpack.c.l.b16 %v2026
  %v2283 = vunpack.c.l.b16 %v2027
  %v2284 = vunpack.c.l.b16 %v2028
  %v2285 = vunpack.c.l.b16 %v2029
  %v2286 = vunpack.c.l.b16 %v2030
  %v2287 = vunpack.c.l.b16 %v2031
  %v2288 = vunpack.c.l.b16 %v2032
  %v2289 = vunpack.c.l.b16 %v2033
  %v2290 = vunpack.c.l.b16 %v2034
  %v2291 = vunpack.c.l.b16 %v2035
  %v2292 = vunpack.c.l.b16 %v2036
  %v2293 = vunpack.c.l.b16 %v2037
  %v2294 = vunpack.c.l.b16 %v2038
  %v2295 = vunpack.c.l.b16 %v2039
  %v2296 = vunpack.c.l.b16 %v2040
  %v2297 = vunpack.c.l.b16 %v2041
  %v2298 = vunpack.c.l.b16 %v2042
  %v2299 = vunpack.c.l.b16 %v2043
  %v2300 = vunpack.c.l.b16 %v2044
  %v2301 = vunpack.c.l.b16 %v2045
  %v2302 = vunpack.c.l.b16 %v2046
  %v2303 = vunpack.c.l.b16 %v2047
  %v2304 = vunpack.c.l.b16 %v2048
  %v2305 = vunpack.c.l.b16 %v2049
  %v2306 = vunpack.c.l.b16 %v2050
  %v2307 = vunpack.c.l.b16 %v2051
  %v2308 = vunpack.c.l.b16 %v2052
  %v2309 = vunpack.c.l.b16 %v2053
  %v2310 = vunpack.c.l.b16 %v2054
  %v2311 = vunpack.c.l.b16 %v2055
  %v2312 = vunpack.c.l.b16 %v2056
  %v2313 = vunpack.c.l.b16 %v2057
  %v2314 = vunpack.c.l.b16 %v2058
  %v2315 = vunpack.c.l.b16 %v2059
  %v2316 = vunpack.c.l.b16 %v2060
  %v2317 = vunpack.c.l.b16 %v2061
  %v2318 = vunpack.c.l.b16 %v2062
  %v2319 = vunpack.c.l.b16 %v2063
  %v2320 = vunpack.c.l.b16 %v2064
  %v2321 = vunpack.c.l.b16 %v2065
  %v2322 = vunpack.c.l.b16 %v2066
  %v2323 = vunpack.c.l.b16 %v2067
  %v2324 = vunpack.c.l.b16 %v2068
  %v2325 = vunpack.c.l.b16 %v2069
  %v2326 = vunpack.c.l.b16 %v2070
  %v2327 = vunpack.c.l.b16 %v2071
  %v2328 = vunpack.c.l.b16 %v2072
  %v2329 = vunpack.c.l.b16 %v2073
  %v2330 = vunpack.c.l.b16 %v2074
  %v2331 = vunpack.c.l.b16 %v2075
  %v2332 = vunpack.c.l.b16 %v2076
  %v2333 = vunpack.c.l.b16 %v2077
  %v2334 = vunpack.c.l.b16 %v2078
  %v2335 = vunpack.c.l.b16 %v2079
  %v2336 = vunpack.c.l.b16 %v2080
  %v2337 = vunpack.c.l.b16 %v2081
  %v2338 = vunpack.c.l.b16 %v2082
  %v2339 = vunpack.c.l.b16 %v2083
  %v2340 = vunpack.c.l.b16 %v2084
  %v2341 = vunpack.c.l.b16 %v2085
  %v2342 = vunpack.c.l.b16 %v2086
  %v2343 = vunpack.c.l.b16 %v2087
  %v2344 = vunpack.c.l.b16 %v2088
  %v2345 = vunpack.c.l.b16 %v2089
  %v2346 = vunpack.c.l.b16 %v2090
  %v2347 = vunpack.c.l.b16 %v2091
  %v2348 = vunpack.c.l.b16 %v2092
  %v2349 = vunpack.c.l.b16 %v2093
  %v2350 = vunpack.c.l.b16 %v2094
  %v2351 = vunpack.c.l.b16 %v2095
  %v2352 = vunpack.c.l.b16 %v2096
  %v2353 = vunpack.c.l.b16 %v2097
  %v2354 = vunpack.c.l.b16 %v2098
  %v2355 = vunpack.c.l.b16 %v2099
  %v2356 = vunpack.c.l.b16 %v2100
  %v2357 = vunpack.c.l.b16 %v2101
  %v2358 = vunpack.c.l.b16 %v2102
  %v2359 = vunpack.c.l.b16 %v2103
  %v2360 = vunpack.c.l.b16 %v2104
  %v2361 = vunpack.c.l.b16 %v2105
  %v2362 = vunpack.c.l.b16 %v2106
  %v2363 = vunpack.c.l.b16 %v2107
  %v2364 = vunpack.c.l.b16 %v2108
  %v2365 = vunpack.c.l.b16 %v2109
  %v2366 = vunpack.c.l.b16 %v2110
  %v2367 = vunpack.c.l.b16 %v2111
  %v2368 = vpack.c.b16 %v2241, %v2240
  %v2369 = vpack.c.b16 %v2243, %v2242
  %v2370 = vpack.c.b16 %v2245, %v2244
  %v2371 = vpack.c.b16 %v2247, %v2246
  %v2372 = vpack.c.b16 %v2249, %v2248
  %v2373 = vpack.c.b16 %v2251, %v2250
  %v2374 = vpack.c.b16 %v2253, %v2252
  %v2375 = vpack.c.b16 %v2255, %v2254
  %v2376 = vpack.c.b16 %v2257, %v2256
  %v2377 = vpack.c.b16 %v2259, %v2258
  %v2378 = vpack.c.b16 %v2261, %v2260
  %v2379 = vpack.c.b16 %v2263, %v2262
  %v2380 = vpack.c.b16 %v2265, %v2264
  %v2381 = vpack.c.b16 %v2267, %v2266
  %v2382 = vpack.c.b16 %v2269, %v2268
  %v2383 = vpack.c.b16 %v2271, %v2270
  %v2384 = vpack.c.b16 %v2273, %v2272
  %v2385 = vpack.c.b16 %v2275, %v2274
  %v2386 = vpack.c.b16 %v2277, %v2276
  %v2387 = vpack.c.b16 %v2279, %v2278
  %v2388 = vpack.c.b16 %v2281, %v2280
  %v2389 = vpack.c.b16 %v2283, %v2282
  %v2390 = vpack.c.b16 %v2285, %v2284
  %v2391 = vpack.c.b16 %v2287, %v2286
  %v2392 = vpack.c.b16 %v2289, %v2288
  %v2393 = vpack.c.b16 %v2291, %v2290
  %v2394 = vpack.c.b16 %v2293, %v2292
  %v2395 = vpack.c.b16 %v2295, %v2294
  %v2396 = vpack.c.b16 %v2297, %v2296
  %v2397 = vpack.c.b16 %v2299, %v2298
  %v2398 = vpack.c.b16 %v2301, %v2300
  %v2399 = vpack.c.b16 %v2303, %v2302
  %v2400 = vpack.c.b16 %v2305, %v2304
  %v2401 = vpack.c.b16 %v2307, %v2306
  %v2402 = vpack.c.b16 %v2309, %v2308
  %v2403 = vpack.c.b16 %v2311, %v2310
  %v2404 = vpack.c.b16 %v2313, %v2312
  %v2405 = vpack.c.b16 %v2315, %v2314
  %v2406 = vpack.c.b16 %v2317, %v2316
  %v2407 = vpack.c.b16 %v2319, %v2318
  %v2408 = vpack.c.b16 %v2321, %v2320
  %v2409 = vpack.c.b16 %v2323, %v2322
  %v2410 = vpack.c.b16 %v2325, %v2324
  %v2411 = vpack.c.b16 %v2327, %v2326
  %v2412 = vpack.c.b16 %v2329, %v2328
  %v2413 = vpack.c.b16 %v2331, %v2330
  %v2414 = vpack.c.b16 %v2333, %v2332
  %v2415 = vpack.c.b16 %v2335, %v2334
  %v2416 = vpack.c.b16 %v2337, %v2336
  %v2417 = vpack.c.b16 %v2339, %v2338
  %v2418 = vpack.c.b16 %v2341, %v2340
  %v2419 = vpack.c.b16 %v2343, %v2342
  %v2420 = vpack.c.b16 %v2345, %v2344
  %v2421 = vpack.c.b16 %v2347, %v2346
  %v2422 = vpack.c.b16 %v2349, %v2348
  %v2423 = vpack.c.b16 %v2351, %v2350
  %v2424 = vpack.c.b16 %v2353, %v2352
  %v2425 = vpack.c.b16 %v2355, %v2354
  %v2426 = vpack.c.b16 %v2357, %v2356
  %v2427 = vpack.c.b16 %v2359, %v2358
  %v2428 = vpack.c.b16 %v2361, %v2360
  %v2429 = vpack.c.b16 %v2363, %v2362
  %v2430 = vpack.c.b16 %v2365, %v2364
  %v2431 = vpack.c.b16 %v2367, %v2366
  %2496 = vmatprep.subr.bf16.mxu0 0
  %2497 = vmatpush1.bf16.msra.mxu0 %v2368
  %2498 = vmatprep.subr.bf16.mxu0 0
  %2499 = vmatpush1.bf16.msra.mxu0 %v2369
  %2500 = vmatprep.subr.bf16.mxu0 0
  %2501 = vmatpush1.bf16.msra.mxu0 %v2370
  %2502 = vmatprep.subr.bf16.mxu0 0
  %2503 = vmatpush1.bf16.msra.mxu0 %v2371
  %2504 = vmatprep.subr.bf16.mxu0 0
  %2505 = vmatpush1.bf16.msra.mxu0 %v2372
  %2506 = vmatprep.subr.bf16.mxu0 0
  %2507 = vmatpush1.bf16.msra.mxu0 %v2373
  %2508 = vmatprep.subr.bf16.mxu0 0
  %2509 = vmatpush1.bf16.msra.mxu0 %v2374
  %2510 = vmatprep.subr.bf16.mxu0 0
  %2511 = vmatpush1.bf16.msra.mxu0 %v2375
  %2512 = vmatprep.subr.bf16.mxu0 0
  %2513 = vmatpush1.bf16.msra.mxu0 %v2376
  %2514 = vmatprep.subr.bf16.mxu0 0
  %2515 = vmatpush1.bf16.msra.mxu0 %v2377
  %2516 = vmatprep.subr.bf16.mxu0 0
  %2517 = vmatpush1.bf16.msra.mxu0 %v2378
  %2518 = vmatprep.subr.bf16.mxu0 0
  %2519 = vmatpush1.bf16.msra.mxu0 %v2379
  %2520 = vmatprep.subr.bf16.mxu0 0
  %2521 = vmatpush1.bf16.msra.mxu0 %v2380
  %2522 = vmatprep.subr.bf16.mxu0 0
  %2523 = vmatpush1.bf16.msra.mxu0 %v2381
  %2524 = vmatprep.subr.bf16.mxu0 0
  %2525 = vmatpush1.bf16.msra.mxu0 %v2382
  %2526 = vmatprep.subr.bf16.mxu0 0
  %2527 = vmatpush1.bf16.msra.mxu0 %v2383
  %2528 = vmatprep.mubr.bf16.mxu0 %v331
  %2529 = vmatmul.mubr.bf16.gmra.mrb[0].mxu0 %v317
  %v2530 = vpop.f32.mrb[0].mxu0
  %v2531 = vadd.f32 0.0, %v2530
  %v2532 = vpop.f32.mrb[0].mxu0
  %v2533 = vpop.f32.mrb[0].mxu0
  %v2534 = vpop.f32.mrb[0].mxu0
  %2535 = vdwg.mxu0
  %2536 = vmatprep.subr.bf16.mxu0 0
  %2537 = vmatpush1.bf16.msra.mxu0 %v2384
  %2538 = vmatprep.subr.bf16.mxu0 0
  %2539 = vmatpush1.bf16.msra.mxu0 %v2385
  %2540 = vmatprep.subr.bf16.mxu0 0
  %2541 = vmatpush1.bf16.msra.mxu0 %v2386
  %2542 = vmatprep.subr.bf16.mxu0 0
  %2543 = vmatpush1.bf16.msra.mxu0 %v2387
  %2544 = vmatprep.subr.bf16.mxu0 0
  %2545 = vmatpush1.bf16.msra.mxu0 %v2388
  %2546 = vmatprep.subr.bf16.mxu0 0
  %2547 = vmatpush1.bf16.msra.mxu0 %v2389
  %2548 = vmatprep.subr.bf16.mxu0 0
  %2549 = vmatpush1.bf16.msra.mxu0 %v2390
  %2550 = vmatprep.subr.bf16.mxu0 0
  %2551 = vmatpush1.bf16.msra.mxu0 %v2391
  %2552 = vmatprep.subr.bf16.mxu0 0
  %2553 = vmatpush1.bf16.msra.mxu0 %v2392
  %2554 = vmatprep.subr.bf16.mxu0 0
  %2555 = vmatpush1.bf16.msra.mxu0 %v2393
  %2556 = vmatprep.subr.bf16.mxu0 0
  %2557 = vmatpush1.bf16.msra.mxu0 %v2394
  %2558 = vmatprep.subr.bf16.mxu0 0
  %2559 = vmatpush1.bf16.msra.mxu0 %v2395
  %2560 = vmatprep.subr.bf16.mxu0 0
  %2561 = vmatpush1.bf16.msra.mxu0 %v2396
  %2562 = vmatprep.subr.bf16.mxu0 0
  %2563 = vmatpush1.bf16.msra.mxu0 %v2397
  %2564 = vmatprep.subr.bf16.mxu0 0
  %2565 = vmatpush1.bf16.msra.mxu0 %v2398
  %2566 = vmatprep.subr.bf16.mxu0 0
  %2567 = vmatpush1.bf16.msra.mxu0 %v2399
  %2568 = vmatprep.mubr.bf16.mxu0 %v341
  %2569 = vmatmul.mubr.bf16.gmra.mrb[0].mxu0 %v339
  %v2570 = vpop.f32.mrb[0].mxu0
  %v2571 = vadd.f32 %v2531, %v2570
  %v2572 = vpop.f32.mrb[0].mxu0
  %v2573 = vpop.f32.mrb[0].mxu0
  %v2574 = vpop.f32.mrb[0].mxu0
  %2575 = vdwg.mxu0
  %2576 = vmatprep.subr.bf16.mxu0 0
  %2577 = vmatpush1.bf16.msra.mxu0 %v2400
  %2578 = vmatprep.subr.bf16.mxu0 0
  %2579 = vmatpush1.bf16.msra.mxu0 %v2401
  %2580 = vmatprep.subr.bf16.mxu0 0
  %2581 = vmatpush1.bf16.msra.mxu0 %v2402
  %2582 = vmatprep.subr.bf16.mxu0 0
  %2583 = vmatpush1.bf16.msra.mxu0 %v2403
  %2584 = vmatprep.subr.bf16.mxu0 0
  %2585 = vmatpush1.bf16.msra.mxu0 %v2404
  %2586 = vmatprep.subr.bf16.mxu0 0
  %2587 = vmatpush1.bf16.msra.mxu0 %v2405
  %2588 = vmatprep.subr.bf16.mxu0 0
  %2589 = vmatpush1.bf16.msra.mxu0 %v2406
  %2590 = vmatprep.subr.bf16.mxu0 0
  %2591 = vmatpush1.bf16.msra.mxu0 %v2407
  %2592 = vmatprep.subr.bf16.mxu0 0
  %2593 = vmatpush1.bf16.msra.mxu0 %v2408
  %2594 = vmatprep.subr.bf16.mxu0 0
  %2595 = vmatpush1.bf16.msra.mxu0 %v2409
  %2596 = vmatprep.subr.bf16.mxu0 0
  %2597 = vmatpush1.bf16.msra.mxu0 %v2410
  %2598 = vmatprep.subr.bf16.mxu0 0
  %2599 = vmatpush1.bf16.msra.mxu0 %v2411
  %2600 = vmatprep.subr.bf16.mxu0 0
  %2601 = vmatpush1.bf16.msra.mxu0 %v2412
  %2602 = vmatprep.subr.bf16.mxu0 0
  %2603 = vmatpush1.bf16.msra.mxu0 %v2413
  %2604 = vmatprep.subr.bf16.mxu0 0
  %2605 = vmatpush1.bf16.msra.mxu0 %v2414
  %2606 = vmatprep.subr.bf16.mxu0 0
  %2607 = vmatpush1.bf16.msra.mxu0 %v2415
  %2608 = vmatprep.mubr.bf16.mxu0 %v338
  %2609 = vmatmul.mubr.bf16.gmra.mrb[0].mxu0 %v324
  %v2610 = vpop.f32.mrb[0].mxu0
  %v2611 = vadd.f32 %v2571, %v2610
  %v2612 = vpop.f32.mrb[0].mxu0
  %v2613 = vpop.f32.mrb[0].mxu0
  %v2614 = vpop.f32.mrb[0].mxu0
  %2615 = vdwg.mxu0
  %2616 = vmatprep.subr.bf16.mxu0 0
  %2617 = vmatpush1.bf16.msra.mxu0 %v2416
  %2618 = vmatprep.subr.bf16.mxu0 0
  %2619 = vmatpush1.bf16.msra.mxu0 %v2417
  %2620 = vmatprep.subr.bf16.mxu0 0
  %2621 = vmatpush1.bf16.msra.mxu0 %v2418
  %2622 = vmatprep.subr.bf16.mxu0 0
  %2623 = vmatpush1.bf16.msra.mxu0 %v2419
  %2624 = vmatprep.subr.bf16.mxu0 0
  %2625 = vmatpush1.bf16.msra.mxu0 %v2420
  %2626 = vmatprep.subr.bf16.mxu0 0
  %2627 = vmatpush1.bf16.msra.mxu0 %v2421
  %2628 = vmatprep.subr.bf16.mxu0 0
  %2629 = vmatpush1.bf16.msra.mxu0 %v2422
  %2630 = vmatprep.subr.bf16.mxu0 0
  %2631 = vmatpush1.bf16.msra.mxu0 %v2423
  %2632 = vmatprep.subr.bf16.mxu0 0
  %2633 = vmatpush1.bf16.msra.mxu0 %v2424
  %2634 = vmatprep.subr.bf16.mxu0 0
  %2635 = vmatpush1.bf16.msra.mxu0 %v2425
  %2636 = vmatprep.subr.bf16.mxu0 0
  %2637 = vmatpush1.bf16.msra.mxu0 %v2426
  %2638 = vmatprep.subr.bf16.mxu0 0
  %2639 = vmatpush1.bf16.msra.mxu0 %v2427
  %2640 = vmatprep.subr.bf16.mxu0 0
  %2641 = vmatpush1.bf16.msra.mxu0 %v2428
  %2642 = vmatprep.subr.bf16.mxu0 0
  %2643 = vmatpush1.bf16.msra.mxu0 %v2429
  %2644 = vmatprep.subr.bf16.mxu0 0
  %2645 = vmatpush1.bf16.msra.mxu0 %v2430
  %2646 = vmatprep.subr.bf16.mxu0 0
  %2647 = vmatpush1.bf16.msra.mxu0 %v2431
  %2648 = vmatprep.mubr.bf16.mxu0 %v342
  %2649 = vmatmul.mubr.bf16.gmra.mrb[0].mxu0 %v340
  %v2650 = vpop.f32.mrb[0].mxu0
  %v2651 = vadd.f32 %v2611, %v2650
  %v2652 = vpop.f32.mrb[0].mxu0
  %v2653 = vpop.f32.mrb[0].mxu0
  %v2654 = vpop.f32.mrb[0].mxu0
  %2655 = vdwg.mxu0
  %v2656 = vadd.f32 %v1983, %v2651
  %vm2657 = vcmask 254976
  %2658 = vst.msk [vmem:[%s4] sm:$0x3] %vm2657, %v2656
  // Predicated region
  $region22: #{global_dim_forward.4} parent=0 // pred_check
    _
  $region23: #{global_dim_forward.4} parent=0 // pred_check_branch
    %2660 = sbr.rel (0) target = $region25
  $region24: #{global_dim_forward.4} parent=0 // pred_region
    _
  $region25: #{global_dim_forward.4} parent=0 // pred_fallthru
    _
  // Predicated region
  $region26: #{global_dim_forward.4} parent=0 // pred_check
    _
  $region27: #{global_dim_forward.4} parent=0 // pred_check_branch
    %2662 = sbr.rel (0) target = $region29
  $region28: #{global_dim_forward.4} parent=0 // pred_region
    _
  $region29: #{global_dim_forward.4} parent=0 // pred_fallthru
    _
  // Predicated region
  $region30: #{global_dim_forward.4} parent=0 // pred_check
    _
  $region31: #{global_dim_forward.4} parent=0 // pred_check_branch
    %2664 = sbr.rel (0) target = $region33
  $region32: #{global_dim_forward.4} parent=0 // pred_region
    _
  $region33: #{global_dim_forward.4} parent=0 // pred_fallthru
    _
  // Predicated region
  $region34: #{global_dim_forward.4} parent=0 // pred_check
    _
  $region35: #{global_dim_forward.4} parent=0 // pred_check_branch
    %2666 = sbr.rel (0) target = $region37
  $region36: #{global_dim_forward.4} parent=0 // pred_region
    _
  $region37: #{global_dim_forward.4} parent=0 // pred_fallthru
    _

// kernel: global_dim_forward.5
$region0: #{global_dim_forward.5}
  #allocation0 [shape = 'u32[]', space=smem, size = 0x4, offset = 0x4, fixed_abs, tag = 'smem constant byte address 0x4 - core index']
  #allocation1 [shape = 'u32[144,128]{1,0:T(1,128)}', space=vmem, size = 0x12000, scoped, tag = 'internal scratch']
  #allocation2 [shape = 'f32[4,512]{1,0:T(4,128)}', space=vmem, size = 0x2000, scoped, tag = 'scratch operand']
  #allocation3 [shape = 'f32[1,1]{1,0:T(1,128)S(1)}', space=vmem, size = 0x200, scoped, tag = 'scoped memory for global_dim_forward.5']
  %s0 = inlined_call_operand.vmem [shape: f32[2,32], index: 0, kind: input, shape index: {}]
  %s1 = inlined_call_operand.vmem [shape: f32[2,32], index: 1, kind: input, shape index: {}]
  %s2 = inlined_call_operand.vmem [shape: f32[2,512], index: 2, kind: input, shape index: {}]
  %s3 = inlined_call_operand.vmem [shape: bf16[32,512], index: 3, kind: input, shape index: {}]
  %s4 = inlined_call_operand.vmem [shape: f32[1,512], index: 4, kind: input, shape index: {}]
  %s5 = inlined_call_operand.vmem [shape: bf16[512,512], index: 5, kind: input, shape index: {}]
  %s6 = inlined_call_operand.vmem [shape: f32[1,512], index: 6, kind: input, shape index: {}]
  %s7 = inlined_call_operand.vmem [shape: f32[1,512], index: 7, kind: input, shape index: {}]
  %s8 = inlined_call_operand.<no memory space> [shape: f32[1,1], index: 8, kind: input, shape index: {}]
  %s9 = inlined_call_operand.vmem [shape: f32[2,1], index: 9, kind: output, shape index: {0}]
  %s10 = inlined_call_operand.vmem [shape: f32[2,1], index: 10, kind: output, shape index: {1}]
  %11 = xla_tuple %s9, %s10
  %s12 = sld [smem:[#allocation0]]
  $region54: #{global_dim_forward.5} parent=0
    _
  %s14 = ssub.s32 1, %s12
  %s15 = scalar_select 0, %s14, %s12
  %v16 = vstv %s8
  %17 = vst [vmem:[#allocation3] sm:$0x1] %v16
  // Predicated region
  $region2: #{global_dim_forward.5} parent=0 // pred_check
    _
  $region3: #{global_dim_forward.5} parent=0 // pred_check_branch
    %19 = sbr.rel (0) target = $region5
  $region4: #{global_dim_forward.5} parent=0 // pred_region
    _
  $region5: #{global_dim_forward.5} parent=0 // pred_fallthru
    _
  // Predicated region
  $region6: #{global_dim_forward.5} parent=0 // pred_check
    _
  $region7: #{global_dim_forward.5} parent=0 // pred_check_branch
    %21 = sbr.rel (0) target = $region9
  $region8: #{global_dim_forward.5} parent=0 // pred_region
    _
  $region9: #{global_dim_forward.5} parent=0 // pred_fallthru
    _
  // Predicated region
  $region10: #{global_dim_forward.5} parent=0 // pred_check
    _
  $region11: #{global_dim_forward.5} parent=0 // pred_check_branch
    %23 = sbr.rel (0) target = $region13
  $region12: #{global_dim_forward.5} parent=0 // pred_region
    _
  $region13: #{global_dim_forward.5} parent=0 // pred_fallthru
    _
  // Predicated region
  $region14: #{global_dim_forward.5} parent=0 // pred_check
    _
  $region15: #{global_dim_forward.5} parent=0 // pred_check_branch
    %25 = sbr.rel (0) target = $region17
  $region16: #{global_dim_forward.5} parent=0 // pred_region
    _
  $region17: #{global_dim_forward.5} parent=0 // pred_fallthru
    _
  // Predicated region
  $region18: #{global_dim_forward.5} parent=0 // pred_check
    _
  $region19: #{global_dim_forward.5} parent=0 // pred_check_branch
    %27 = sbr.rel (0) target = $region21
  $region20: #{global_dim_forward.5} parent=0 // pred_region
    _
  $region21: #{global_dim_forward.5} parent=0 // pred_fallthru
    _
  // Predicated region
  $region22: #{global_dim_forward.5} parent=0 // pred_check
    _
  $region23: #{global_dim_forward.5} parent=0 // pred_check_branch
    %29 = sbr.rel (0) target = $region25
  $region24: #{global_dim_forward.5} parent=0 // pred_region
    _
  $region25: #{global_dim_forward.5} parent=0 // pred_fallthru
    _
  // Predicated region
  $region26: #{global_dim_forward.5} parent=0 // pred_check
    _
  $region27: #{global_dim_forward.5} parent=0 // pred_check_branch
    %31 = sbr.rel (0) target = $region29
  $region28: #{global_dim_forward.5} parent=0 // pred_region
    _
  $region29: #{global_dim_forward.5} parent=0 // pred_fallthru
    _
  // Predicated region
  $region30: #{global_dim_forward.5} parent=0 // pred_check
    _
  $region31: #{global_dim_forward.5} parent=0 // pred_check_branch
    %33 = sbr.rel (0) target = $region33
  $region32: #{global_dim_forward.5} parent=0 // pred_region
    _
  $region33: #{global_dim_forward.5} parent=0 // pred_fallthru
    _
  // Predicated region
  $region34: #{global_dim_forward.5} parent=0 // pred_check
    _
  $region35: #{global_dim_forward.5} parent=0 // pred_check_branch
    %35 = sbr.rel (0) target = $region37
  $region36: #{global_dim_forward.5} parent=0 // pred_region
    _
  $region37: #{global_dim_forward.5} parent=0 // pred_fallthru
    _
  %v37 = vld [vmem:[%s2] sm:$0xff]
  %v38 = vld [vmem:[%s4] sm:$0xf]
  %v39 = vld [vmem:[%s3] sm:$0xff]
  %v40 = vld [vmem:[%s3 + $0x8] sm:$0xff]
  %v41 = vld [vmem:[%s3 + $0x10] sm:$0xff]
  %v42 = vld [vmem:[%s3 + $0x18] sm:$0xff]
  %v43 = vld [vmem:[%s3 + $0x20] sm:$0xff]
  %v44 = vld [vmem:[%s3 + $0x28] sm:$0xff]
  %v45 = vld [vmem:[%s3 + $0x30] sm:$0xff]
  %v46 = vld [vmem:[%s3 + $0x38] sm:$0xff]
  %v47 = vld [vmem:[%s0] sm:$0x3]
  %v48 = vpack.c.bf16 %v47, %v47
  %v57 = vunpack.c.l.b16 %v39
  %v58 = vunpack.c.h.b16 %v39
  %v59 = vunpack.c.l.b16 %v40
  %v60 = vunpack.c.h.b16 %v40
  %v61 = vunpack.c.l.b16 %v41
  %v62 = vunpack.c.h.b16 %v41
  %v63 = vunpack.c.l.b16 %v42
  %v64 = vunpack.c.h.b16 %v42
  %v65 = vunpack.c.l.b16 %v43
  %v66 = vunpack.c.h.b16 %v43
  %v67 = vunpack.c.l.b16 %v44
  %v68 = vunpack.c.h.b16 %v44
  %v69 = vunpack.c.l.b16 %v45
  %v70 = vunpack.c.h.b16 %v45
  %v71 = vunpack.c.l.b16 %v46
  %v72 = vunpack.c.h.b16 %v46
  %v73 = vpack.c.b16 %v61, %v57
  %v74 = vpack.c.b16 %v62, %v58
  %v75 = vpack.c.b16 %v63, %v59
  %v76 = vpack.c.b16 %v64, %v60
  %v77 = vpack.c.b16 %v69, %v65
  %v78 = vpack.c.b16 %v70, %v66
  %v79 = vpack.c.b16 %v71, %v67
  %v80 = vpack.c.b16 %v72, %v68
  %vm89 = vcmask 261120
  %v91 = vsel %vm89, %v48, 0
  %93 = vmatprep.subr.bf16.mxu0 %v74
  %94 = vmatpush1.bf16.msra.mxu0 %v73
  %95 = vmatprep.subr.bf16.mxu0 %v78
  %96 = vmatpush1.bf16.msra.mxu0 %v77
  %97 = vmatprep.subr.bf16.mxu0 0
  %98 = vmatpush1.bf16.msra.mxu0 0
  %99 = vmatprep.subr.bf16.mxu0 0
  %100 = vmatpush1.bf16.msra.mxu0 0
  %101 = vmatprep.subr.bf16.mxu0 0
  %102 = vmatpush1.bf16.msra.mxu0 0
  %103 = vmatprep.subr.bf16.mxu0 0
  %104 = vmatpush1.bf16.msra.mxu0 0
  %105 = vmatprep.subr.bf16.mxu0 0
  %106 = vmatpush1.bf16.msra.mxu0 0
  %107 = vmatprep.subr.bf16.mxu0 0
  %108 = vmatpush1.bf16.msra.mxu0 0
  %109 = vmatprep.subr.bf16.mxu0 0
  %110 = vmatpush1.bf16.msra.mxu0 0
  %111 = vmatprep.subr.bf16.mxu0 0
  %112 = vmatpush1.bf16.msra.mxu0 0
  %113 = vmatprep.subr.bf16.mxu0 0
  %114 = vmatpush1.bf16.msra.mxu0 0
  %115 = vmatprep.subr.bf16.mxu0 0
  %116 = vmatpush1.bf16.msra.mxu0 0
  %117 = vmatprep.subr.bf16.mxu0 0
  %118 = vmatpush1.bf16.msra.mxu0 0
  %119 = vmatprep.subr.bf16.mxu0 0
  %120 = vmatpush1.bf16.msra.mxu0 0
  %121 = vmatprep.subr.bf16.mxu0 0
  %122 = vmatpush1.bf16.msra.mxu0 0
  %123 = vmatprep.subr.bf16.mxu0 0
  %124 = vmatpush1.bf16.msra.mxu0 0
  %125 = vmatprep.mubr.bf16.mxu0 0
  %126 = vmatmul.mubr.bf16.gmra.mrb[0].mxu0 %v91
  %v127 = vpop.f32.mrb[0].mxu0
  %v128 = vadd.f32 0.0, %v127
  %v129 = vpop.f32.mrb[0].mxu0
  %v130 = vadd.f32 0.0, %v129
  %v131 = vpop.f32.mrb[0].mxu0
  %v132 = vpop.f32.mrb[0].mxu0
  %133 = vdwg.mxu0
  %134 = vmatprep.subr.bf16.mxu0 %v76
  %135 = vmatpush1.bf16.msra.mxu0 %v75
  %136 = vmatprep.subr.bf16.mxu0 %v80
  %137 = vmatpush1.bf16.msra.mxu0 %v79
  %138 = vmatprep.subr.bf16.mxu0 0
  %139 = vmatpush1.bf16.msra.mxu0 0
  %140 = vmatprep.subr.bf16.mxu0 0
  %141 = vmatpush1.bf16.msra.mxu0 0
  %142 = vmatprep.subr.bf16.mxu0 0
  %143 = vmatpush1.bf16.msra.mxu0 0
  %144 = vmatprep.subr.bf16.mxu0 0
  %145 = vmatpush1.bf16.msra.mxu0 0
  %146 = vmatprep.subr.bf16.mxu0 0
  %147 = vmatpush1.bf16.msra.mxu0 0
  %148 = vmatprep.subr.bf16.mxu0 0
  %149 = vmatpush1.bf16.msra.mxu0 0
  %150 = vmatprep.subr.bf16.mxu0 0
  %151 = vmatpush1.bf16.msra.mxu0 0
  %152 = vmatprep.subr.bf16.mxu0 0
  %153 = vmatpush1.bf16.msra.mxu0 0
  %154 = vmatprep.subr.bf16.mxu0 0
  %155 = vmatpush1.bf16.msra.mxu0 0
  %156 = vmatprep.subr.bf16.mxu0 0
  %157 = vmatpush1.bf16.msra.mxu0 0
  %158 = vmatprep.subr.bf16.mxu0 0
  %159 = vmatpush1.bf16.msra.mxu0 0
  %160 = vmatprep.subr.bf16.mxu0 0
  %161 = vmatpush1.bf16.msra.mxu0 0
  %162 = vmatprep.subr.bf16.mxu0 0
  %163 = vmatpush1.bf16.msra.mxu0 0
  %164 = vmatprep.subr.bf16.mxu0 0
  %165 = vmatpush1.bf16.msra.mxu0 0
  %166 = vmatprep.mubr.bf16.mxu0 0
  %167 = vmatmul.mubr.bf16.gmra.mrb[0].mxu0 %v91
  %v168 = vpop.f32.mrb[0].mxu0
  %v169 = vadd.f32 0.0, %v168
  %v170 = vpop.f32.mrb[0].mxu0
  %v171 = vadd.f32 0.0, %v170
  %v172 = vpop.f32.mrb[0].mxu0
  %v173 = vpop.f32.mrb[0].mxu0
  %174 = vdwg.mxu0
  %v179 = vcombine.low %v128, %v130
  %v180 = vcombine.low %v169, %v171
  %v182 = vunpack.c.l.s4 1983009808
  %v183 = vunpack.c.0.s8 %v182
  %v184 = vlaneseq
  %v185 = vshrl.u32 %v184, 7
  %v186 = vsub.s32 %v183, %v185
  %v187 = vrot.slane %v179, %v186
  %v189 = vunpack.c.l.s4 1983009808
  %v190 = vunpack.c.0.s8 %v189
  %v191 = vlaneseq
  %v192 = vshrl.u32 %v191, 7
  %v193 = vsub.s32 %v190, %v192
  %v194 = vrot.slane %v180, %v193
  %v195 = vcombine.low %v187, %v194
  %v197 = vadd.f32 %v37, %v195
  %v199 = vlaneseq
  %v200 = vshrl.u32 %v199, 7
  %v201 = vsub.s32 0, %v200
  %v202 = vrot.slane %v38, %v201
  %v203 = vlaneseq
  %v204 = vshrl.u32 %v203, 7
  %v205 = vsub.s32 1, %v204
  %v206 = vrot.slane %v38, %v205
  %v207 = vlaneseq
  %v208 = vshrl.u32 %v207, 7
  %v209 = vsub.s32 2, %v208
  %v210 = vrot.slane %v38, %v209
  %v211 = vlaneseq
  %v212 = vshrl.u32 %v211, 7
  %v213 = vsub.s32 3, %v212
  %v214 = vrot.slane %v38, %v213
  %v215 = vcombine.low %v202, %v206
  %v216 = vcombine.low %v210, %v214
  %v218 = vunpack.c.l.s4 1983009808
  %v219 = vunpack.c.0.s8 %v218
  %v220 = vlaneseq
  %v221 = vshrl.u32 %v220, 7
  %v222 = vsub.s32 %v219, %v221
  %v223 = vrot.slane %v215, %v222
  %v225 = vunpack.c.l.s4 1983009808
  %v226 = vunpack.c.0.s8 %v225
  %v227 = vlaneseq
  %v228 = vshrl.u32 %v227, 7
  %v229 = vsub.s32 %v226, %v228
  %v230 = vrot.slane %v216, %v229
  %v231 = vcombine.low %v223, %v230
  %v233 = vadd.f32 %v197, %v231
  %v234 = vmax.f32 %v233, 0.0
  %v235 = vld [vmem:[%s1] sm:$0x3]
  %v236 = vpack.c.bf16 %v235, %v235
  %v238 = vsel %vm89, %v236, 0
  %240 = vmatprep.subr.bf16.mxu0 %v74
  %241 = vmatpush1.bf16.msra.mxu0 %v73
  %242 = vmatprep.subr.bf16.mxu0 %v78
  %243 = vmatpush1.bf16.msra.mxu0 %v77
  %244 = vmatprep.subr.bf16.mxu0 0
  %245 = vmatpush1.bf16.msra.mxu0 0
  %246 = vmatprep.subr.bf16.mxu0 0
  %247 = vmatpush1.bf16.msra.mxu0 0
  %248 = vmatprep.subr.bf16.mxu0 0
  %249 = vmatpush1.bf16.msra.mxu0 0
  %250 = vmatprep.subr.bf16.mxu0 0
  %251 = vmatpush1.bf16.msra.mxu0 0
  %252 = vmatprep.subr.bf16.mxu0 0
  %253 = vmatpush1.bf16.msra.mxu0 0
  %254 = vmatprep.subr.bf16.mxu0 0
  %255 = vmatpush1.bf16.msra.mxu0 0
  %256 = vmatprep.subr.bf16.mxu0 0
  %257 = vmatpush1.bf16.msra.mxu0 0
  %258 = vmatprep.subr.bf16.mxu0 0
  %259 = vmatpush1.bf16.msra.mxu0 0
  %260 = vmatprep.subr.bf16.mxu0 0
  %261 = vmatpush1.bf16.msra.mxu0 0
  %262 = vmatprep.subr.bf16.mxu0 0
  %263 = vmatpush1.bf16.msra.mxu0 0
  %264 = vmatprep.subr.bf16.mxu0 0
  %265 = vmatpush1.bf16.msra.mxu0 0
  %266 = vmatprep.subr.bf16.mxu0 0
  %267 = vmatpush1.bf16.msra.mxu0 0
  %268 = vmatprep.subr.bf16.mxu0 0
  %269 = vmatpush1.bf16.msra.mxu0 0
  %270 = vmatprep.subr.bf16.mxu0 0
  %271 = vmatpush1.bf16.msra.mxu0 0
  %272 = vmatprep.mubr.bf16.mxu0 0
  %273 = vmatmul.mubr.bf16.gmra.mrb[0].mxu0 %v238
  %v274 = vpop.f32.mrb[0].mxu0
  %v275 = vadd.f32 0.0, %v274
  %v276 = vpop.f32.mrb[0].mxu0
  %v277 = vadd.f32 0.0, %v276
  %v278 = vpop.f32.mrb[0].mxu0
  %v279 = vpop.f32.mrb[0].mxu0
  %280 = vdwg.mxu0
  %281 = vmatprep.subr.bf16.mxu0 %v76
  %282 = vmatpush1.bf16.msra.mxu0 %v75
  %283 = vmatprep.subr.bf16.mxu0 %v80
  %284 = vmatpush1.bf16.msra.mxu0 %v79
  %285 = vmatprep.subr.bf16.mxu0 0
  %286 = vmatpush1.bf16.msra.mxu0 0
  %287 = vmatprep.subr.bf16.mxu0 0
  %288 = vmatpush1.bf16.msra.mxu0 0
  %289 = vmatprep.subr.bf16.mxu0 0
  %290 = vmatpush1.bf16.msra.mxu0 0
  %291 = vmatprep.subr.bf16.mxu0 0
  %292 = vmatpush1.bf16.msra.mxu0 0
  %293 = vmatprep.subr.bf16.mxu0 0
  %294 = vmatpush1.bf16.msra.mxu0 0
  %295 = vmatprep.subr.bf16.mxu0 0
  %296 = vmatpush1.bf16.msra.mxu0 0
  %297 = vmatprep.subr.bf16.mxu0 0
  %298 = vmatpush1.bf16.msra.mxu0 0
  %299 = vmatprep.subr.bf16.mxu0 0
  %300 = vmatpush1.bf16.msra.mxu0 0
  %301 = vmatprep.subr.bf16.mxu0 0
  %302 = vmatpush1.bf16.msra.mxu0 0
  %303 = vmatprep.subr.bf16.mxu0 0
  %304 = vmatpush1.bf16.msra.mxu0 0
  %305 = vmatprep.subr.bf16.mxu0 0
  %306 = vmatpush1.bf16.msra.mxu0 0
  %307 = vmatprep.subr.bf16.mxu0 0
  %308 = vmatpush1.bf16.msra.mxu0 0
  %309 = vmatprep.subr.bf16.mxu0 0
  %310 = vmatpush1.bf16.msra.mxu0 0
  %311 = vmatprep.subr.bf16.mxu0 0
  %312 = vmatpush1.bf16.msra.mxu0 0
  %313 = vmatprep.mubr.bf16.mxu0 0
  %314 = vmatmul.mubr.bf16.gmra.mrb[0].mxu0 %v238
  %v315 = vpop.f32.mrb[0].mxu0
  %v316 = vadd.f32 0.0, %v315
  %v317 = vpop.f32.mrb[0].mxu0
  %v318 = vadd.f32 0.0, %v317
  %v319 = vpop.f32.mrb[0].mxu0
  %v320 = vpop.f32.mrb[0].mxu0
  %321 = vdwg.mxu0
  %v326 = vcombine.low %v275, %v277
  %v327 = vcombine.low %v316, %v318
  %v329 = vunpack.c.l.s4 1983009808
  %v330 = vunpack.c.0.s8 %v329
  %v331 = vlaneseq
  %v332 = vshrl.u32 %v331, 7
  %v333 = vsub.s32 %v330, %v332
  %v334 = vrot.slane %v326, %v333
  %v336 = vunpack.c.l.s4 1983009808
  %v337 = vunpack.c.0.s8 %v336
  %v338 = vlaneseq
  %v339 = vshrl.u32 %v338, 7
  %v340 = vsub.s32 %v337, %v339
  %v341 = vrot.slane %v327, %v340
  %v342 = vcombine.low %v334, %v341
  %v344 = vadd.f32 %v37, %v342
  %v345 = vadd.f32 %v344, %v231
  %v346 = vmax.f32 %v345, 0.0
  %v348 = vcombine.high %v234, %v234
  %v350 = vunpack.c.l.s4 1983009808
  %v351 = vunpack.c.0.s8 %v350
  %v352 = vlaneseq
  %v353 = vshrl.u32 %v352, 7
  %v354 = vsub.s32 %v351, %v353
  %v355 = vrot.slane %v234, %v354
  %v357 = vunpack.c.l.s4 1983009808
  %v358 = vunpack.c.0.s8 %v357
  %v359 = vlaneseq
  %v360 = vshrl.u32 %v359, 7
  %v361 = vsub.s32 %v358, %v360
  %v362 = vrot.slane %v348, %v361
  %365 = vst [vmem:[#allocation2] sm:$0x33] %v355
  %366 = vst [vmem:[#allocation2 + $0x8] sm:$0x33] %v362
  %v368 = vcombine.low %v346, %v346
  %v370 = vunpack.c.l.s4 1983009808
  %v371 = vunpack.c.0.s8 %v370
  %v372 = vlaneseq
  %v373 = vshrl.u32 %v372, 7
  %v374 = vsub.s32 %v371, %v373
  %v375 = vrot.slane %v368, %v374
  %v377 = vunpack.c.l.s4 1983009808
  %v378 = vunpack.c.0.s8 %v377
  %v379 = vlaneseq
  %v380 = vshrl.u32 %v379, 7
  %v381 = vsub.s32 %v378, %v380
  %v382 = vrot.slane %v346, %v381
  %385 = vst [vmem:[#allocation2] sm:$0xcc] %v375
  %386 = vst [vmem:[#allocation2 + $0x8] sm:$0xcc] %v382
  %v387 = vld [vmem:[#allocation2] sm:$0xff]
  %v388 = vld [vmem:[#allocation2 + $0x8] sm:$0xff]
  %v391 = vcombine.high %v387, %v387
  %v392 = vcombine.high %v388, %v388
  %v395 = vpack.c.bf16 %v387, %v387
  %v396 = vpack.c.bf16 %v391, %v391
  %v397 = vpack.c.bf16 %v388, %v388
  %v398 = vpack.c.bf16 %v392, %v392
  %v399 = vld [vmem:[%s5] sm:$0xff]
  %v400 = vld [vmem:[%s5 + $0x8] sm:$0xff]
  %v401 = vld [vmem:[%s5 + $0x10] sm:$0xff]
  %v402 = vld [vmem:[%s5 + $0x18] sm:$0xff]
  %v403 = vld [vmem:[%s5 + $0x20] sm:$0xff]
  %v404 = vld [vmem:[%s5 + $0x28] sm:$0xff]
  %v405 = vld [vmem:[%s5 + $0x30] sm:$0xff]
  %v406 = vld [vmem:[%s5 + $0x38] sm:$0xff]
  %v407 = vld [vmem:[%s5 + $0x40] sm:$0xff]
  %v408 = vld [vmem:[%s5 + $0x48] sm:$0xff]
  %v409 = vld [vmem:[%s5 + $0x50] sm:$0xff]
  %v410 = vld [vmem:[%s5 + $0x58] sm:$0xff]
  %v411 = vld [vmem:[%s5 + $0x60] sm:$0xff]
  %v412 = vld [vmem:[%s5 + $0x68] sm:$0xff]
  %v413 = vld [vmem:[%s5 + $0x70] sm:$0xff]
  %v414 = vld [vmem:[%s5 + $0x78] sm:$0xff]
  %v415 = vld [vmem:[%s5 + $0x80] sm:$0xff]
  %v416 = vld [vmem:[%s5 + $0x88] sm:$0xff]
  %v417 = vld [vmem:[%s5 + $0x90] sm:$0xff]
  %v418 = vld [vmem:[%s5 + $0x98] sm:$0xff]
  %v419 = vld [vmem:[%s5 + $0xa0] sm:$0xff]
  %v420 = vld [vmem:[%s5 + $0xa8] sm:$0xff]
  %v421 = vld [vmem:[%s5 + $0xb0] sm:$0xff]
  %v422 = vld [vmem:[%s5 + $0xb8] sm:$0xff]
  %v423 = vld [vmem:[%s5 + $0xc0] sm:$0xff]
  %v424 = vld [vmem:[%s5 + $0xc8] sm:$0xff]
  %v425 = vld [vmem:[%s5 + $0xd0] sm:$0xff]
  %v426 = vld [vmem:[%s5 + $0xd8] sm:$0xff]
  %v427 = vld [vmem:[%s5 + $0xe0] sm:$0xff]
  %v428 = vld [vmem:[%s5 + $0xe8] sm:$0xff]
  %v429 = vld [vmem:[%s5 + $0xf0] sm:$0xff]
  %v430 = vld [vmem:[%s5 + $0xf8] sm:$0xff]
  %v431 = vld [vmem:[%s5 + $0x100] sm:$0xff]
  %v432 = vld [vmem:[%s5 + $0x108] sm:$0xff]
  %v433 = vld [vmem:[%s5 + $0x110] sm:$0xff]
  %v434 = vld [vmem:[%s5 + $0x118] sm:$0xff]
  %v435 = vld [vmem:[%s5 + $0x120] sm:$0xff]
  %v436 = vld [vmem:[%s5 + $0x128] sm:$0xff]
  %v437 = vld [vmem:[%s5 + $0x130] sm:$0xff]
  %v438 = vld [vmem:[%s5 + $0x138] sm:$0xff]
  %v439 = vld [vmem:[%s5 + $0x140] sm:$0xff]
  %v440 = vld [vmem:[%s5 + $0x148] sm:$0xff]
  %v441 = vld [vmem:[%s5 + $0x150] sm:$0xff]
  %v442 = vld [vmem:[%s5 + $0x158] sm:$0xff]
  %v443 = vld [vmem:[%s5 + $0x160] sm:$0xff]
  %v444 = vld [vmem:[%s5 + $0x168] sm:$0xff]
  %v445 = vld [vmem:[%s5 + $0x170] sm:$0xff]
  %v446 = vld [vmem:[%s5 + $0x178] sm:$0xff]
  %v447 = vld [vmem:[%s5 + $0x180] sm:$0xff]
  %v448 = vld [vmem:[%s5 + $0x188] sm:$0xff]
  %v449 = vld [vmem:[%s5 + $0x190] sm:$0xff]
  %v450 = vld [vmem:[%s5 + $0x198] sm:$0xff]
  %v451 = vld [vmem:[%s5 + $0x1a0] sm:$0xff]
  %v452 = vld [vmem:[%s5 + $0x1a8] sm:$0xff]
  %v453 = vld [vmem:[%s5 + $0x1b0] sm:$0xff]
  %v454 = vld [vmem:[%s5 + $0x1b8] sm:$0xff]
  %v455 = vld [vmem:[%s5 + $0x1c0] sm:$0xff]
  %v456 = vld [vmem:[%s5 + $0x1c8] sm:$0xff]
  %v457 = vld [vmem:[%s5 + $0x1d0] sm:$0xff]
  %v458 = vld [vmem:[%s5 + $0x1d8] sm:$0xff]
  %v459 = vld [vmem:[%s5 + $0x1e0] sm:$0xff]
  %v460 = vld [vmem:[%s5 + $0x1e8] sm:$0xff]
  %v461 = vld [vmem:[%s5 + $0x1f0] sm:$0xff]
  %v462 = vld [vmem:[%s5 + $0x1f8] sm:$0xff]
  %v463 = vld [vmem:[%s5 + $0x200] sm:$0xff]
  %v464 = vld [vmem:[%s5 + $0x208] sm:$0xff]
  %v465 = vld [vmem:[%s5 + $0x210] sm:$0xff]
  %v466 = vld [vmem:[%s5 + $0x218] sm:$0xff]
  %v467 = vld [vmem:[%s5 + $0x220] sm:$0xff]
  %v468 = vld [vmem:[%s5 + $0x228] sm:$0xff]
  %v469 = vld [vmem:[%s5 + $0x230] sm:$0xff]
  %v470 = vld [vmem:[%s5 + $0x238] sm:$0xff]
  %v471 = vld [vmem:[%s5 + $0x240] sm:$0xff]
  %v472 = vld [vmem:[%s5 + $0x248] sm:$0xff]
  %v473 = vld [vmem:[%s5 + $0x250] sm:$0xff]
  %v474 = vld [vmem:[%s5 + $0x258] sm:$0xff]
  %v475 = vld [vmem:[%s5 + $0x260] sm:$0xff]
  %v476 = vld [vmem:[%s5 + $0x268] sm:$0xff]
  %v477 = vld [vmem:[%s5 + $0x270] sm:$0xff]
  %v478 = vld [vmem:[%s5 + $0x278] sm:$0xff]
  %v479 = vld [vmem:[%s5 + $0x280] sm:$0xff]
  %v480 = vld [vmem:[%s5 + $0x288] sm:$0xff]
  %v481 = vld [vmem:[%s5 + $0x290] sm:$0xff]
  %v482 = vld [vmem:[%s5 + $0x298] sm:$0xff]
  %v483 = vld [vmem:[%s5 + $0x2a0] sm:$0xff]
  %v484 = vld [vmem:[%s5 + $0x2a8] sm:$0xff]
  %v485 = vld [vmem:[%s5 + $0x2b0] sm:$0xff]
  %v486 = vld [vmem:[%s5 + $0x2b8] sm:$0xff]
  %v487 = vld [vmem:[%s5 + $0x2c0] sm:$0xff]
  %v488 = vld [vmem:[%s5 + $0x2c8] sm:$0xff]
  %v489 = vld [vmem:[%s5 + $0x2d0] sm:$0xff]
  %v490 = vld [vmem:[%s5 + $0x2d8] sm:$0xff]
  %v491 = vld [vmem:[%s5 + $0x2e0] sm:$0xff]
  %v492 = vld [vmem:[%s5 + $0x2e8] sm:$0xff]
  %v493 = vld [vmem:[%s5 + $0x2f0] sm:$0xff]
  %v494 = vld [vmem:[%s5 + $0x2f8] sm:$0xff]
  %v495 = vld [vmem:[%s5 + $0x300] sm:$0xff]
  %v496 = vld [vmem:[%s5 + $0x308] sm:$0xff]
  %v497 = vld [vmem:[%s5 + $0x310] sm:$0xff]
  %v498 = vld [vmem:[%s5 + $0x318] sm:$0xff]
  %v499 = vld [vmem:[%s5 + $0x320] sm:$0xff]
  %v500 = vld [vmem:[%s5 + $0x328] sm:$0xff]
  %v501 = vld [vmem:[%s5 + $0x330] sm:$0xff]
  %v502 = vld [vmem:[%s5 + $0x338] sm:$0xff]
  %v503 = vld [vmem:[%s5 + $0x340] sm:$0xff]
  %v504 = vld [vmem:[%s5 + $0x348] sm:$0xff]
  %v505 = vld [vmem:[%s5 + $0x350] sm:$0xff]
  %v506 = vld [vmem:[%s5 + $0x358] sm:$0xff]
  %v507 = vld [vmem:[%s5 + $0x360] sm:$0xff]
  %v508 = vld [vmem:[%s5 + $0x368] sm:$0xff]
  %v509 = vld [vmem:[%s5 + $0x370] sm:$0xff]
  %v510 = vld [vmem:[%s5 + $0x378] sm:$0xff]
  %v511 = vld [vmem:[%s5 + $0x380] sm:$0xff]
  %v512 = vld [vmem:[%s5 + $0x388] sm:$0xff]
  %v513 = vld [vmem:[%s5 + $0x390] sm:$0xff]
  %v514 = vld [vmem:[%s5 + $0x398] sm:$0xff]
  %v515 = vld [vmem:[%s5 + $0x3a0] sm:$0xff]
  %v516 = vld [vmem:[%s5 + $0x3a8] sm:$0xff]
  %v517 = vld [vmem:[%s5 + $0x3b0] sm:$0xff]
  %v518 = vld [vmem:[%s5 + $0x3b8] sm:$0xff]
  %v519 = vld [vmem:[%s5 + $0x3c0] sm:$0xff]
  %v520 = vld [vmem:[%s5 + $0x3c8] sm:$0xff]
  %v521 = vld [vmem:[%s5 + $0x3d0] sm:$0xff]
  %v522 = vld [vmem:[%s5 + $0x3d8] sm:$0xff]
  %v523 = vld [vmem:[%s5 + $0x3e0] sm:$0xff]
  %v524 = vld [vmem:[%s5 + $0x3e8] sm:$0xff]
  %v525 = vld [vmem:[%s5 + $0x3f0] sm:$0xff]
  %v526 = vld [vmem:[%s5 + $0x3f8] sm:$0xff]
  %v527 = vld [vmem:[%s6] sm:$0xf]
  %v529 = vlaneseq
  %v530 = vshrl.u32 %v529, 7
  %v531 = vsub.s32 0, %v530
  %v532 = vrot.slane %v527, %v531
  %v533 = vlaneseq
  %v534 = vshrl.u32 %v533, 7
  %v535 = vsub.s32 1, %v534
  %v536 = vrot.slane %v527, %v535
  %v537 = vlaneseq
  %v538 = vshrl.u32 %v537, 7
  %v539 = vsub.s32 2, %v538
  %v540 = vrot.slane %v527, %v539
  %v541 = vlaneseq
  %v542 = vshrl.u32 %v541, 7
  %v543 = vsub.s32 3, %v542
  %v544 = vrot.slane %v527, %v543
  %v677 = vunpack.c.l.b16 %v399
  %v678 = vunpack.c.h.b16 %v399
  %v679 = vunpack.c.l.b16 %v400
  %v680 = vunpack.c.h.b16 %v400
  %v681 = vunpack.c.l.b16 %v401
  %v682 = vunpack.c.h.b16 %v401
  %v683 = vunpack.c.l.b16 %v402
  %v684 = vunpack.c.h.b16 %v402
  %v685 = vunpack.c.l.b16 %v403
  %v686 = vunpack.c.h.b16 %v403
  %v687 = vunpack.c.l.b16 %v404
  %v688 = vunpack.c.h.b16 %v404
  %v689 = vunpack.c.l.b16 %v405
  %v690 = vunpack.c.h.b16 %v405
  %v691 = vunpack.c.l.b16 %v406
  %v692 = vunpack.c.h.b16 %v406
  %v693 = vunpack.c.l.b16 %v407
  %v694 = vunpack.c.h.b16 %v407
  %v695 = vunpack.c.l.b16 %v408
  %v696 = vunpack.c.h.b16 %v408
  %v697 = vunpack.c.l.b16 %v409
  %v698 = vunpack.c.h.b16 %v409
  %v699 = vunpack.c.l.b16 %v410
  %v700 = vunpack.c.h.b16 %v410
  %v701 = vunpack.c.l.b16 %v411
  %v702 = vunpack.c.h.b16 %v411
  %v703 = vunpack.c.l.b16 %v412
  %v704 = vunpack.c.h.b16 %v412
  %v705 = vunpack.c.l.b16 %v413
  %v706 = vunpack.c.h.b16 %v413
  %v707 = vunpack.c.l.b16 %v414
  %v708 = vunpack.c.h.b16 %v414
  %v709 = vunpack.c.l.b16 %v415
  %v710 = vunpack.c.h.b16 %v415
  %v711 = vunpack.c.l.b16 %v416
  %v712 = vunpack.c.h.b16 %v416
  %v713 = vunpack.c.l.b16 %v417
  %v714 = vunpack.c.h.b16 %v417
  %v715 = vunpack.c.l.b16 %v418
  %v716 = vunpack.c.h.b16 %v418
  %v717 = vunpack.c.l.b16 %v419
  %v718 = vunpack.c.h.b16 %v419
  %v719 = vunpack.c.l.b16 %v420
  %v720 = vunpack.c.h.b16 %v420
  %v721 = vunpack.c.l.b16 %v421
  %v722 = vunpack.c.h.b16 %v421
  %v723 = vunpack.c.l.b16 %v422
  %v724 = vunpack.c.h.b16 %v422
  %v725 = vunpack.c.l.b16 %v423
  %v726 = vunpack.c.h.b16 %v423
  %v727 = vunpack.c.l.b16 %v424
  %v728 = vunpack.c.h.b16 %v424
  %v729 = vunpack.c.l.b16 %v425
  %v730 = vunpack.c.h.b16 %v425
  %v731 = vunpack.c.l.b16 %v426
  %v732 = vunpack.c.h.b16 %v426
  %v733 = vunpack.c.l.b16 %v427
  %v734 = vunpack.c.h.b16 %v427
  %v735 = vunpack.c.l.b16 %v428
  %v736 = vunpack.c.h.b16 %v428
  %v737 = vunpack.c.l.b16 %v429
  %v738 = vunpack.c.h.b16 %v429
  %v739 = vunpack.c.l.b16 %v430
  %v740 = vunpack.c.h.b16 %v430
  %v741 = vunpack.c.l.b16 %v431
  %v742 = vunpack.c.h.b16 %v431
  %v743 = vunpack.c.l.b16 %v432
  %v744 = vunpack.c.h.b16 %v432
  %v745 = vunpack.c.l.b16 %v433
  %v746 = vunpack.c.h.b16 %v433
  %v747 = vunpack.c.l.b16 %v434
  %v748 = vunpack.c.h.b16 %v434
  %v749 = vunpack.c.l.b16 %v435
  %v750 = vunpack.c.h.b16 %v435
  %v751 = vunpack.c.l.b16 %v436
  %v752 = vunpack.c.h.b16 %v436
  %v753 = vunpack.c.l.b16 %v437
  %v754 = vunpack.c.h.b16 %v437
  %v755 = vunpack.c.l.b16 %v438
  %v756 = vunpack.c.h.b16 %v438
  %v757 = vunpack.c.l.b16 %v439
  %v758 = vunpack.c.h.b16 %v439
  %v759 = vunpack.c.l.b16 %v440
  %v760 = vunpack.c.h.b16 %v440
  %v761 = vunpack.c.l.b16 %v441
  %v762 = vunpack.c.h.b16 %v441
  %v763 = vunpack.c.l.b16 %v442
  %v764 = vunpack.c.h.b16 %v442
  %v765 = vunpack.c.l.b16 %v443
  %v766 = vunpack.c.h.b16 %v443
  %v767 = vunpack.c.l.b16 %v444
  %v768 = vunpack.c.h.b16 %v444
  %v769 = vunpack.c.l.b16 %v445
  %v770 = vunpack.c.h.b16 %v445
  %v771 = vunpack.c.l.b16 %v446
  %v772 = vunpack.c.h.b16 %v446
  %v773 = vunpack.c.l.b16 %v447
  %v774 = vunpack.c.h.b16 %v447
  %v775 = vunpack.c.l.b16 %v448
  %v776 = vunpack.c.h.b16 %v448
  %v777 = vunpack.c.l.b16 %v449
  %v778 = vunpack.c.h.b16 %v449
  %v779 = vunpack.c.l.b16 %v450
  %v780 = vunpack.c.h.b16 %v450
  %v781 = vunpack.c.l.b16 %v451
  %v782 = vunpack.c.h.b16 %v451
  %v783 = vunpack.c.l.b16 %v452
  %v784 = vunpack.c.h.b16 %v452
  %v785 = vunpack.c.l.b16 %v453
  %v786 = vunpack.c.h.b16 %v453
  %v787 = vunpack.c.l.b16 %v454
  %v788 = vunpack.c.h.b16 %v454
  %v789 = vunpack.c.l.b16 %v455
  %v790 = vunpack.c.h.b16 %v455
  %v791 = vunpack.c.l.b16 %v456
  %v792 = vunpack.c.h.b16 %v456
  %v793 = vunpack.c.l.b16 %v457
  %v794 = vunpack.c.h.b16 %v457
  %v795 = vunpack.c.l.b16 %v458
  %v796 = vunpack.c.h.b16 %v458
  %v797 = vunpack.c.l.b16 %v459
  %v798 = vunpack.c.h.b16 %v459
  %v799 = vunpack.c.l.b16 %v460
  %v800 = vunpack.c.h.b16 %v460
  %v801 = vunpack.c.l.b16 %v461
  %v802 = vunpack.c.h.b16 %v461
  %v803 = vunpack.c.l.b16 %v462
  %v804 = vunpack.c.h.b16 %v462
  %v805 = vunpack.c.l.b16 %v463
  %v806 = vunpack.c.h.b16 %v463
  %v807 = vunpack.c.l.b16 %v464
  %v808 = vunpack.c.h.b16 %v464
  %v809 = vunpack.c.l.b16 %v465
  %v810 = vunpack.c.h.b16 %v465
  %v811 = vunpack.c.l.b16 %v466
  %v812 = vunpack.c.h.b16 %v466
  %v813 = vunpack.c.l.b16 %v467
  %v814 = vunpack.c.h.b16 %v467
  %v815 = vunpack.c.l.b16 %v468
  %v816 = vunpack.c.h.b16 %v468
  %v817 = vunpack.c.l.b16 %v469
  %v818 = vunpack.c.h.b16 %v469
  %v819 = vunpack.c.l.b16 %v470
  %v820 = vunpack.c.h.b16 %v470
  %v821 = vunpack.c.l.b16 %v471
  %v822 = vunpack.c.h.b16 %v471
  %v823 = vunpack.c.l.b16 %v472
  %v824 = vunpack.c.h.b16 %v472
  %v825 = vunpack.c.l.b16 %v473
  %v826 = vunpack.c.h.b16 %v473
  %v827 = vunpack.c.l.b16 %v474
  %v828 = vunpack.c.h.b16 %v474
  %v829 = vunpack.c.l.b16 %v475
  %v830 = vunpack.c.h.b16 %v475
  %v831 = vunpack.c.l.b16 %v476
  %v832 = vunpack.c.h.b16 %v476
  %v833 = vunpack.c.l.b16 %v477
  %v834 = vunpack.c.h.b16 %v477
  %v835 = vunpack.c.l.b16 %v478
  %v836 = vunpack.c.h.b16 %v478
  %v837 = vunpack.c.l.b16 %v479
  %v838 = vunpack.c.h.b16 %v479
  %v839 = vunpack.c.l.b16 %v480
  %v840 = vunpack.c.h.b16 %v480
  %v841 = vunpack.c.l.b16 %v481
  %v842 = vunpack.c.h.b16 %v481
  %v843 = vunpack.c.l.b16 %v482
  %v844 = vunpack.c.h.b16 %v482
  %v845 = vunpack.c.l.b16 %v483
  %v846 = vunpack.c.h.b16 %v483
  %v847 = vunpack.c.l.b16 %v484
  %v848 = vunpack.c.h.b16 %v484
  %v849 = vunpack.c.l.b16 %v485
  %v850 = vunpack.c.h.b16 %v485
  %v851 = vunpack.c.l.b16 %v486
  %v852 = vunpack.c.h.b16 %v486
  %v853 = vunpack.c.l.b16 %v487
  %v854 = vunpack.c.h.b16 %v487
  %v855 = vunpack.c.l.b16 %v488
  %v856 = vunpack.c.h.b16 %v488
  %v857 = vunpack.c.l.b16 %v489
  %v858 = vunpack.c.h.b16 %v489
  %v859 = vunpack.c.l.b16 %v490
  %v860 = vunpack.c.h.b16 %v490
  %v861 = vunpack.c.l.b16 %v491
  %v862 = vunpack.c.h.b16 %v491
  %v863 = vunpack.c.l.b16 %v492
  %v864 = vunpack.c.h.b16 %v492
  %v865 = vunpack.c.l.b16 %v493
  %v866 = vunpack.c.h.b16 %v493
  %v867 = vunpack.c.l.b16 %v494
  %v868 = vunpack.c.h.b16 %v494
  %v869 = vunpack.c.l.b16 %v495
  %v870 = vunpack.c.h.b16 %v495
  %v871 = vunpack.c.l.b16 %v496
  %v872 = vunpack.c.h.b16 %v496
  %v873 = vunpack.c.l.b16 %v497
  %v874 = vunpack.c.h.b16 %v497
  %v875 = vunpack.c.l.b16 %v498
  %v876 = vunpack.c.h.b16 %v498
  %v877 = vunpack.c.l.b16 %v499
  %v878 = vunpack.c.h.b16 %v499
  %v879 = vunpack.c.l.b16 %v500
  %v880 = vunpack.c.h.b16 %v500
  %v881 = vunpack.c.l.b16 %v501
  %v882 = vunpack.c.h.b16 %v501
  %v883 = vunpack.c.l.b16 %v502
  %v884 = vunpack.c.h.b16 %v502
  %v885 = vunpack.c.l.b16 %v503
  %v886 = vunpack.c.h.b16 %v503
  %v887 = vunpack.c.l.b16 %v504
  %v888 = vunpack.c.h.b16 %v504
  %v889 = vunpack.c.l.b16 %v505
  %v890 = vunpack.c.h.b16 %v505
  %v891 = vunpack.c.l.b16 %v506
  %v892 = vunpack.c.h.b16 %v506
  %v893 = vunpack.c.l.b16 %v507
  %v894 = vunpack.c.h.b16 %v507
  %v895 = vunpack.c.l.b16 %v508
  %v896 = vunpack.c.h.b16 %v508
  %v897 = vunpack.c.l.b16 %v509
  %v898 = vunpack.c.h.b16 %v509
  %v899 = vunpack.c.l.b16 %v510
  %v900 = vunpack.c.h.b16 %v510
  %v901 = vunpack.c.l.b16 %v511
  %v902 = vunpack.c.h.b16 %v511
  %v903 = vunpack.c.l.b16 %v512
  %v904 = vunpack.c.h.b16 %v512
  %v905 = vunpack.c.l.b16 %v513
  %v906 = vunpack.c.h.b16 %v513
  %v907 = vunpack.c.l.b16 %v514
  %v908 = vunpack.c.h.b16 %v514
  %v909 = vunpack.c.l.b16 %v515
  %v910 = vunpack.c.h.b16 %v515
  %v911 = vunpack.c.l.b16 %v516
  %v912 = vunpack.c.h.b16 %v516
  %v913 = vunpack.c.l.b16 %v517
  %v914 = vunpack.c.h.b16 %v517
  %v915 = vunpack.c.l.b16 %v518
  %v916 = vunpack.c.h.b16 %v518
  %v917 = vunpack.c.l.b16 %v519
  %v918 = vunpack.c.h.b16 %v519
  %v919 = vunpack.c.l.b16 %v520
  %v920 = vunpack.c.h.b16 %v520
  %v921 = vunpack.c.l.b16 %v521
  %v922 = vunpack.c.h.b16 %v521
  %v923 = vunpack.c.l.b16 %v522
  %v924 = vunpack.c.h.b16 %v522
  %v925 = vunpack.c.l.b16 %v523
  %v926 = vunpack.c.h.b16 %v523
  %v927 = vunpack.c.l.b16 %v524
  %v928 = vunpack.c.h.b16 %v524
  %v929 = vunpack.c.l.b16 %v525
  %v930 = vunpack.c.h.b16 %v525
  %v931 = vunpack.c.l.b16 %v526
  %v932 = vunpack.c.h.b16 %v526
  %v933 = vpack.c.b16 %v681, %v677
  %v934 = vpack.c.b16 %v682, %v678
  %v935 = vpack.c.b16 %v683, %v679
  %v936 = vpack.c.b16 %v684, %v680
  %v937 = vpack.c.b16 %v689, %v685
  %v938 = vpack.c.b16 %v690, %v686
  %v939 = vpack.c.b16 %v691, %v687
  %v940 = vpack.c.b16 %v692, %v688
  %v941 = vpack.c.b16 %v697, %v693
  %v942 = vpack.c.b16 %v698, %v694
  %v943 = vpack.c.b16 %v699, %v695
  %v944 = vpack.c.b16 %v700, %v696
  %v945 = vpack.c.b16 %v705, %v701
  %v946 = vpack.c.b16 %v706, %v702
  %v947 = vpack.c.b16 %v707, %v703
  %v948 = vpack.c.b16 %v708, %v704
  %v949 = vpack.c.b16 %v713, %v709
  %v950 = vpack.c.b16 %v714, %v710
  %v951 = vpack.c.b16 %v715, %v711
  %v952 = vpack.c.b16 %v716, %v712
  %v953 = vpack.c.b16 %v721, %v717
  %v954 = vpack.c.b16 %v722, %v718
  %v955 = vpack.c.b16 %v723, %v719
  %v956 = vpack.c.b16 %v724, %v720
  %v957 = vpack.c.b16 %v729, %v725
  %v958 = vpack.c.b16 %v730, %v726
  %v959 = vpack.c.b16 %v731, %v727
  %v960 = vpack.c.b16 %v732, %v728
  %v961 = vpack.c.b16 %v737, %v733
  %v962 = vpack.c.b16 %v738, %v734
  %v963 = vpack.c.b16 %v739, %v735
  %v964 = vpack.c.b16 %v740, %v736
  %v965 = vpack.c.b16 %v745, %v741
  %v966 = vpack.c.b16 %v746, %v742
  %v967 = vpack.c.b16 %v747, %v743
  %v968 = vpack.c.b16 %v748, %v744
  %v969 = vpack.c.b16 %v753, %v749
  %v970 = vpack.c.b16 %v754, %v750
  %v971 = vpack.c.b16 %v755, %v751
  %v972 = vpack.c.b16 %v756, %v752
  %v973 = vpack.c.b16 %v761, %v757
  %v974 = vpack.c.b16 %v762, %v758
  %v975 = vpack.c.b16 %v763, %v759
  %v976 = vpack.c.b16 %v764, %v760
  %v977 = vpack.c.b16 %v769, %v765
  %v978 = vpack.c.b16 %v770, %v766
  %v979 = vpack.c.b16 %v771, %v767
  %v980 = vpack.c.b16 %v772, %v768
  %v981 = vpack.c.b16 %v777, %v773
  %v982 = vpack.c.b16 %v778, %v774
  %v983 = vpack.c.b16 %v779, %v775
  %v984 = vpack.c.b16 %v780, %v776
  %v985 = vpack.c.b16 %v785, %v781
  %v986 = vpack.c.b16 %v786, %v782
  %v987 = vpack.c.b16 %v787, %v783
  %v988 = vpack.c.b16 %v788, %v784
  %v989 = vpack.c.b16 %v793, %v789
  %v990 = vpack.c.b16 %v794, %v790
  %v991 = vpack.c.b16 %v795, %v791
  %v992 = vpack.c.b16 %v796, %v792
  %v993 = vpack.c.b16 %v801, %v797
  %v994 = vpack.c.b16 %v802, %v798
  %v995 = vpack.c.b16 %v803, %v799
  %v996 = vpack.c.b16 %v804, %v800
  %v997 = vpack.c.b16 %v809, %v805
  %v998 = vpack.c.b16 %v810, %v806
  %v999 = vpack.c.b16 %v811, %v807
  %v1000 = vpack.c.b16 %v812, %v808
  %v1001 = vpack.c.b16 %v817, %v813
  %v1002 = vpack.c.b16 %v818, %v814
  %v1003 = vpack.c.b16 %v819, %v815
  %v1004 = vpack.c.b16 %v820, %v816
  %v1005 = vpack.c.b16 %v825, %v821
  %v1006 = vpack.c.b16 %v826, %v822
  %v1007 = vpack.c.b16 %v827, %v823
  %v1008 = vpack.c.b16 %v828, %v824
  %v1009 = vpack.c.b16 %v833, %v829
  %v1010 = vpack.c.b16 %v834, %v830
  %v1011 = vpack.c.b16 %v835, %v831
  %v1012 = vpack.c.b16 %v836, %v832
  %v1013 = vpack.c.b16 %v841, %v837
  %v1014 = vpack.c.b16 %v842, %v838
  %v1015 = vpack.c.b16 %v843, %v839
  %v1016 = vpack.c.b16 %v844, %v840
  %v1017 = vpack.c.b16 %v849, %v845
  %v1018 = vpack.c.b16 %v850, %v846
  %v1019 = vpack.c.b16 %v851, %v847
  %v1020 = vpack.c.b16 %v852, %v848
  %v1021 = vpack.c.b16 %v857, %v853
  %v1022 = vpack.c.b16 %v858, %v854
  %v1023 = vpack.c.b16 %v859, %v855
  %v1024 = vpack.c.b16 %v860, %v856
  %v1025 = vpack.c.b16 %v865, %v861
  %v1026 = vpack.c.b16 %v866, %v862
  %v1027 = vpack.c.b16 %v867, %v863
  %v1028 = vpack.c.b16 %v868, %v864
  %v1029 = vpack.c.b16 %v873, %v869
  %v1030 = vpack.c.b16 %v874, %v870
  %v1031 = vpack.c.b16 %v875, %v871
  %v1032 = vpack.c.b16 %v876, %v872
  %v1033 = vpack.c.b16 %v881, %v877
  %v1034 = vpack.c.b16 %v882, %v878
  %v1035 = vpack.c.b16 %v883, %v879
  %v1036 = vpack.c.b16 %v884, %v880
  %v1037 = vpack.c.b16 %v889, %v885
  %v1038 = vpack.c.b16 %v890, %v886
  %v1039 = vpack.c.b16 %v891, %v887
  %v1040 = vpack.c.b16 %v892, %v888
  %v1041 = vpack.c.b16 %v897, %v893
  %v1042 = vpack.c.b16 %v898, %v894
  %v1043 = vpack.c.b16 %v899, %v895
  %v1044 = vpack.c.b16 %v900, %v896
  %v1045 = vpack.c.b16 %v905, %v901
  %v1046 = vpack.c.b16 %v906, %v902
  %v1047 = vpack.c.b16 %v907, %v903
  %v1048 = vpack.c.b16 %v908, %v904
  %v1049 = vpack.c.b16 %v913, %v909
  %v1050 = vpack.c.b16 %v914, %v910
  %v1051 = vpack.c.b16 %v915, %v911
  %v1052 = vpack.c.b16 %v916, %v912
  %v1053 = vpack.c.b16 %v921, %v917
  %v1054 = vpack.c.b16 %v922, %v918
  %v1055 = vpack.c.b16 %v923, %v919
  %v1056 = vpack.c.b16 %v924, %v920
  %v1057 = vpack.c.b16 %v929, %v925
  %v1058 = vpack.c.b16 %v930, %v926
  %v1059 = vpack.c.b16 %v931, %v927
  %v1060 = vpack.c.b16 %v932, %v928
  %1189 = vmatprep.subr.bf16.mxu0 %v934
  %1190 = vmatpush1.bf16.msra.mxu0 %v933
  %1191 = vmatprep.subr.bf16.mxu0 %v938
  %1192 = vmatpush1.bf16.msra.mxu0 %v937
  %1193 = vmatprep.subr.bf16.mxu0 %v942
  %1194 = vmatpush1.bf16.msra.mxu0 %v941
  %1195 = vmatprep.subr.bf16.mxu0 %v946
  %1196 = vmatpush1.bf16.msra.mxu0 %v945
  %1197 = vmatprep.subr.bf16.mxu0 %v950
  %1198 = vmatpush1.bf16.msra.mxu0 %v949
  %1199 = vmatprep.subr.bf16.mxu0 %v954
  %1200 = vmatpush1.bf16.msra.mxu0 %v953
  %1201 = vmatprep.subr.bf16.mxu0 %v958
  %1202 = vmatpush1.bf16.msra.mxu0 %v957
  %1203 = vmatprep.subr.bf16.mxu0 %v962
  %1204 = vmatpush1.bf16.msra.mxu0 %v961
  %1205 = vmatprep.subr.bf16.mxu0 %v966
  %1206 = vmatpush1.bf16.msra.mxu0 %v965
  %1207 = vmatprep.subr.bf16.mxu0 %v970
  %1208 = vmatpush1.bf16.msra.mxu0 %v969
  %1209 = vmatprep.subr.bf16.mxu0 %v974
  %1210 = vmatpush1.bf16.msra.mxu0 %v973
  %1211 = vmatprep.subr.bf16.mxu0 %v978
  %1212 = vmatpush1.bf16.msra.mxu0 %v977
  %1213 = vmatprep.subr.bf16.mxu0 %v982
  %1214 = vmatpush1.bf16.msra.mxu0 %v981
  %1215 = vmatprep.subr.bf16.mxu0 %v986
  %1216 = vmatpush1.bf16.msra.mxu0 %v985
  %1217 = vmatprep.subr.bf16.mxu0 %v990
  %1218 = vmatpush1.bf16.msra.mxu0 %v989
  %1219 = vmatprep.subr.bf16.mxu0 %v994
  %1220 = vmatpush1.bf16.msra.mxu0 %v993
  %1221 = vmatprep.mubr.bf16.mxu0 %v396
  %1222 = vmatmul.mubr.bf16.gmra.mrb[0].mxu0 %v395
  %v1223 = vpop.f32.mrb[0].mxu0
  %v1224 = vadd.f32 %v532, %v1223
  %v1225 = vpop.f32.mrb[0].mxu0
  %v1226 = vadd.f32 %v536, %v1225
  %v1227 = vpop.f32.mrb[0].mxu0
  %v1228 = vpop.f32.mrb[0].mxu0
  %1229 = vdwg.mxu0
  %1230 = vmatprep.subr.bf16.mxu0 %v998
  %1231 = vmatpush1.bf16.msra.mxu0 %v997
  %1232 = vmatprep.subr.bf16.mxu0 %v1002
  %1233 = vmatpush1.bf16.msra.mxu0 %v1001
  %1234 = vmatprep.subr.bf16.mxu0 %v1006
  %1235 = vmatpush1.bf16.msra.mxu0 %v1005
  %1236 = vmatprep.subr.bf16.mxu0 %v1010
  %1237 = vmatpush1.bf16.msra.mxu0 %v1009
  %1238 = vmatprep.subr.bf16.mxu0 %v1014
  %1239 = vmatpush1.bf16.msra.mxu0 %v1013
  %1240 = vmatprep.subr.bf16.mxu0 %v1018
  %1241 = vmatpush1.bf16.msra.mxu0 %v1017
  %1242 = vmatprep.subr.bf16.mxu0 %v1022
  %1243 = vmatpush1.bf16.msra.mxu0 %v1021
  %1244 = vmatprep.subr.bf16.mxu0 %v1026
  %1245 = vmatpush1.bf16.msra.mxu0 %v1025
  %1246 = vmatprep.subr.bf16.mxu0 %v1030
  %1247 = vmatpush1.bf16.msra.mxu0 %v1029
  %1248 = vmatprep.subr.bf16.mxu0 %v1034
  %1249 = vmatpush1.bf16.msra.mxu0 %v1033
  %1250 = vmatprep.subr.bf16.mxu0 %v1038
  %1251 = vmatpush1.bf16.msra.mxu0 %v1037
  %1252 = vmatprep.subr.bf16.mxu0 %v1042
  %1253 = vmatpush1.bf16.msra.mxu0 %v1041
  %1254 = vmatprep.subr.bf16.mxu0 %v1046
  %1255 = vmatpush1.bf16.msra.mxu0 %v1045
  %1256 = vmatprep.subr.bf16.mxu0 %v1050
  %1257 = vmatpush1.bf16.msra.mxu0 %v1049
  %1258 = vmatprep.subr.bf16.mxu0 %v1054
  %1259 = vmatpush1.bf16.msra.mxu0 %v1053
  %1260 = vmatprep.subr.bf16.mxu0 %v1058
  %1261 = vmatpush1.bf16.msra.mxu0 %v1057
  %1262 = vmatprep.mubr.bf16.mxu0 %v398
  %1263 = vmatmul.mubr.bf16.gmra.mrb[0].mxu0 %v397
  %v1264 = vpop.f32.mrb[0].mxu0
  %v1265 = vadd.f32 %v1224, %v1264
  %v1266 = vpop.f32.mrb[0].mxu0
  %v1267 = vadd.f32 %v1226, %v1266
  %v1268 = vpop.f32.mrb[0].mxu0
  %v1269 = vpop.f32.mrb[0].mxu0
  %1270 = vdwg.mxu0
  %1271 = vmatprep.subr.bf16.mxu0 %v936
  %1272 = vmatpush1.bf16.msra.mxu0 %v935
  %1273 = vmatprep.subr.bf16.mxu0 %v940
  %1274 = vmatpush1.bf16.msra.mxu0 %v939
  %1275 = vmatprep.subr.bf16.mxu0 %v944
  %1276 = vmatpush1.bf16.msra.mxu0 %v943
  %1277 = vmatprep.subr.bf16.mxu0 %v948
  %1278 = vmatpush1.bf16.msra.mxu0 %v947
  %1279 = vmatprep.subr.bf16.mxu0 %v952
  %1280 = vmatpush1.bf16.msra.mxu0 %v951
  %1281 = vmatprep.subr.bf16.mxu0 %v956
  %1282 = vmatpush1.bf16.msra.mxu0 %v955
  %1283 = vmatprep.subr.bf16.mxu0 %v960
  %1284 = vmatpush1.bf16.msra.mxu0 %v959
  %1285 = vmatprep.subr.bf16.mxu0 %v964
  %1286 = vmatpush1.bf16.msra.mxu0 %v963
  %1287 = vmatprep.subr.bf16.mxu0 %v968
  %1288 = vmatpush1.bf16.msra.mxu0 %v967
  %1289 = vmatprep.subr.bf16.mxu0 %v972
  %1290 = vmatpush1.bf16.msra.mxu0 %v971
  %1291 = vmatprep.subr.bf16.mxu0 %v976
  %1292 = vmatpush1.bf16.msra.mxu0 %v975
  %1293 = vmatprep.subr.bf16.mxu0 %v980
  %1294 = vmatpush1.bf16.msra.mxu0 %v979
  %1295 = vmatprep.subr.bf16.mxu0 %v984
  %1296 = vmatpush1.bf16.msra.mxu0 %v983
  %1297 = vmatprep.subr.bf16.mxu0 %v988
  %1298 = vmatpush1.bf16.msra.mxu0 %v987
  %1299 = vmatprep.subr.bf16.mxu0 %v992
  %1300 = vmatpush1.bf16.msra.mxu0 %v991
  %1301 = vmatprep.subr.bf16.mxu0 %v996
  %1302 = vmatpush1.bf16.msra.mxu0 %v995
  %1303 = vmatprep.mubr.bf16.mxu0 %v396
  %1304 = vmatmul.mubr.bf16.gmra.mrb[0].mxu0 %v395
  %v1305 = vpop.f32.mrb[0].mxu0
  %v1306 = vadd.f32 %v540, %v1305
  %v1307 = vpop.f32.mrb[0].mxu0
  %v1308 = vadd.f32 %v544, %v1307
  %v1309 = vpop.f32.mrb[0].mxu0
  %v1310 = vpop.f32.mrb[0].mxu0
  %1311 = vdwg.mxu0
  %1312 = vmatprep.subr.bf16.mxu0 %v1000
  %1313 = vmatpush1.bf16.msra.mxu0 %v999
  %1314 = vmatprep.subr.bf16.mxu0 %v1004
  %1315 = vmatpush1.bf16.msra.mxu0 %v1003
  %1316 = vmatprep.subr.bf16.mxu0 %v1008
  %1317 = vmatpush1.bf16.msra.mxu0 %v1007
  %1318 = vmatprep.subr.bf16.mxu0 %v1012
  %1319 = vmatpush1.bf16.msra.mxu0 %v1011
  %1320 = vmatprep.subr.bf16.mxu0 %v1016
  %1321 = vmatpush1.bf16.msra.mxu0 %v1015
  %1322 = vmatprep.subr.bf16.mxu0 %v1020
  %1323 = vmatpush1.bf16.msra.mxu0 %v1019
  %1324 = vmatprep.subr.bf16.mxu0 %v1024
  %1325 = vmatpush1.bf16.msra.mxu0 %v1023
  %1326 = vmatprep.subr.bf16.mxu0 %v1028
  %1327 = vmatpush1.bf16.msra.mxu0 %v1027
  %1328 = vmatprep.subr.bf16.mxu0 %v1032
  %1329 = vmatpush1.bf16.msra.mxu0 %v1031
  %1330 = vmatprep.subr.bf16.mxu0 %v1036
  %1331 = vmatpush1.bf16.msra.mxu0 %v1035
  %1332 = vmatprep.subr.bf16.mxu0 %v1040
  %1333 = vmatpush1.bf16.msra.mxu0 %v1039
  %1334 = vmatprep.subr.bf16.mxu0 %v1044
  %1335 = vmatpush1.bf16.msra.mxu0 %v1043
  %1336 = vmatprep.subr.bf16.mxu0 %v1048
  %1337 = vmatpush1.bf16.msra.mxu0 %v1047
  %1338 = vmatprep.subr.bf16.mxu0 %v1052
  %1339 = vmatpush1.bf16.msra.mxu0 %v1051
  %1340 = vmatprep.subr.bf16.mxu0 %v1056
  %1341 = vmatpush1.bf16.msra.mxu0 %v1055
  %1342 = vmatprep.subr.bf16.mxu0 %v1060
  %1343 = vmatpush1.bf16.msra.mxu0 %v1059
  %1344 = vmatprep.mubr.bf16.mxu0 %v398
  %1345 = vmatmul.mubr.bf16.gmra.mrb[0].mxu0 %v397
  %v1346 = vpop.f32.mrb[0].mxu0
  %v1347 = vadd.f32 %v1306, %v1346
  %v1348 = vpop.f32.mrb[0].mxu0
  %v1349 = vadd.f32 %v1308, %v1348
  %v1350 = vpop.f32.mrb[0].mxu0
  %v1351 = vpop.f32.mrb[0].mxu0
  %1352 = vdwg.mxu0
  %v1353 = vmax.f32 %v1265, 0.0
  %v1354 = vmax.f32 %v1267, 0.0
  %v1355 = vmax.f32 %v1347, 0.0
  %v1356 = vmax.f32 %v1349, 0.0
  %v1357 = vld [vmem:[%s7] sm:$0xf]
  %v1359 = vlaneseq
  %v1360 = vshrl.u32 %v1359, 7
  %v1361 = vsub.s32 0, %v1360
  %v1362 = vrot.slane %v1357, %v1361
  %v1363 = vlaneseq
  %v1364 = vshrl.u32 %v1363, 7
  %v1365 = vsub.s32 1, %v1364
  %v1366 = vrot.slane %v1357, %v1365
  %v1367 = vlaneseq
  %v1368 = vshrl.u32 %v1367, 7
  %v1369 = vsub.s32 2, %v1368
  %v1370 = vrot.slane %v1357, %v1369
  %v1371 = vlaneseq
  %v1372 = vshrl.u32 %v1371, 7
  %v1373 = vsub.s32 3, %v1372
  %v1374 = vrot.slane %v1357, %v1373
  %v1379 = vmul.f32 %v1353, %v1362
  %v1380 = vmul.f32 %v1354, %v1366
  %v1381 = vmul.f32 %v1355, %v1370
  %v1382 = vmul.f32 %v1356, %v1374
  %vm1383 = vcmask 1043456
  %v1384 = vsel %vm1383, %v1379, 0.0
  %v1385 = vsel %vm1383, %v1380, 0.0
  %v1386 = vadd.f32 %v1384, %v1385
  %v1387 = vsel %vm1383, %v1381, 0.0
  %v1388 = vadd.f32 %v1386, %v1387
  %v1389 = vsel %vm1383, %v1382, 0.0
  %v1390 = vadd.f32 %v1388, %v1389
  %1391 = vadd.xlane.f32.xlu0 %v1390
  %v1392 = vpop.xlane.xlu0 %1391
  %v1393 = vld [vmem:[#allocation3] sm:$0x1]
  %v1395 = vlaneseq
  %v1396 = vshrl.u32 %v1395, 7
  %v1397 = vsub.s32 0, %v1396
  %v1398 = vrot.slane %v1393, %v1397
  %v1400 = vadd.f32 %v1392, %v1398
  %v1401 = vsub.f32 0.0, %v1400
  %v1402 = vmax.f32 %v1401, 0.0
  %v1403 = vand.u32 2147483647, %v1401
  %v1404 = vsub.f32 0.0, %v1403
  %v1405 = vmul.f32 %v1404, 1.442695
  %v1406 = vpow.pop %v1405
  %v1407 = vadd.f32 %v1406, 1.0
  %v1408 = vlog2.pop %v1407
  %v1409 = vmul.f32 %v1408, 0.6931472
  %v1410 = vadd.f32 %v1402, %v1409
  %vm1411 = vcmask 1024
  %1412 = vst.msk [vmem:[%s9] sm:$0x3] %vm1411, %v1410
  %v1413 = vmax.f32 %v1400, 0.0
  %v1414 = vand.u32 2147483647, %v1400
  %v1415 = vsub.f32 0.0, %v1414
  %v1416 = vmul.f32 %v1415, 1.442695
  %v1417 = vpow.pop %v1416
  %v1418 = vadd.f32 %v1417, 1.0
  %v1419 = vlog2.pop %v1418
  %v1420 = vmul.f32 %v1419, 0.6931472
  %v1421 = vadd.f32 %v1413, %v1420
  %vm1422 = vcmask 3074
  %1423 = vst.msk [vmem:[%s10 - $0x2] sm:$0xc] %vm1422, %v1421
  // Predicated region
  $region38: #{global_dim_forward.5} parent=0 // pred_check
    _
  $region39: #{global_dim_forward.5} parent=0 // pred_check_branch
    %1425 = sbr.rel (0) target = $region41
  $region40: #{global_dim_forward.5} parent=0 // pred_region
    _
  $region41: #{global_dim_forward.5} parent=0 // pred_fallthru
    _
  // Predicated region
  $region42: #{global_dim_forward.5} parent=0 // pred_check
    _
  $region43: #{global_dim_forward.5} parent=0 // pred_check_branch
    %1427 = sbr.rel (0) target = $region45
  $region44: #{global_dim_forward.5} parent=0 // pred_region
    _
  $region45: #{global_dim_forward.5} parent=0 // pred_fallthru
    _
  // Predicated region
  $region46: #{global_dim_forward.5} parent=0 // pred_check
    _
  $region47: #{global_dim_forward.5} parent=0 // pred_check_branch
    %1429 = sbr.rel (0) target = $region49
  $region48: #{global_dim_forward.5} parent=0 // pred_region
    _
  $region49: #{global_dim_forward.5} parent=0 // pred_fallthru
    _
  // Predicated region
  $region50: #{global_dim_forward.5} parent=0 // pred_check
    _
  $region51: #{global_dim_forward.5} parent=0 // pred_check_branch
    %1431 = sbr.rel (0) target = $region53
  $region52: #{global_dim_forward.5} parent=0 // pred_region
    _
  $region53: #{global_dim_forward.5} parent=0 // pred_fallthru
    _

// kernel: global_dim_forward.3
$region0: #{global_dim_forward.3}
  #allocation0 [shape = 'u32[]', space=smem, size = 0x4, offset = 0x4, fixed_abs, tag = 'smem constant byte address 0x4 - core index']
  #allocation1 [shape = 'u32[144,128]{1,0:T(1,128)}', space=vmem, size = 0x12000, scoped, tag = 'internal scratch']
  #allocation2 [shape = 'bf16[2,4,326]{2,1,0:T(4,128)(2,1)}', space=vmem, size = 0x1800, scoped, tag = 'scratch operand']
  #allocation3 [shape = 'bf16[2,8,326]{2,1,0:T(8,128)(2,1)}', space=vmem, size = 0x3000, scoped, tag = 'scratch operand']
  %s0 = inlined_call_operand.vmem [shape: bf16[2,4,256], index: 0, kind: input, shape index: {}]
  %s1 = inlined_call_operand.vmem [shape: bf16[8,36], index: 1, kind: input, shape index: {}]
  %s2 = inlined_call_operand.vmem [shape: f32[8,1], index: 2, kind: input, shape index: {}]
  %s3 = inlined_call_operand.vmem [shape: bf16[4,72], index: 3, kind: input, shape index: {}]
  %s4 = inlined_call_operand.vmem [shape: f32[4,1], index: 4, kind: input, shape index: {}]
  %s5 = inlined_call_operand.vmem [shape: bf16[2,4,256], index: 5, kind: output, shape index: {}]
  %s6 = sld [smem:[#allocation0]]
  $region30: #{global_dim_forward.3} parent=0
    _
  %s8 = ssub.s32 1, %s6
  %s9 = scalar_select 0, %s8, %s6
  // Predicated region
  $region2: #{global_dim_forward.3} parent=0 // pred_check
    _
  $region3: #{global_dim_forward.3} parent=0 // pred_check_branch
    %11 = sbr.rel (0) target = $region5
  $region4: #{global_dim_forward.3} parent=0 // pred_region
    _
  $region5: #{global_dim_forward.3} parent=0 // pred_fallthru
    _
  // Predicated region
  $region6: #{global_dim_forward.3} parent=0 // pred_check
    _
  $region7: #{global_dim_forward.3} parent=0 // pred_check_branch
    %13 = sbr.rel (0) target = $region9
  $region8: #{global_dim_forward.3} parent=0 // pred_region
    _
  $region9: #{global_dim_forward.3} parent=0 // pred_fallthru
    _
  // Predicated region
  $region10: #{global_dim_forward.3} parent=0 // pred_check
    _
  $region11: #{global_dim_forward.3} parent=0 // pred_check_branch
    %15 = sbr.rel (0) target = $region13
  $region12: #{global_dim_forward.3} parent=0 // pred_region
    _
  $region13: #{global_dim_forward.3} parent=0 // pred_fallthru
    _
  // Predicated region
  $region14: #{global_dim_forward.3} parent=0 // pred_check
    _
  $region15: #{global_dim_forward.3} parent=0 // pred_check_branch
    %17 = sbr.rel (0) target = $region17
  $region16: #{global_dim_forward.3} parent=0 // pred_region
    _
  $region17: #{global_dim_forward.3} parent=0 // pred_fallthru
    _
  // Predicated region
  $region18: #{global_dim_forward.3} parent=0 // pred_check
    _
  $region19: #{global_dim_forward.3} parent=0 // pred_check_branch
    %19 = sbr.rel (0) target = $region21
  $region20: #{global_dim_forward.3} parent=0 // pred_region
    _
  $region21: #{global_dim_forward.3} parent=0 // pred_fallthru
    _
  %vm21 = vcmask 1041408
  %vm22 = vcmask 1043458
  %vm23 = vmor %vm22, %vm21
  %vm24 = vcmask 570372
  %vm25 = vmor %vm24, %vm23
  %26 = vst.msk [vmem:[#allocation2] sm:$0x3f] %vm25, 0
  %27 = vst.msk [vmem:[#allocation2 + $0x6] sm:$0x3f] %vm25, 0
  %28 = vst [vmem:[#allocation3] sm:$0xff] 0
  %vm29 = vcmask 568320
  %30 = vst.msk [vmem:[#allocation3 + $0x8] sm:$0xf] %vm29, 0
  %31 = vst [vmem:[#allocation3 + $0xc] sm:$0xff] 0
  %32 = vst.msk [vmem:[#allocation3 + $0x14] sm:$0xf] %vm29, 0
  %v33 = vld [vmem:[%s0] sm:$0x3]
  %v34 = vld [vmem:[%s0 + $0x4] sm:$0x3]
  %37 = vrot.lane.b32.xlu0 %v33, 19
  %v38 = vpop.permute.xlu0 %37
  %39 = vrot.lane.b32.xlu0 %v34, 19
  %v40 = vpop.permute.xlu0 %39
  %vm43 = vcmask 279704
  %44 = vst.msk [vmem:[#allocation2] sm:$0x3] %vm43, %v38
  %45 = vst.msk [vmem:[#allocation2 + $0x6] sm:$0x3] %vm43, %v40
  %v46 = vld [vmem:[%s0] sm:$0x3]
  %v47 = vld [vmem:[%s0 + $0x4] sm:$0x3]
  %50 = vrot.lane.b32.xlu0 %v46, 21
  %v51 = vpop.permute.xlu0 %50
  %52 = vrot.lane.b32.xlu0 %v47, 21
  %v53 = vpop.permute.xlu0 %52
  %vm56 = vcmask 427304
  %57 = vst.msk [vmem:[#allocation2] sm:$0x3] %vm56, %v51
  %58 = vst.msk [vmem:[#allocation2 + $0x6] sm:$0x3] %vm56, %v53
  %v59 = vld [vmem:[%s0] sm:$0x3]
  %v60 = vld [vmem:[%s0 + $0x4] sm:$0x3]
  %63 = vrot.lane.b32.xlu0 %v59, 23
  %v64 = vpop.permute.xlu0 %63
  %65 = vrot.lane.b32.xlu0 %v60, 23
  %v66 = vpop.permute.xlu0 %65
  %vm69 = vcmask 574904
  %70 = vst.msk [vmem:[#allocation2] sm:$0x3] %vm69, %v64
  %71 = vst.msk [vmem:[#allocation2 + $0x6] sm:$0x3] %vm69, %v66
  %v72 = vld [vmem:[%s0] sm:$0x3]
  %v73 = vld [vmem:[%s0 + $0x4] sm:$0x3]
  %76 = vrot.lane.b32.xlu0 %v72, 25
  %v77 = vpop.permute.xlu0 %76
  %78 = vrot.lane.b32.xlu0 %v73, 25
  %v79 = vpop.permute.xlu0 %78
  %vm82 = vcmask 722504
  %83 = vst.msk [vmem:[#allocation2] sm:$0x3] %vm82, %v77
  %84 = vst.msk [vmem:[#allocation2 + $0x6] sm:$0x3] %vm82, %v79
  %v85 = vld [vmem:[%s0] sm:$0x3]
  %v86 = vld [vmem:[%s0 + $0x4] sm:$0x3]
  %89 = vrot.lane.b32.xlu0 %v85, 27
  %v90 = vpop.permute.xlu0 %89
  %91 = vrot.lane.b32.xlu0 %v86, 27
  %v92 = vpop.permute.xlu0 %91
  %vm95 = vcmask 870104
  %96 = vst.msk [vmem:[#allocation2] sm:$0x3] %vm95, %v90
  %97 = vst.msk [vmem:[#allocation2 + $0x6] sm:$0x3] %vm95, %v92
  %v98 = vld [vmem:[%s0] sm:$0x3]
  %v99 = vld [vmem:[%s0 + $0x4] sm:$0x3]
  %102 = vrot.lane.b32.xlu0 %v98, 29
  %v103 = vpop.permute.xlu0 %102
  %104 = vrot.lane.b32.xlu0 %v99, 29
  %v105 = vpop.permute.xlu0 %104
  %vm108 = vcmask 1017704
  %109 = vst.msk [vmem:[#allocation2] sm:$0x3] %vm108, %v103
  %110 = vst.msk [vmem:[#allocation2 + $0x6] sm:$0x3] %vm108, %v105
  %v111 = vld [vmem:[%s0] sm:$0x3]
  %v112 = vld [vmem:[%s0 + $0x4] sm:$0x3]
  %115 = vrot.lane.b32.xlu0 %v111, 31
  %v116 = vpop.permute.xlu0 %115
  %117 = vrot.lane.b32.xlu0 %v112, 31
  %v118 = vpop.permute.xlu0 %117
  %v119 = vrot.slane %v116, 6
  %v120 = vrot.slane %v118, 6
  %vm121 = vcmask 252928
  %v122 = vsel %vm121, %v119, %v116
  %v123 = vsel %vm121, %v120, %v118
  %vm126 = vcmask 1042424
  %vm127 = vcmask 117762
  %vm128 = vmor %vm127, %vm126
  %129 = vst.msk [vmem:[#allocation2] sm:$0xf] %vm128, %v122
  %130 = vst.msk [vmem:[#allocation2 + $0x6] sm:$0xf] %vm128, %v123
  %v131 = vld [vmem:[%s0] sm:$0x3]
  %v132 = vld [vmem:[%s0 + $0x4] sm:$0x3]
  %135 = vrot.lane.b32.xlu0 %v131, 33
  %v136 = vpop.permute.xlu0 %135
  %137 = vrot.lane.b32.xlu0 %v132, 33
  %v138 = vpop.permute.xlu0 %137
  %vm141 = vcmask 263304
  %142 = vst.msk [vmem:[#allocation2 + $0x2] sm:$0x3] %vm141, %v136
  %143 = vst.msk [vmem:[#allocation2 + $0x8] sm:$0x3] %vm141, %v138
  %v144 = vld [vmem:[%s0 + $0x2] sm:$0x3]
  %v145 = vld [vmem:[%s0 + $0x6] sm:$0x3]
  %148 = vrot.lane.b32.xlu0 %v144, 35
  %v149 = vpop.permute.xlu0 %148
  %150 = vrot.lane.b32.xlu0 %v145, 35
  %v151 = vpop.permute.xlu0 %150
  %vm154 = vcmask 410904
  %155 = vst.msk [vmem:[#allocation2 + $0x2] sm:$0x3] %vm154, %v149
  %156 = vst.msk [vmem:[#allocation2 + $0x8] sm:$0x3] %vm154, %v151
  %v157 = vld [vmem:[%s0 + $0x2] sm:$0x3]
  %v158 = vld [vmem:[%s0 + $0x6] sm:$0x3]
  %161 = vrot.lane.b32.xlu0 %v157, 37
  %v162 = vpop.permute.xlu0 %161
  %163 = vrot.lane.b32.xlu0 %v158, 37
  %v164 = vpop.permute.xlu0 %163
  %vm167 = vcmask 558504
  %168 = vst.msk [vmem:[#allocation2 + $0x2] sm:$0x3] %vm167, %v162
  %169 = vst.msk [vmem:[#allocation2 + $0x8] sm:$0x3] %vm167, %v164
  %v170 = vld [vmem:[%s0 + $0x2] sm:$0x3]
  %v171 = vld [vmem:[%s0 + $0x6] sm:$0x3]
  %174 = vrot.lane.b32.xlu0 %v170, 39
  %v175 = vpop.permute.xlu0 %174
  %176 = vrot.lane.b32.xlu0 %v171, 39
  %v177 = vpop.permute.xlu0 %176
  %vm180 = vcmask 706104
  %181 = vst.msk [vmem:[#allocation2 + $0x2] sm:$0x3] %vm180, %v175
  %182 = vst.msk [vmem:[#allocation2 + $0x8] sm:$0x3] %vm180, %v177
  %v183 = vld [vmem:[%s0 + $0x2] sm:$0x3]
  %v184 = vld [vmem:[%s0 + $0x6] sm:$0x3]
  %187 = vrot.lane.b32.xlu0 %v183, 41
  %v188 = vpop.permute.xlu0 %187
  %189 = vrot.lane.b32.xlu0 %v184, 41
  %v190 = vpop.permute.xlu0 %189
  %vm193 = vcmask 853704
  %194 = vst.msk [vmem:[#allocation2 + $0x2] sm:$0x3] %vm193, %v188
  %195 = vst.msk [vmem:[#allocation2 + $0x8] sm:$0x3] %vm193, %v190
  %v196 = vld [vmem:[%s0 + $0x2] sm:$0x3]
  %v197 = vld [vmem:[%s0 + $0x6] sm:$0x3]
  %200 = vrot.lane.b32.xlu0 %v196, 43
  %v201 = vpop.permute.xlu0 %200
  %202 = vrot.lane.b32.xlu0 %v197, 43
  %v203 = vpop.permute.xlu0 %202
  %vm206 = vcmask 1001304
  %207 = vst.msk [vmem:[#allocation2 + $0x2] sm:$0x3] %vm206, %v201
  %208 = vst.msk [vmem:[#allocation2 + $0x8] sm:$0x3] %vm206, %v203
  %v209 = vld [vmem:[%s0 + $0x2] sm:$0x3]
  %v210 = vld [vmem:[%s0 + $0x6] sm:$0x3]
  %213 = vrot.lane.b32.xlu0 %v209, 45
  %v214 = vpop.permute.xlu0 %213
  %215 = vrot.lane.b32.xlu0 %v210, 45
  %v216 = vpop.permute.xlu0 %215
  %v217 = vrot.slane %v214, 6
  %v218 = vrot.slane %v216, 6
  %vm219 = vcmask 367616
  %v220 = vsel %vm219, %v217, %v214
  %v221 = vsel %vm219, %v218, %v216
  %vm224 = vcmask 1042408
  %vm225 = vcmask 101378
  %vm226 = vmor %vm225, %vm224
  %227 = vst.msk [vmem:[#allocation2 + $0x2] sm:$0xf] %vm226, %v220
  %228 = vst.msk [vmem:[#allocation2 + $0x8] sm:$0xf] %vm226, %v221
  %v229 = vld [vmem:[%s0 + $0x2] sm:$0x3]
  %v230 = vld [vmem:[%s0 + $0x6] sm:$0x3]
  %233 = vrot.lane.b32.xlu0 %v229, 47
  %v234 = vpop.permute.xlu0 %233
  %235 = vrot.lane.b32.xlu0 %v230, 47
  %v236 = vpop.permute.xlu0 %235
  %vm239 = vcmask 246904
  %240 = vst.msk [vmem:[#allocation2 + $0x4] sm:$0x3] %vm239, %v234
  %241 = vst.msk [vmem:[#allocation2 + $0xa] sm:$0x3] %vm239, %v236
  %v242 = vld [vmem:[%s0 + $0x2] sm:$0x3]
  %v243 = vld [vmem:[%s0 + $0x6] sm:$0x3]
  %246 = vrot.lane.b32.xlu0 %v242, 49
  %v247 = vpop.permute.xlu0 %246
  %248 = vrot.lane.b32.xlu0 %v243, 49
  %v249 = vpop.permute.xlu0 %248
  %vm252 = vcmask 394504
  %253 = vst.msk [vmem:[#allocation2 + $0x4] sm:$0x3] %vm252, %v247
  %254 = vst.msk [vmem:[#allocation2 + $0xa] sm:$0x3] %vm252, %v249
  %v255 = vld [vmem:[%s1] sm:$0xf]
  %v256 = vld [vmem:[%s3] sm:$0x3]
  %v257 = vld [vmem:[%s2] sm:$0xff]
  %v258 = vld [vmem:[%s4] sm:$0xf]
  %v259 = vld [vmem:[#allocation2] sm:$0x3f]
  %v261 = vunpack.c.l.b16 %v255
  %v262 = vpack.c.b16 %v261, %v261
  %263 = vrot.lane.b32.xlu0 %v262, 124
  %v264 = vpop.permute.xlu0 %263
  %v266 = vcombine.high %v259, %v259
  %v268 = vunpack.c.l.s4 1983009808
  %v269 = vunpack.c.0.s8 %v268
  %v270 = vlaneseq
  %v271 = vshrl.u32 %v270, 7
  %v272 = vsub.s32 %v269, %v271
  %v273 = vrot.slane %v259, %v272
  %v275 = vunpack.c.l.s4 1983009808
  %v276 = vunpack.c.0.s8 %v275
  %v277 = vlaneseq
  %v278 = vshrl.u32 %v277, 7
  %v279 = vsub.s32 %v276, %v278
  %v280 = vrot.slane %v266, %v279
  %v281 = vcombine.high %v273, %v273
  %282 = vrot.lane.b32.xlu0 %v273, 127
  %v283 = vpop.permute.xlu0 %282
  %284 = vrot.lane.b32.xlu0 %v281, 127
  %v285 = vpop.permute.xlu0 %284
  %286 = vrot.lane.b32.xlu0 %v280, 127
  %v287 = vpop.permute.xlu0 %286
  %vm288 = vcmask 1039360
  %v289 = vsel %vm288, %v283, %v285
  %v290 = vsel %vm288, %v285, %v287
  %vm291 = vcmask 31744
  %v293 = vsel %vm291, %v264, 0
  %v296 = vsel %vm21, %v289, 0
  %v299 = vsel %vm21, %v290, 0
  %v302 = vsel %vm21, %v287, 0
  %304 = vmatprep.subr.bf16.mxu0 %v299
  %305 = vmatpush1.bf16.msra.mxu0 %v296
  %306 = vmatprep.subr.bf16.mxu0 0
  %307 = vmatpush1.bf16.msra.mxu0 0
  %308 = vmatprep.subr.bf16.mxu0 0
  %309 = vmatpush1.bf16.msra.mxu0 0
  %310 = vmatprep.subr.bf16.mxu0 0
  %311 = vmatpush1.bf16.msra.mxu0 0
  %312 = vmatprep.subr.bf16.mxu0 0
  %313 = vmatpush1.bf16.msra.mxu0 0
  %314 = vmatprep.subr.bf16.mxu0 0
  %315 = vmatpush1.bf16.msra.mxu0 0
  %316 = vmatprep.subr.bf16.mxu0 0
  %317 = vmatpush1.bf16.msra.mxu0 0
  %318 = vmatprep.subr.bf16.mxu0 0
  %319 = vmatpush1.bf16.msra.mxu0 0
  %320 = vmatprep.subr.bf16.mxu0 0
  %321 = vmatpush1.bf16.msra.mxu0 0
  %322 = vmatprep.subr.bf16.mxu0 0
  %323 = vmatpush1.bf16.msra.mxu0 0
  %324 = vmatprep.subr.bf16.mxu0 0
  %325 = vmatpush1.bf16.msra.mxu0 0
  %326 = vmatprep.subr.bf16.mxu0 0
  %327 = vmatpush1.bf16.msra.mxu0 0
  %328 = vmatprep.subr.bf16.mxu0 0
  %329 = vmatpush1.bf16.msra.mxu0 0
  %330 = vmatprep.subr.bf16.mxu0 0
  %331 = vmatpush1.bf16.msra.mxu0 0
  %332 = vmatprep.subr.bf16.mxu0 0
  %333 = vmatpush1.bf16.msra.mxu0 0
  %334 = vmatprep.subr.bf16.mxu0 0
  %335 = vmatpush1.bf16.msra.mxu0 0
  %336 = vmatprep.mubr.bf16.mxu0 0
  %337 = vmatmul.mubr.bf16.gmra.mrb[0].mxu0 %v293
  %v338 = vpop.f32.mrb[0].mxu0
  %v339 = vadd.f32 0.0, %v338
  %v340 = vpop.f32.mrb[0].mxu0
  %v341 = vadd.f32 0.0, %v340
  %v342 = vpop.f32.mrb[0].mxu0
  %v343 = vpop.f32.mrb[0].mxu0
  %344 = vdwg.mxu0
  %345 = vmatprep.subr.bf16.mxu0 0
  %346 = vmatpush1.bf16.msra.mxu0 %v302
  %347 = vmatprep.subr.bf16.mxu0 0
  %348 = vmatpush1.bf16.msra.mxu0 0
  %349 = vmatprep.subr.bf16.mxu0 0
  %350 = vmatpush1.bf16.msra.mxu0 0
  %351 = vmatprep.subr.bf16.mxu0 0
  %352 = vmatpush1.bf16.msra.mxu0 0
  %353 = vmatprep.subr.bf16.mxu0 0
  %354 = vmatpush1.bf16.msra.mxu0 0
  %355 = vmatprep.subr.bf16.mxu0 0
  %356 = vmatpush1.bf16.msra.mxu0 0
  %357 = vmatprep.subr.bf16.mxu0 0
  %358 = vmatpush1.bf16.msra.mxu0 0
  %359 = vmatprep.subr.bf16.mxu0 0
  %360 = vmatpush1.bf16.msra.mxu0 0
  %361 = vmatprep.subr.bf16.mxu0 0
  %362 = vmatpush1.bf16.msra.mxu0 0
  %363 = vmatprep.subr.bf16.mxu0 0
  %364 = vmatpush1.bf16.msra.mxu0 0
  %365 = vmatprep.subr.bf16.mxu0 0
  %366 = vmatpush1.bf16.msra.mxu0 0
  %367 = vmatprep.subr.bf16.mxu0 0
  %368 = vmatpush1.bf16.msra.mxu0 0
  %369 = vmatprep.subr.bf16.mxu0 0
  %370 = vmatpush1.bf16.msra.mxu0 0
  %371 = vmatprep.subr.bf16.mxu0 0
  %372 = vmatpush1.bf16.msra.mxu0 0
  %373 = vmatprep.subr.bf16.mxu0 0
  %374 = vmatpush1.bf16.msra.mxu0 0
  %375 = vmatprep.subr.bf16.mxu0 0
  %376 = vmatpush1.bf16.msra.mxu0 0
  %377 = vmatprep.mubr.bf16.mxu0 0
  %378 = vmatmul.mubr.bf16.gmra.mrb[0].mxu0 %v293
  %v379 = vpop.f32.mrb[0].mxu0
  %v380 = vadd.f32 0.0, %v379
  %v381 = vpop.f32.mrb[0].mxu0
  %v382 = vpop.f32.mrb[0].mxu0
  %v383 = vpop.f32.mrb[0].mxu0
  %384 = vdwg.mxu0
  %v386 = vsel %vm291, %v255, 0
  %v389 = vsel %vm21, %v273, 0
  %v392 = vsel %vm21, %v281, 0
  %v395 = vsel %vm21, %v280, 0
  %397 = vmatprep.subr.bf16.mxu0 %v392
  %398 = vmatpush1.bf16.msra.mxu0 %v389
  %399 = vmatprep.subr.bf16.mxu0 0
  %400 = vmatpush1.bf16.msra.mxu0 0
  %401 = vmatprep.subr.bf16.mxu0 0
  %402 = vmatpush1.bf16.msra.mxu0 0
  %403 = vmatprep.subr.bf16.mxu0 0
  %404 = vmatpush1.bf16.msra.mxu0 0
  %405 = vmatprep.subr.bf16.mxu0 0
  %406 = vmatpush1.bf16.msra.mxu0 0
  %407 = vmatprep.subr.bf16.mxu0 0
  %408 = vmatpush1.bf16.msra.mxu0 0
  %409 = vmatprep.subr.bf16.mxu0 0
  %410 = vmatpush1.bf16.msra.mxu0 0
  %411 = vmatprep.subr.bf16.mxu0 0
  %412 = vmatpush1.bf16.msra.mxu0 0
  %413 = vmatprep.subr.bf16.mxu0 0
  %414 = vmatpush1.bf16.msra.mxu0 0
  %415 = vmatprep.subr.bf16.mxu0 0
  %416 = vmatpush1.bf16.msra.mxu0 0
  %417 = vmatprep.subr.bf16.mxu0 0
  %418 = vmatpush1.bf16.msra.mxu0 0
  %419 = vmatprep.subr.bf16.mxu0 0
  %420 = vmatpush1.bf16.msra.mxu0 0
  %421 = vmatprep.subr.bf16.mxu0 0
  %422 = vmatpush1.bf16.msra.mxu0 0
  %423 = vmatprep.subr.bf16.mxu0 0
  %424 = vmatpush1.bf16.msra.mxu0 0
  %425 = vmatprep.subr.bf16.mxu0 0
  %426 = vmatpush1.bf16.msra.mxu0 0
  %427 = vmatprep.subr.bf16.mxu0 0
  %428 = vmatpush1.bf16.msra.mxu0 0
  %429 = vmatprep.mubr.bf16.mxu0 0
  %430 = vmatmul.mubr.bf16.gmra.mrb[0].mxu0 %v386
  %v431 = vpop.f32.mrb[0].mxu0
  %v432 = vadd.f32 %v339, %v431
  %v433 = vpop.f32.mrb[0].mxu0
  %v434 = vadd.f32 %v341, %v433
  %v435 = vpop.f32.mrb[0].mxu0
  %v436 = vpop.f32.mrb[0].mxu0
  %437 = vdwg.mxu0
  %438 = vmatprep.subr.bf16.mxu0 0
  %439 = vmatpush1.bf16.msra.mxu0 %v395
  %440 = vmatprep.subr.bf16.mxu0 0
  %441 = vmatpush1.bf16.msra.mxu0 0
  %442 = vmatprep.subr.bf16.mxu0 0
  %443 = vmatpush1.bf16.msra.mxu0 0
  %444 = vmatprep.subr.bf16.mxu0 0
  %445 = vmatpush1.bf16.msra.mxu0 0
  %446 = vmatprep.subr.bf16.mxu0 0
  %447 = vmatpush1.bf16.msra.mxu0 0
  %448 = vmatprep.subr.bf16.mxu0 0
  %449 = vmatpush1.bf16.msra.mxu0 0
  %450 = vmatprep.subr.bf16.mxu0 0
  %451 = vmatpush1.bf16.msra.mxu0 0
  %452 = vmatprep.subr.bf16.mxu0 0
  %453 = vmatpush1.bf16.msra.mxu0 0
  %454 = vmatprep.subr.bf16.mxu0 0
  %455 = vmatpush1.bf16.msra.mxu0 0
  %456 = vmatprep.subr.bf16.mxu0 0
  %457 = vmatpush1.bf16.msra.mxu0 0
  %458 = vmatprep.subr.bf16.mxu0 0
  %459 = vmatpush1.bf16.msra.mxu0 0
  %460 = vmatprep.subr.bf16.mxu0 0
  %461 = vmatpush1.bf16.msra.mxu0 0
  %462 = vmatprep.subr.bf16.mxu0 0
  %463 = vmatpush1.bf16.msra.mxu0 0
  %464 = vmatprep.subr.bf16.mxu0 0
  %465 = vmatpush1.bf16.msra.mxu0 0
  %466 = vmatprep.subr.bf16.mxu0 0
  %467 = vmatpush1.bf16.msra.mxu0 0
  %468 = vmatprep.subr.bf16.mxu0 0
  %469 = vmatpush1.bf16.msra.mxu0 0
  %470 = vmatprep.mubr.bf16.mxu0 0
  %471 = vmatmul.mubr.bf16.gmra.mrb[0].mxu0 %v386
  %v472 = vpop.f32.mrb[0].mxu0
  %v473 = vadd.f32 %v380, %v472
  %v474 = vpop.f32.mrb[0].mxu0
  %v475 = vpop.f32.mrb[0].mxu0
  %v476 = vpop.f32.mrb[0].mxu0
  %477 = vdwg.mxu0
  %478 = vrot.lane.b32.xlu0 %v262, 120
  %v479 = vpop.permute.xlu0 %478
  %480 = vrot.lane.b32.xlu0 %v273, 126
  %v481 = vpop.permute.xlu0 %480
  %482 = vrot.lane.b32.xlu0 %v281, 126
  %v483 = vpop.permute.xlu0 %482
  %484 = vrot.lane.b32.xlu0 %v280, 126
  %v485 = vpop.permute.xlu0 %484
  %vm486 = vcmask 1031168
  %v487 = vsel %vm486, %v481, %v483
  %v488 = vsel %vm486, %v483, %v485
  %v490 = vsel %vm291, %v479, 0
  %v493 = vsel %vm21, %v487, 0
  %v496 = vsel %vm21, %v488, 0
  %v499 = vsel %vm21, %v485, 0
  %501 = vmatprep.subr.bf16.mxu0 %v496
  %502 = vmatpush1.bf16.msra.mxu0 %v493
  %503 = vmatprep.subr.bf16.mxu0 0
  %504 = vmatpush1.bf16.msra.mxu0 0
  %505 = vmatprep.subr.bf16.mxu0 0
  %506 = vmatpush1.bf16.msra.mxu0 0
  %507 = vmatprep.subr.bf16.mxu0 0
  %508 = vmatpush1.bf16.msra.mxu0 0
  %509 = vmatprep.subr.bf16.mxu0 0
  %510 = vmatpush1.bf16.msra.mxu0 0
  %511 = vmatprep.subr.bf16.mxu0 0
  %512 = vmatpush1.bf16.msra.mxu0 0
  %513 = vmatprep.subr.bf16.mxu0 0
  %514 = vmatpush1.bf16.msra.mxu0 0
  %515 = vmatprep.subr.bf16.mxu0 0
  %516 = vmatpush1.bf16.msra.mxu0 0
  %517 = vmatprep.subr.bf16.mxu0 0
  %518 = vmatpush1.bf16.msra.mxu0 0
  %519 = vmatprep.subr.bf16.mxu0 0
  %520 = vmatpush1.bf16.msra.mxu0 0
  %521 = vmatprep.subr.bf16.mxu0 0
  %522 = vmatpush1.bf16.msra.mxu0 0
  %523 = vmatprep.subr.bf16.mxu0 0
  %524 = vmatpush1.bf16.msra.mxu0 0
  %525 = vmatprep.subr.bf16.mxu0 0
  %526 = vmatpush1.bf16.msra.mxu0 0
  %527 = vmatprep.subr.bf16.mxu0 0
  %528 = vmatpush1.bf16.msra.mxu0 0
  %529 = vmatprep.subr.bf16.mxu0 0
  %530 = vmatpush1.bf16.msra.mxu0 0
  %531 = vmatprep.subr.bf16.mxu0 0
  %532 = vmatpush1.bf16.msra.mxu0 0
  %533 = vmatprep.mubr.bf16.mxu0 0
  %534 = vmatmul.mubr.bf16.gmra.mrb[0].mxu0 %v490
  %v535 = vpop.f32.mrb[0].mxu0
  %v536 = vadd.f32 0.0, %v535
  %v537 = vpop.f32.mrb[0].mxu0
  %v538 = vadd.f32 0.0, %v537
  %v539 = vpop.f32.mrb[0].mxu0
  %v540 = vpop.f32.mrb[0].mxu0
  %541 = vdwg.mxu0
  %542 = vmatprep.subr.bf16.mxu0 0
  %543 = vmatpush1.bf16.msra.mxu0 %v499
  %544 = vmatprep.subr.bf16.mxu0 0
  %545 = vmatpush1.bf16.msra.mxu0 0
  %546 = vmatprep.subr.bf16.mxu0 0
  %547 = vmatpush1.bf16.msra.mxu0 0
  %548 = vmatprep.subr.bf16.mxu0 0
  %549 = vmatpush1.bf16.msra.mxu0 0
  %550 = vmatprep.subr.bf16.mxu0 0
  %551 = vmatpush1.bf16.msra.mxu0 0
  %552 = vmatprep.subr.bf16.mxu0 0
  %553 = vmatpush1.bf16.msra.mxu0 0
  %554 = vmatprep.subr.bf16.mxu0 0
  %555 = vmatpush1.bf16.msra.mxu0 0
  %556 = vmatprep.subr.bf16.mxu0 0
  %557 = vmatpush1.bf16.msra.mxu0 0
  %558 = vmatprep.subr.bf16.mxu0 0
  %559 = vmatpush1.bf16.msra.mxu0 0
  %560 = vmatprep.subr.bf16.mxu0 0
  %561 = vmatpush1.bf16.msra.mxu0 0
  %562 = vmatprep.subr.bf16.mxu0 0
  %563 = vmatpush1.bf16.msra.mxu0 0
  %564 = vmatprep.subr.bf16.mxu0 0
  %565 = vmatpush1.bf16.msra.mxu0 0
  %566 = vmatprep.subr.bf16.mxu0 0
  %567 = vmatpush1.bf16.msra.mxu0 0
  %568 = vmatprep.subr.bf16.mxu0 0
  %569 = vmatpush1.bf16.msra.mxu0 0
  %570 = vmatprep.subr.bf16.mxu0 0
  %571 = vmatpush1.bf16.msra.mxu0 0
  %572 = vmatprep.subr.bf16.mxu0 0
  %573 = vmatpush1.bf16.msra.mxu0 0
  %574 = vmatprep.mubr.bf16.mxu0 0
  %575 = vmatmul.mubr.bf16.gmra.mrb[0].mxu0 %v490
  %v576 = vpop.f32.mrb[0].mxu0
  %v577 = vadd.f32 0.0, %v576
  %v578 = vpop.f32.mrb[0].mxu0
  %v579 = vpop.f32.mrb[0].mxu0
  %v580 = vpop.f32.mrb[0].mxu0
  %581 = vdwg.mxu0
  %v582 = vadd.f32 %v432, %v536
  %v583 = vadd.f32 %v434, %v538
  %v584 = vadd.f32 %v473, %v577
  %585 = vrot.lane.b32.xlu0 %v262, 116
  %v586 = vpop.permute.xlu0 %585
  %587 = vrot.lane.b32.xlu0 %v273, 110
  %v588 = vpop.permute.xlu0 %587
  %589 = vrot.lane.b32.xlu0 %v281, 110
  %v590 = vpop.permute.xlu0 %589
  %591 = vrot.lane.b32.xlu0 %v280, 110
  %v592 = vpop.permute.xlu0 %591
  %vm593 = vcmask 900096
  %v594 = vsel %vm593, %v588, %v590
  %v595 = vsel %vm593, %v590, %v592
  %v597 = vsel %vm291, %v586, 0
  %v600 = vsel %vm21, %v594, 0
  %v603 = vsel %vm21, %v595, 0
  %v606 = vsel %vm21, %v592, 0
  %608 = vmatprep.subr.bf16.mxu0 %v603
  %609 = vmatpush1.bf16.msra.mxu0 %v600
  %610 = vmatprep.subr.bf16.mxu0 0
  %611 = vmatpush1.bf16.msra.mxu0 0
  %612 = vmatprep.subr.bf16.mxu0 0
  %613 = vmatpush1.bf16.msra.mxu0 0
  %614 = vmatprep.subr.bf16.mxu0 0
  %615 = vmatpush1.bf16.msra.mxu0 0
  %616 = vmatprep.subr.bf16.mxu0 0
  %617 = vmatpush1.bf16.msra.mxu0 0
  %618 = vmatprep.subr.bf16.mxu0 0
  %619 = vmatpush1.bf16.msra.mxu0 0
  %620 = vmatprep.subr.bf16.mxu0 0
  %621 = vmatpush1.bf16.msra.mxu0 0
  %622 = vmatprep.subr.bf16.mxu0 0
  %623 = vmatpush1.bf16.msra.mxu0 0
  %624 = vmatprep.subr.bf16.mxu0 0
  %625 = vmatpush1.bf16.msra.mxu0 0
  %626 = vmatprep.subr.bf16.mxu0 0
  %627 = vmatpush1.bf16.msra.mxu0 0
  %628 = vmatprep.subr.bf16.mxu0 0
  %629 = vmatpush1.bf16.msra.mxu0 0
  %630 = vmatprep.subr.bf16.mxu0 0
  %631 = vmatpush1.bf16.msra.mxu0 0
  %632 = vmatprep.subr.bf16.mxu0 0
  %633 = vmatpush1.bf16.msra.mxu0 0
  %634 = vmatprep.subr.bf16.mxu0 0
  %635 = vmatpush1.bf16.msra.mxu0 0
  %636 = vmatprep.subr.bf16.mxu0 0
  %637 = vmatpush1.bf16.msra.mxu0 0
  %638 = vmatprep.subr.bf16.mxu0 0
  %639 = vmatpush1.bf16.msra.mxu0 0
  %640 = vmatprep.mubr.bf16.mxu0 0
  %641 = vmatmul.mubr.bf16.gmra.mrb[0].mxu0 %v597
  %v642 = vpop.f32.mrb[0].mxu0
  %v643 = vadd.f32 0.0, %v642
  %v644 = vpop.f32.mrb[0].mxu0
  %v645 = vadd.f32 0.0, %v644
  %v646 = vpop.f32.mrb[0].mxu0
  %v647 = vpop.f32.mrb[0].mxu0
  %648 = vdwg.mxu0
  %649 = vmatprep.subr.bf16.mxu0 0
  %650 = vmatpush1.bf16.msra.mxu0 %v606
  %651 = vmatprep.subr.bf16.mxu0 0
  %652 = vmatpush1.bf16.msra.mxu0 0
  %653 = vmatprep.subr.bf16.mxu0 0
  %654 = vmatpush1.bf16.msra.mxu0 0
  %655 = vmatprep.subr.bf16.mxu0 0
  %656 = vmatpush1.bf16.msra.mxu0 0
  %657 = vmatprep.subr.bf16.mxu0 0
  %658 = vmatpush1.bf16.msra.mxu0 0
  %659 = vmatprep.subr.bf16.mxu0 0
  %660 = vmatpush1.bf16.msra.mxu0 0
  %661 = vmatprep.subr.bf16.mxu0 0
  %662 = vmatpush1.bf16.msra.mxu0 0
  %663 = vmatprep.subr.bf16.mxu0 0
  %664 = vmatpush1.bf16.msra.mxu0 0
  %665 = vmatprep.subr.bf16.mxu0 0
  %666 = vmatpush1.bf16.msra.mxu0 0
  %667 = vmatprep.subr.bf16.mxu0 0
  %668 = vmatpush1.bf16.msra.mxu0 0
  %669 = vmatprep.subr.bf16.mxu0 0
  %670 = vmatpush1.bf16.msra.mxu0 0
  %671 = vmatprep.subr.bf16.mxu0 0
  %672 = vmatpush1.bf16.msra.mxu0 0
  %673 = vmatprep.subr.bf16.mxu0 0
  %674 = vmatpush1.bf16.msra.mxu0 0
  %675 = vmatprep.subr.bf16.mxu0 0
  %676 = vmatpush1.bf16.msra.mxu0 0
  %677 = vmatprep.subr.bf16.mxu0 0
  %678 = vmatpush1.bf16.msra.mxu0 0
  %679 = vmatprep.subr.bf16.mxu0 0
  %680 = vmatpush1.bf16.msra.mxu0 0
  %681 = vmatprep.mubr.bf16.mxu0 0
  %682 = vmatmul.mubr.bf16.gmra.mrb[0].mxu0 %v597
  %v683 = vpop.f32.mrb[0].mxu0
  %v684 = vadd.f32 0.0, %v683
  %v685 = vpop.f32.mrb[0].mxu0
  %v686 = vpop.f32.mrb[0].mxu0
  %v687 = vpop.f32.mrb[0].mxu0
  %688 = vdwg.mxu0
  %v689 = vadd.f32 %v582, %v643
  %v690 = vadd.f32 %v583, %v645
  %v691 = vadd.f32 %v584, %v684
  %692 = vrot.lane.b32.xlu0 %v262, 112
  %v693 = vpop.permute.xlu0 %692
  %694 = vrot.lane.b32.xlu0 %v273, 109
  %v695 = vpop.permute.xlu0 %694
  %696 = vrot.lane.b32.xlu0 %v281, 109
  %v697 = vpop.permute.xlu0 %696
  %698 = vrot.lane.b32.xlu0 %v280, 109
  %v699 = vpop.permute.xlu0 %698
  %vm700 = vcmask 891904
  %v701 = vsel %vm700, %v695, %v697
  %v702 = vsel %vm700, %v697, %v699
  %v704 = vsel %vm291, %v693, 0
  %v707 = vsel %vm21, %v701, 0
  %v710 = vsel %vm21, %v702, 0
  %v713 = vsel %vm21, %v699, 0
  %715 = vmatprep.subr.bf16.mxu0 %v710
  %716 = vmatpush1.bf16.msra.mxu0 %v707
  %717 = vmatprep.subr.bf16.mxu0 0
  %718 = vmatpush1.bf16.msra.mxu0 0
  %719 = vmatprep.subr.bf16.mxu0 0
  %720 = vmatpush1.bf16.msra.mxu0 0
  %721 = vmatprep.subr.bf16.mxu0 0
  %722 = vmatpush1.bf16.msra.mxu0 0
  %723 = vmatprep.subr.bf16.mxu0 0
  %724 = vmatpush1.bf16.msra.mxu0 0
  %725 = vmatprep.subr.bf16.mxu0 0
  %726 = vmatpush1.bf16.msra.mxu0 0
  %727 = vmatprep.subr.bf16.mxu0 0
  %728 = vmatpush1.bf16.msra.mxu0 0
  %729 = vmatprep.subr.bf16.mxu0 0
  %730 = vmatpush1.bf16.msra.mxu0 0
  %731 = vmatprep.subr.bf16.mxu0 0
  %732 = vmatpush1.bf16.msra.mxu0 0
  %733 = vmatprep.subr.bf16.mxu0 0
  %734 = vmatpush1.bf16.msra.mxu0 0
  %735 = vmatprep.subr.bf16.mxu0 0
  %736 = vmatpush1.bf16.msra.mxu0 0
  %737 = vmatprep.subr.bf16.mxu0 0
  %738 = vmatpush1.bf16.msra.mxu0 0
  %739 = vmatprep.subr.bf16.mxu0 0
  %740 = vmatpush1.bf16.msra.mxu0 0
  %741 = vmatprep.subr.bf16.mxu0 0
  %742 = vmatpush1.bf16.msra.mxu0 0
  %743 = vmatprep.subr.bf16.mxu0 0
  %744 = vmatpush1.bf16.msra.mxu0 0
  %745 = vmatprep.subr.bf16.mxu0 0
  %746 = vmatpush1.bf16.msra.mxu0 0
  %747 = vmatprep.mubr.bf16.mxu0 0
  %748 = vmatmul.mubr.bf16.gmra.mrb[0].mxu0 %v704
  %v749 = vpop.f32.mrb[0].mxu0
  %v750 = vadd.f32 0.0, %v749
  %v751 = vpop.f32.mrb[0].mxu0
  %v752 = vadd.f32 0.0, %v751
  %v753 = vpop.f32.mrb[0].mxu0
  %v754 = vpop.f32.mrb[0].mxu0
  %755 = vdwg.mxu0
  %756 = vmatprep.subr.bf16.mxu0 0
  %757 = vmatpush1.bf16.msra.mxu0 %v713
  %758 = vmatprep.subr.bf16.mxu0 0
  %759 = vmatpush1.bf16.msra.mxu0 0
  %760 = vmatprep.subr.bf16.mxu0 0
  %761 = vmatpush1.bf16.msra.mxu0 0
  %762 = vmatprep.subr.bf16.mxu0 0
  %763 = vmatpush1.bf16.msra.mxu0 0
  %764 = vmatprep.subr.bf16.mxu0 0
  %765 = vmatpush1.bf16.msra.mxu0 0
  %766 = vmatprep.subr.bf16.mxu0 0
  %767 = vmatpush1.bf16.msra.mxu0 0
  %768 = vmatprep.subr.bf16.mxu0 0
  %769 = vmatpush1.bf16.msra.mxu0 0
  %770 = vmatprep.subr.bf16.mxu0 0
  %771 = vmatpush1.bf16.msra.mxu0 0
  %772 = vmatprep.subr.bf16.mxu0 0
  %773 = vmatpush1.bf16.msra.mxu0 0
  %774 = vmatprep.subr.bf16.mxu0 0
  %775 = vmatpush1.bf16.msra.mxu0 0
  %776 = vmatprep.subr.bf16.mxu0 0
  %777 = vmatpush1.bf16.msra.mxu0 0
  %778 = vmatprep.subr.bf16.mxu0 0
  %779 = vmatpush1.bf16.msra.mxu0 0
  %780 = vmatprep.subr.bf16.mxu0 0
  %781 = vmatpush1.bf16.msra.mxu0 0
  %782 = vmatprep.subr.bf16.mxu0 0
  %783 = vmatpush1.bf16.msra.mxu0 0
  %784 = vmatprep.subr.bf16.mxu0 0
  %785 = vmatpush1.bf16.msra.mxu0 0
  %786 = vmatprep.subr.bf16.mxu0 0
  %787 = vmatpush1.bf16.msra.mxu0 0
  %788 = vmatprep.mubr.bf16.mxu0 0
  %789 = vmatmul.mubr.bf16.gmra.mrb[0].mxu0 %v704
  %v790 = vpop.f32.mrb[0].mxu0
  %v791 = vadd.f32 0.0, %v790
  %v792 = vpop.f32.mrb[0].mxu0
  %v793 = vpop.f32.mrb[0].mxu0
  %v794 = vpop.f32.mrb[0].mxu0
  %795 = vdwg.mxu0
  %v796 = vadd.f32 %v689, %v750
  %v797 = vadd.f32 %v690, %v752
  %v798 = vadd.f32 %v691, %v791
  %799 = vrot.lane.b32.xlu0 %v262, 108
  %v800 = vpop.permute.xlu0 %799
  %801 = vrot.lane.b32.xlu0 %v273, 108
  %v802 = vpop.permute.xlu0 %801
  %803 = vrot.lane.b32.xlu0 %v281, 108
  %v804 = vpop.permute.xlu0 %803
  %805 = vrot.lane.b32.xlu0 %v280, 108
  %v806 = vpop.permute.xlu0 %805
  %vm807 = vcmask 883712
  %v808 = vsel %vm807, %v802, %v804
  %v809 = vsel %vm807, %v804, %v806
  %v811 = vsel %vm291, %v800, 0
  %v814 = vsel %vm21, %v808, 0
  %v817 = vsel %vm21, %v809, 0
  %v820 = vsel %vm21, %v806, 0
  %822 = vmatprep.subr.bf16.mxu0 %v817
  %823 = vmatpush1.bf16.msra.mxu0 %v814
  %824 = vmatprep.subr.bf16.mxu0 0
  %825 = vmatpush1.bf16.msra.mxu0 0
  %826 = vmatprep.subr.bf16.mxu0 0
  %827 = vmatpush1.bf16.msra.mxu0 0
  %828 = vmatprep.subr.bf16.mxu0 0
  %829 = vmatpush1.bf16.msra.mxu0 0
  %830 = vmatprep.subr.bf16.mxu0 0
  %831 = vmatpush1.bf16.msra.mxu0 0
  %832 = vmatprep.subr.bf16.mxu0 0
  %833 = vmatpush1.bf16.msra.mxu0 0
  %834 = vmatprep.subr.bf16.mxu0 0
  %835 = vmatpush1.bf16.msra.mxu0 0
  %836 = vmatprep.subr.bf16.mxu0 0
  %837 = vmatpush1.bf16.msra.mxu0 0
  %838 = vmatprep.subr.bf16.mxu0 0
  %839 = vmatpush1.bf16.msra.mxu0 0
  %840 = vmatprep.subr.bf16.mxu0 0
  %841 = vmatpush1.bf16.msra.mxu0 0
  %842 = vmatprep.subr.bf16.mxu0 0
  %843 = vmatpush1.bf16.msra.mxu0 0
  %844 = vmatprep.subr.bf16.mxu0 0
  %845 = vmatpush1.bf16.msra.mxu0 0
  %846 = vmatprep.subr.bf16.mxu0 0
  %847 = vmatpush1.bf16.msra.mxu0 0
  %848 = vmatprep.subr.bf16.mxu0 0
  %849 = vmatpush1.bf16.msra.mxu0 0
  %850 = vmatprep.subr.bf16.mxu0 0
  %851 = vmatpush1.bf16.msra.mxu0 0
  %852 = vmatprep.subr.bf16.mxu0 0
  %853 = vmatpush1.bf16.msra.mxu0 0
  %854 = vmatprep.mubr.bf16.mxu0 0
  %855 = vmatmul.mubr.bf16.gmra.mrb[0].mxu0 %v811
  %v856 = vpop.f32.mrb[0].mxu0
  %v857 = vadd.f32 0.0, %v856
  %v858 = vpop.f32.mrb[0].mxu0
  %v859 = vadd.f32 0.0, %v858
  %v860 = vpop.f32.mrb[0].mxu0
  %v861 = vpop.f32.mrb[0].mxu0
  %862 = vdwg.mxu0
  %863 = vmatprep.subr.bf16.mxu0 0
  %864 = vmatpush1.bf16.msra.mxu0 %v820
  %865 = vmatprep.subr.bf16.mxu0 0
  %866 = vmatpush1.bf16.msra.mxu0 0
  %867 = vmatprep.subr.bf16.mxu0 0
  %868 = vmatpush1.bf16.msra.mxu0 0
  %869 = vmatprep.subr.bf16.mxu0 0
  %870 = vmatpush1.bf16.msra.mxu0 0
  %871 = vmatprep.subr.bf16.mxu0 0
  %872 = vmatpush1.bf16.msra.mxu0 0
  %873 = vmatprep.subr.bf16.mxu0 0
  %874 = vmatpush1.bf16.msra.mxu0 0
  %875 = vmatprep.subr.bf16.mxu0 0
  %876 = vmatpush1.bf16.msra.mxu0 0
  %877 = vmatprep.subr.bf16.mxu0 0
  %878 = vmatpush1.bf16.msra.mxu0 0
  %879 = vmatprep.subr.bf16.mxu0 0
  %880 = vmatpush1.bf16.msra.mxu0 0
  %881 = vmatprep.subr.bf16.mxu0 0
  %882 = vmatpush1.bf16.msra.mxu0 0
  %883 = vmatprep.subr.bf16.mxu0 0
  %884 = vmatpush1.bf16.msra.mxu0 0
  %885 = vmatprep.subr.bf16.mxu0 0
  %886 = vmatpush1.bf16.msra.mxu0 0
  %887 = vmatprep.subr.bf16.mxu0 0
  %888 = vmatpush1.bf16.msra.mxu0 0
  %889 = vmatprep.subr.bf16.mxu0 0
  %890 = vmatpush1.bf16.msra.mxu0 0
  %891 = vmatprep.subr.bf16.mxu0 0
  %892 = vmatpush1.bf16.msra.mxu0 0
  %893 = vmatprep.subr.bf16.mxu0 0
  %894 = vmatpush1.bf16.msra.mxu0 0
  %895 = vmatprep.mubr.bf16.mxu0 0
  %896 = vmatmul.mubr.bf16.gmra.mrb[0].mxu0 %v811
  %v897 = vpop.f32.mrb[0].mxu0
  %v898 = vadd.f32 0.0, %v897
  %v899 = vpop.f32.mrb[0].mxu0
  %v900 = vpop.f32.mrb[0].mxu0
  %v901 = vpop.f32.mrb[0].mxu0
  %902 = vdwg.mxu0
  %v903 = vadd.f32 %v796, %v857
  %v904 = vadd.f32 %v797, %v859
  %v905 = vadd.f32 %v798, %v898
  %906 = vrot.lane.b32.xlu0 %v262, 104
  %v907 = vpop.permute.xlu0 %906
  %908 = vrot.lane.b32.xlu0 %v273, 92
  %v909 = vpop.permute.xlu0 %908
  %910 = vrot.lane.b32.xlu0 %v281, 92
  %v911 = vpop.permute.xlu0 %910
  %912 = vrot.lane.b32.xlu0 %v280, 92
  %v913 = vpop.permute.xlu0 %912
  %vm914 = vcmask 752640
  %v915 = vsel %vm914, %v909, %v911
  %v916 = vsel %vm914, %v911, %v913
  %v918 = vsel %vm291, %v907, 0
  %v921 = vsel %vm21, %v915, 0
  %v924 = vsel %vm21, %v916, 0
  %v927 = vsel %vm21, %v913, 0
  %929 = vmatprep.subr.bf16.mxu0 %v924
  %930 = vmatpush1.bf16.msra.mxu0 %v921
  %931 = vmatprep.subr.bf16.mxu0 0
  %932 = vmatpush1.bf16.msra.mxu0 0
  %933 = vmatprep.subr.bf16.mxu0 0
  %934 = vmatpush1.bf16.msra.mxu0 0
  %935 = vmatprep.subr.bf16.mxu0 0
  %936 = vmatpush1.bf16.msra.mxu0 0
  %937 = vmatprep.subr.bf16.mxu0 0
  %938 = vmatpush1.bf16.msra.mxu0 0
  %939 = vmatprep.subr.bf16.mxu0 0
  %940 = vmatpush1.bf16.msra.mxu0 0
  %941 = vmatprep.subr.bf16.mxu0 0
  %942 = vmatpush1.bf16.msra.mxu0 0
  %943 = vmatprep.subr.bf16.mxu0 0
  %944 = vmatpush1.bf16.msra.mxu0 0
  %945 = vmatprep.subr.bf16.mxu0 0
  %946 = vmatpush1.bf16.msra.mxu0 0
  %947 = vmatprep.subr.bf16.mxu0 0
  %948 = vmatpush1.bf16.msra.mxu0 0
  %949 = vmatprep.subr.bf16.mxu0 0
  %950 = vmatpush1.bf16.msra.mxu0 0
  %951 = vmatprep.subr.bf16.mxu0 0
  %952 = vmatpush1.bf16.msra.mxu0 0
  %953 = vmatprep.subr.bf16.mxu0 0
  %954 = vmatpush1.bf16.msra.mxu0 0
  %955 = vmatprep.subr.bf16.mxu0 0
  %956 = vmatpush1.bf16.msra.mxu0 0
  %957 = vmatprep.subr.bf16.mxu0 0
  %958 = vmatpush1.bf16.msra.mxu0 0
  %959 = vmatprep.subr.bf16.mxu0 0
  %960 = vmatpush1.bf16.msra.mxu0 0
  %961 = vmatprep.mubr.bf16.mxu0 0
  %962 = vmatmul.mubr.bf16.gmra.mrb[0].mxu0 %v918
  %v963 = vpop.f32.mrb[0].mxu0
  %v964 = vadd.f32 0.0, %v963
  %v965 = vpop.f32.mrb[0].mxu0
  %v966 = vadd.f32 0.0, %v965
  %v967 = vpop.f32.mrb[0].mxu0
  %v968 = vpop.f32.mrb[0].mxu0
  %969 = vdwg.mxu0
  %970 = vmatprep.subr.bf16.mxu0 0
  %971 = vmatpush1.bf16.msra.mxu0 %v927
  %972 = vmatprep.subr.bf16.mxu0 0
  %973 = vmatpush1.bf16.msra.mxu0 0
  %974 = vmatprep.subr.bf16.mxu0 0
  %975 = vmatpush1.bf16.msra.mxu0 0
  %976 = vmatprep.subr.bf16.mxu0 0
  %977 = vmatpush1.bf16.msra.mxu0 0
  %978 = vmatprep.subr.bf16.mxu0 0
  %979 = vmatpush1.bf16.msra.mxu0 0
  %980 = vmatprep.subr.bf16.mxu0 0
  %981 = vmatpush1.bf16.msra.mxu0 0
  %982 = vmatprep.subr.bf16.mxu0 0
  %983 = vmatpush1.bf16.msra.mxu0 0
  %984 = vmatprep.subr.bf16.mxu0 0
  %985 = vmatpush1.bf16.msra.mxu0 0
  %986 = vmatprep.subr.bf16.mxu0 0
  %987 = vmatpush1.bf16.msra.mxu0 0
  %988 = vmatprep.subr.bf16.mxu0 0
  %989 = vmatpush1.bf16.msra.mxu0 0
  %990 = vmatprep.subr.bf16.mxu0 0
  %991 = vmatpush1.bf16.msra.mxu0 0
  %992 = vmatprep.subr.bf16.mxu0 0
  %993 = vmatpush1.bf16.msra.mxu0 0
  %994 = vmatprep.subr.bf16.mxu0 0
  %995 = vmatpush1.bf16.msra.mxu0 0
  %996 = vmatprep.subr.bf16.mxu0 0
  %997 = vmatpush1.bf16.msra.mxu0 0
  %998 = vmatprep.subr.bf16.mxu0 0
  %999 = vmatpush1.bf16.msra.mxu0 0
  %1000 = vmatprep.subr.bf16.mxu0 0
  %1001 = vmatpush1.bf16.msra.mxu0 0
  %1002 = vmatprep.mubr.bf16.mxu0 0
  %1003 = vmatmul.mubr.bf16.gmra.mrb[0].mxu0 %v918
  %v1004 = vpop.f32.mrb[0].mxu0
  %v1005 = vadd.f32 0.0, %v1004
  %v1006 = vpop.f32.mrb[0].mxu0
  %v1007 = vpop.f32.mrb[0].mxu0
  %v1008 = vpop.f32.mrb[0].mxu0
  %1009 = vdwg.mxu0
  %v1010 = vadd.f32 %v903, %v964
  %v1011 = vadd.f32 %v904, %v966
  %v1012 = vadd.f32 %v905, %v1005
  %1013 = vrot.lane.b32.xlu0 %v262, 100
  %v1014 = vpop.permute.xlu0 %1013
  %1015 = vrot.lane.b32.xlu0 %v273, 91
  %v1016 = vpop.permute.xlu0 %1015
  %1017 = vrot.lane.b32.xlu0 %v281, 91
  %v1018 = vpop.permute.xlu0 %1017
  %1019 = vrot.lane.b32.xlu0 %v280, 91
  %v1020 = vpop.permute.xlu0 %1019
  %vm1021 = vcmask 744448
  %v1022 = vsel %vm1021, %v1016, %v1018
  %v1023 = vsel %vm1021, %v1018, %v1020
  %v1025 = vsel %vm291, %v1014, 0
  %v1028 = vsel %vm21, %v1022, 0
  %v1031 = vsel %vm21, %v1023, 0
  %v1034 = vsel %vm21, %v1020, 0
  %1036 = vmatprep.subr.bf16.mxu0 %v1031
  %1037 = vmatpush1.bf16.msra.mxu0 %v1028
  %1038 = vmatprep.subr.bf16.mxu0 0
  %1039 = vmatpush1.bf16.msra.mxu0 0
  %1040 = vmatprep.subr.bf16.mxu0 0
  %1041 = vmatpush1.bf16.msra.mxu0 0
  %1042 = vmatprep.subr.bf16.mxu0 0
  %1043 = vmatpush1.bf16.msra.mxu0 0
  %1044 = vmatprep.subr.bf16.mxu0 0
  %1045 = vmatpush1.bf16.msra.mxu0 0
  %1046 = vmatprep.subr.bf16.mxu0 0
  %1047 = vmatpush1.bf16.msra.mxu0 0
  %1048 = vmatprep.subr.bf16.mxu0 0
  %1049 = vmatpush1.bf16.msra.mxu0 0
  %1050 = vmatprep.subr.bf16.mxu0 0
  %1051 = vmatpush1.bf16.msra.mxu0 0
  %1052 = vmatprep.subr.bf16.mxu0 0
  %1053 = vmatpush1.bf16.msra.mxu0 0
  %1054 = vmatprep.subr.bf16.mxu0 0
  %1055 = vmatpush1.bf16.msra.mxu0 0
  %1056 = vmatprep.subr.bf16.mxu0 0
  %1057 = vmatpush1.bf16.msra.mxu0 0
  %1058 = vmatprep.subr.bf16.mxu0 0
  %1059 = vmatpush1.bf16.msra.mxu0 0
  %1060 = vmatprep.subr.bf16.mxu0 0
  %1061 = vmatpush1.bf16.msra.mxu0 0
  %1062 = vmatprep.subr.bf16.mxu0 0
  %1063 = vmatpush1.bf16.msra.mxu0 0
  %1064 = vmatprep.subr.bf16.mxu0 0
  %1065 = vmatpush1.bf16.msra.mxu0 0
  %1066 = vmatprep.subr.bf16.mxu0 0
  %1067 = vmatpush1.bf16.msra.mxu0 0
  %1068 = vmatprep.mubr.bf16.mxu0 0
  %1069 = vmatmul.mubr.bf16.gmra.mrb[0].mxu0 %v1025
  %v1070 = vpop.f32.mrb[0].mxu0
  %v1071 = vadd.f32 0.0, %v1070
  %v1072 = vpop.f32.mrb[0].mxu0
  %v1073 = vadd.f32 0.0, %v1072
  %v1074 = vpop.f32.mrb[0].mxu0
  %v1075 = vpop.f32.mrb[0].mxu0
  %1076 = vdwg.mxu0
  %1077 = vmatprep.subr.bf16.mxu0 0
  %1078 = vmatpush1.bf16.msra.mxu0 %v1034
  %1079 = vmatprep.subr.bf16.mxu0 0
  %1080 = vmatpush1.bf16.msra.mxu0 0
  %1081 = vmatprep.subr.bf16.mxu0 0
  %1082 = vmatpush1.bf16.msra.mxu0 0
  %1083 = vmatprep.subr.bf16.mxu0 0
  %1084 = vmatpush1.bf16.msra.mxu0 0
  %1085 = vmatprep.subr.bf16.mxu0 0
  %1086 = vmatpush1.bf16.msra.mxu0 0
  %1087 = vmatprep.subr.bf16.mxu0 0
  %1088 = vmatpush1.bf16.msra.mxu0 0
  %1089 = vmatprep.subr.bf16.mxu0 0
  %1090 = vmatpush1.bf16.msra.mxu0 0
  %1091 = vmatprep.subr.bf16.mxu0 0
  %1092 = vmatpush1.bf16.msra.mxu0 0
  %1093 = vmatprep.subr.bf16.mxu0 0
  %1094 = vmatpush1.bf16.msra.mxu0 0
  %1095 = vmatprep.subr.bf16.mxu0 0
  %1096 = vmatpush1.bf16.msra.mxu0 0
  %1097 = vmatprep.subr.bf16.mxu0 0
  %1098 = vmatpush1.bf16.msra.mxu0 0
  %1099 = vmatprep.subr.bf16.mxu0 0
  %1100 = vmatpush1.bf16.msra.mxu0 0
  %1101 = vmatprep.subr.bf16.mxu0 0
  %1102 = vmatpush1.bf16.msra.mxu0 0
  %1103 = vmatprep.subr.bf16.mxu0 0
  %1104 = vmatpush1.bf16.msra.mxu0 0
  %1105 = vmatprep.subr.bf16.mxu0 0
  %1106 = vmatpush1.bf16.msra.mxu0 0
  %1107 = vmatprep.subr.bf16.mxu0 0
  %1108 = vmatpush1.bf16.msra.mxu0 0
  %1109 = vmatprep.mubr.bf16.mxu0 0
  %1110 = vmatmul.mubr.bf16.gmra.mrb[0].mxu0 %v1025
  %v1111 = vpop.f32.mrb[0].mxu0
  %v1112 = vadd.f32 0.0, %v1111
  %v1113 = vpop.f32.mrb[0].mxu0
  %v1114 = vpop.f32.mrb[0].mxu0
  %v1115 = vpop.f32.mrb[0].mxu0
  %1116 = vdwg.mxu0
  %v1117 = vadd.f32 %v1010, %v1071
  %v1118 = vadd.f32 %v1011, %v1073
  %v1119 = vadd.f32 %v1012, %v1112
  %1120 = vrot.lane.b32.xlu0 %v262, 96
  %v1121 = vpop.permute.xlu0 %1120
  %1122 = vrot.lane.b32.xlu0 %v273, 90
  %v1123 = vpop.permute.xlu0 %1122
  %1124 = vrot.lane.b32.xlu0 %v281, 90
  %v1125 = vpop.permute.xlu0 %1124
  %1126 = vrot.lane.b32.xlu0 %v280, 90
  %v1127 = vpop.permute.xlu0 %1126
  %vm1128 = vcmask 736256
  %v1129 = vsel %vm1128, %v1123, %v1125
  %v1130 = vsel %vm1128, %v1125, %v1127
  %v1132 = vsel %vm291, %v1121, 0
  %v1135 = vsel %vm21, %v1129, 0
  %v1138 = vsel %vm21, %v1130, 0
  %v1141 = vsel %vm21, %v1127, 0
  %1143 = vmatprep.subr.bf16.mxu0 %v1138
  %1144 = vmatpush1.bf16.msra.mxu0 %v1135
  %1145 = vmatprep.subr.bf16.mxu0 0
  %1146 = vmatpush1.bf16.msra.mxu0 0
  %1147 = vmatprep.subr.bf16.mxu0 0
  %1148 = vmatpush1.bf16.msra.mxu0 0
  %1149 = vmatprep.subr.bf16.mxu0 0
  %1150 = vmatpush1.bf16.msra.mxu0 0
  %1151 = vmatprep.subr.bf16.mxu0 0
  %1152 = vmatpush1.bf16.msra.mxu0 0
  %1153 = vmatprep.subr.bf16.mxu0 0
  %1154 = vmatpush1.bf16.msra.mxu0 0
  %1155 = vmatprep.subr.bf16.mxu0 0
  %1156 = vmatpush1.bf16.msra.mxu0 0
  %1157 = vmatprep.subr.bf16.mxu0 0
  %1158 = vmatpush1.bf16.msra.mxu0 0
  %1159 = vmatprep.subr.bf16.mxu0 0
  %1160 = vmatpush1.bf16.msra.mxu0 0
  %1161 = vmatprep.subr.bf16.mxu0 0
  %1162 = vmatpush1.bf16.msra.mxu0 0
  %1163 = vmatprep.subr.bf16.mxu0 0
  %1164 = vmatpush1.bf16.msra.mxu0 0
  %1165 = vmatprep.subr.bf16.mxu0 0
  %1166 = vmatpush1.bf16.msra.mxu0 0
  %1167 = vmatprep.subr.bf16.mxu0 0
  %1168 = vmatpush1.bf16.msra.mxu0 0
  %1169 = vmatprep.subr.bf16.mxu0 0
  %1170 = vmatpush1.bf16.msra.mxu0 0
  %1171 = vmatprep.subr.bf16.mxu0 0
  %1172 = vmatpush1.bf16.msra.mxu0 0
  %1173 = vmatprep.subr.bf16.mxu0 0
  %1174 = vmatpush1.bf16.msra.mxu0 0
  %1175 = vmatprep.mubr.bf16.mxu0 0
  %1176 = vmatmul.mubr.bf16.gmra.mrb[0].mxu0 %v1132
  %v1177 = vpop.f32.mrb[0].mxu0
  %v1178 = vadd.f32 0.0, %v1177
  %v1179 = vpop.f32.mrb[0].mxu0
  %v1180 = vadd.f32 0.0, %v1179
  %v1181 = vpop.f32.mrb[0].mxu0
  %v1182 = vpop.f32.mrb[0].mxu0
  %1183 = vdwg.mxu0
  %1184 = vmatprep.subr.bf16.mxu0 0
  %1185 = vmatpush1.bf16.msra.mxu0 %v1141
  %1186 = vmatprep.subr.bf16.mxu0 0
  %1187 = vmatpush1.bf16.msra.mxu0 0
  %1188 = vmatprep.subr.bf16.mxu0 0
  %1189 = vmatpush1.bf16.msra.mxu0 0
  %1190 = vmatprep.subr.bf16.mxu0 0
  %1191 = vmatpush1.bf16.msra.mxu0 0
  %1192 = vmatprep.subr.bf16.mxu0 0
  %1193 = vmatpush1.bf16.msra.mxu0 0
  %1194 = vmatprep.subr.bf16.mxu0 0
  %1195 = vmatpush1.bf16.msra.mxu0 0
  %1196 = vmatprep.subr.bf16.mxu0 0
  %1197 = vmatpush1.bf16.msra.mxu0 0
  %1198 = vmatprep.subr.bf16.mxu0 0
  %1199 = vmatpush1.bf16.msra.mxu0 0
  %1200 = vmatprep.subr.bf16.mxu0 0
  %1201 = vmatpush1.bf16.msra.mxu0 0
  %1202 = vmatprep.subr.bf16.mxu0 0
  %1203 = vmatpush1.bf16.msra.mxu0 0
  %1204 = vmatprep.subr.bf16.mxu0 0
  %1205 = vmatpush1.bf16.msra.mxu0 0
  %1206 = vmatprep.subr.bf16.mxu0 0
  %1207 = vmatpush1.bf16.msra.mxu0 0
  %1208 = vmatprep.subr.bf16.mxu0 0
  %1209 = vmatpush1.bf16.msra.mxu0 0
  %1210 = vmatprep.subr.bf16.mxu0 0
  %1211 = vmatpush1.bf16.msra.mxu0 0
  %1212 = vmatprep.subr.bf16.mxu0 0
  %1213 = vmatpush1.bf16.msra.mxu0 0
  %1214 = vmatprep.subr.bf16.mxu0 0
  %1215 = vmatpush1.bf16.msra.mxu0 0
  %1216 = vmatprep.mubr.bf16.mxu0 0
  %1217 = vmatmul.mubr.bf16.gmra.mrb[0].mxu0 %v1132
  %v1218 = vpop.f32.mrb[0].mxu0
  %v1219 = vadd.f32 0.0, %v1218
  %v1220 = vpop.f32.mrb[0].mxu0
  %v1221 = vpop.f32.mrb[0].mxu0
  %v1222 = vpop.f32.mrb[0].mxu0
  %1223 = vdwg.mxu0
  %v1224 = vadd.f32 %v1117, %v1178
  %v1225 = vadd.f32 %v1118, %v1180
  %v1226 = vadd.f32 %v1119, %v1219
  %1228 = vset.pattern.permute.xlu0 0
  %1229 = vperm.xlu0 %1228, %v257
  %v1230 = vpop.permute.xlu0 %1229
  %v1232 = vadd.f32 %v1224, %v1230
  %v1233 = vadd.f32 %v1225, %v1230
  %v1234 = vadd.f32 %v1226, %v1230
  %v1235 = vmax.f32 %v1232, 0.0
  %v1236 = vmax.f32 %v1233, 0.0
  %v1237 = vmax.f32 %v1234, 0.0
  %v1238 = vpack.c.bf16 %v1235, %v1235
  %v1239 = vpack.c.bf16 %v1236, %v1236
  %v1240 = vpack.c.bf16 %v1237, %v1237
  %v1242 = vunpack.c.l.b16 %v1238
  %v1243 = vpack.c.b16 %v1242, %v1242
  %1244 = vrot.lane.b32.xlu0 %v1243, 19
  %v1245 = vpop.permute.xlu0 %1244
  %vm1247 = vcmask 281752
  %1248 = vst.msk [vmem:[#allocation3] sm:$0xf] %vm1247, %v1245
  %vm1249 = vcmask 429352
  %1250 = vst.msk [vmem:[#allocation3] sm:$0xf] %vm1249, %v1245
  %vm1251 = vcmask 576952
  %1252 = vst.msk [vmem:[#allocation3] sm:$0xf] %vm1251, %v1245
  %vm1253 = vcmask 724552
  %1254 = vst.msk [vmem:[#allocation3] sm:$0xf] %vm1253, %v1245
  %vm1255 = vcmask 872152
  %1256 = vst.msk [vmem:[#allocation3] sm:$0xf] %vm1255, %v1245
  %vm1257 = vcmask 1019752
  %1258 = vst.msk [vmem:[#allocation3] sm:$0xf] %vm1257, %v1245
  %v1259 = vrot.slane %v1245, 4
  %vm1260 = vcmask 154624
  %v1261 = vsel %vm1260, %v1259, %v1245
  %vm1263 = vcmask 1044472
  %vm1264 = vcmask 121860
  %vm1265 = vmor %vm1264, %vm1263
  %1266 = vst.msk [vmem:[#allocation3] sm:$0xff] %vm1265, %v1261
  %v1268 = vunpack.c.l.b16 %v1239
  %v1269 = vpack.c.b16 %v1268, %v1242
  %1270 = vrot.lane.b32.xlu0 %v1269, 19
  %v1271 = vpop.permute.xlu0 %1270
  %v1272 = vrot.slane %v1271, 4
  %v1273 = vsel %vm1260, %v1271, %v1272
  %vm1275 = vcmask 265352
  %1276 = vst.msk [vmem:[#allocation3 + $0x4] sm:$0xf] %vm1275, %v1273
  %v1277 = vpack.c.b16 %v1268, %v1268
  %1278 = vrot.lane.b32.xlu0 %v1277, 19
  %v1279 = vpop.permute.xlu0 %1278
  %vm1281 = vcmask 412952
  %1282 = vst.msk [vmem:[#allocation3 + $0x4] sm:$0xf] %vm1281, %v1279
  %vm1283 = vcmask 560552
  %1284 = vst.msk [vmem:[#allocation3 + $0x4] sm:$0xf] %vm1283, %v1279
  %vm1285 = vcmask 708152
  %1286 = vst.msk [vmem:[#allocation3 + $0x4] sm:$0xf] %vm1285, %v1279
  %vm1287 = vcmask 855752
  %1288 = vst.msk [vmem:[#allocation3 + $0x4] sm:$0xf] %vm1287, %v1279
  %vm1289 = vcmask 1003352
  %1290 = vst.msk [vmem:[#allocation3 + $0x4] sm:$0xf] %vm1289, %v1279
  %v1291 = vrot.slane %v1279, 4
  %v1292 = vsel %vm1260, %v1291, %v1279
  %vm1294 = vcmask 1044456
  %vm1295 = vcmask 105476
  %vm1296 = vmor %vm1295, %vm1294
  %1297 = vst.msk [vmem:[#allocation3 + $0x4] sm:$0xff] %vm1296, %v1292
  %v1299 = vunpack.c.l.b16 %v1240
  %v1300 = vpack.c.b16 %v1299, %v1268
  %1301 = vrot.lane.b32.xlu0 %v1300, 19
  %v1302 = vpop.permute.xlu0 %1301
  %v1303 = vrot.slane %v1302, 4
  %v1304 = vsel %vm1260, %v1302, %v1303
  %vm1306 = vcmask 248952
  %1307 = vst.msk [vmem:[#allocation3 + $0x8] sm:$0xf] %vm1306, %v1304
  %v1308 = vpack.c.b16 %v1299, %v1299
  %1309 = vrot.lane.b32.xlu0 %v1308, 19
  %v1310 = vpop.permute.xlu0 %1309
  %vm1312 = vcmask 396552
  %1313 = vst.msk [vmem:[#allocation3 + $0x8] sm:$0xf] %vm1312, %v1310
  %s1314 = scalar_lea.vmem [#allocation2], 6
  %v1315 = vld [vmem:[%s1314] sm:$0x3f]
  %v1317 = vcombine.high %v1315, %v1315
  %v1319 = vunpack.c.l.s4 1983009808
  %v1320 = vunpack.c.0.s8 %v1319
  %v1321 = vlaneseq
  %v1322 = vshrl.u32 %v1321, 7
  %v1323 = vsub.s32 %v1320, %v1322
  %v1324 = vrot.slane %v1315, %v1323
  %v1326 = vunpack.c.l.s4 1983009808
  %v1327 = vunpack.c.0.s8 %v1326
  %v1328 = vlaneseq
  %v1329 = vshrl.u32 %v1328, 7
  %v1330 = vsub.s32 %v1327, %v1329
  %v1331 = vrot.slane %v1317, %v1330
  %v1332 = vcombine.high %v1324, %v1324
  %1333 = vrot.lane.b32.xlu0 %v1324, 127
  %v1334 = vpop.permute.xlu0 %1333
  %1335 = vrot.lane.b32.xlu0 %v1332, 127
  %v1336 = vpop.permute.xlu0 %1335
  %1337 = vrot.lane.b32.xlu0 %v1331, 127
  %v1338 = vpop.permute.xlu0 %1337
  %v1339 = vsel %vm288, %v1334, %v1336
  %v1340 = vsel %vm288, %v1336, %v1338
  %v1342 = vsel %vm21, %v1339, 0
  %v1345 = vsel %vm21, %v1340, 0
  %v1348 = vsel %vm21, %v1338, 0
  %1350 = vmatprep.subr.bf16.mxu0 %v1345
  %1351 = vmatpush1.bf16.msra.mxu0 %v1342
  %1352 = vmatprep.subr.bf16.mxu0 0
  %1353 = vmatpush1.bf16.msra.mxu0 0
  %1354 = vmatprep.subr.bf16.mxu0 0
  %1355 = vmatpush1.bf16.msra.mxu0 0
  %1356 = vmatprep.subr.bf16.mxu0 0
  %1357 = vmatpush1.bf16.msra.mxu0 0
  %1358 = vmatprep.subr.bf16.mxu0 0
  %1359 = vmatpush1.bf16.msra.mxu0 0
  %1360 = vmatprep.subr.bf16.mxu0 0
  %1361 = vmatpush1.bf16.msra.mxu0 0
  %1362 = vmatprep.subr.bf16.mxu0 0
  %1363 = vmatpush1.bf16.msra.mxu0 0
  %1364 = vmatprep.subr.bf16.mxu0 0
  %1365 = vmatpush1.bf16.msra.mxu0 0
  %1366 = vmatprep.subr.bf16.mxu0 0
  %1367 = vmatpush1.bf16.msra.mxu0 0
  %1368 = vmatprep.subr.bf16.mxu0 0
  %1369 = vmatpush1.bf16.msra.mxu0 0
  %1370 = vmatprep.subr.bf16.mxu0 0
  %1371 = vmatpush1.bf16.msra.mxu0 0
  %1372 = vmatprep.subr.bf16.mxu0 0
  %1373 = vmatpush1.bf16.msra.mxu0 0
  %1374 = vmatprep.subr.bf16.mxu0 0
  %1375 = vmatpush1.bf16.msra.mxu0 0
  %1376 = vmatprep.subr.bf16.mxu0 0
  %1377 = vmatpush1.bf16.msra.mxu0 0
  %1378 = vmatprep.subr.bf16.mxu0 0
  %1379 = vmatpush1.bf16.msra.mxu0 0
  %1380 = vmatprep.subr.bf16.mxu0 0
  %1381 = vmatpush1.bf16.msra.mxu0 0
  %1382 = vmatprep.mubr.bf16.mxu0 0
  %1383 = vmatmul.mubr.bf16.gmra.mrb[0].mxu0 %v293
  %v1384 = vpop.f32.mrb[0].mxu0
  %v1385 = vadd.f32 0.0, %v1384
  %v1386 = vpop.f32.mrb[0].mxu0
  %v1387 = vadd.f32 0.0, %v1386
  %v1388 = vpop.f32.mrb[0].mxu0
  %v1389 = vpop.f32.mrb[0].mxu0
  %1390 = vdwg.mxu0
  %1391 = vmatprep.subr.bf16.mxu0 0
  %1392 = vmatpush1.bf16.msra.mxu0 %v1348
  %1393 = vmatprep.subr.bf16.mxu0 0
  %1394 = vmatpush1.bf16.msra.mxu0 0
  %1395 = vmatprep.subr.bf16.mxu0 0
  %1396 = vmatpush1.bf16.msra.mxu0 0
  %1397 = vmatprep.subr.bf16.mxu0 0
  %1398 = vmatpush1.bf16.msra.mxu0 0
  %1399 = vmatprep.subr.bf16.mxu0 0
  %1400 = vmatpush1.bf16.msra.mxu0 0
  %1401 = vmatprep.subr.bf16.mxu0 0
  %1402 = vmatpush1.bf16.msra.mxu0 0
  %1403 = vmatprep.subr.bf16.mxu0 0
  %1404 = vmatpush1.bf16.msra.mxu0 0
  %1405 = vmatprep.subr.bf16.mxu0 0
  %1406 = vmatpush1.bf16.msra.mxu0 0
  %1407 = vmatprep.subr.bf16.mxu0 0
  %1408 = vmatpush1.bf16.msra.mxu0 0
  %1409 = vmatprep.subr.bf16.mxu0 0
  %1410 = vmatpush1.bf16.msra.mxu0 0
  %1411 = vmatprep.subr.bf16.mxu0 0
  %1412 = vmatpush1.bf16.msra.mxu0 0
  %1413 = vmatprep.subr.bf16.mxu0 0
  %1414 = vmatpush1.bf16.msra.mxu0 0
  %1415 = vmatprep.subr.bf16.mxu0 0
  %1416 = vmatpush1.bf16.msra.mxu0 0
  %1417 = vmatprep.subr.bf16.mxu0 0
  %1418 = vmatpush1.bf16.msra.mxu0 0
  %1419 = vmatprep.subr.bf16.mxu0 0
  %1420 = vmatpush1.bf16.msra.mxu0 0
  %1421 = vmatprep.subr.bf16.mxu0 0
  %1422 = vmatpush1.bf16.msra.mxu0 0
  %1423 = vmatprep.mubr.bf16.mxu0 0
  %1424 = vmatmul.mubr.bf16.gmra.mrb[0].mxu0 %v293
  %v1425 = vpop.f32.mrb[0].mxu0
  %v1426 = vadd.f32 0.0, %v1425
  %v1427 = vpop.f32.mrb[0].mxu0
  %v1428 = vpop.f32.mrb[0].mxu0
  %v1429 = vpop.f32.mrb[0].mxu0
  %1430 = vdwg.mxu0
  %v1432 = vsel %vm21, %v1324, 0
  %v1435 = vsel %vm21, %v1332, 0
  %v1438 = vsel %vm21, %v1331, 0
  %1440 = vmatprep.subr.bf16.mxu0 %v1435
  %1441 = vmatpush1.bf16.msra.mxu0 %v1432
  %1442 = vmatprep.subr.bf16.mxu0 0
  %1443 = vmatpush1.bf16.msra.mxu0 0
  %1444 = vmatprep.subr.bf16.mxu0 0
  %1445 = vmatpush1.bf16.msra.mxu0 0
  %1446 = vmatprep.subr.bf16.mxu0 0
  %1447 = vmatpush1.bf16.msra.mxu0 0
  %1448 = vmatprep.subr.bf16.mxu0 0
  %1449 = vmatpush1.bf16.msra.mxu0 0
  %1450 = vmatprep.subr.bf16.mxu0 0
  %1451 = vmatpush1.bf16.msra.mxu0 0
  %1452 = vmatprep.subr.bf16.mxu0 0
  %1453 = vmatpush1.bf16.msra.mxu0 0
  %1454 = vmatprep.subr.bf16.mxu0 0
  %1455 = vmatpush1.bf16.msra.mxu0 0
  %1456 = vmatprep.subr.bf16.mxu0 0
  %1457 = vmatpush1.bf16.msra.mxu0 0
  %1458 = vmatprep.subr.bf16.mxu0 0
  %1459 = vmatpush1.bf16.msra.mxu0 0
  %1460 = vmatprep.subr.bf16.mxu0 0
  %1461 = vmatpush1.bf16.msra.mxu0 0
  %1462 = vmatprep.subr.bf16.mxu0 0
  %1463 = vmatpush1.bf16.msra.mxu0 0
  %1464 = vmatprep.subr.bf16.mxu0 0
  %1465 = vmatpush1.bf16.msra.mxu0 0
  %1466 = vmatprep.subr.bf16.mxu0 0
  %1467 = vmatpush1.bf16.msra.mxu0 0
  %1468 = vmatprep.subr.bf16.mxu0 0
  %1469 = vmatpush1.bf16.msra.mxu0 0
  %1470 = vmatprep.subr.bf16.mxu0 0
  %1471 = vmatpush1.bf16.msra.mxu0 0
  %1472 = vmatprep.mubr.bf16.mxu0 0
  %1473 = vmatmul.mubr.bf16.gmra.mrb[0].mxu0 %v386
  %v1474 = vpop.f32.mrb[0].mxu0
  %v1475 = vadd.f32 %v1385, %v1474
  %v1476 = vpop.f32.mrb[0].mxu0
  %v1477 = vadd.f32 %v1387, %v1476
  %v1478 = vpop.f32.mrb[0].mxu0
  %v1479 = vpop.f32.mrb[0].mxu0
  %1480 = vdwg.mxu0
  %1481 = vmatprep.subr.bf16.mxu0 0
  %1482 = vmatpush1.bf16.msra.mxu0 %v1438
  %1483 = vmatprep.subr.bf16.mxu0 0
  %1484 = vmatpush1.bf16.msra.mxu0 0
  %1485 = vmatprep.subr.bf16.mxu0 0
  %1486 = vmatpush1.bf16.msra.mxu0 0
  %1487 = vmatprep.subr.bf16.mxu0 0
  %1488 = vmatpush1.bf16.msra.mxu0 0
  %1489 = vmatprep.subr.bf16.mxu0 0
  %1490 = vmatpush1.bf16.msra.mxu0 0
  %1491 = vmatprep.subr.bf16.mxu0 0
  %1492 = vmatpush1.bf16.msra.mxu0 0
  %1493 = vmatprep.subr.bf16.mxu0 0
  %1494 = vmatpush1.bf16.msra.mxu0 0
  %1495 = vmatprep.subr.bf16.mxu0 0
  %1496 = vmatpush1.bf16.msra.mxu0 0
  %1497 = vmatprep.subr.bf16.mxu0 0
  %1498 = vmatpush1.bf16.msra.mxu0 0
  %1499 = vmatprep.subr.bf16.mxu0 0
  %1500 = vmatpush1.bf16.msra.mxu0 0
  %1501 = vmatprep.subr.bf16.mxu0 0
  %1502 = vmatpush1.bf16.msra.mxu0 0
  %1503 = vmatprep.subr.bf16.mxu0 0
  %1504 = vmatpush1.bf16.msra.mxu0 0
  %1505 = vmatprep.subr.bf16.mxu0 0
  %1506 = vmatpush1.bf16.msra.mxu0 0
  %1507 = vmatprep.subr.bf16.mxu0 0
  %1508 = vmatpush1.bf16.msra.mxu0 0
  %1509 = vmatprep.subr.bf16.mxu0 0
  %1510 = vmatpush1.bf16.msra.mxu0 0
  %1511 = vmatprep.subr.bf16.mxu0 0
  %1512 = vmatpush1.bf16.msra.mxu0 0
  %1513 = vmatprep.mubr.bf16.mxu0 0
  %1514 = vmatmul.mubr.bf16.gmra.mrb[0].mxu0 %v386
  %v1515 = vpop.f32.mrb[0].mxu0
  %v1516 = vadd.f32 %v1426, %v1515
  %v1517 = vpop.f32.mrb[0].mxu0
  %v1518 = vpop.f32.mrb[0].mxu0
  %v1519 = vpop.f32.mrb[0].mxu0
  %1520 = vdwg.mxu0
  %1521 = vrot.lane.b32.xlu0 %v1324, 126
  %v1522 = vpop.permute.xlu0 %1521
  %1523 = vrot.lane.b32.xlu0 %v1332, 126
  %v1524 = vpop.permute.xlu0 %1523
  %1525 = vrot.lane.b32.xlu0 %v1331, 126
  %v1526 = vpop.permute.xlu0 %1525
  %v1527 = vsel %vm486, %v1522, %v1524
  %v1528 = vsel %vm486, %v1524, %v1526
  %v1530 = vsel %vm21, %v1527, 0
  %v1533 = vsel %vm21, %v1528, 0
  %v1536 = vsel %vm21, %v1526, 0
  %1538 = vmatprep.subr.bf16.mxu0 %v1533
  %1539 = vmatpush1.bf16.msra.mxu0 %v1530
  %1540 = vmatprep.subr.bf16.mxu0 0
  %1541 = vmatpush1.bf16.msra.mxu0 0
  %1542 = vmatprep.subr.bf16.mxu0 0
  %1543 = vmatpush1.bf16.msra.mxu0 0
  %1544 = vmatprep.subr.bf16.mxu0 0
  %1545 = vmatpush1.bf16.msra.mxu0 0
  %1546 = vmatprep.subr.bf16.mxu0 0
  %1547 = vmatpush1.bf16.msra.mxu0 0
  %1548 = vmatprep.subr.bf16.mxu0 0
  %1549 = vmatpush1.bf16.msra.mxu0 0
  %1550 = vmatprep.subr.bf16.mxu0 0
  %1551 = vmatpush1.bf16.msra.mxu0 0
  %1552 = vmatprep.subr.bf16.mxu0 0
  %1553 = vmatpush1.bf16.msra.mxu0 0
  %1554 = vmatprep.subr.bf16.mxu0 0
  %1555 = vmatpush1.bf16.msra.mxu0 0
  %1556 = vmatprep.subr.bf16.mxu0 0
  %1557 = vmatpush1.bf16.msra.mxu0 0
  %1558 = vmatprep.subr.bf16.mxu0 0
  %1559 = vmatpush1.bf16.msra.mxu0 0
  %1560 = vmatprep.subr.bf16.mxu0 0
  %1561 = vmatpush1.bf16.msra.mxu0 0
  %1562 = vmatprep.subr.bf16.mxu0 0
  %1563 = vmatpush1.bf16.msra.mxu0 0
  %1564 = vmatprep.subr.bf16.mxu0 0
  %1565 = vmatpush1.bf16.msra.mxu0 0
  %1566 = vmatprep.subr.bf16.mxu0 0
  %1567 = vmatpush1.bf16.msra.mxu0 0
  %1568 = vmatprep.subr.bf16.mxu0 0
  %1569 = vmatpush1.bf16.msra.mxu0 0
  %1570 = vmatprep.mubr.bf16.mxu0 0
  %1571 = vmatmul.mubr.bf16.gmra.mrb[0].mxu0 %v490
  %v1572 = vpop.f32.mrb[0].mxu0
  %v1573 = vadd.f32 0.0, %v1572
  %v1574 = vpop.f32.mrb[0].mxu0
  %v1575 = vadd.f32 0.0, %v1574
  %v1576 = vpop.f32.mrb[0].mxu0
  %v1577 = vpop.f32.mrb[0].mxu0
  %1578 = vdwg.mxu0
  %1579 = vmatprep.subr.bf16.mxu0 0
  %1580 = vmatpush1.bf16.msra.mxu0 %v1536
  %1581 = vmatprep.subr.bf16.mxu0 0
  %1582 = vmatpush1.bf16.msra.mxu0 0
  %1583 = vmatprep.subr.bf16.mxu0 0
  %1584 = vmatpush1.bf16.msra.mxu0 0
  %1585 = vmatprep.subr.bf16.mxu0 0
  %1586 = vmatpush1.bf16.msra.mxu0 0
  %1587 = vmatprep.subr.bf16.mxu0 0
  %1588 = vmatpush1.bf16.msra.mxu0 0
  %1589 = vmatprep.subr.bf16.mxu0 0
  %1590 = vmatpush1.bf16.msra.mxu0 0
  %1591 = vmatprep.subr.bf16.mxu0 0
  %1592 = vmatpush1.bf16.msra.mxu0 0
  %1593 = vmatprep.subr.bf16.mxu0 0
  %1594 = vmatpush1.bf16.msra.mxu0 0
  %1595 = vmatprep.subr.bf16.mxu0 0
  %1596 = vmatpush1.bf16.msra.mxu0 0
  %1597 = vmatprep.subr.bf16.mxu0 0
  %1598 = vmatpush1.bf16.msra.mxu0 0
  %1599 = vmatprep.subr.bf16.mxu0 0
  %1600 = vmatpush1.bf16.msra.mxu0 0
  %1601 = vmatprep.subr.bf16.mxu0 0
  %1602 = vmatpush1.bf16.msra.mxu0 0
  %1603 = vmatprep.subr.bf16.mxu0 0
  %1604 = vmatpush1.bf16.msra.mxu0 0
  %1605 = vmatprep.subr.bf16.mxu0 0
  %1606 = vmatpush1.bf16.msra.mxu0 0
  %1607 = vmatprep.subr.bf16.mxu0 0
  %1608 = vmatpush1.bf16.msra.mxu0 0
  %1609 = vmatprep.subr.bf16.mxu0 0
  %1610 = vmatpush1.bf16.msra.mxu0 0
  %1611 = vmatprep.mubr.bf16.mxu0 0
  %1612 = vmatmul.mubr.bf16.gmra.mrb[0].mxu0 %v490
  %v1613 = vpop.f32.mrb[0].mxu0
  %v1614 = vadd.f32 0.0, %v1613
  %v1615 = vpop.f32.mrb[0].mxu0
  %v1616 = vpop.f32.mrb[0].mxu0
  %v1617 = vpop.f32.mrb[0].mxu0
  %1618 = vdwg.mxu0
  %v1619 = vadd.f32 %v1475, %v1573
  %v1620 = vadd.f32 %v1477, %v1575
  %v1621 = vadd.f32 %v1516, %v1614
  %1622 = vrot.lane.b32.xlu0 %v1324, 110
  %v1623 = vpop.permute.xlu0 %1622
  %1624 = vrot.lane.b32.xlu0 %v1332, 110
  %v1625 = vpop.permute.xlu0 %1624
  %1626 = vrot.lane.b32.xlu0 %v1331, 110
  %v1627 = vpop.permute.xlu0 %1626
  %v1628 = vsel %vm593, %v1623, %v1625
  %v1629 = vsel %vm593, %v1625, %v1627
  %v1631 = vsel %vm21, %v1628, 0
  %v1634 = vsel %vm21, %v1629, 0
  %v1637 = vsel %vm21, %v1627, 0
  %1639 = vmatprep.subr.bf16.mxu0 %v1634
  %1640 = vmatpush1.bf16.msra.mxu0 %v1631
  %1641 = vmatprep.subr.bf16.mxu0 0
  %1642 = vmatpush1.bf16.msra.mxu0 0
  %1643 = vmatprep.subr.bf16.mxu0 0
  %1644 = vmatpush1.bf16.msra.mxu0 0
  %1645 = vmatprep.subr.bf16.mxu0 0
  %1646 = vmatpush1.bf16.msra.mxu0 0
  %1647 = vmatprep.subr.bf16.mxu0 0
  %1648 = vmatpush1.bf16.msra.mxu0 0
  %1649 = vmatprep.subr.bf16.mxu0 0
  %1650 = vmatpush1.bf16.msra.mxu0 0
  %1651 = vmatprep.subr.bf16.mxu0 0
  %1652 = vmatpush1.bf16.msra.mxu0 0
  %1653 = vmatprep.subr.bf16.mxu0 0
  %1654 = vmatpush1.bf16.msra.mxu0 0
  %1655 = vmatprep.subr.bf16.mxu0 0
  %1656 = vmatpush1.bf16.msra.mxu0 0
  %1657 = vmatprep.subr.bf16.mxu0 0
  %1658 = vmatpush1.bf16.msra.mxu0 0
  %1659 = vmatprep.subr.bf16.mxu0 0
  %1660 = vmatpush1.bf16.msra.mxu0 0
  %1661 = vmatprep.subr.bf16.mxu0 0
  %1662 = vmatpush1.bf16.msra.mxu0 0
  %1663 = vmatprep.subr.bf16.mxu0 0
  %1664 = vmatpush1.bf16.msra.mxu0 0
  %1665 = vmatprep.subr.bf16.mxu0 0
  %1666 = vmatpush1.bf16.msra.mxu0 0
  %1667 = vmatprep.subr.bf16.mxu0 0
  %1668 = vmatpush1.bf16.msra.mxu0 0
  %1669 = vmatprep.subr.bf16.mxu0 0
  %1670 = vmatpush1.bf16.msra.mxu0 0
  %1671 = vmatprep.mubr.bf16.mxu0 0
  %1672 = vmatmul.mubr.bf16.gmra.mrb[0].mxu0 %v597
  %v1673 = vpop.f32.mrb[0].mxu0
  %v1674 = vadd.f32 0.0, %v1673
  %v1675 = vpop.f32.mrb[0].mxu0
  %v1676 = vadd.f32 0.0, %v1675
  %v1677 = vpop.f32.mrb[0].mxu0
  %v1678 = vpop.f32.mrb[0].mxu0
  %1679 = vdwg.mxu0
  %1680 = vmatprep.subr.bf16.mxu0 0
  %1681 = vmatpush1.bf16.msra.mxu0 %v1637
  %1682 = vmatprep.subr.bf16.mxu0 0
  %1683 = vmatpush1.bf16.msra.mxu0 0
  %1684 = vmatprep.subr.bf16.mxu0 0
  %1685 = vmatpush1.bf16.msra.mxu0 0
  %1686 = vmatprep.subr.bf16.mxu0 0
  %1687 = vmatpush1.bf16.msra.mxu0 0
  %1688 = vmatprep.subr.bf16.mxu0 0
  %1689 = vmatpush1.bf16.msra.mxu0 0
  %1690 = vmatprep.subr.bf16.mxu0 0
  %1691 = vmatpush1.bf16.msra.mxu0 0
  %1692 = vmatprep.subr.bf16.mxu0 0
  %1693 = vmatpush1.bf16.msra.mxu0 0
  %1694 = vmatprep.subr.bf16.mxu0 0
  %1695 = vmatpush1.bf16.msra.mxu0 0
  %1696 = vmatprep.subr.bf16.mxu0 0
  %1697 = vmatpush1.bf16.msra.mxu0 0
  %1698 = vmatprep.subr.bf16.mxu0 0
  %1699 = vmatpush1.bf16.msra.mxu0 0
  %1700 = vmatprep.subr.bf16.mxu0 0
  %1701 = vmatpush1.bf16.msra.mxu0 0
  %1702 = vmatprep.subr.bf16.mxu0 0
  %1703 = vmatpush1.bf16.msra.mxu0 0
  %1704 = vmatprep.subr.bf16.mxu0 0
  %1705 = vmatpush1.bf16.msra.mxu0 0
  %1706 = vmatprep.subr.bf16.mxu0 0
  %1707 = vmatpush1.bf16.msra.mxu0 0
  %1708 = vmatprep.subr.bf16.mxu0 0
  %1709 = vmatpush1.bf16.msra.mxu0 0
  %1710 = vmatprep.subr.bf16.mxu0 0
  %1711 = vmatpush1.bf16.msra.mxu0 0
  %1712 = vmatprep.mubr.bf16.mxu0 0
  %1713 = vmatmul.mubr.bf16.gmra.mrb[0].mxu0 %v597
  %v1714 = vpop.f32.mrb[0].mxu0
  %v1715 = vadd.f32 0.0, %v1714
  %v1716 = vpop.f32.mrb[0].mxu0
  %v1717 = vpop.f32.mrb[0].mxu0
  %v1718 = vpop.f32.mrb[0].mxu0
  %1719 = vdwg.mxu0
  %v1720 = vadd.f32 %v1619, %v1674
  %v1721 = vadd.f32 %v1620, %v1676
  %v1722 = vadd.f32 %v1621, %v1715
  %1723 = vrot.lane.b32.xlu0 %v1324, 109
  %v1724 = vpop.permute.xlu0 %1723
  %1725 = vrot.lane.b32.xlu0 %v1332, 109
  %v1726 = vpop.permute.xlu0 %1725
  %1727 = vrot.lane.b32.xlu0 %v1331, 109
  %v1728 = vpop.permute.xlu0 %1727
  %v1729 = vsel %vm700, %v1724, %v1726
  %v1730 = vsel %vm700, %v1726, %v1728
  %v1732 = vsel %vm21, %v1729, 0
  %v1735 = vsel %vm21, %v1730, 0
  %v1738 = vsel %vm21, %v1728, 0
  %1740 = vmatprep.subr.bf16.mxu0 %v1735
  %1741 = vmatpush1.bf16.msra.mxu0 %v1732
  %1742 = vmatprep.subr.bf16.mxu0 0
  %1743 = vmatpush1.bf16.msra.mxu0 0
  %1744 = vmatprep.subr.bf16.mxu0 0
  %1745 = vmatpush1.bf16.msra.mxu0 0
  %1746 = vmatprep.subr.bf16.mxu0 0
  %1747 = vmatpush1.bf16.msra.mxu0 0
  %1748 = vmatprep.subr.bf16.mxu0 0
  %1749 = vmatpush1.bf16.msra.mxu0 0
  %1750 = vmatprep.subr.bf16.mxu0 0
  %1751 = vmatpush1.bf16.msra.mxu0 0
  %1752 = vmatprep.subr.bf16.mxu0 0
  %1753 = vmatpush1.bf16.msra.mxu0 0
  %1754 = vmatprep.subr.bf16.mxu0 0
  %1755 = vmatpush1.bf16.msra.mxu0 0
  %1756 = vmatprep.subr.bf16.mxu0 0
  %1757 = vmatpush1.bf16.msra.mxu0 0
  %1758 = vmatprep.subr.bf16.mxu0 0
  %1759 = vmatpush1.bf16.msra.mxu0 0
  %1760 = vmatprep.subr.bf16.mxu0 0
  %1761 = vmatpush1.bf16.msra.mxu0 0
  %1762 = vmatprep.subr.bf16.mxu0 0
  %1763 = vmatpush1.bf16.msra.mxu0 0
  %1764 = vmatprep.subr.bf16.mxu0 0
  %1765 = vmatpush1.bf16.msra.mxu0 0
  %1766 = vmatprep.subr.bf16.mxu0 0
  %1767 = vmatpush1.bf16.msra.mxu0 0
  %1768 = vmatprep.subr.bf16.mxu0 0
  %1769 = vmatpush1.bf16.msra.mxu0 0
  %1770 = vmatprep.subr.bf16.mxu0 0
  %1771 = vmatpush1.bf16.msra.mxu0 0
  %1772 = vmatprep.mubr.bf16.mxu0 0
  %1773 = vmatmul.mubr.bf16.gmra.mrb[0].mxu0 %v704
  %v1774 = vpop.f32.mrb[0].mxu0
  %v1775 = vadd.f32 0.0, %v1774
  %v1776 = vpop.f32.mrb[0].mxu0
  %v1777 = vadd.f32 0.0, %v1776
  %v1778 = vpop.f32.mrb[0].mxu0
  %v1779 = vpop.f32.mrb[0].mxu0
  %1780 = vdwg.mxu0
  %1781 = vmatprep.subr.bf16.mxu0 0
  %1782 = vmatpush1.bf16.msra.mxu0 %v1738
  %1783 = vmatprep.subr.bf16.mxu0 0
  %1784 = vmatpush1.bf16.msra.mxu0 0
  %1785 = vmatprep.subr.bf16.mxu0 0
  %1786 = vmatpush1.bf16.msra.mxu0 0
  %1787 = vmatprep.subr.bf16.mxu0 0
  %1788 = vmatpush1.bf16.msra.mxu0 0
  %1789 = vmatprep.subr.bf16.mxu0 0
  %1790 = vmatpush1.bf16.msra.mxu0 0
  %1791 = vmatprep.subr.bf16.mxu0 0
  %1792 = vmatpush1.bf16.msra.mxu0 0
  %1793 = vmatprep.subr.bf16.mxu0 0
  %1794 = vmatpush1.bf16.msra.mxu0 0
  %1795 = vmatprep.subr.bf16.mxu0 0
  %1796 = vmatpush1.bf16.msra.mxu0 0
  %1797 = vmatprep.subr.bf16.mxu0 0
  %1798 = vmatpush1.bf16.msra.mxu0 0
  %1799 = vmatprep.subr.bf16.mxu0 0
  %1800 = vmatpush1.bf16.msra.mxu0 0
  %1801 = vmatprep.subr.bf16.mxu0 0
  %1802 = vmatpush1.bf16.msra.mxu0 0
  %1803 = vmatprep.subr.bf16.mxu0 0
  %1804 = vmatpush1.bf16.msra.mxu0 0
  %1805 = vmatprep.subr.bf16.mxu0 0
  %1806 = vmatpush1.bf16.msra.mxu0 0
  %1807 = vmatprep.subr.bf16.mxu0 0
  %1808 = vmatpush1.bf16.msra.mxu0 0
  %1809 = vmatprep.subr.bf16.mxu0 0
  %1810 = vmatpush1.bf16.msra.mxu0 0
  %1811 = vmatprep.subr.bf16.mxu0 0
  %1812 = vmatpush1.bf16.msra.mxu0 0
  %1813 = vmatprep.mubr.bf16.mxu0 0
  %1814 = vmatmul.mubr.bf16.gmra.mrb[0].mxu0 %v704
  %v1815 = vpop.f32.mrb[0].mxu0
  %v1816 = vadd.f32 0.0, %v1815
  %v1817 = vpop.f32.mrb[0].mxu0
  %v1818 = vpop.f32.mrb[0].mxu0
  %v1819 = vpop.f32.mrb[0].mxu0
  %1820 = vdwg.mxu0
  %v1821 = vadd.f32 %v1720, %v1775
  %v1822 = vadd.f32 %v1721, %v1777
  %v1823 = vadd.f32 %v1722, %v1816
  %1824 = vrot.lane.b32.xlu0 %v1324, 108
  %v1825 = vpop.permute.xlu0 %1824
  %1826 = vrot.lane.b32.xlu0 %v1332, 108
  %v1827 = vpop.permute.xlu0 %1826
  %1828 = vrot.lane.b32.xlu0 %v1331, 108
  %v1829 = vpop.permute.xlu0 %1828
  %v1830 = vsel %vm807, %v1825, %v1827
  %v1831 = vsel %vm807, %v1827, %v1829
  %v1833 = vsel %vm21, %v1830, 0
  %v1836 = vsel %vm21, %v1831, 0
  %v1839 = vsel %vm21, %v1829, 0
  %1841 = vmatprep.subr.bf16.mxu0 %v1836
  %1842 = vmatpush1.bf16.msra.mxu0 %v1833
  %1843 = vmatprep.subr.bf16.mxu0 0
  %1844 = vmatpush1.bf16.msra.mxu0 0
  %1845 = vmatprep.subr.bf16.mxu0 0
  %1846 = vmatpush1.bf16.msra.mxu0 0
  %1847 = vmatprep.subr.bf16.mxu0 0
  %1848 = vmatpush1.bf16.msra.mxu0 0
  %1849 = vmatprep.subr.bf16.mxu0 0
  %1850 = vmatpush1.bf16.msra.mxu0 0
  %1851 = vmatprep.subr.bf16.mxu0 0
  %1852 = vmatpush1.bf16.msra.mxu0 0
  %1853 = vmatprep.subr.bf16.mxu0 0
  %1854 = vmatpush1.bf16.msra.mxu0 0
  %1855 = vmatprep.subr.bf16.mxu0 0
  %1856 = vmatpush1.bf16.msra.mxu0 0
  %1857 = vmatprep.subr.bf16.mxu0 0
  %1858 = vmatpush1.bf16.msra.mxu0 0
  %1859 = vmatprep.subr.bf16.mxu0 0
  %1860 = vmatpush1.bf16.msra.mxu0 0
  %1861 = vmatprep.subr.bf16.mxu0 0
  %1862 = vmatpush1.bf16.msra.mxu0 0
  %1863 = vmatprep.subr.bf16.mxu0 0
  %1864 = vmatpush1.bf16.msra.mxu0 0
  %1865 = vmatprep.subr.bf16.mxu0 0
  %1866 = vmatpush1.bf16.msra.mxu0 0
  %1867 = vmatprep.subr.bf16.mxu0 0
  %1868 = vmatpush1.bf16.msra.mxu0 0
  %1869 = vmatprep.subr.bf16.mxu0 0
  %1870 = vmatpush1.bf16.msra.mxu0 0
  %1871 = vmatprep.subr.bf16.mxu0 0
  %1872 = vmatpush1.bf16.msra.mxu0 0
  %1873 = vmatprep.mubr.bf16.mxu0 0
  %1874 = vmatmul.mubr.bf16.gmra.mrb[0].mxu0 %v811
  %v1875 = vpop.f32.mrb[0].mxu0
  %v1876 = vadd.f32 0.0, %v1875
  %v1877 = vpop.f32.mrb[0].mxu0
  %v1878 = vadd.f32 0.0, %v1877
  %v1879 = vpop.f32.mrb[0].mxu0
  %v1880 = vpop.f32.mrb[0].mxu0
  %1881 = vdwg.mxu0
  %1882 = vmatprep.subr.bf16.mxu0 0
  %1883 = vmatpush1.bf16.msra.mxu0 %v1839
  %1884 = vmatprep.subr.bf16.mxu0 0
  %1885 = vmatpush1.bf16.msra.mxu0 0
  %1886 = vmatprep.subr.bf16.mxu0 0
  %1887 = vmatpush1.bf16.msra.mxu0 0
  %1888 = vmatprep.subr.bf16.mxu0 0
  %1889 = vmatpush1.bf16.msra.mxu0 0
  %1890 = vmatprep.subr.bf16.mxu0 0
  %1891 = vmatpush1.bf16.msra.mxu0 0
  %1892 = vmatprep.subr.bf16.mxu0 0
  %1893 = vmatpush1.bf16.msra.mxu0 0
  %1894 = vmatprep.subr.bf16.mxu0 0
  %1895 = vmatpush1.bf16.msra.mxu0 0
  %1896 = vmatprep.subr.bf16.mxu0 0
  %1897 = vmatpush1.bf16.msra.mxu0 0
  %1898 = vmatprep.subr.bf16.mxu0 0
  %1899 = vmatpush1.bf16.msra.mxu0 0
  %1900 = vmatprep.subr.bf16.mxu0 0
  %1901 = vmatpush1.bf16.msra.mxu0 0
  %1902 = vmatprep.subr.bf16.mxu0 0
  %1903 = vmatpush1.bf16.msra.mxu0 0
  %1904 = vmatprep.subr.bf16.mxu0 0
  %1905 = vmatpush1.bf16.msra.mxu0 0
  %1906 = vmatprep.subr.bf16.mxu0 0
  %1907 = vmatpush1.bf16.msra.mxu0 0
  %1908 = vmatprep.subr.bf16.mxu0 0
  %1909 = vmatpush1.bf16.msra.mxu0 0
  %1910 = vmatprep.subr.bf16.mxu0 0
  %1911 = vmatpush1.bf16.msra.mxu0 0
  %1912 = vmatprep.subr.bf16.mxu0 0
  %1913 = vmatpush1.bf16.msra.mxu0 0
  %1914 = vmatprep.mubr.bf16.mxu0 0
  %1915 = vmatmul.mubr.bf16.gmra.mrb[0].mxu0 %v811
  %v1916 = vpop.f32.mrb[0].mxu0
  %v1917 = vadd.f32 0.0, %v1916
  %v1918 = vpop.f32.mrb[0].mxu0
  %v1919 = vpop.f32.mrb[0].mxu0
  %v1920 = vpop.f32.mrb[0].mxu0
  %1921 = vdwg.mxu0
  %v1922 = vadd.f32 %v1821, %v1876
  %v1923 = vadd.f32 %v1822, %v1878
  %v1924 = vadd.f32 %v1823, %v1917
  %1925 = vrot.lane.b32.xlu0 %v1324, 92
  %v1926 = vpop.permute.xlu0 %1925
  %1927 = vrot.lane.b32.xlu0 %v1332, 92
  %v1928 = vpop.permute.xlu0 %1927
  %1929 = vrot.lane.b32.xlu0 %v1331, 92
  %v1930 = vpop.permute.xlu0 %1929
  %v1931 = vsel %vm914, %v1926, %v1928
  %v1932 = vsel %vm914, %v1928, %v1930
  %v1934 = vsel %vm21, %v1931, 0
  %v1937 = vsel %vm21, %v1932, 0
  %v1940 = vsel %vm21, %v1930, 0
  %1942 = vmatprep.subr.bf16.mxu0 %v1937
  %1943 = vmatpush1.bf16.msra.mxu0 %v1934
  %1944 = vmatprep.subr.bf16.mxu0 0
  %1945 = vmatpush1.bf16.msra.mxu0 0
  %1946 = vmatprep.subr.bf16.mxu0 0
  %1947 = vmatpush1.bf16.msra.mxu0 0
  %1948 = vmatprep.subr.bf16.mxu0 0
  %1949 = vmatpush1.bf16.msra.mxu0 0
  %1950 = vmatprep.subr.bf16.mxu0 0
  %1951 = vmatpush1.bf16.msra.mxu0 0
  %1952 = vmatprep.subr.bf16.mxu0 0
  %1953 = vmatpush1.bf16.msra.mxu0 0
  %1954 = vmatprep.subr.bf16.mxu0 0
  %1955 = vmatpush1.bf16.msra.mxu0 0
  %1956 = vmatprep.subr.bf16.mxu0 0
  %1957 = vmatpush1.bf16.msra.mxu0 0
  %1958 = vmatprep.subr.bf16.mxu0 0
  %1959 = vmatpush1.bf16.msra.mxu0 0
  %1960 = vmatprep.subr.bf16.mxu0 0
  %1961 = vmatpush1.bf16.msra.mxu0 0
  %1962 = vmatprep.subr.bf16.mxu0 0
  %1963 = vmatpush1.bf16.msra.mxu0 0
  %1964 = vmatprep.subr.bf16.mxu0 0
  %1965 = vmatpush1.bf16.msra.mxu0 0
  %1966 = vmatprep.subr.bf16.mxu0 0
  %1967 = vmatpush1.bf16.msra.mxu0 0
  %1968 = vmatprep.subr.bf16.mxu0 0
  %1969 = vmatpush1.bf16.msra.mxu0 0
  %1970 = vmatprep.subr.bf16.mxu0 0
  %1971 = vmatpush1.bf16.msra.mxu0 0
  %1972 = vmatprep.subr.bf16.mxu0 0
  %1973 = vmatpush1.bf16.msra.mxu0 0
  %1974 = vmatprep.mubr.bf16.mxu0 0
  %1975 = vmatmul.mubr.bf16.gmra.mrb[0].mxu0 %v918
  %v1976 = vpop.f32.mrb[0].mxu0
  %v1977 = vadd.f32 0.0, %v1976
  %v1978 = vpop.f32.mrb[0].mxu0
  %v1979 = vadd.f32 0.0, %v1978
  %v1980 = vpop.f32.mrb[0].mxu0
  %v1981 = vpop.f32.mrb[0].mxu0
  %1982 = vdwg.mxu0
  %1983 = vmatprep.subr.bf16.mxu0 0
  %1984 = vmatpush1.bf16.msra.mxu0 %v1940
  %1985 = vmatprep.subr.bf16.mxu0 0
  %1986 = vmatpush1.bf16.msra.mxu0 0
  %1987 = vmatprep.subr.bf16.mxu0 0
  %1988 = vmatpush1.bf16.msra.mxu0 0
  %1989 = vmatprep.subr.bf16.mxu0 0
  %1990 = vmatpush1.bf16.msra.mxu0 0
  %1991 = vmatprep.subr.bf16.mxu0 0
  %1992 = vmatpush1.bf16.msra.mxu0 0
  %1993 = vmatprep.subr.bf16.mxu0 0
  %1994 = vmatpush1.bf16.msra.mxu0 0
  %1995 = vmatprep.subr.bf16.mxu0 0
  %1996 = vmatpush1.bf16.msra.mxu0 0
  %1997 = vmatprep.subr.bf16.mxu0 0
  %1998 = vmatpush1.bf16.msra.mxu0 0
  %1999 = vmatprep.subr.bf16.mxu0 0
  %2000 = vmatpush1.bf16.msra.mxu0 0
  %2001 = vmatprep.subr.bf16.mxu0 0
  %2002 = vmatpush1.bf16.msra.mxu0 0
  %2003 = vmatprep.subr.bf16.mxu0 0
  %2004 = vmatpush1.bf16.msra.mxu0 0
  %2005 = vmatprep.subr.bf16.mxu0 0
  %2006 = vmatpush1.bf16.msra.mxu0 0
  %2007 = vmatprep.subr.bf16.mxu0 0
  %2008 = vmatpush1.bf16.msra.mxu0 0
  %2009 = vmatprep.subr.bf16.mxu0 0
  %2010 = vmatpush1.bf16.msra.mxu0 0
  %2011 = vmatprep.subr.bf16.mxu0 0
  %2012 = vmatpush1.bf16.msra.mxu0 0
  %2013 = vmatprep.subr.bf16.mxu0 0
  %2014 = vmatpush1.bf16.msra.mxu0 0
  %2015 = vmatprep.mubr.bf16.mxu0 0
  %2016 = vmatmul.mubr.bf16.gmra.mrb[0].mxu0 %v918
  %v2017 = vpop.f32.mrb[0].mxu0
  %v2018 = vadd.f32 0.0, %v2017
  %v2019 = vpop.f32.mrb[0].mxu0
  %v2020 = vpop.f32.mrb[0].mxu0
  %v2021 = vpop.f32.mrb[0].mxu0
  %2022 = vdwg.mxu0
  %v2023 = vadd.f32 %v1922, %v1977
  %v2024 = vadd.f32 %v1923, %v1979
  %v2025 = vadd.f32 %v1924, %v2018
  %2026 = vrot.lane.b32.xlu0 %v1324, 91
  %v2027 = vpop.permute.xlu0 %2026
  %2028 = vrot.lane.b32.xlu0 %v1332, 91
  %v2029 = vpop.permute.xlu0 %2028
  %2030 = vrot.lane.b32.xlu0 %v1331, 91
  %v2031 = vpop.permute.xlu0 %2030
  %v2032 = vsel %vm1021, %v2027, %v2029
  %v2033 = vsel %vm1021, %v2029, %v2031
  %v2035 = vsel %vm21, %v2032, 0
  %v2038 = vsel %vm21, %v2033, 0
  %v2041 = vsel %vm21, %v2031, 0
  %2043 = vmatprep.subr.bf16.mxu0 %v2038
  %2044 = vmatpush1.bf16.msra.mxu0 %v2035
  %2045 = vmatprep.subr.bf16.mxu0 0
  %2046 = vmatpush1.bf16.msra.mxu0 0
  %2047 = vmatprep.subr.bf16.mxu0 0
  %2048 = vmatpush1.bf16.msra.mxu0 0
  %2049 = vmatprep.subr.bf16.mxu0 0
  %2050 = vmatpush1.bf16.msra.mxu0 0
  %2051 = vmatprep.subr.bf16.mxu0 0
  %2052 = vmatpush1.bf16.msra.mxu0 0
  %2053 = vmatprep.subr.bf16.mxu0 0
  %2054 = vmatpush1.bf16.msra.mxu0 0
  %2055 = vmatprep.subr.bf16.mxu0 0
  %2056 = vmatpush1.bf16.msra.mxu0 0
  %2057 = vmatprep.subr.bf16.mxu0 0
  %2058 = vmatpush1.bf16.msra.mxu0 0
  %2059 = vmatprep.subr.bf16.mxu0 0
  %2060 = vmatpush1.bf16.msra.mxu0 0
  %2061 = vmatprep.subr.bf16.mxu0 0
  %2062 = vmatpush1.bf16.msra.mxu0 0
  %2063 = vmatprep.subr.bf16.mxu0 0
  %2064 = vmatpush1.bf16.msra.mxu0 0
  %2065 = vmatprep.subr.bf16.mxu0 0
  %2066 = vmatpush1.bf16.msra.mxu0 0
  %2067 = vmatprep.subr.bf16.mxu0 0
  %2068 = vmatpush1.bf16.msra.mxu0 0
  %2069 = vmatprep.subr.bf16.mxu0 0
  %2070 = vmatpush1.bf16.msra.mxu0 0
  %2071 = vmatprep.subr.bf16.mxu0 0
  %2072 = vmatpush1.bf16.msra.mxu0 0
  %2073 = vmatprep.subr.bf16.mxu0 0
  %2074 = vmatpush1.bf16.msra.mxu0 0
  %2075 = vmatprep.mubr.bf16.mxu0 0
  %2076 = vmatmul.mubr.bf16.gmra.mrb[0].mxu0 %v1025
  %v2077 = vpop.f32.mrb[0].mxu0
  %v2078 = vadd.f32 0.0, %v2077
  %v2079 = vpop.f32.mrb[0].mxu0
  %v2080 = vadd.f32 0.0, %v2079
  %v2081 = vpop.f32.mrb[0].mxu0
  %v2082 = vpop.f32.mrb[0].mxu0
  %2083 = vdwg.mxu0
  %2084 = vmatprep.subr.bf16.mxu0 0
  %2085 = vmatpush1.bf16.msra.mxu0 %v2041
  %2086 = vmatprep.subr.bf16.mxu0 0
  %2087 = vmatpush1.bf16.msra.mxu0 0
  %2088 = vmatprep.subr.bf16.mxu0 0
  %2089 = vmatpush1.bf16.msra.mxu0 0
  %2090 = vmatprep.subr.bf16.mxu0 0
  %2091 = vmatpush1.bf16.msra.mxu0 0
  %2092 = vmatprep.subr.bf16.mxu0 0
  %2093 = vmatpush1.bf16.msra.mxu0 0
  %2094 = vmatprep.subr.bf16.mxu0 0
  %2095 = vmatpush1.bf16.msra.mxu0 0
  %2096 = vmatprep.subr.bf16.mxu0 0
  %2097 = vmatpush1.bf16.msra.mxu0 0
  %2098 = vmatprep.subr.bf16.mxu0 0
  %2099 = vmatpush1.bf16.msra.mxu0 0
  %2100 = vmatprep.subr.bf16.mxu0 0
  %2101 = vmatpush1.bf16.msra.mxu0 0
  %2102 = vmatprep.subr.bf16.mxu0 0
  %2103 = vmatpush1.bf16.msra.mxu0 0
  %2104 = vmatprep.subr.bf16.mxu0 0
  %2105 = vmatpush1.bf16.msra.mxu0 0
  %2106 = vmatprep.subr.bf16.mxu0 0
  %2107 = vmatpush1.bf16.msra.mxu0 0
  %2108 = vmatprep.subr.bf16.mxu0 0
  %2109 = vmatpush1.bf16.msra.mxu0 0
  %2110 = vmatprep.subr.bf16.mxu0 0
  %2111 = vmatpush1.bf16.msra.mxu0 0
  %2112 = vmatprep.subr.bf16.mxu0 0
  %2113 = vmatpush1.bf16.msra.mxu0 0
  %2114 = vmatprep.subr.bf16.mxu0 0
  %2115 = vmatpush1.bf16.msra.mxu0 0
  %2116 = vmatprep.mubr.bf16.mxu0 0
  %2117 = vmatmul.mubr.bf16.gmra.mrb[0].mxu0 %v1025
  %v2118 = vpop.f32.mrb[0].mxu0
  %v2119 = vadd.f32 0.0, %v2118
  %v2120 = vpop.f32.mrb[0].mxu0
  %v2121 = vpop.f32.mrb[0].mxu0
  %v2122 = vpop.f32.mrb[0].mxu0
  %2123 = vdwg.mxu0
  %v2124 = vadd.f32 %v2023, %v2078
  %v2125 = vadd.f32 %v2024, %v2080
  %v2126 = vadd.f32 %v2025, %v2119
  %2127 = vrot.lane.b32.xlu0 %v1324, 90
  %v2128 = vpop.permute.xlu0 %2127
  %2129 = vrot.lane.b32.xlu0 %v1332, 90
  %v2130 = vpop.permute.xlu0 %2129
  %2131 = vrot.lane.b32.xlu0 %v1331, 90
  %v2132 = vpop.permute.xlu0 %2131
  %v2133 = vsel %vm1128, %v2128, %v2130
  %v2134 = vsel %vm1128, %v2130, %v2132
  %v2136 = vsel %vm21, %v2133, 0
  %v2139 = vsel %vm21, %v2134, 0
  %v2142 = vsel %vm21, %v2132, 0
  %2144 = vmatprep.subr.bf16.mxu0 %v2139
  %2145 = vmatpush1.bf16.msra.mxu0 %v2136
  %2146 = vmatprep.subr.bf16.mxu0 0
  %2147 = vmatpush1.bf16.msra.mxu0 0
  %2148 = vmatprep.subr.bf16.mxu0 0
  %2149 = vmatpush1.bf16.msra.mxu0 0
  %2150 = vmatprep.subr.bf16.mxu0 0
  %2151 = vmatpush1.bf16.msra.mxu0 0
  %2152 = vmatprep.subr.bf16.mxu0 0
  %2153 = vmatpush1.bf16.msra.mxu0 0
  %2154 = vmatprep.subr.bf16.mxu0 0
  %2155 = vmatpush1.bf16.msra.mxu0 0
  %2156 = vmatprep.subr.bf16.mxu0 0
  %2157 = vmatpush1.bf16.msra.mxu0 0
  %2158 = vmatprep.subr.bf16.mxu0 0
  %2159 = vmatpush1.bf16.msra.mxu0 0
  %2160 = vmatprep.subr.bf16.mxu0 0
  %2161 = vmatpush1.bf16.msra.mxu0 0
  %2162 = vmatprep.subr.bf16.mxu0 0
  %2163 = vmatpush1.bf16.msra.mxu0 0
  %2164 = vmatprep.subr.bf16.mxu0 0
  %2165 = vmatpush1.bf16.msra.mxu0 0
  %2166 = vmatprep.subr.bf16.mxu0 0
  %2167 = vmatpush1.bf16.msra.mxu0 0
  %2168 = vmatprep.subr.bf16.mxu0 0
  %2169 = vmatpush1.bf16.msra.mxu0 0
  %2170 = vmatprep.subr.bf16.mxu0 0
  %2171 = vmatpush1.bf16.msra.mxu0 0
  %2172 = vmatprep.subr.bf16.mxu0 0
  %2173 = vmatpush1.bf16.msra.mxu0 0
  %2174 = vmatprep.subr.bf16.mxu0 0
  %2175 = vmatpush1.bf16.msra.mxu0 0
  %2176 = vmatprep.mubr.bf16.mxu0 0
  %2177 = vmatmul.mubr.bf16.gmra.mrb[0].mxu0 %v1132
  %v2178 = vpop.f32.mrb[0].mxu0
  %v2179 = vadd.f32 0.0, %v2178
  %v2180 = vpop.f32.mrb[0].mxu0
  %v2181 = vadd.f32 0.0, %v2180
  %v2182 = vpop.f32.mrb[0].mxu0
  %v2183 = vpop.f32.mrb[0].mxu0
  %2184 = vdwg.mxu0
  %2185 = vmatprep.subr.bf16.mxu0 0
  %2186 = vmatpush1.bf16.msra.mxu0 %v2142
  %2187 = vmatprep.subr.bf16.mxu0 0
  %2188 = vmatpush1.bf16.msra.mxu0 0
  %2189 = vmatprep.subr.bf16.mxu0 0
  %2190 = vmatpush1.bf16.msra.mxu0 0
  %2191 = vmatprep.subr.bf16.mxu0 0
  %2192 = vmatpush1.bf16.msra.mxu0 0
  %2193 = vmatprep.subr.bf16.mxu0 0
  %2194 = vmatpush1.bf16.msra.mxu0 0
  %2195 = vmatprep.subr.bf16.mxu0 0
  %2196 = vmatpush1.bf16.msra.mxu0 0
  %2197 = vmatprep.subr.bf16.mxu0 0
  %2198 = vmatpush1.bf16.msra.mxu0 0
  %2199 = vmatprep.subr.bf16.mxu0 0
  %2200 = vmatpush1.bf16.msra.mxu0 0
  %2201 = vmatprep.subr.bf16.mxu0 0
  %2202 = vmatpush1.bf16.msra.mxu0 0
  %2203 = vmatprep.subr.bf16.mxu0 0
  %2204 = vmatpush1.bf16.msra.mxu0 0
  %2205 = vmatprep.subr.bf16.mxu0 0
  %2206 = vmatpush1.bf16.msra.mxu0 0
  %2207 = vmatprep.subr.bf16.mxu0 0
  %2208 = vmatpush1.bf16.msra.mxu0 0
  %2209 = vmatprep.subr.bf16.mxu0 0
  %2210 = vmatpush1.bf16.msra.mxu0 0
  %2211 = vmatprep.subr.bf16.mxu0 0
  %2212 = vmatpush1.bf16.msra.mxu0 0
  %2213 = vmatprep.subr.bf16.mxu0 0
  %2214 = vmatpush1.bf16.msra.mxu0 0
  %2215 = vmatprep.subr.bf16.mxu0 0
  %2216 = vmatpush1.bf16.msra.mxu0 0
  %2217 = vmatprep.mubr.bf16.mxu0 0
  %2218 = vmatmul.mubr.bf16.gmra.mrb[0].mxu0 %v1132
  %v2219 = vpop.f32.mrb[0].mxu0
  %v2220 = vadd.f32 0.0, %v2219
  %v2221 = vpop.f32.mrb[0].mxu0
  %v2222 = vpop.f32.mrb[0].mxu0
  %v2223 = vpop.f32.mrb[0].mxu0
  %2224 = vdwg.mxu0
  %v2225 = vadd.f32 %v2124, %v2179
  %v2226 = vadd.f32 %v2125, %v2181
  %v2227 = vadd.f32 %v2126, %v2220
  %v2228 = vadd.f32 %v2225, %v1230
  %v2229 = vadd.f32 %v2226, %v1230
  %v2230 = vadd.f32 %v2227, %v1230
  %v2231 = vmax.f32 %v2228, 0.0
  %v2232 = vmax.f32 %v2229, 0.0
  %v2233 = vmax.f32 %v2230, 0.0
  %v2234 = vpack.c.bf16 %v2231, %v2231
  %v2235 = vpack.c.bf16 %v2232, %v2232
  %v2236 = vpack.c.bf16 %v2233, %v2233
  %v2238 = vunpack.c.l.b16 %v2234
  %v2239 = vpack.c.b16 %v2238, %v2238
  %2240 = vrot.lane.b32.xlu0 %v2239, 19
  %v2241 = vpop.permute.xlu0 %2240
  %s2243 = scalar_lea.vmem [#allocation3], 12
  %2244 = vst.msk [vmem:[%s2243] sm:$0xf] %vm1247, %v2241
  %2245 = vst.msk [vmem:[%s2243] sm:$0xf] %vm1249, %v2241
  %2246 = vst.msk [vmem:[%s2243] sm:$0xf] %vm1251, %v2241
  %2247 = vst.msk [vmem:[%s2243] sm:$0xf] %vm1253, %v2241
  %2248 = vst.msk [vmem:[%s2243] sm:$0xf] %vm1255, %v2241
  %2249 = vst.msk [vmem:[%s2243] sm:$0xf] %vm1257, %v2241
  %v2250 = vrot.slane %v2241, 4
  %v2251 = vsel %vm1260, %v2250, %v2241
  %2253 = vst.msk [vmem:[%s2243] sm:$0xff] %vm1265, %v2251
  %v2255 = vunpack.c.l.b16 %v2235
  %v2256 = vpack.c.b16 %v2255, %v2238
  %2257 = vrot.lane.b32.xlu0 %v2256, 19
  %v2258 = vpop.permute.xlu0 %2257
  %v2259 = vrot.slane %v2258, 4
  %v2260 = vsel %vm1260, %v2258, %v2259
  %2262 = vst.msk [vmem:[%s2243 + $0x4] sm:$0xf] %vm1275, %v2260
  %v2263 = vpack.c.b16 %v2255, %v2255
  %2264 = vrot.lane.b32.xlu0 %v2263, 19
  %v2265 = vpop.permute.xlu0 %2264
  %2267 = vst.msk [vmem:[%s2243 + $0x4] sm:$0xf] %vm1281, %v2265
  %2268 = vst.msk [vmem:[%s2243 + $0x4] sm:$0xf] %vm1283, %v2265
  %2269 = vst.msk [vmem:[%s2243 + $0x4] sm:$0xf] %vm1285, %v2265
  %2270 = vst.msk [vmem:[%s2243 + $0x4] sm:$0xf] %vm1287, %v2265
  %2271 = vst.msk [vmem:[%s2243 + $0x4] sm:$0xf] %vm1289, %v2265
  %v2272 = vrot.slane %v2265, 4
  %v2273 = vsel %vm1260, %v2272, %v2265
  %2275 = vst.msk [vmem:[%s2243 + $0x4] sm:$0xff] %vm1296, %v2273
  %v2277 = vunpack.c.l.b16 %v2236
  %v2278 = vpack.c.b16 %v2277, %v2255
  %2279 = vrot.lane.b32.xlu0 %v2278, 19
  %v2280 = vpop.permute.xlu0 %2279
  %v2281 = vrot.slane %v2280, 4
  %v2282 = vsel %vm1260, %v2280, %v2281
  %2284 = vst.msk [vmem:[%s2243 + $0x8] sm:$0xf] %vm1306, %v2282
  %v2285 = vpack.c.b16 %v2277, %v2277
  %2286 = vrot.lane.b32.xlu0 %v2285, 19
  %v2287 = vpop.permute.xlu0 %2286
  %2289 = vst.msk [vmem:[%s2243 + $0x8] sm:$0xf] %vm1312, %v2287
  %v2290 = vld [vmem:[#allocation3] sm:$0xff]
  %v2291 = vld [vmem:[#allocation3 + $0x8] sm:$0xf]
  %v2294 = vunpack.c.l.s4 1983009808
  %v2295 = vunpack.c.0.s8 %v2294
  %v2296 = vlaneseq
  %v2297 = vshrl.u32 %v2296, 7
  %v2298 = vsub.s32 %v2295, %v2297
  %v2299 = vrot.slane %v256, %v2298
  %2300 = vrot.lane.b32.xlu0 %v2299, 120
  %v2301 = vpop.permute.xlu0 %2300
  %v2304 = vunpack.c.l.b16 %v2290
  %v2305 = vunpack.c.h.b16 %v2290
  %v2306 = vunpack.c.l.b16 %v2291
  %v2307 = vpack.c.b16 %v2304, %v2304
  %v2308 = vpack.c.b16 %v2305, %v2305
  %v2309 = vpack.c.b16 %v2306, %v2306
  %2310 = vrot.lane.b32.xlu0 %v2307, 127
  %v2311 = vpop.permute.xlu0 %2310
  %2312 = vrot.lane.b32.xlu0 %v2308, 127
  %v2313 = vpop.permute.xlu0 %2312
  %2314 = vrot.lane.b32.xlu0 %v2309, 127
  %v2315 = vpop.permute.xlu0 %2314
  %v2316 = vsel %vm288, %v2311, %v2313
  %v2317 = vsel %vm288, %v2313, %v2315
  %vm2318 = vcmask 64512
  %v2320 = vsel %vm2318, %v2301, 0
  %vm2322 = vcmask 1043456
  %v2324 = vsel %vm2322, %v2316, 0
  %v2327 = vsel %vm2322, %v2317, 0
  %v2330 = vsel %vm2322, %v2315, 0
  %2332 = vmatprep.subr.bf16.mxu0 %v2327
  %2333 = vmatpush1.bf16.msra.mxu0 %v2324
  %2334 = vmatprep.subr.bf16.mxu0 0
  %2335 = vmatpush1.bf16.msra.mxu0 0
  %2336 = vmatprep.subr.bf16.mxu0 0
  %2337 = vmatpush1.bf16.msra.mxu0 0
  %2338 = vmatprep.subr.bf16.mxu0 0
  %2339 = vmatpush1.bf16.msra.mxu0 0
  %2340 = vmatprep.subr.bf16.mxu0 0
  %2341 = vmatpush1.bf16.msra.mxu0 0
  %2342 = vmatprep.subr.bf16.mxu0 0
  %2343 = vmatpush1.bf16.msra.mxu0 0
  %2344 = vmatprep.subr.bf16.mxu0 0
  %2345 = vmatpush1.bf16.msra.mxu0 0
  %2346 = vmatprep.subr.bf16.mxu0 0
  %2347 = vmatpush1.bf16.msra.mxu0 0
  %2348 = vmatprep.subr.bf16.mxu0 0
  %2349 = vmatpush1.bf16.msra.mxu0 0
  %2350 = vmatprep.subr.bf16.mxu0 0
  %2351 = vmatpush1.bf16.msra.mxu0 0
  %2352 = vmatprep.subr.bf16.mxu0 0
  %2353 = vmatpush1.bf16.msra.mxu0 0
  %2354 = vmatprep.subr.bf16.mxu0 0
  %2355 = vmatpush1.bf16.msra.mxu0 0
  %2356 = vmatprep.subr.bf16.mxu0 0
  %2357 = vmatpush1.bf16.msra.mxu0 0
  %2358 = vmatprep.subr.bf16.mxu0 0
  %2359 = vmatpush1.bf16.msra.mxu0 0
  %2360 = vmatprep.subr.bf16.mxu0 0
  %2361 = vmatpush1.bf16.msra.mxu0 0
  %2362 = vmatprep.subr.bf16.mxu0 0
  %2363 = vmatpush1.bf16.msra.mxu0 0
  %2364 = vmatprep.mubr.bf16.mxu0 0
  %2365 = vmatmul.mubr.bf16.gmra.mrb[0].mxu0 %v2320
  %v2366 = vpop.f32.mrb[0].mxu0
  %v2367 = vadd.f32 0.0, %v2366
  %v2368 = vpop.f32.mrb[0].mxu0
  %v2369 = vadd.f32 0.0, %v2368
  %v2370 = vpop.f32.mrb[0].mxu0
  %v2371 = vpop.f32.mrb[0].mxu0
  %2372 = vdwg.mxu0
  %2373 = vmatprep.subr.bf16.mxu0 0
  %2374 = vmatpush1.bf16.msra.mxu0 %v2330
  %2375 = vmatprep.subr.bf16.mxu0 0
  %2376 = vmatpush1.bf16.msra.mxu0 0
  %2377 = vmatprep.subr.bf16.mxu0 0
  %2378 = vmatpush1.bf16.msra.mxu0 0
  %2379 = vmatprep.subr.bf16.mxu0 0
  %2380 = vmatpush1.bf16.msra.mxu0 0
  %2381 = vmatprep.subr.bf16.mxu0 0
  %2382 = vmatpush1.bf16.msra.mxu0 0
  %2383 = vmatprep.subr.bf16.mxu0 0
  %2384 = vmatpush1.bf16.msra.mxu0 0
  %2385 = vmatprep.subr.bf16.mxu0 0
  %2386 = vmatpush1.bf16.msra.mxu0 0
  %2387 = vmatprep.subr.bf16.mxu0 0
  %2388 = vmatpush1.bf16.msra.mxu0 0
  %2389 = vmatprep.subr.bf16.mxu0 0
  %2390 = vmatpush1.bf16.msra.mxu0 0
  %2391 = vmatprep.subr.bf16.mxu0 0
  %2392 = vmatpush1.bf16.msra.mxu0 0
  %2393 = vmatprep.subr.bf16.mxu0 0
  %2394 = vmatpush1.bf16.msra.mxu0 0
  %2395 = vmatprep.subr.bf16.mxu0 0
  %2396 = vmatpush1.bf16.msra.mxu0 0
  %2397 = vmatprep.subr.bf16.mxu0 0
  %2398 = vmatpush1.bf16.msra.mxu0 0
  %2399 = vmatprep.subr.bf16.mxu0 0
  %2400 = vmatpush1.bf16.msra.mxu0 0
  %2401 = vmatprep.subr.bf16.mxu0 0
  %2402 = vmatpush1.bf16.msra.mxu0 0
  %2403 = vmatprep.subr.bf16.mxu0 0
  %2404 = vmatpush1.bf16.msra.mxu0 0
  %2405 = vmatprep.mubr.bf16.mxu0 0
  %2406 = vmatmul.mubr.bf16.gmra.mrb[0].mxu0 %v2320
  %v2407 = vpop.f32.mrb[0].mxu0
  %v2408 = vadd.f32 0.0, %v2407
  %v2409 = vpop.f32.mrb[0].mxu0
  %v2410 = vpop.f32.mrb[0].mxu0
  %v2411 = vpop.f32.mrb[0].mxu0
  %2412 = vdwg.mxu0
  %v2414 = vsel %vm2318, %v256, 0
  %v2417 = vsel %vm2322, %v2307, 0
  %v2420 = vsel %vm2322, %v2308, 0
  %v2423 = vsel %vm2322, %v2309, 0
  %2425 = vmatprep.subr.bf16.mxu0 %v2420
  %2426 = vmatpush1.bf16.msra.mxu0 %v2417
  %2427 = vmatprep.subr.bf16.mxu0 0
  %2428 = vmatpush1.bf16.msra.mxu0 0
  %2429 = vmatprep.subr.bf16.mxu0 0
  %2430 = vmatpush1.bf16.msra.mxu0 0
  %2431 = vmatprep.subr.bf16.mxu0 0
  %2432 = vmatpush1.bf16.msra.mxu0 0
  %2433 = vmatprep.subr.bf16.mxu0 0
  %2434 = vmatpush1.bf16.msra.mxu0 0
  %2435 = vmatprep.subr.bf16.mxu0 0
  %2436 = vmatpush1.bf16.msra.mxu0 0
  %2437 = vmatprep.subr.bf16.mxu0 0
  %2438 = vmatpush1.bf16.msra.mxu0 0
  %2439 = vmatprep.subr.bf16.mxu0 0
  %2440 = vmatpush1.bf16.msra.mxu0 0
  %2441 = vmatprep.subr.bf16.mxu0 0
  %2442 = vmatpush1.bf16.msra.mxu0 0
  %2443 = vmatprep.subr.bf16.mxu0 0
  %2444 = vmatpush1.bf16.msra.mxu0 0
  %2445 = vmatprep.subr.bf16.mxu0 0
  %2446 = vmatpush1.bf16.msra.mxu0 0
  %2447 = vmatprep.subr.bf16.mxu0 0
  %2448 = vmatpush1.bf16.msra.mxu0 0
  %2449 = vmatprep.subr.bf16.mxu0 0
  %2450 = vmatpush1.bf16.msra.mxu0 0
  %2451 = vmatprep.subr.bf16.mxu0 0
  %2452 = vmatpush1.bf16.msra.mxu0 0
  %2453 = vmatprep.subr.bf16.mxu0 0
  %2454 = vmatpush1.bf16.msra.mxu0 0
  %2455 = vmatprep.subr.bf16.mxu0 0
  %2456 = vmatpush1.bf16.msra.mxu0 0
  %2457 = vmatprep.mubr.bf16.mxu0 0
  %2458 = vmatmul.mubr.bf16.gmra.mrb[0].mxu0 %v2414
  %v2459 = vpop.f32.mrb[0].mxu0
  %v2460 = vadd.f32 %v2367, %v2459
  %v2461 = vpop.f32.mrb[0].mxu0
  %v2462 = vadd.f32 %v2369, %v2461
  %v2463 = vpop.f32.mrb[0].mxu0
  %v2464 = vpop.f32.mrb[0].mxu0
  %2465 = vdwg.mxu0
  %2466 = vmatprep.subr.bf16.mxu0 0
  %2467 = vmatpush1.bf16.msra.mxu0 %v2423
  %2468 = vmatprep.subr.bf16.mxu0 0
  %2469 = vmatpush1.bf16.msra.mxu0 0
  %2470 = vmatprep.subr.bf16.mxu0 0
  %2471 = vmatpush1.bf16.msra.mxu0 0
  %2472 = vmatprep.subr.bf16.mxu0 0
  %2473 = vmatpush1.bf16.msra.mxu0 0
  %2474 = vmatprep.subr.bf16.mxu0 0
  %2475 = vmatpush1.bf16.msra.mxu0 0
  %2476 = vmatprep.subr.bf16.mxu0 0
  %2477 = vmatpush1.bf16.msra.mxu0 0
  %2478 = vmatprep.subr.bf16.mxu0 0
  %2479 = vmatpush1.bf16.msra.mxu0 0
  %2480 = vmatprep.subr.bf16.mxu0 0
  %2481 = vmatpush1.bf16.msra.mxu0 0
  %2482 = vmatprep.subr.bf16.mxu0 0
  %2483 = vmatpush1.bf16.msra.mxu0 0
  %2484 = vmatprep.subr.bf16.mxu0 0
  %2485 = vmatpush1.bf16.msra.mxu0 0
  %2486 = vmatprep.subr.bf16.mxu0 0
  %2487 = vmatpush1.bf16.msra.mxu0 0
  %2488 = vmatprep.subr.bf16.mxu0 0
  %2489 = vmatpush1.bf16.msra.mxu0 0
  %2490 = vmatprep.subr.bf16.mxu0 0
  %2491 = vmatpush1.bf16.msra.mxu0 0
  %2492 = vmatprep.subr.bf16.mxu0 0
  %2493 = vmatpush1.bf16.msra.mxu0 0
  %2494 = vmatprep.subr.bf16.mxu0 0
  %2495 = vmatpush1.bf16.msra.mxu0 0
  %2496 = vmatprep.subr.bf16.mxu0 0
  %2497 = vmatpush1.bf16.msra.mxu0 0
  %2498 = vmatprep.mubr.bf16.mxu0 0
  %2499 = vmatmul.mubr.bf16.gmra.mrb[0].mxu0 %v2414
  %v2500 = vpop.f32.mrb[0].mxu0
  %v2501 = vadd.f32 %v2408, %v2500
  %v2502 = vpop.f32.mrb[0].mxu0
  %v2503 = vpop.f32.mrb[0].mxu0
  %v2504 = vpop.f32.mrb[0].mxu0
  %2505 = vdwg.mxu0
  %2506 = vrot.lane.b32.xlu0 %v2299, 112
  %v2507 = vpop.permute.xlu0 %2506
  %2508 = vrot.lane.b32.xlu0 %v2307, 126
  %v2509 = vpop.permute.xlu0 %2508
  %2510 = vrot.lane.b32.xlu0 %v2308, 126
  %v2511 = vpop.permute.xlu0 %2510
  %2512 = vrot.lane.b32.xlu0 %v2309, 126
  %v2513 = vpop.permute.xlu0 %2512
  %v2514 = vsel %vm486, %v2509, %v2511
  %v2515 = vsel %vm486, %v2511, %v2513
  %v2517 = vsel %vm2318, %v2507, 0
  %v2520 = vsel %vm2322, %v2514, 0
  %v2523 = vsel %vm2322, %v2515, 0
  %v2526 = vsel %vm2322, %v2513, 0
  %2528 = vmatprep.subr.bf16.mxu0 %v2523
  %2529 = vmatpush1.bf16.msra.mxu0 %v2520
  %2530 = vmatprep.subr.bf16.mxu0 0
  %2531 = vmatpush1.bf16.msra.mxu0 0
  %2532 = vmatprep.subr.bf16.mxu0 0
  %2533 = vmatpush1.bf16.msra.mxu0 0
  %2534 = vmatprep.subr.bf16.mxu0 0
  %2535 = vmatpush1.bf16.msra.mxu0 0
  %2536 = vmatprep.subr.bf16.mxu0 0
  %2537 = vmatpush1.bf16.msra.mxu0 0
  %2538 = vmatprep.subr.bf16.mxu0 0
  %2539 = vmatpush1.bf16.msra.mxu0 0
  %2540 = vmatprep.subr.bf16.mxu0 0
  %2541 = vmatpush1.bf16.msra.mxu0 0
  %2542 = vmatprep.subr.bf16.mxu0 0
  %2543 = vmatpush1.bf16.msra.mxu0 0
  %2544 = vmatprep.subr.bf16.mxu0 0
  %2545 = vmatpush1.bf16.msra.mxu0 0
  %2546 = vmatprep.subr.bf16.mxu0 0
  %2547 = vmatpush1.bf16.msra.mxu0 0
  %2548 = vmatprep.subr.bf16.mxu0 0
  %2549 = vmatpush1.bf16.msra.mxu0 0
  %2550 = vmatprep.subr.bf16.mxu0 0
  %2551 = vmatpush1.bf16.msra.mxu0 0
  %2552 = vmatprep.subr.bf16.mxu0 0
  %2553 = vmatpush1.bf16.msra.mxu0 0
  %2554 = vmatprep.subr.bf16.mxu0 0
  %2555 = vmatpush1.bf16.msra.mxu0 0
  %2556 = vmatprep.subr.bf16.mxu0 0
  %2557 = vmatpush1.bf16.msra.mxu0 0
  %2558 = vmatprep.subr.bf16.mxu0 0
  %2559 = vmatpush1.bf16.msra.mxu0 0
  %2560 = vmatprep.mubr.bf16.mxu0 0
  %2561 = vmatmul.mubr.bf16.gmra.mrb[0].mxu0 %v2517
  %v2562 = vpop.f32.mrb[0].mxu0
  %v2563 = vadd.f32 0.0, %v2562
  %v2564 = vpop.f32.mrb[0].mxu0
  %v2565 = vadd.f32 0.0, %v2564
  %v2566 = vpop.f32.mrb[0].mxu0
  %v2567 = vpop.f32.mrb[0].mxu0
  %2568 = vdwg.mxu0
  %2569 = vmatprep.subr.bf16.mxu0 0
  %2570 = vmatpush1.bf16.msra.mxu0 %v2526
  %2571 = vmatprep.subr.bf16.mxu0 0
  %2572 = vmatpush1.bf16.msra.mxu0 0
  %2573 = vmatprep.subr.bf16.mxu0 0
  %2574 = vmatpush1.bf16.msra.mxu0 0
  %2575 = vmatprep.subr.bf16.mxu0 0
  %2576 = vmatpush1.bf16.msra.mxu0 0
  %2577 = vmatprep.subr.bf16.mxu0 0
  %2578 = vmatpush1.bf16.msra.mxu0 0
  %2579 = vmatprep.subr.bf16.mxu0 0
  %2580 = vmatpush1.bf16.msra.mxu0 0
  %2581 = vmatprep.subr.bf16.mxu0 0
  %2582 = vmatpush1.bf16.msra.mxu0 0
  %2583 = vmatprep.subr.bf16.mxu0 0
  %2584 = vmatpush1.bf16.msra.mxu0 0
  %2585 = vmatprep.subr.bf16.mxu0 0
  %2586 = vmatpush1.bf16.msra.mxu0 0
  %2587 = vmatprep.subr.bf16.mxu0 0
  %2588 = vmatpush1.bf16.msra.mxu0 0
  %2589 = vmatprep.subr.bf16.mxu0 0
  %2590 = vmatpush1.bf16.msra.mxu0 0
  %2591 = vmatprep.subr.bf16.mxu0 0
  %2592 = vmatpush1.bf16.msra.mxu0 0
  %2593 = vmatprep.subr.bf16.mxu0 0
  %2594 = vmatpush1.bf16.msra.mxu0 0
  %2595 = vmatprep.subr.bf16.mxu0 0
  %2596 = vmatpush1.bf16.msra.mxu0 0
  %2597 = vmatprep.subr.bf16.mxu0 0
  %2598 = vmatpush1.bf16.msra.mxu0 0
  %2599 = vmatprep.subr.bf16.mxu0 0
  %2600 = vmatpush1.bf16.msra.mxu0 0
  %2601 = vmatprep.mubr.bf16.mxu0 0
  %2602 = vmatmul.mubr.bf16.gmra.mrb[0].mxu0 %v2517
  %v2603 = vpop.f32.mrb[0].mxu0
  %v2604 = vadd.f32 0.0, %v2603
  %v2605 = vpop.f32.mrb[0].mxu0
  %v2606 = vpop.f32.mrb[0].mxu0
  %v2607 = vpop.f32.mrb[0].mxu0
  %2608 = vdwg.mxu0
  %v2609 = vadd.f32 %v2460, %v2563
  %v2610 = vadd.f32 %v2462, %v2565
  %v2611 = vadd.f32 %v2501, %v2604
  %2612 = vrot.lane.b32.xlu0 %v2299, 104
  %v2613 = vpop.permute.xlu0 %2612
  %2614 = vrot.lane.b32.xlu0 %v2307, 110
  %v2615 = vpop.permute.xlu0 %2614
  %2616 = vrot.lane.b32.xlu0 %v2308, 110
  %v2617 = vpop.permute.xlu0 %2616
  %2618 = vrot.lane.b32.xlu0 %v2309, 110
  %v2619 = vpop.permute.xlu0 %2618
  %v2620 = vsel %vm593, %v2615, %v2617
  %v2621 = vsel %vm593, %v2617, %v2619
  %v2623 = vsel %vm2318, %v2613, 0
  %v2626 = vsel %vm2322, %v2620, 0
  %v2629 = vsel %vm2322, %v2621, 0
  %v2632 = vsel %vm2322, %v2619, 0
  %2634 = vmatprep.subr.bf16.mxu0 %v2629
  %2635 = vmatpush1.bf16.msra.mxu0 %v2626
  %2636 = vmatprep.subr.bf16.mxu0 0
  %2637 = vmatpush1.bf16.msra.mxu0 0
  %2638 = vmatprep.subr.bf16.mxu0 0
  %2639 = vmatpush1.bf16.msra.mxu0 0
  %2640 = vmatprep.subr.bf16.mxu0 0
  %2641 = vmatpush1.bf16.msra.mxu0 0
  %2642 = vmatprep.subr.bf16.mxu0 0
  %2643 = vmatpush1.bf16.msra.mxu0 0
  %2644 = vmatprep.subr.bf16.mxu0 0
  %2645 = vmatpush1.bf16.msra.mxu0 0
  %2646 = vmatprep.subr.bf16.mxu0 0
  %2647 = vmatpush1.bf16.msra.mxu0 0
  %2648 = vmatprep.subr.bf16.mxu0 0
  %2649 = vmatpush1.bf16.msra.mxu0 0
  %2650 = vmatprep.subr.bf16.mxu0 0
  %2651 = vmatpush1.bf16.msra.mxu0 0
  %2652 = vmatprep.subr.bf16.mxu0 0
  %2653 = vmatpush1.bf16.msra.mxu0 0
  %2654 = vmatprep.subr.bf16.mxu0 0
  %2655 = vmatpush1.bf16.msra.mxu0 0
  %2656 = vmatprep.subr.bf16.mxu0 0
  %2657 = vmatpush1.bf16.msra.mxu0 0
  %2658 = vmatprep.subr.bf16.mxu0 0
  %2659 = vmatpush1.bf16.msra.mxu0 0
  %2660 = vmatprep.subr.bf16.mxu0 0
  %2661 = vmatpush1.bf16.msra.mxu0 0
  %2662 = vmatprep.subr.bf16.mxu0 0
  %2663 = vmatpush1.bf16.msra.mxu0 0
  %2664 = vmatprep.subr.bf16.mxu0 0
  %2665 = vmatpush1.bf16.msra.mxu0 0
  %2666 = vmatprep.mubr.bf16.mxu0 0
  %2667 = vmatmul.mubr.bf16.gmra.mrb[0].mxu0 %v2623
  %v2668 = vpop.f32.mrb[0].mxu0
  %v2669 = vadd.f32 0.0, %v2668
  %v2670 = vpop.f32.mrb[0].mxu0
  %v2671 = vadd.f32 0.0, %v2670
  %v2672 = vpop.f32.mrb[0].mxu0
  %v2673 = vpop.f32.mrb[0].mxu0
  %2674 = vdwg.mxu0
  %2675 = vmatprep.subr.bf16.mxu0 0
  %2676 = vmatpush1.bf16.msra.mxu0 %v2632
  %2677 = vmatprep.subr.bf16.mxu0 0
  %2678 = vmatpush1.bf16.msra.mxu0 0
  %2679 = vmatprep.subr.bf16.mxu0 0
  %2680 = vmatpush1.bf16.msra.mxu0 0
  %2681 = vmatprep.subr.bf16.mxu0 0
  %2682 = vmatpush1.bf16.msra.mxu0 0
  %2683 = vmatprep.subr.bf16.mxu0 0
  %2684 = vmatpush1.bf16.msra.mxu0 0
  %2685 = vmatprep.subr.bf16.mxu0 0
  %2686 = vmatpush1.bf16.msra.mxu0 0
  %2687 = vmatprep.subr.bf16.mxu0 0
  %2688 = vmatpush1.bf16.msra.mxu0 0
  %2689 = vmatprep.subr.bf16.mxu0 0
  %2690 = vmatpush1.bf16.msra.mxu0 0
  %2691 = vmatprep.subr.bf16.mxu0 0
  %2692 = vmatpush1.bf16.msra.mxu0 0
  %2693 = vmatprep.subr.bf16.mxu0 0
  %2694 = vmatpush1.bf16.msra.mxu0 0
  %2695 = vmatprep.subr.bf16.mxu0 0
  %2696 = vmatpush1.bf16.msra.mxu0 0
  %2697 = vmatprep.subr.bf16.mxu0 0
  %2698 = vmatpush1.bf16.msra.mxu0 0
  %2699 = vmatprep.subr.bf16.mxu0 0
  %2700 = vmatpush1.bf16.msra.mxu0 0
  %2701 = vmatprep.subr.bf16.mxu0 0
  %2702 = vmatpush1.bf16.msra.mxu0 0
  %2703 = vmatprep.subr.bf16.mxu0 0
  %2704 = vmatpush1.bf16.msra.mxu0 0
  %2705 = vmatprep.subr.bf16.mxu0 0
  %2706 = vmatpush1.bf16.msra.mxu0 0
  %2707 = vmatprep.mubr.bf16.mxu0 0
  %2708 = vmatmul.mubr.bf16.gmra.mrb[0].mxu0 %v2623
  %v2709 = vpop.f32.mrb[0].mxu0
  %v2710 = vadd.f32 0.0, %v2709
  %v2711 = vpop.f32.mrb[0].mxu0
  %v2712 = vpop.f32.mrb[0].mxu0
  %v2713 = vpop.f32.mrb[0].mxu0
  %2714 = vdwg.mxu0
  %v2715 = vadd.f32 %v2609, %v2669
  %v2716 = vadd.f32 %v2610, %v2671
  %v2717 = vadd.f32 %v2611, %v2710
  %2718 = vrot.lane.b32.xlu0 %v2299, 96
  %v2719 = vpop.permute.xlu0 %2718
  %2720 = vrot.lane.b32.xlu0 %v2307, 109
  %v2721 = vpop.permute.xlu0 %2720
  %2722 = vrot.lane.b32.xlu0 %v2308, 109
  %v2723 = vpop.permute.xlu0 %2722
  %2724 = vrot.lane.b32.xlu0 %v2309, 109
  %v2725 = vpop.permute.xlu0 %2724
  %v2726 = vsel %vm700, %v2721, %v2723
  %v2727 = vsel %vm700, %v2723, %v2725
  %v2729 = vsel %vm2318, %v2719, 0
  %v2732 = vsel %vm2322, %v2726, 0
  %v2735 = vsel %vm2322, %v2727, 0
  %v2738 = vsel %vm2322, %v2725, 0
  %2740 = vmatprep.subr.bf16.mxu0 %v2735
  %2741 = vmatpush1.bf16.msra.mxu0 %v2732
  %2742 = vmatprep.subr.bf16.mxu0 0
  %2743 = vmatpush1.bf16.msra.mxu0 0
  %2744 = vmatprep.subr.bf16.mxu0 0
  %2745 = vmatpush1.bf16.msra.mxu0 0
  %2746 = vmatprep.subr.bf16.mxu0 0
  %2747 = vmatpush1.bf16.msra.mxu0 0
  %2748 = vmatprep.subr.bf16.mxu0 0
  %2749 = vmatpush1.bf16.msra.mxu0 0
  %2750 = vmatprep.subr.bf16.mxu0 0
  %2751 = vmatpush1.bf16.msra.mxu0 0
  %2752 = vmatprep.subr.bf16.mxu0 0
  %2753 = vmatpush1.bf16.msra.mxu0 0
  %2754 = vmatprep.subr.bf16.mxu0 0
  %2755 = vmatpush1.bf16.msra.mxu0 0
  %2756 = vmatprep.subr.bf16.mxu0 0
  %2757 = vmatpush1.bf16.msra.mxu0 0
  %2758 = vmatprep.subr.bf16.mxu0 0
  %2759 = vmatpush1.bf16.msra.mxu0 0
  %2760 = vmatprep.subr.bf16.mxu0 0
  %2761 = vmatpush1.bf16.msra.mxu0 0
  %2762 = vmatprep.subr.bf16.mxu0 0
  %2763 = vmatpush1.bf16.msra.mxu0 0
  %2764 = vmatprep.subr.bf16.mxu0 0
  %2765 = vmatpush1.bf16.msra.mxu0 0
  %2766 = vmatprep.subr.bf16.mxu0 0
  %2767 = vmatpush1.bf16.msra.mxu0 0
  %2768 = vmatprep.subr.bf16.mxu0 0
  %2769 = vmatpush1.bf16.msra.mxu0 0
  %2770 = vmatprep.subr.bf16.mxu0 0
  %2771 = vmatpush1.bf16.msra.mxu0 0
  %2772 = vmatprep.mubr.bf16.mxu0 0
  %2773 = vmatmul.mubr.bf16.gmra.mrb[0].mxu0 %v2729
  %v2774 = vpop.f32.mrb[0].mxu0
  %v2775 = vadd.f32 0.0, %v2774
  %v2776 = vpop.f32.mrb[0].mxu0
  %v2777 = vadd.f32 0.0, %v2776
  %v2778 = vpop.f32.mrb[0].mxu0
  %v2779 = vpop.f32.mrb[0].mxu0
  %2780 = vdwg.mxu0
  %2781 = vmatprep.subr.bf16.mxu0 0
  %2782 = vmatpush1.bf16.msra.mxu0 %v2738
  %2783 = vmatprep.subr.bf16.mxu0 0
  %2784 = vmatpush1.bf16.msra.mxu0 0
  %2785 = vmatprep.subr.bf16.mxu0 0
  %2786 = vmatpush1.bf16.msra.mxu0 0
  %2787 = vmatprep.subr.bf16.mxu0 0
  %2788 = vmatpush1.bf16.msra.mxu0 0
  %2789 = vmatprep.subr.bf16.mxu0 0
  %2790 = vmatpush1.bf16.msra.mxu0 0
  %2791 = vmatprep.subr.bf16.mxu0 0
  %2792 = vmatpush1.bf16.msra.mxu0 0
  %2793 = vmatprep.subr.bf16.mxu0 0
  %2794 = vmatpush1.bf16.msra.mxu0 0
  %2795 = vmatprep.subr.bf16.mxu0 0
  %2796 = vmatpush1.bf16.msra.mxu0 0
  %2797 = vmatprep.subr.bf16.mxu0 0
  %2798 = vmatpush1.bf16.msra.mxu0 0
  %2799 = vmatprep.subr.bf16.mxu0 0
  %2800 = vmatpush1.bf16.msra.mxu0 0
  %2801 = vmatprep.subr.bf16.mxu0 0
  %2802 = vmatpush1.bf16.msra.mxu0 0
  %2803 = vmatprep.subr.bf16.mxu0 0
  %2804 = vmatpush1.bf16.msra.mxu0 0
  %2805 = vmatprep.subr.bf16.mxu0 0
  %2806 = vmatpush1.bf16.msra.mxu0 0
  %2807 = vmatprep.subr.bf16.mxu0 0
  %2808 = vmatpush1.bf16.msra.mxu0 0
  %2809 = vmatprep.subr.bf16.mxu0 0
  %2810 = vmatpush1.bf16.msra.mxu0 0
  %2811 = vmatprep.subr.bf16.mxu0 0
  %2812 = vmatpush1.bf16.msra.mxu0 0
  %2813 = vmatprep.mubr.bf16.mxu0 0
  %2814 = vmatmul.mubr.bf16.gmra.mrb[0].mxu0 %v2729
  %v2815 = vpop.f32.mrb[0].mxu0
  %v2816 = vadd.f32 0.0, %v2815
  %v2817 = vpop.f32.mrb[0].mxu0
  %v2818 = vpop.f32.mrb[0].mxu0
  %v2819 = vpop.f32.mrb[0].mxu0
  %2820 = vdwg.mxu0
  %v2821 = vadd.f32 %v2715, %v2775
  %v2822 = vadd.f32 %v2716, %v2777
  %v2823 = vadd.f32 %v2717, %v2816
  %2824 = vrot.lane.b32.xlu0 %v2299, 88
  %v2825 = vpop.permute.xlu0 %2824
  %2826 = vrot.lane.b32.xlu0 %v2307, 108
  %v2827 = vpop.permute.xlu0 %2826
  %2828 = vrot.lane.b32.xlu0 %v2308, 108
  %v2829 = vpop.permute.xlu0 %2828
  %2830 = vrot.lane.b32.xlu0 %v2309, 108
  %v2831 = vpop.permute.xlu0 %2830
  %v2832 = vsel %vm807, %v2827, %v2829
  %v2833 = vsel %vm807, %v2829, %v2831
  %v2835 = vsel %vm2318, %v2825, 0
  %v2838 = vsel %vm2322, %v2832, 0
  %v2841 = vsel %vm2322, %v2833, 0
  %v2844 = vsel %vm2322, %v2831, 0
  %2846 = vmatprep.subr.bf16.mxu0 %v2841
  %2847 = vmatpush1.bf16.msra.mxu0 %v2838
  %2848 = vmatprep.subr.bf16.mxu0 0
  %2849 = vmatpush1.bf16.msra.mxu0 0
  %2850 = vmatprep.subr.bf16.mxu0 0
  %2851 = vmatpush1.bf16.msra.mxu0 0
  %2852 = vmatprep.subr.bf16.mxu0 0
  %2853 = vmatpush1.bf16.msra.mxu0 0
  %2854 = vmatprep.subr.bf16.mxu0 0
  %2855 = vmatpush1.bf16.msra.mxu0 0
  %2856 = vmatprep.subr.bf16.mxu0 0
  %2857 = vmatpush1.bf16.msra.mxu0 0
  %2858 = vmatprep.subr.bf16.mxu0 0
  %2859 = vmatpush1.bf16.msra.mxu0 0
  %2860 = vmatprep.subr.bf16.mxu0 0
  %2861 = vmatpush1.bf16.msra.mxu0 0
  %2862 = vmatprep.subr.bf16.mxu0 0
  %2863 = vmatpush1.bf16.msra.mxu0 0
  %2864 = vmatprep.subr.bf16.mxu0 0
  %2865 = vmatpush1.bf16.msra.mxu0 0
  %2866 = vmatprep.subr.bf16.mxu0 0
  %2867 = vmatpush1.bf16.msra.mxu0 0
  %2868 = vmatprep.subr.bf16.mxu0 0
  %2869 = vmatpush1.bf16.msra.mxu0 0
  %2870 = vmatprep.subr.bf16.mxu0 0
  %2871 = vmatpush1.bf16.msra.mxu0 0
  %2872 = vmatprep.subr.bf16.mxu0 0
  %2873 = vmatpush1.bf16.msra.mxu0 0
  %2874 = vmatprep.subr.bf16.mxu0 0
  %2875 = vmatpush1.bf16.msra.mxu0 0
  %2876 = vmatprep.subr.bf16.mxu0 0
  %2877 = vmatpush1.bf16.msra.mxu0 0
  %2878 = vmatprep.mubr.bf16.mxu0 0
  %2879 = vmatmul.mubr.bf16.gmra.mrb[0].mxu0 %v2835
  %v2880 = vpop.f32.mrb[0].mxu0
  %v2881 = vadd.f32 0.0, %v2880
  %v2882 = vpop.f32.mrb[0].mxu0
  %v2883 = vadd.f32 0.0, %v2882
  %v2884 = vpop.f32.mrb[0].mxu0
  %v2885 = vpop.f32.mrb[0].mxu0
  %2886 = vdwg.mxu0
  %2887 = vmatprep.subr.bf16.mxu0 0
  %2888 = vmatpush1.bf16.msra.mxu0 %v2844
  %2889 = vmatprep.subr.bf16.mxu0 0
  %2890 = vmatpush1.bf16.msra.mxu0 0
  %2891 = vmatprep.subr.bf16.mxu0 0
  %2892 = vmatpush1.bf16.msra.mxu0 0
  %2893 = vmatprep.subr.bf16.mxu0 0
  %2894 = vmatpush1.bf16.msra.mxu0 0
  %2895 = vmatprep.subr.bf16.mxu0 0
  %2896 = vmatpush1.bf16.msra.mxu0 0
  %2897 = vmatprep.subr.bf16.mxu0 0
  %2898 = vmatpush1.bf16.msra.mxu0 0
  %2899 = vmatprep.subr.bf16.mxu0 0
  %2900 = vmatpush1.bf16.msra.mxu0 0
  %2901 = vmatprep.subr.bf16.mxu0 0
  %2902 = vmatpush1.bf16.msra.mxu0 0
  %2903 = vmatprep.subr.bf16.mxu0 0
  %2904 = vmatpush1.bf16.msra.mxu0 0
  %2905 = vmatprep.subr.bf16.mxu0 0
  %2906 = vmatpush1.bf16.msra.mxu0 0
  %2907 = vmatprep.subr.bf16.mxu0 0
  %2908 = vmatpush1.bf16.msra.mxu0 0
  %2909 = vmatprep.subr.bf16.mxu0 0
  %2910 = vmatpush1.bf16.msra.mxu0 0
  %2911 = vmatprep.subr.bf16.mxu0 0
  %2912 = vmatpush1.bf16.msra.mxu0 0
  %2913 = vmatprep.subr.bf16.mxu0 0
  %2914 = vmatpush1.bf16.msra.mxu0 0
  %2915 = vmatprep.subr.bf16.mxu0 0
  %2916 = vmatpush1.bf16.msra.mxu0 0
  %2917 = vmatprep.subr.bf16.mxu0 0
  %2918 = vmatpush1.bf16.msra.mxu0 0
  %2919 = vmatprep.mubr.bf16.mxu0 0
  %2920 = vmatmul.mubr.bf16.gmra.mrb[0].mxu0 %v2835
  %v2921 = vpop.f32.mrb[0].mxu0
  %v2922 = vadd.f32 0.0, %v2921
  %v2923 = vpop.f32.mrb[0].mxu0
  %v2924 = vpop.f32.mrb[0].mxu0
  %v2925 = vpop.f32.mrb[0].mxu0
  %2926 = vdwg.mxu0
  %v2927 = vadd.f32 %v2821, %v2881
  %v2928 = vadd.f32 %v2822, %v2883
  %v2929 = vadd.f32 %v2823, %v2922
  %2930 = vrot.lane.b32.xlu0 %v2299, 80
  %v2931 = vpop.permute.xlu0 %2930
  %2932 = vrot.lane.b32.xlu0 %v2307, 92
  %v2933 = vpop.permute.xlu0 %2932
  %2934 = vrot.lane.b32.xlu0 %v2308, 92
  %v2935 = vpop.permute.xlu0 %2934
  %2936 = vrot.lane.b32.xlu0 %v2309, 92
  %v2937 = vpop.permute.xlu0 %2936
  %v2938 = vsel %vm914, %v2933, %v2935
  %v2939 = vsel %vm914, %v2935, %v2937
  %v2941 = vsel %vm2318, %v2931, 0
  %v2944 = vsel %vm2322, %v2938, 0
  %v2947 = vsel %vm2322, %v2939, 0
  %v2950 = vsel %vm2322, %v2937, 0
  %2952 = vmatprep.subr.bf16.mxu0 %v2947
  %2953 = vmatpush1.bf16.msra.mxu0 %v2944
  %2954 = vmatprep.subr.bf16.mxu0 0
  %2955 = vmatpush1.bf16.msra.mxu0 0
  %2956 = vmatprep.subr.bf16.mxu0 0
  %2957 = vmatpush1.bf16.msra.mxu0 0
  %2958 = vmatprep.subr.bf16.mxu0 0
  %2959 = vmatpush1.bf16.msra.mxu0 0
  %2960 = vmatprep.subr.bf16.mxu0 0
  %2961 = vmatpush1.bf16.msra.mxu0 0
  %2962 = vmatprep.subr.bf16.mxu0 0
  %2963 = vmatpush1.bf16.msra.mxu0 0
  %2964 = vmatprep.subr.bf16.mxu0 0
  %2965 = vmatpush1.bf16.msra.mxu0 0
  %2966 = vmatprep.subr.bf16.mxu0 0
  %2967 = vmatpush1.bf16.msra.mxu0 0
  %2968 = vmatprep.subr.bf16.mxu0 0
  %2969 = vmatpush1.bf16.msra.mxu0 0
  %2970 = vmatprep.subr.bf16.mxu0 0
  %2971 = vmatpush1.bf16.msra.mxu0 0
  %2972 = vmatprep.subr.bf16.mxu0 0
  %2973 = vmatpush1.bf16.msra.mxu0 0
  %2974 = vmatprep.subr.bf16.mxu0 0
  %2975 = vmatpush1.bf16.msra.mxu0 0
  %2976 = vmatprep.subr.bf16.mxu0 0
  %2977 = vmatpush1.bf16.msra.mxu0 0
  %2978 = vmatprep.subr.bf16.mxu0 0
  %2979 = vmatpush1.bf16.msra.mxu0 0
  %2980 = vmatprep.subr.bf16.mxu0 0
  %2981 = vmatpush1.bf16.msra.mxu0 0
  %2982 = vmatprep.subr.bf16.mxu0 0
  %2983 = vmatpush1.bf16.msra.mxu0 0
  %2984 = vmatprep.mubr.bf16.mxu0 0
  %2985 = vmatmul.mubr.bf16.gmra.mrb[0].mxu0 %v2941
  %v2986 = vpop.f32.mrb[0].mxu0
  %v2987 = vadd.f32 0.0, %v2986
  %v2988 = vpop.f32.mrb[0].mxu0
  %v2989 = vadd.f32 0.0, %v2988
  %v2990 = vpop.f32.mrb[0].mxu0
  %v2991 = vpop.f32.mrb[0].mxu0
  %2992 = vdwg.mxu0
  %2993 = vmatprep.subr.bf16.mxu0 0
  %2994 = vmatpush1.bf16.msra.mxu0 %v2950
  %2995 = vmatprep.subr.bf16.mxu0 0
  %2996 = vmatpush1.bf16.msra.mxu0 0
  %2997 = vmatprep.subr.bf16.mxu0 0
  %2998 = vmatpush1.bf16.msra.mxu0 0
  %2999 = vmatprep.subr.bf16.mxu0 0
  %3000 = vmatpush1.bf16.msra.mxu0 0
  %3001 = vmatprep.subr.bf16.mxu0 0
  %3002 = vmatpush1.bf16.msra.mxu0 0
  %3003 = vmatprep.subr.bf16.mxu0 0
  %3004 = vmatpush1.bf16.msra.mxu0 0
  %3005 = vmatprep.subr.bf16.mxu0 0
  %3006 = vmatpush1.bf16.msra.mxu0 0
  %3007 = vmatprep.subr.bf16.mxu0 0
  %3008 = vmatpush1.bf16.msra.mxu0 0
  %3009 = vmatprep.subr.bf16.mxu0 0
  %3010 = vmatpush1.bf16.msra.mxu0 0
  %3011 = vmatprep.subr.bf16.mxu0 0
  %3012 = vmatpush1.bf16.msra.mxu0 0
  %3013 = vmatprep.subr.bf16.mxu0 0
  %3014 = vmatpush1.bf16.msra.mxu0 0
  %3015 = vmatprep.subr.bf16.mxu0 0
  %3016 = vmatpush1.bf16.msra.mxu0 0
  %3017 = vmatprep.subr.bf16.mxu0 0
  %3018 = vmatpush1.bf16.msra.mxu0 0
  %3019 = vmatprep.subr.bf16.mxu0 0
  %3020 = vmatpush1.bf16.msra.mxu0 0
  %3021 = vmatprep.subr.bf16.mxu0 0
  %3022 = vmatpush1.bf16.msra.mxu0 0
  %3023 = vmatprep.subr.bf16.mxu0 0
  %3024 = vmatpush1.bf16.msra.mxu0 0
  %3025 = vmatprep.mubr.bf16.mxu0 0
  %3026 = vmatmul.mubr.bf16.gmra.mrb[0].mxu0 %v2941
  %v3027 = vpop.f32.mrb[0].mxu0
  %v3028 = vadd.f32 0.0, %v3027
  %v3029 = vpop.f32.mrb[0].mxu0
  %v3030 = vpop.f32.mrb[0].mxu0
  %v3031 = vpop.f32.mrb[0].mxu0
  %3032 = vdwg.mxu0
  %v3033 = vadd.f32 %v2927, %v2987
  %v3034 = vadd.f32 %v2928, %v2989
  %v3035 = vadd.f32 %v2929, %v3028
  %3036 = vrot.lane.b32.xlu0 %v2299, 72
  %v3037 = vpop.permute.xlu0 %3036
  %3038 = vrot.lane.b32.xlu0 %v2307, 91
  %v3039 = vpop.permute.xlu0 %3038
  %3040 = vrot.lane.b32.xlu0 %v2308, 91
  %v3041 = vpop.permute.xlu0 %3040
  %3042 = vrot.lane.b32.xlu0 %v2309, 91
  %v3043 = vpop.permute.xlu0 %3042
  %v3044 = vsel %vm1021, %v3039, %v3041
  %v3045 = vsel %vm1021, %v3041, %v3043
  %v3047 = vsel %vm2318, %v3037, 0
  %v3050 = vsel %vm2322, %v3044, 0
  %v3053 = vsel %vm2322, %v3045, 0
  %v3056 = vsel %vm2322, %v3043, 0
  %3058 = vmatprep.subr.bf16.mxu0 %v3053
  %3059 = vmatpush1.bf16.msra.mxu0 %v3050
  %3060 = vmatprep.subr.bf16.mxu0 0
  %3061 = vmatpush1.bf16.msra.mxu0 0
  %3062 = vmatprep.subr.bf16.mxu0 0
  %3063 = vmatpush1.bf16.msra.mxu0 0
  %3064 = vmatprep.subr.bf16.mxu0 0
  %3065 = vmatpush1.bf16.msra.mxu0 0
  %3066 = vmatprep.subr.bf16.mxu0 0
  %3067 = vmatpush1.bf16.msra.mxu0 0
  %3068 = vmatprep.subr.bf16.mxu0 0
  %3069 = vmatpush1.bf16.msra.mxu0 0
  %3070 = vmatprep.subr.bf16.mxu0 0
  %3071 = vmatpush1.bf16.msra.mxu0 0
  %3072 = vmatprep.subr.bf16.mxu0 0
  %3073 = vmatpush1.bf16.msra.mxu0 0
  %3074 = vmatprep.subr.bf16.mxu0 0
  %3075 = vmatpush1.bf16.msra.mxu0 0
  %3076 = vmatprep.subr.bf16.mxu0 0
  %3077 = vmatpush1.bf16.msra.mxu0 0
  %3078 = vmatprep.subr.bf16.mxu0 0
  %3079 = vmatpush1.bf16.msra.mxu0 0
  %3080 = vmatprep.subr.bf16.mxu0 0
  %3081 = vmatpush1.bf16.msra.mxu0 0
  %3082 = vmatprep.subr.bf16.mxu0 0
  %3083 = vmatpush1.bf16.msra.mxu0 0
  %3084 = vmatprep.subr.bf16.mxu0 0
  %3085 = vmatpush1.bf16.msra.mxu0 0
  %3086 = vmatprep.subr.bf16.mxu0 0
  %3087 = vmatpush1.bf16.msra.mxu0 0
  %3088 = vmatprep.subr.bf16.mxu0 0
  %3089 = vmatpush1.bf16.msra.mxu0 0
  %3090 = vmatprep.mubr.bf16.mxu0 0
  %3091 = vmatmul.mubr.bf16.gmra.mrb[0].mxu0 %v3047
  %v3092 = vpop.f32.mrb[0].mxu0
  %v3093 = vadd.f32 0.0, %v3092
  %v3094 = vpop.f32.mrb[0].mxu0
  %v3095 = vadd.f32 0.0, %v3094
  %v3096 = vpop.f32.mrb[0].mxu0
  %v3097 = vpop.f32.mrb[0].mxu0
  %3098 = vdwg.mxu0
  %3099 = vmatprep.subr.bf16.mxu0 0
  %3100 = vmatpush1.bf16.msra.mxu0 %v3056
  %3101 = vmatprep.subr.bf16.mxu0 0
  %3102 = vmatpush1.bf16.msra.mxu0 0
  %3103 = vmatprep.subr.bf16.mxu0 0
  %3104 = vmatpush1.bf16.msra.mxu0 0
  %3105 = vmatprep.subr.bf16.mxu0 0
  %3106 = vmatpush1.bf16.msra.mxu0 0
  %3107 = vmatprep.subr.bf16.mxu0 0
  %3108 = vmatpush1.bf16.msra.mxu0 0
  %3109 = vmatprep.subr.bf16.mxu0 0
  %3110 = vmatpush1.bf16.msra.mxu0 0
  %3111 = vmatprep.subr.bf16.mxu0 0
  %3112 = vmatpush1.bf16.msra.mxu0 0
  %3113 = vmatprep.subr.bf16.mxu0 0
  %3114 = vmatpush1.bf16.msra.mxu0 0
  %3115 = vmatprep.subr.bf16.mxu0 0
  %3116 = vmatpush1.bf16.msra.mxu0 0
  %3117 = vmatprep.subr.bf16.mxu0 0
  %3118 = vmatpush1.bf16.msra.mxu0 0
  %3119 = vmatprep.subr.bf16.mxu0 0
  %3120 = vmatpush1.bf16.msra.mxu0 0
  %3121 = vmatprep.subr.bf16.mxu0 0
  %3122 = vmatpush1.bf16.msra.mxu0 0
  %3123 = vmatprep.subr.bf16.mxu0 0
  %3124 = vmatpush1.bf16.msra.mxu0 0
  %3125 = vmatprep.subr.bf16.mxu0 0
  %3126 = vmatpush1.bf16.msra.mxu0 0
  %3127 = vmatprep.subr.bf16.mxu0 0
  %3128 = vmatpush1.bf16.msra.mxu0 0
  %3129 = vmatprep.subr.bf16.mxu0 0
  %3130 = vmatpush1.bf16.msra.mxu0 0
  %3131 = vmatprep.mubr.bf16.mxu0 0
  %3132 = vmatmul.mubr.bf16.gmra.mrb[0].mxu0 %v3047
  %v3133 = vpop.f32.mrb[0].mxu0
  %v3134 = vadd.f32 0.0, %v3133
  %v3135 = vpop.f32.mrb[0].mxu0
  %v3136 = vpop.f32.mrb[0].mxu0
  %v3137 = vpop.f32.mrb[0].mxu0
  %3138 = vdwg.mxu0
  %v3139 = vadd.f32 %v3033, %v3093
  %v3140 = vadd.f32 %v3034, %v3095
  %v3141 = vadd.f32 %v3035, %v3134
  %3142 = vrot.lane.b32.xlu0 %v2299, 64
  %v3143 = vpop.permute.xlu0 %3142
  %3144 = vrot.lane.b32.xlu0 %v2307, 90
  %v3145 = vpop.permute.xlu0 %3144
  %3146 = vrot.lane.b32.xlu0 %v2308, 90
  %v3147 = vpop.permute.xlu0 %3146
  %3148 = vrot.lane.b32.xlu0 %v2309, 90
  %v3149 = vpop.permute.xlu0 %3148
  %v3150 = vsel %vm1128, %v3145, %v3147
  %v3151 = vsel %vm1128, %v3147, %v3149
  %v3153 = vsel %vm2318, %v3143, 0
  %v3156 = vsel %vm2322, %v3150, 0
  %v3159 = vsel %vm2322, %v3151, 0
  %v3162 = vsel %vm2322, %v3149, 0
  %3164 = vmatprep.subr.bf16.mxu0 %v3159
  %3165 = vmatpush1.bf16.msra.mxu0 %v3156
  %3166 = vmatprep.subr.bf16.mxu0 0
  %3167 = vmatpush1.bf16.msra.mxu0 0
  %3168 = vmatprep.subr.bf16.mxu0 0
  %3169 = vmatpush1.bf16.msra.mxu0 0
  %3170 = vmatprep.subr.bf16.mxu0 0
  %3171 = vmatpush1.bf16.msra.mxu0 0
  %3172 = vmatprep.subr.bf16.mxu0 0
  %3173 = vmatpush1.bf16.msra.mxu0 0
  %3174 = vmatprep.subr.bf16.mxu0 0
  %3175 = vmatpush1.bf16.msra.mxu0 0
  %3176 = vmatprep.subr.bf16.mxu0 0
  %3177 = vmatpush1.bf16.msra.mxu0 0
  %3178 = vmatprep.subr.bf16.mxu0 0
  %3179 = vmatpush1.bf16.msra.mxu0 0
  %3180 = vmatprep.subr.bf16.mxu0 0
  %3181 = vmatpush1.bf16.msra.mxu0 0
  %3182 = vmatprep.subr.bf16.mxu0 0
  %3183 = vmatpush1.bf16.msra.mxu0 0
  %3184 = vmatprep.subr.bf16.mxu0 0
  %3185 = vmatpush1.bf16.msra.mxu0 0
  %3186 = vmatprep.subr.bf16.mxu0 0
  %3187 = vmatpush1.bf16.msra.mxu0 0
  %3188 = vmatprep.subr.bf16.mxu0 0
  %3189 = vmatpush1.bf16.msra.mxu0 0
  %3190 = vmatprep.subr.bf16.mxu0 0
  %3191 = vmatpush1.bf16.msra.mxu0 0
  %3192 = vmatprep.subr.bf16.mxu0 0
  %3193 = vmatpush1.bf16.msra.mxu0 0
  %3194 = vmatprep.subr.bf16.mxu0 0
  %3195 = vmatpush1.bf16.msra.mxu0 0
  %3196 = vmatprep.mubr.bf16.mxu0 0
  %3197 = vmatmul.mubr.bf16.gmra.mrb[0].mxu0 %v3153
  %v3198 = vpop.f32.mrb[0].mxu0
  %v3199 = vadd.f32 0.0, %v3198
  %v3200 = vpop.f32.mrb[0].mxu0
  %v3201 = vadd.f32 0.0, %v3200
  %v3202 = vpop.f32.mrb[0].mxu0
  %v3203 = vpop.f32.mrb[0].mxu0
  %3204 = vdwg.mxu0
  %3205 = vmatprep.subr.bf16.mxu0 0
  %3206 = vmatpush1.bf16.msra.mxu0 %v3162
  %3207 = vmatprep.subr.bf16.mxu0 0
  %3208 = vmatpush1.bf16.msra.mxu0 0
  %3209 = vmatprep.subr.bf16.mxu0 0
  %3210 = vmatpush1.bf16.msra.mxu0 0
  %3211 = vmatprep.subr.bf16.mxu0 0
  %3212 = vmatpush1.bf16.msra.mxu0 0
  %3213 = vmatprep.subr.bf16.mxu0 0
  %3214 = vmatpush1.bf16.msra.mxu0 0
  %3215 = vmatprep.subr.bf16.mxu0 0
  %3216 = vmatpush1.bf16.msra.mxu0 0
  %3217 = vmatprep.subr.bf16.mxu0 0
  %3218 = vmatpush1.bf16.msra.mxu0 0
  %3219 = vmatprep.subr.bf16.mxu0 0
  %3220 = vmatpush1.bf16.msra.mxu0 0
  %3221 = vmatprep.subr.bf16.mxu0 0
  %3222 = vmatpush1.bf16.msra.mxu0 0
  %3223 = vmatprep.subr.bf16.mxu0 0
  %3224 = vmatpush1.bf16.msra.mxu0 0
  %3225 = vmatprep.subr.bf16.mxu0 0
  %3226 = vmatpush1.bf16.msra.mxu0 0
  %3227 = vmatprep.subr.bf16.mxu0 0
  %3228 = vmatpush1.bf16.msra.mxu0 0
  %3229 = vmatprep.subr.bf16.mxu0 0
  %3230 = vmatpush1.bf16.msra.mxu0 0
  %3231 = vmatprep.subr.bf16.mxu0 0
  %3232 = vmatpush1.bf16.msra.mxu0 0
  %3233 = vmatprep.subr.bf16.mxu0 0
  %3234 = vmatpush1.bf16.msra.mxu0 0
  %3235 = vmatprep.subr.bf16.mxu0 0
  %3236 = vmatpush1.bf16.msra.mxu0 0
  %3237 = vmatprep.mubr.bf16.mxu0 0
  %3238 = vmatmul.mubr.bf16.gmra.mrb[0].mxu0 %v3153
  %v3239 = vpop.f32.mrb[0].mxu0
  %v3240 = vadd.f32 0.0, %v3239
  %v3241 = vpop.f32.mrb[0].mxu0
  %v3242 = vpop.f32.mrb[0].mxu0
  %v3243 = vpop.f32.mrb[0].mxu0
  %3244 = vdwg.mxu0
  %v3245 = vadd.f32 %v3139, %v3199
  %v3246 = vadd.f32 %v3140, %v3201
  %v3247 = vadd.f32 %v3141, %v3240
  %3249 = vset.pattern.permute.xlu0 0
  %3250 = vperm.xlu0 %3249, %v258
  %v3251 = vpop.permute.xlu0 %3250
  %v3253 = vadd.f32 %v3245, %v3251
  %v3254 = vadd.f32 %v3246, %v3251
  %v3255 = vadd.f32 %v3247, %v3251
  %v3256 = vpack.c.bf16 %v3253, %v3253
  %vm3257 = vcmask 123904
  %3258 = vst.msk [vmem:[%s5] sm:$0x3] %vm3257, %v3256
  %v3261 = vunpack.c.l.s4 1983009808
  %v3262 = vunpack.c.0.s8 %v3261
  %v3263 = vlaneseq
  %v3264 = vshrl.u32 %v3263, 7
  %v3265 = vsub.s32 %v3262, %v3264
  %v3266 = vrot.slane %v3256, %v3265
  %3267 = vrot.lane.b32.xlu0 %v3266, 126
  %v3268 = vpop.permute.xlu0 %3267
  %vm3270 = vcmask 255104
  %3271 = vst.msk [vmem:[%s5] sm:$0x3] %vm3270, %v3268
  %3272 = vrot.lane.b32.xlu0 %v3266, 124
  %v3273 = vpop.permute.xlu0 %3272
  %vm3275 = vcmask 386304
  %3276 = vst.msk [vmem:[%s5] sm:$0x3] %vm3275, %v3273
  %3277 = vrot.lane.b32.xlu0 %v3266, 122
  %v3278 = vpop.permute.xlu0 %3277
  %vm3280 = vcmask 517504
  %3281 = vst.msk [vmem:[%s5] sm:$0x3] %vm3280, %v3278
  %3282 = vrot.lane.b32.xlu0 %v3266, 120
  %v3283 = vpop.permute.xlu0 %3282
  %vm3285 = vcmask 648704
  %3286 = vst.msk [vmem:[%s5] sm:$0x3] %vm3285, %v3283
  %3287 = vrot.lane.b32.xlu0 %v3266, 118
  %v3288 = vpop.permute.xlu0 %3287
  %vm3290 = vcmask 779904
  %3291 = vst.msk [vmem:[%s5] sm:$0x3] %vm3290, %v3288
  %3292 = vrot.lane.b32.xlu0 %v3266, 116
  %v3293 = vpop.permute.xlu0 %3292
  %vm3295 = vcmask 911104
  %3296 = vst.msk [vmem:[%s5] sm:$0x3] %vm3295, %v3293
  %v3297 = vpack.c.bf16 %v3254, %v3254
  %v3299 = vcombine.low %v3256, %v3297
  %v3301 = vunpack.c.l.s4 1983009808
  %v3302 = vunpack.c.0.s8 %v3301
  %v3303 = vlaneseq
  %v3304 = vshrl.u32 %v3303, 7
  %v3305 = vsub.s32 %v3302, %v3304
  %v3306 = vrot.slane %v3299, %v3305
  %3307 = vrot.lane.b32.xlu0 %v3306, 114
  %v3308 = vpop.permute.xlu0 %3307
  %v3309 = vrot.slane %v3308, 2
  %vm3310 = vcmask 932864
  %v3311 = vsel %vm3310, %v3308, %v3309
  %vm3313 = vcmask 1042304
  %3314 = vst.msk [vmem:[%s5] sm:$0x3] %vm3313, %v3311
  %v3316 = vunpack.c.l.s4 1983009808
  %v3317 = vunpack.c.0.s8 %v3316
  %v3318 = vlaneseq
  %v3319 = vshrl.u32 %v3318, 7
  %v3320 = vsub.s32 %v3317, %v3319
  %v3321 = vrot.slane %v3297, %v3320
  %3322 = vrot.lane.b32.xlu0 %v3321, 112
  %v3323 = vpop.permute.xlu0 %3322
  %3325 = vst.msk [vmem:[%s5 + $0x2] sm:$0x3] %vm3257, %v3323
  %3326 = vrot.lane.b32.xlu0 %v3321, 110
  %v3327 = vpop.permute.xlu0 %3326
  %3329 = vst.msk [vmem:[%s5 + $0x2] sm:$0x3] %vm3270, %v3327
  %3330 = vrot.lane.b32.xlu0 %v3321, 108
  %v3331 = vpop.permute.xlu0 %3330
  %3333 = vst.msk [vmem:[%s5 + $0x2] sm:$0x3] %vm3275, %v3331
  %3334 = vrot.lane.b32.xlu0 %v3321, 106
  %v3335 = vpop.permute.xlu0 %3334
  %3337 = vst.msk [vmem:[%s5 + $0x2] sm:$0x3] %vm3280, %v3335
  %3338 = vrot.lane.b32.xlu0 %v3321, 104
  %v3339 = vpop.permute.xlu0 %3338
  %3341 = vst.msk [vmem:[%s5 + $0x2] sm:$0x3] %vm3285, %v3339
  %3342 = vrot.lane.b32.xlu0 %v3321, 102
  %v3343 = vpop.permute.xlu0 %3342
  %3345 = vst.msk [vmem:[%s5 + $0x2] sm:$0x3] %vm3290, %v3343
  %v3346 = vpack.c.bf16 %v3255, %v3255
  %v3348 = vcombine.low %v3297, %v3346
  %v3350 = vunpack.c.l.s4 1983009808
  %v3351 = vunpack.c.0.s8 %v3350
  %v3352 = vlaneseq
  %v3353 = vshrl.u32 %v3352, 7
  %v3354 = vsub.s32 %v3351, %v3353
  %v3355 = vrot.slane %v3348, %v3354
  %3356 = vrot.lane.b32.xlu0 %v3355, 100
  %v3357 = vpop.permute.xlu0 %3356
  %v3358 = vrot.slane %v3357, 2
  %vm3359 = vcmask 818176
  %v3360 = vsel %vm3359, %v3357, %v3358
  %3362 = vst.msk [vmem:[%s5 + $0x2] sm:$0x3] %vm3295, %v3360
  %v3364 = vunpack.c.l.s4 1983009808
  %v3365 = vunpack.c.0.s8 %v3364
  %v3366 = vlaneseq
  %v3367 = vshrl.u32 %v3366, 7
  %v3368 = vsub.s32 %v3365, %v3367
  %v3369 = vrot.slane %v3346, %v3368
  %3370 = vrot.lane.b32.xlu0 %v3369, 98
  %v3371 = vpop.permute.xlu0 %3370
  %3373 = vst.msk [vmem:[%s5 + $0x2] sm:$0x3] %vm3313, %v3371
  %v3374 = vld [vmem:[%s2243] sm:$0xff]
  %v3375 = vld [vmem:[%s2243 + $0x8] sm:$0xf]
  %v3378 = vunpack.c.l.b16 %v3374
  %v3379 = vunpack.c.h.b16 %v3374
  %v3380 = vunpack.c.l.b16 %v3375
  %v3381 = vpack.c.b16 %v3378, %v3378
  %v3382 = vpack.c.b16 %v3379, %v3379
  %v3383 = vpack.c.b16 %v3380, %v3380
  %3384 = vrot.lane.b32.xlu0 %v3381, 127
  %v3385 = vpop.permute.xlu0 %3384
  %3386 = vrot.lane.b32.xlu0 %v3382, 127
  %v3387 = vpop.permute.xlu0 %3386
  %3388 = vrot.lane.b32.xlu0 %v3383, 127
  %v3389 = vpop.permute.xlu0 %3388
  %v3390 = vsel %vm288, %v3385, %v3387
  %v3391 = vsel %vm288, %v3387, %v3389
  %v3393 = vsel %vm2322, %v3390, 0
  %v3396 = vsel %vm2322, %v3391, 0
  %v3399 = vsel %vm2322, %v3389, 0
  %3401 = vmatprep.subr.bf16.mxu0 %v3396
  %3402 = vmatpush1.bf16.msra.mxu0 %v3393
  %3403 = vmatprep.subr.bf16.mxu0 0
  %3404 = vmatpush1.bf16.msra.mxu0 0
  %3405 = vmatprep.subr.bf16.mxu0 0
  %3406 = vmatpush1.bf16.msra.mxu0 0
  %3407 = vmatprep.subr.bf16.mxu0 0
  %3408 = vmatpush1.bf16.msra.mxu0 0
  %3409 = vmatprep.subr.bf16.mxu0 0
  %3410 = vmatpush1.bf16.msra.mxu0 0
  %3411 = vmatprep.subr.bf16.mxu0 0
  %3412 = vmatpush1.bf16.msra.mxu0 0
  %3413 = vmatprep.subr.bf16.mxu0 0
  %3414 = vmatpush1.bf16.msra.mxu0 0
  %3415 = vmatprep.subr.bf16.mxu0 0
  %3416 = vmatpush1.bf16.msra.mxu0 0
  %3417 = vmatprep.subr.bf16.mxu0 0
  %3418 = vmatpush1.bf16.msra.mxu0 0
  %3419 = vmatprep.subr.bf16.mxu0 0
  %3420 = vmatpush1.bf16.msra.mxu0 0
  %3421 = vmatprep.subr.bf16.mxu0 0
  %3422 = vmatpush1.bf16.msra.mxu0 0
  %3423 = vmatprep.subr.bf16.mxu0 0
  %3424 = vmatpush1.bf16.msra.mxu0 0
  %3425 = vmatprep.subr.bf16.mxu0 0
  %3426 = vmatpush1.bf16.msra.mxu0 0
  %3427 = vmatprep.subr.bf16.mxu0 0
  %3428 = vmatpush1.bf16.msra.mxu0 0
  %3429 = vmatprep.subr.bf16.mxu0 0
  %3430 = vmatpush1.bf16.msra.mxu0 0
  %3431 = vmatprep.subr.bf16.mxu0 0
  %3432 = vmatpush1.bf16.msra.mxu0 0
  %3433 = vmatprep.mubr.bf16.mxu0 0
  %3434 = vmatmul.mubr.bf16.gmra.mrb[0].mxu0 %v2320
  %v3435 = vpop.f32.mrb[0].mxu0
  %v3436 = vadd.f32 0.0, %v3435
  %v3437 = vpop.f32.mrb[0].mxu0
  %v3438 = vadd.f32 0.0, %v3437
  %v3439 = vpop.f32.mrb[0].mxu0
  %v3440 = vpop.f32.mrb[0].mxu0
  %3441 = vdwg.mxu0
  %3442 = vmatprep.subr.bf16.mxu0 0
  %3443 = vmatpush1.bf16.msra.mxu0 %v3399
  %3444 = vmatprep.subr.bf16.mxu0 0
  %3445 = vmatpush1.bf16.msra.mxu0 0
  %3446 = vmatprep.subr.bf16.mxu0 0
  %3447 = vmatpush1.bf16.msra.mxu0 0
  %3448 = vmatprep.subr.bf16.mxu0 0
  %3449 = vmatpush1.bf16.msra.mxu0 0
  %3450 = vmatprep.subr.bf16.mxu0 0
  %3451 = vmatpush1.bf16.msra.mxu0 0
  %3452 = vmatprep.subr.bf16.mxu0 0
  %3453 = vmatpush1.bf16.msra.mxu0 0
  %3454 = vmatprep.subr.bf16.mxu0 0
  %3455 = vmatpush1.bf16.msra.mxu0 0
  %3456 = vmatprep.subr.bf16.mxu0 0
  %3457 = vmatpush1.bf16.msra.mxu0 0
  %3458 = vmatprep.subr.bf16.mxu0 0
  %3459 = vmatpush1.bf16.msra.mxu0 0
  %3460 = vmatprep.subr.bf16.mxu0 0
  %3461 = vmatpush1.bf16.msra.mxu0 0
  %3462 = vmatprep.subr.bf16.mxu0 0
  %3463 = vmatpush1.bf16.msra.mxu0 0
  %3464 = vmatprep.subr.bf16.mxu0 0
  %3465 = vmatpush1.bf16.msra.mxu0 0
  %3466 = vmatprep.subr.bf16.mxu0 0
  %3467 = vmatpush1.bf16.msra.mxu0 0
  %3468 = vmatprep.subr.bf16.mxu0 0
  %3469 = vmatpush1.bf16.msra.mxu0 0
  %3470 = vmatprep.subr.bf16.mxu0 0
  %3471 = vmatpush1.bf16.msra.mxu0 0
  %3472 = vmatprep.subr.bf16.mxu0 0
  %3473 = vmatpush1.bf16.msra.mxu0 0
  %3474 = vmatprep.mubr.bf16.mxu0 0
  %3475 = vmatmul.mubr.bf16.gmra.mrb[0].mxu0 %v2320
  %v3476 = vpop.f32.mrb[0].mxu0
  %v3477 = vadd.f32 0.0, %v3476
  %v3478 = vpop.f32.mrb[0].mxu0
  %v3479 = vpop.f32.mrb[0].mxu0
  %v3480 = vpop.f32.mrb[0].mxu0
  %3481 = vdwg.mxu0
  %v3483 = vsel %vm2322, %v3381, 0
  %v3486 = vsel %vm2322, %v3382, 0
  %v3489 = vsel %vm2322, %v3383, 0
  %3491 = vmatprep.subr.bf16.mxu0 %v3486
  %3492 = vmatpush1.bf16.msra.mxu0 %v3483
  %3493 = vmatprep.subr.bf16.mxu0 0
  %3494 = vmatpush1.bf16.msra.mxu0 0
  %3495 = vmatprep.subr.bf16.mxu0 0
  %3496 = vmatpush1.bf16.msra.mxu0 0
  %3497 = vmatprep.subr.bf16.mxu0 0
  %3498 = vmatpush1.bf16.msra.mxu0 0
  %3499 = vmatprep.subr.bf16.mxu0 0
  %3500 = vmatpush1.bf16.msra.mxu0 0
  %3501 = vmatprep.subr.bf16.mxu0 0
  %3502 = vmatpush1.bf16.msra.mxu0 0
  %3503 = vmatprep.subr.bf16.mxu0 0
  %3504 = vmatpush1.bf16.msra.mxu0 0
  %3505 = vmatprep.subr.bf16.mxu0 0
  %3506 = vmatpush1.bf16.msra.mxu0 0
  %3507 = vmatprep.subr.bf16.mxu0 0
  %3508 = vmatpush1.bf16.msra.mxu0 0
  %3509 = vmatprep.subr.bf16.mxu0 0
  %3510 = vmatpush1.bf16.msra.mxu0 0
  %3511 = vmatprep.subr.bf16.mxu0 0
  %3512 = vmatpush1.bf16.msra.mxu0 0
  %3513 = vmatprep.subr.bf16.mxu0 0
  %3514 = vmatpush1.bf16.msra.mxu0 0
  %3515 = vmatprep.subr.bf16.mxu0 0
  %3516 = vmatpush1.bf16.msra.mxu0 0
  %3517 = vmatprep.subr.bf16.mxu0 0
  %3518 = vmatpush1.bf16.msra.mxu0 0
  %3519 = vmatprep.subr.bf16.mxu0 0
  %3520 = vmatpush1.bf16.msra.mxu0 0
  %3521 = vmatprep.subr.bf16.mxu0 0
  %3522 = vmatpush1.bf16.msra.mxu0 0
  %3523 = vmatprep.mubr.bf16.mxu0 0
  %3524 = vmatmul.mubr.bf16.gmra.mrb[0].mxu0 %v2414
  %v3525 = vpop.f32.mrb[0].mxu0
  %v3526 = vadd.f32 %v3436, %v3525
  %v3527 = vpop.f32.mrb[0].mxu0
  %v3528 = vadd.f32 %v3438, %v3527
  %v3529 = vpop.f32.mrb[0].mxu0
  %v3530 = vpop.f32.mrb[0].mxu0
  %3531 = vdwg.mxu0
  %3532 = vmatprep.subr.bf16.mxu0 0
  %3533 = vmatpush1.bf16.msra.mxu0 %v3489
  %3534 = vmatprep.subr.bf16.mxu0 0
  %3535 = vmatpush1.bf16.msra.mxu0 0
  %3536 = vmatprep.subr.bf16.mxu0 0
  %3537 = vmatpush1.bf16.msra.mxu0 0
  %3538 = vmatprep.subr.bf16.mxu0 0
  %3539 = vmatpush1.bf16.msra.mxu0 0
  %3540 = vmatprep.subr.bf16.mxu0 0
  %3541 = vmatpush1.bf16.msra.mxu0 0
  %3542 = vmatprep.subr.bf16.mxu0 0
  %3543 = vmatpush1.bf16.msra.mxu0 0
  %3544 = vmatprep.subr.bf16.mxu0 0
  %3545 = vmatpush1.bf16.msra.mxu0 0
  %3546 = vmatprep.subr.bf16.mxu0 0
  %3547 = vmatpush1.bf16.msra.mxu0 0
  %3548 = vmatprep.subr.bf16.mxu0 0
  %3549 = vmatpush1.bf16.msra.mxu0 0
  %3550 = vmatprep.subr.bf16.mxu0 0
  %3551 = vmatpush1.bf16.msra.mxu0 0
  %3552 = vmatprep.subr.bf16.mxu0 0
  %3553 = vmatpush1.bf16.msra.mxu0 0
  %3554 = vmatprep.subr.bf16.mxu0 0
  %3555 = vmatpush1.bf16.msra.mxu0 0
  %3556 = vmatprep.subr.bf16.mxu0 0
  %3557 = vmatpush1.bf16.msra.mxu0 0
  %3558 = vmatprep.subr.bf16.mxu0 0
  %3559 = vmatpush1.bf16.msra.mxu0 0
  %3560 = vmatprep.subr.bf16.mxu0 0
  %3561 = vmatpush1.bf16.msra.mxu0 0
  %3562 = vmatprep.subr.bf16.mxu0 0
  %3563 = vmatpush1.bf16.msra.mxu0 0
  %3564 = vmatprep.mubr.bf16.mxu0 0
  %3565 = vmatmul.mubr.bf16.gmra.mrb[0].mxu0 %v2414
  %v3566 = vpop.f32.mrb[0].mxu0
  %v3567 = vadd.f32 %v3477, %v3566
  %v3568 = vpop.f32.mrb[0].mxu0
  %v3569 = vpop.f32.mrb[0].mxu0
  %v3570 = vpop.f32.mrb[0].mxu0
  %3571 = vdwg.mxu0
  %3572 = vrot.lane.b32.xlu0 %v3381, 126
  %v3573 = vpop.permute.xlu0 %3572
  %3574 = vrot.lane.b32.xlu0 %v3382, 126
  %v3575 = vpop.permute.xlu0 %3574
  %3576 = vrot.lane.b32.xlu0 %v3383, 126
  %v3577 = vpop.permute.xlu0 %3576
  %v3578 = vsel %vm486, %v3573, %v3575
  %v3579 = vsel %vm486, %v3575, %v3577
  %v3581 = vsel %vm2322, %v3578, 0
  %v3584 = vsel %vm2322, %v3579, 0
  %v3587 = vsel %vm2322, %v3577, 0
  %3589 = vmatprep.subr.bf16.mxu0 %v3584
  %3590 = vmatpush1.bf16.msra.mxu0 %v3581
  %3591 = vmatprep.subr.bf16.mxu0 0
  %3592 = vmatpush1.bf16.msra.mxu0 0
  %3593 = vmatprep.subr.bf16.mxu0 0
  %3594 = vmatpush1.bf16.msra.mxu0 0
  %3595 = vmatprep.subr.bf16.mxu0 0
  %3596 = vmatpush1.bf16.msra.mxu0 0
  %3597 = vmatprep.subr.bf16.mxu0 0
  %3598 = vmatpush1.bf16.msra.mxu0 0
  %3599 = vmatprep.subr.bf16.mxu0 0
  %3600 = vmatpush1.bf16.msra.mxu0 0
  %3601 = vmatprep.subr.bf16.mxu0 0
  %3602 = vmatpush1.bf16.msra.mxu0 0
  %3603 = vmatprep.subr.bf16.mxu0 0
  %3604 = vmatpush1.bf16.msra.mxu0 0
  %3605 = vmatprep.subr.bf16.mxu0 0
  %3606 = vmatpush1.bf16.msra.mxu0 0
  %3607 = vmatprep.subr.bf16.mxu0 0
  %3608 = vmatpush1.bf16.msra.mxu0 0
  %3609 = vmatprep.subr.bf16.mxu0 0
  %3610 = vmatpush1.bf16.msra.mxu0 0
  %3611 = vmatprep.subr.bf16.mxu0 0
  %3612 = vmatpush1.bf16.msra.mxu0 0
  %3613 = vmatprep.subr.bf16.mxu0 0
  %3614 = vmatpush1.bf16.msra.mxu0 0
  %3615 = vmatprep.subr.bf16.mxu0 0
  %3616 = vmatpush1.bf16.msra.mxu0 0
  %3617 = vmatprep.subr.bf16.mxu0 0
  %3618 = vmatpush1.bf16.msra.mxu0 0
  %3619 = vmatprep.subr.bf16.mxu0 0
  %3620 = vmatpush1.bf16.msra.mxu0 0
  %3621 = vmatprep.mubr.bf16.mxu0 0
  %3622 = vmatmul.mubr.bf16.gmra.mrb[0].mxu0 %v2517
  %v3623 = vpop.f32.mrb[0].mxu0
  %v3624 = vadd.f32 0.0, %v3623
  %v3625 = vpop.f32.mrb[0].mxu0
  %v3626 = vadd.f32 0.0, %v3625
  %v3627 = vpop.f32.mrb[0].mxu0
  %v3628 = vpop.f32.mrb[0].mxu0
  %3629 = vdwg.mxu0
  %3630 = vmatprep.subr.bf16.mxu0 0
  %3631 = vmatpush1.bf16.msra.mxu0 %v3587
  %3632 = vmatprep.subr.bf16.mxu0 0
  %3633 = vmatpush1.bf16.msra.mxu0 0
  %3634 = vmatprep.subr.bf16.mxu0 0
  %3635 = vmatpush1.bf16.msra.mxu0 0
  %3636 = vmatprep.subr.bf16.mxu0 0
  %3637 = vmatpush1.bf16.msra.mxu0 0
  %3638 = vmatprep.subr.bf16.mxu0 0
  %3639 = vmatpush1.bf16.msra.mxu0 0
  %3640 = vmatprep.subr.bf16.mxu0 0
  %3641 = vmatpush1.bf16.msra.mxu0 0
  %3642 = vmatprep.subr.bf16.mxu0 0
  %3643 = vmatpush1.bf16.msra.mxu0 0
  %3644 = vmatprep.subr.bf16.mxu0 0
  %3645 = vmatpush1.bf16.msra.mxu0 0
  %3646 = vmatprep.subr.bf16.mxu0 0
  %3647 = vmatpush1.bf16.msra.mxu0 0
  %3648 = vmatprep.subr.bf16.mxu0 0
  %3649 = vmatpush1.bf16.msra.mxu0 0
  %3650 = vmatprep.subr.bf16.mxu0 0
  %3651 = vmatpush1.bf16.msra.mxu0 0
  %3652 = vmatprep.subr.bf16.mxu0 0
  %3653 = vmatpush1.bf16.msra.mxu0 0
  %3654 = vmatprep.subr.bf16.mxu0 0
  %3655 = vmatpush1.bf16.msra.mxu0 0
  %3656 = vmatprep.subr.bf16.mxu0 0
  %3657 = vmatpush1.bf16.msra.mxu0 0
  %3658 = vmatprep.subr.bf16.mxu0 0
  %3659 = vmatpush1.bf16.msra.mxu0 0
  %3660 = vmatprep.subr.bf16.mxu0 0
  %3661 = vmatpush1.bf16.msra.mxu0 0
  %3662 = vmatprep.mubr.bf16.mxu0 0
  %3663 = vmatmul.mubr.bf16.gmra.mrb[0].mxu0 %v2517
  %v3664 = vpop.f32.mrb[0].mxu0
  %v3665 = vadd.f32 0.0, %v3664
  %v3666 = vpop.f32.mrb[0].mxu0
  %v3667 = vpop.f32.mrb[0].mxu0
  %v3668 = vpop.f32.mrb[0].mxu0
  %3669 = vdwg.mxu0
  %v3670 = vadd.f32 %v3526, %v3624
  %v3671 = vadd.f32 %v3528, %v3626
  %v3672 = vadd.f32 %v3567, %v3665
  %3673 = vrot.lane.b32.xlu0 %v3381, 110
  %v3674 = vpop.permute.xlu0 %3673
  %3675 = vrot.lane.b32.xlu0 %v3382, 110
  %v3676 = vpop.permute.xlu0 %3675
  %3677 = vrot.lane.b32.xlu0 %v3383, 110
  %v3678 = vpop.permute.xlu0 %3677
  %v3679 = vsel %vm593, %v3674, %v3676
  %v3680 = vsel %vm593, %v3676, %v3678
  %v3682 = vsel %vm2322, %v3679, 0
  %v3685 = vsel %vm2322, %v3680, 0
  %v3688 = vsel %vm2322, %v3678, 0
  %3690 = vmatprep.subr.bf16.mxu0 %v3685
  %3691 = vmatpush1.bf16.msra.mxu0 %v3682
  %3692 = vmatprep.subr.bf16.mxu0 0
  %3693 = vmatpush1.bf16.msra.mxu0 0
  %3694 = vmatprep.subr.bf16.mxu0 0
  %3695 = vmatpush1.bf16.msra.mxu0 0
  %3696 = vmatprep.subr.bf16.mxu0 0
  %3697 = vmatpush1.bf16.msra.mxu0 0
  %3698 = vmatprep.subr.bf16.mxu0 0
  %3699 = vmatpush1.bf16.msra.mxu0 0
  %3700 = vmatprep.subr.bf16.mxu0 0
  %3701 = vmatpush1.bf16.msra.mxu0 0
  %3702 = vmatprep.subr.bf16.mxu0 0
  %3703 = vmatpush1.bf16.msra.mxu0 0
  %3704 = vmatprep.subr.bf16.mxu0 0
  %3705 = vmatpush1.bf16.msra.mxu0 0
  %3706 = vmatprep.subr.bf16.mxu0 0
  %3707 = vmatpush1.bf16.msra.mxu0 0
  %3708 = vmatprep.subr.bf16.mxu0 0
  %3709 = vmatpush1.bf16.msra.mxu0 0
  %3710 = vmatprep.subr.bf16.mxu0 0
  %3711 = vmatpush1.bf16.msra.mxu0 0
  %3712 = vmatprep.subr.bf16.mxu0 0
  %3713 = vmatpush1.bf16.msra.mxu0 0
  %3714 = vmatprep.subr.bf16.mxu0 0
  %3715 = vmatpush1.bf16.msra.mxu0 0
  %3716 = vmatprep.subr.bf16.mxu0 0
  %3717 = vmatpush1.bf16.msra.mxu0 0
  %3718 = vmatprep.subr.bf16.mxu0 0
  %3719 = vmatpush1.bf16.msra.mxu0 0
  %3720 = vmatprep.subr.bf16.mxu0 0
  %3721 = vmatpush1.bf16.msra.mxu0 0
  %3722 = vmatprep.mubr.bf16.mxu0 0
  %3723 = vmatmul.mubr.bf16.gmra.mrb[0].mxu0 %v2623
  %v3724 = vpop.f32.mrb[0].mxu0
  %v3725 = vadd.f32 0.0, %v3724
  %v3726 = vpop.f32.mrb[0].mxu0
  %v3727 = vadd.f32 0.0, %v3726
  %v3728 = vpop.f32.mrb[0].mxu0
  %v3729 = vpop.f32.mrb[0].mxu0
  %3730 = vdwg.mxu0
  %3731 = vmatprep.subr.bf16.mxu0 0
  %3732 = vmatpush1.bf16.msra.mxu0 %v3688
  %3733 = vmatprep.subr.bf16.mxu0 0
  %3734 = vmatpush1.bf16.msra.mxu0 0
  %3735 = vmatprep.subr.bf16.mxu0 0
  %3736 = vmatpush1.bf16.msra.mxu0 0
  %3737 = vmatprep.subr.bf16.mxu0 0
  %3738 = vmatpush1.bf16.msra.mxu0 0
  %3739 = vmatprep.subr.bf16.mxu0 0
  %3740 = vmatpush1.bf16.msra.mxu0 0
  %3741 = vmatprep.subr.bf16.mxu0 0
  %3742 = vmatpush1.bf16.msra.mxu0 0
  %3743 = vmatprep.subr.bf16.mxu0 0
  %3744 = vmatpush1.bf16.msra.mxu0 0
  %3745 = vmatprep.subr.bf16.mxu0 0
  %3746 = vmatpush1.bf16.msra.mxu0 0
  %3747 = vmatprep.subr.bf16.mxu0 0
  %3748 = vmatpush1.bf16.msra.mxu0 0
  %3749 = vmatprep.subr.bf16.mxu0 0
  %3750 = vmatpush1.bf16.msra.mxu0 0
  %3751 = vmatprep.subr.bf16.mxu0 0
  %3752 = vmatpush1.bf16.msra.mxu0 0
  %3753 = vmatprep.subr.bf16.mxu0 0
  %3754 = vmatpush1.bf16.msra.mxu0 0
  %3755 = vmatprep.subr.bf16.mxu0 0
  %3756 = vmatpush1.bf16.msra.mxu0 0
  %3757 = vmatprep.subr.bf16.mxu0 0
  %3758 = vmatpush1.bf16.msra.mxu0 0
  %3759 = vmatprep.subr.bf16.mxu0 0
  %3760 = vmatpush1.bf16.msra.mxu0 0
  %3761 = vmatprep.subr.bf16.mxu0 0
  %3762 = vmatpush1.bf16.msra.mxu0 0
  %3763 = vmatprep.mubr.bf16.mxu0 0
  %3764 = vmatmul.mubr.bf16.gmra.mrb[0].mxu0 %v2623
  %v3765 = vpop.f32.mrb[0].mxu0
  %v3766 = vadd.f32 0.0, %v3765
  %v3767 = vpop.f32.mrb[0].mxu0
  %v3768 = vpop.f32.mrb[0].mxu0
  %v3769 = vpop.f32.mrb[0].mxu0
  %3770 = vdwg.mxu0
  %v3771 = vadd.f32 %v3670, %v3725
  %v3772 = vadd.f32 %v3671, %v3727
  %v3773 = vadd.f32 %v3672, %v3766
  %3774 = vrot.lane.b32.xlu0 %v3381, 109
  %v3775 = vpop.permute.xlu0 %3774
  %3776 = vrot.lane.b32.xlu0 %v3382, 109
  %v3777 = vpop.permute.xlu0 %3776
  %3778 = vrot.lane.b32.xlu0 %v3383, 109
  %v3779 = vpop.permute.xlu0 %3778
  %v3780 = vsel %vm700, %v3775, %v3777
  %v3781 = vsel %vm700, %v3777, %v3779
  %v3783 = vsel %vm2322, %v3780, 0
  %v3786 = vsel %vm2322, %v3781, 0
  %v3789 = vsel %vm2322, %v3779, 0
  %3791 = vmatprep.subr.bf16.mxu0 %v3786
  %3792 = vmatpush1.bf16.msra.mxu0 %v3783
  %3793 = vmatprep.subr.bf16.mxu0 0
  %3794 = vmatpush1.bf16.msra.mxu0 0
  %3795 = vmatprep.subr.bf16.mxu0 0
  %3796 = vmatpush1.bf16.msra.mxu0 0
  %3797 = vmatprep.subr.bf16.mxu0 0
  %3798 = vmatpush1.bf16.msra.mxu0 0
  %3799 = vmatprep.subr.bf16.mxu0 0
  %3800 = vmatpush1.bf16.msra.mxu0 0
  %3801 = vmatprep.subr.bf16.mxu0 0
  %3802 = vmatpush1.bf16.msra.mxu0 0
  %3803 = vmatprep.subr.bf16.mxu0 0
  %3804 = vmatpush1.bf16.msra.mxu0 0
  %3805 = vmatprep.subr.bf16.mxu0 0
  %3806 = vmatpush1.bf16.msra.mxu0 0
  %3807 = vmatprep.subr.bf16.mxu0 0
  %3808 = vmatpush1.bf16.msra.mxu0 0
  %3809 = vmatprep.subr.bf16.mxu0 0
  %3810 = vmatpush1.bf16.msra.mxu0 0
  %3811 = vmatprep.subr.bf16.mxu0 0
  %3812 = vmatpush1.bf16.msra.mxu0 0
  %3813 = vmatprep.subr.bf16.mxu0 0
  %3814 = vmatpush1.bf16.msra.mxu0 0
  %3815 = vmatprep.subr.bf16.mxu0 0
  %3816 = vmatpush1.bf16.msra.mxu0 0
  %3817 = vmatprep.subr.bf16.mxu0 0
  %3818 = vmatpush1.bf16.msra.mxu0 0
  %3819 = vmatprep.subr.bf16.mxu0 0
  %3820 = vmatpush1.bf16.msra.mxu0 0
  %3821 = vmatprep.subr.bf16.mxu0 0
  %3822 = vmatpush1.bf16.msra.mxu0 0
  %3823 = vmatprep.mubr.bf16.mxu0 0
  %3824 = vmatmul.mubr.bf16.gmra.mrb[0].mxu0 %v2729
  %v3825 = vpop.f32.mrb[0].mxu0
  %v3826 = vadd.f32 0.0, %v3825
  %v3827 = vpop.f32.mrb[0].mxu0
  %v3828 = vadd.f32 0.0, %v3827
  %v3829 = vpop.f32.mrb[0].mxu0
  %v3830 = vpop.f32.mrb[0].mxu0
  %3831 = vdwg.mxu0
  %3832 = vmatprep.subr.bf16.mxu0 0
  %3833 = vmatpush1.bf16.msra.mxu0 %v3789
  %3834 = vmatprep.subr.bf16.mxu0 0
  %3835 = vmatpush1.bf16.msra.mxu0 0
  %3836 = vmatprep.subr.bf16.mxu0 0
  %3837 = vmatpush1.bf16.msra.mxu0 0
  %3838 = vmatprep.subr.bf16.mxu0 0
  %3839 = vmatpush1.bf16.msra.mxu0 0
  %3840 = vmatprep.subr.bf16.mxu0 0
  %3841 = vmatpush1.bf16.msra.mxu0 0
  %3842 = vmatprep.subr.bf16.mxu0 0
  %3843 = vmatpush1.bf16.msra.mxu0 0
  %3844 = vmatprep.subr.bf16.mxu0 0
  %3845 = vmatpush1.bf16.msra.mxu0 0
  %3846 = vmatprep.subr.bf16.mxu0 0
  %3847 = vmatpush1.bf16.msra.mxu0 0
  %3848 = vmatprep.subr.bf16.mxu0 0
  %3849 = vmatpush1.bf16.msra.mxu0 0
  %3850 = vmatprep.subr.bf16.mxu0 0
  %3851 = vmatpush1.bf16.msra.mxu0 0
  %3852 = vmatprep.subr.bf16.mxu0 0
  %3853 = vmatpush1.bf16.msra.mxu0 0
  %3854 = vmatprep.subr.bf16.mxu0 0
  %3855 = vmatpush1.bf16.msra.mxu0 0
  %3856 = vmatprep.subr.bf16.mxu0 0
  %3857 = vmatpush1.bf16.msra.mxu0 0
  %3858 = vmatprep.subr.bf16.mxu0 0
  %3859 = vmatpush1.bf16.msra.mxu0 0
  %3860 = vmatprep.subr.bf16.mxu0 0
  %3861 = vmatpush1.bf16.msra.mxu0 0
  %3862 = vmatprep.subr.bf16.mxu0 0
  %3863 = vmatpush1.bf16.msra.mxu0 0
  %3864 = vmatprep.mubr.bf16.mxu0 0
  %3865 = vmatmul.mubr.bf16.gmra.mrb[0].mxu0 %v2729
  %v3866 = vpop.f32.mrb[0].mxu0
  %v3867 = vadd.f32 0.0, %v3866
  %v3868 = vpop.f32.mrb[0].mxu0
  %v3869 = vpop.f32.mrb[0].mxu0
  %v3870 = vpop.f32.mrb[0].mxu0
  %3871 = vdwg.mxu0
  %v3872 = vadd.f32 %v3771, %v3826
  %v3873 = vadd.f32 %v3772, %v3828
  %v3874 = vadd.f32 %v3773, %v3867
  %3875 = vrot.lane.b32.xlu0 %v3381, 108
  %v3876 = vpop.permute.xlu0 %3875
  %3877 = vrot.lane.b32.xlu0 %v3382, 108
  %v3878 = vpop.permute.xlu0 %3877
  %3879 = vrot.lane.b32.xlu0 %v3383, 108
  %v3880 = vpop.permute.xlu0 %3879
  %v3881 = vsel %vm807, %v3876, %v3878
  %v3882 = vsel %vm807, %v3878, %v3880
  %v3884 = vsel %vm2322, %v3881, 0
  %v3887 = vsel %vm2322, %v3882, 0
  %v3890 = vsel %vm2322, %v3880, 0
  %3892 = vmatprep.subr.bf16.mxu0 %v3887
  %3893 = vmatpush1.bf16.msra.mxu0 %v3884
  %3894 = vmatprep.subr.bf16.mxu0 0
  %3895 = vmatpush1.bf16.msra.mxu0 0
  %3896 = vmatprep.subr.bf16.mxu0 0
  %3897 = vmatpush1.bf16.msra.mxu0 0
  %3898 = vmatprep.subr.bf16.mxu0 0
  %3899 = vmatpush1.bf16.msra.mxu0 0
  %3900 = vmatprep.subr.bf16.mxu0 0
  %3901 = vmatpush1.bf16.msra.mxu0 0
  %3902 = vmatprep.subr.bf16.mxu0 0
  %3903 = vmatpush1.bf16.msra.mxu0 0
  %3904 = vmatprep.subr.bf16.mxu0 0
  %3905 = vmatpush1.bf16.msra.mxu0 0
  %3906 = vmatprep.subr.bf16.mxu0 0
  %3907 = vmatpush1.bf16.msra.mxu0 0
  %3908 = vmatprep.subr.bf16.mxu0 0
  %3909 = vmatpush1.bf16.msra.mxu0 0
  %3910 = vmatprep.subr.bf16.mxu0 0
  %3911 = vmatpush1.bf16.msra.mxu0 0
  %3912 = vmatprep.subr.bf16.mxu0 0
  %3913 = vmatpush1.bf16.msra.mxu0 0
  %3914 = vmatprep.subr.bf16.mxu0 0
  %3915 = vmatpush1.bf16.msra.mxu0 0
  %3916 = vmatprep.subr.bf16.mxu0 0
  %3917 = vmatpush1.bf16.msra.mxu0 0
  %3918 = vmatprep.subr.bf16.mxu0 0
  %3919 = vmatpush1.bf16.msra.mxu0 0
  %3920 = vmatprep.subr.bf16.mxu0 0
  %3921 = vmatpush1.bf16.msra.mxu0 0
  %3922 = vmatprep.subr.bf16.mxu0 0
  %3923 = vmatpush1.bf16.msra.mxu0 0
  %3924 = vmatprep.mubr.bf16.mxu0 0
  %3925 = vmatmul.mubr.bf16.gmra.mrb[0].mxu0 %v2835
  %v3926 = vpop.f32.mrb[0].mxu0
  %v3927 = vadd.f32 0.0, %v3926
  %v3928 = vpop.f32.mrb[0].mxu0
  %v3929 = vadd.f32 0.0, %v3928
  %v3930 = vpop.f32.mrb[0].mxu0
  %v3931 = vpop.f32.mrb[0].mxu0
  %3932 = vdwg.mxu0
  %3933 = vmatprep.subr.bf16.mxu0 0
  %3934 = vmatpush1.bf16.msra.mxu0 %v3890
  %3935 = vmatprep.subr.bf16.mxu0 0
  %3936 = vmatpush1.bf16.msra.mxu0 0
  %3937 = vmatprep.subr.bf16.mxu0 0
  %3938 = vmatpush1.bf16.msra.mxu0 0
  %3939 = vmatprep.subr.bf16.mxu0 0
  %3940 = vmatpush1.bf16.msra.mxu0 0
  %3941 = vmatprep.subr.bf16.mxu0 0
  %3942 = vmatpush1.bf16.msra.mxu0 0
  %3943 = vmatprep.subr.bf16.mxu0 0
  %3944 = vmatpush1.bf16.msra.mxu0 0
  %3945 = vmatprep.subr.bf16.mxu0 0
  %3946 = vmatpush1.bf16.msra.mxu0 0
  %3947 = vmatprep.subr.bf16.mxu0 0
  %3948 = vmatpush1.bf16.msra.mxu0 0
  %3949 = vmatprep.subr.bf16.mxu0 0
  %3950 = vmatpush1.bf16.msra.mxu0 0
  %3951 = vmatprep.subr.bf16.mxu0 0
  %3952 = vmatpush1.bf16.msra.mxu0 0
  %3953 = vmatprep.subr.bf16.mxu0 0
  %3954 = vmatpush1.bf16.msra.mxu0 0
  %3955 = vmatprep.subr.bf16.mxu0 0
  %3956 = vmatpush1.bf16.msra.mxu0 0
  %3957 = vmatprep.subr.bf16.mxu0 0
  %3958 = vmatpush1.bf16.msra.mxu0 0
  %3959 = vmatprep.subr.bf16.mxu0 0
  %3960 = vmatpush1.bf16.msra.mxu0 0
  %3961 = vmatprep.subr.bf16.mxu0 0
  %3962 = vmatpush1.bf16.msra.mxu0 0
  %3963 = vmatprep.subr.bf16.mxu0 0
  %3964 = vmatpush1.bf16.msra.mxu0 0
  %3965 = vmatprep.mubr.bf16.mxu0 0
  %3966 = vmatmul.mubr.bf16.gmra.mrb[0].mxu0 %v2835
  %v3967 = vpop.f32.mrb[0].mxu0
  %v3968 = vadd.f32 0.0, %v3967
  %v3969 = vpop.f32.mrb[0].mxu0
  %v3970 = vpop.f32.mrb[0].mxu0
  %v3971 = vpop.f32.mrb[0].mxu0
  %3972 = vdwg.mxu0
  %v3973 = vadd.f32 %v3872, %v3927
  %v3974 = vadd.f32 %v3873, %v3929
  %v3975 = vadd.f32 %v3874, %v3968
  %3976 = vrot.lane.b32.xlu0 %v3381, 92
  %v3977 = vpop.permute.xlu0 %3976
  %3978 = vrot.lane.b32.xlu0 %v3382, 92
  %v3979 = vpop.permute.xlu0 %3978
  %3980 = vrot.lane.b32.xlu0 %v3383, 92
  %v3981 = vpop.permute.xlu0 %3980
  %v3982 = vsel %vm914, %v3977, %v3979
  %v3983 = vsel %vm914, %v3979, %v3981
  %v3985 = vsel %vm2322, %v3982, 0
  %v3988 = vsel %vm2322, %v3983, 0
  %v3991 = vsel %vm2322, %v3981, 0
  %3993 = vmatprep.subr.bf16.mxu0 %v3988
  %3994 = vmatpush1.bf16.msra.mxu0 %v3985
  %3995 = vmatprep.subr.bf16.mxu0 0
  %3996 = vmatpush1.bf16.msra.mxu0 0
  %3997 = vmatprep.subr.bf16.mxu0 0
  %3998 = vmatpush1.bf16.msra.mxu0 0
  %3999 = vmatprep.subr.bf16.mxu0 0
  %4000 = vmatpush1.bf16.msra.mxu0 0
  %4001 = vmatprep.subr.bf16.mxu0 0
  %4002 = vmatpush1.bf16.msra.mxu0 0
  %4003 = vmatprep.subr.bf16.mxu0 0
  %4004 = vmatpush1.bf16.msra.mxu0 0
  %4005 = vmatprep.subr.bf16.mxu0 0
  %4006 = vmatpush1.bf16.msra.mxu0 0
  %4007 = vmatprep.subr.bf16.mxu0 0
  %4008 = vmatpush1.bf16.msra.mxu0 0
  %4009 = vmatprep.subr.bf16.mxu0 0
  %4010 = vmatpush1.bf16.msra.mxu0 0
  %4011 = vmatprep.subr.bf16.mxu0 0
  %4012 = vmatpush1.bf16.msra.mxu0 0
  %4013 = vmatprep.subr.bf16.mxu0 0
  %4014 = vmatpush1.bf16.msra.mxu0 0
  %4015 = vmatprep.subr.bf16.mxu0 0
  %4016 = vmatpush1.bf16.msra.mxu0 0
  %4017 = vmatprep.subr.bf16.mxu0 0
  %4018 = vmatpush1.bf16.msra.mxu0 0
  %4019 = vmatprep.subr.bf16.mxu0 0
  %4020 = vmatpush1.bf16.msra.mxu0 0
  %4021 = vmatprep.subr.bf16.mxu0 0
  %4022 = vmatpush1.bf16.msra.mxu0 0
  %4023 = vmatprep.subr.bf16.mxu0 0
  %4024 = vmatpush1.bf16.msra.mxu0 0
  %4025 = vmatprep.mubr.bf16.mxu0 0
  %4026 = vmatmul.mubr.bf16.gmra.mrb[0].mxu0 %v2941
  %v4027 = vpop.f32.mrb[0].mxu0
  %v4028 = vadd.f32 0.0, %v4027
  %v4029 = vpop.f32.mrb[0].mxu0
  %v4030 = vadd.f32 0.0, %v4029
  %v4031 = vpop.f32.mrb[0].mxu0
  %v4032 = vpop.f32.mrb[0].mxu0
  %4033 = vdwg.mxu0
  %4034 = vmatprep.subr.bf16.mxu0 0
  %4035 = vmatpush1.bf16.msra.mxu0 %v3991
  %4036 = vmatprep.subr.bf16.mxu0 0
  %4037 = vmatpush1.bf16.msra.mxu0 0
  %4038 = vmatprep.subr.bf16.mxu0 0
  %4039 = vmatpush1.bf16.msra.mxu0 0
  %4040 = vmatprep.subr.bf16.mxu0 0
  %4041 = vmatpush1.bf16.msra.mxu0 0
  %4042 = vmatprep.subr.bf16.mxu0 0
  %4043 = vmatpush1.bf16.msra.mxu0 0
  %4044 = vmatprep.subr.bf16.mxu0 0
  %4045 = vmatpush1.bf16.msra.mxu0 0
  %4046 = vmatprep.subr.bf16.mxu0 0
  %4047 = vmatpush1.bf16.msra.mxu0 0
  %4048 = vmatprep.subr.bf16.mxu0 0
  %4049 = vmatpush1.bf16.msra.mxu0 0
  %4050 = vmatprep.subr.bf16.mxu0 0
  %4051 = vmatpush1.bf16.msra.mxu0 0
  %4052 = vmatprep.subr.bf16.mxu0 0
  %4053 = vmatpush1.bf16.msra.mxu0 0
  %4054 = vmatprep.subr.bf16.mxu0 0
  %4055 = vmatpush1.bf16.msra.mxu0 0
  %4056 = vmatprep.subr.bf16.mxu0 0
  %4057 = vmatpush1.bf16.msra.mxu0 0
  %4058 = vmatprep.subr.bf16.mxu0 0
  %4059 = vmatpush1.bf16.msra.mxu0 0
  %4060 = vmatprep.subr.bf16.mxu0 0
  %4061 = vmatpush1.bf16.msra.mxu0 0
  %4062 = vmatprep.subr.bf16.mxu0 0
  %4063 = vmatpush1.bf16.msra.mxu0 0
  %4064 = vmatprep.subr.bf16.mxu0 0
  %4065 = vmatpush1.bf16.msra.mxu0 0
  %4066 = vmatprep.mubr.bf16.mxu0 0
  %4067 = vmatmul.mubr.bf16.gmra.mrb[0].mxu0 %v2941
  %v4068 = vpop.f32.mrb[0].mxu0
  %v4069 = vadd.f32 0.0, %v4068
  %v4070 = vpop.f32.mrb[0].mxu0
  %v4071 = vpop.f32.mrb[0].mxu0
  %v4072 = vpop.f32.mrb[0].mxu0
  %4073 = vdwg.mxu0
  %v4074 = vadd.f32 %v3973, %v4028
  %v4075 = vadd.f32 %v3974, %v4030
  %v4076 = vadd.f32 %v3975, %v4069
  %4077 = vrot.lane.b32.xlu0 %v3381, 91
  %v4078 = vpop.permute.xlu0 %4077
  %4079 = vrot.lane.b32.xlu0 %v3382, 91
  %v4080 = vpop.permute.xlu0 %4079
  %4081 = vrot.lane.b32.xlu0 %v3383, 91
  %v4082 = vpop.permute.xlu0 %4081
  %v4083 = vsel %vm1021, %v4078, %v4080
  %v4084 = vsel %vm1021, %v4080, %v4082
  %v4086 = vsel %vm2322, %v4083, 0
  %v4089 = vsel %vm2322, %v4084, 0
  %v4092 = vsel %vm2322, %v4082, 0
  %4094 = vmatprep.subr.bf16.mxu0 %v4089
  %4095 = vmatpush1.bf16.msra.mxu0 %v4086
  %4096 = vmatprep.subr.bf16.mxu0 0
  %4097 = vmatpush1.bf16.msra.mxu0 0
  %4098 = vmatprep.subr.bf16.mxu0 0
  %4099 = vmatpush1.bf16.msra.mxu0 0
  %4100 = vmatprep.subr.bf16.mxu0 0
  %4101 = vmatpush1.bf16.msra.mxu0 0
  %4102 = vmatprep.subr.bf16.mxu0 0
  %4103 = vmatpush1.bf16.msra.mxu0 0
  %4104 = vmatprep.subr.bf16.mxu0 0
  %4105 = vmatpush1.bf16.msra.mxu0 0
  %4106 = vmatprep.subr.bf16.mxu0 0
  %4107 = vmatpush1.bf16.msra.mxu0 0
  %4108 = vmatprep.subr.bf16.mxu0 0
  %4109 = vmatpush1.bf16.msra.mxu0 0
  %4110 = vmatprep.subr.bf16.mxu0 0
  %4111 = vmatpush1.bf16.msra.mxu0 0
  %4112 = vmatprep.subr.bf16.mxu0 0
  %4113 = vmatpush1.bf16.msra.mxu0 0
  %4114 = vmatprep.subr.bf16.mxu0 0
  %4115 = vmatpush1.bf16.msra.mxu0 0
  %4116 = vmatprep.subr.bf16.mxu0 0
  %4117 = vmatpush1.bf16.msra.mxu0 0
  %4118 = vmatprep.subr.bf16.mxu0 0
  %4119 = vmatpush1.bf16.msra.mxu0 0
  %4120 = vmatprep.subr.bf16.mxu0 0
  %4121 = vmatpush1.bf16.msra.mxu0 0
  %4122 = vmatprep.subr.bf16.mxu0 0
  %4123 = vmatpush1.bf16.msra.mxu0 0
  %4124 = vmatprep.subr.bf16.mxu0 0
  %4125 = vmatpush1.bf16.msra.mxu0 0
  %4126 = vmatprep.mubr.bf16.mxu0 0
  %4127 = vmatmul.mubr.bf16.gmra.mrb[0].mxu0 %v3047
  %v4128 = vpop.f32.mrb[0].mxu0
  %v4129 = vadd.f32 0.0, %v4128
  %v4130 = vpop.f32.mrb[0].mxu0
  %v4131 = vadd.f32 0.0, %v4130
  %v4132 = vpop.f32.mrb[0].mxu0
  %v4133 = vpop.f32.mrb[0].mxu0
  %4134 = vdwg.mxu0
  %4135 = vmatprep.subr.bf16.mxu0 0
  %4136 = vmatpush1.bf16.msra.mxu0 %v4092
  %4137 = vmatprep.subr.bf16.mxu0 0
  %4138 = vmatpush1.bf16.msra.mxu0 0
  %4139 = vmatprep.subr.bf16.mxu0 0
  %4140 = vmatpush1.bf16.msra.mxu0 0
  %4141 = vmatprep.subr.bf16.mxu0 0
  %4142 = vmatpush1.bf16.msra.mxu0 0
  %4143 = vmatprep.subr.bf16.mxu0 0
  %4144 = vmatpush1.bf16.msra.mxu0 0
  %4145 = vmatprep.subr.bf16.mxu0 0
  %4146 = vmatpush1.bf16.msra.mxu0 0
  %4147 = vmatprep.subr.bf16.mxu0 0
  %4148 = vmatpush1.bf16.msra.mxu0 0
  %4149 = vmatprep.subr.bf16.mxu0 0
  %4150 = vmatpush1.bf16.msra.mxu0 0
  %4151 = vmatprep.subr.bf16.mxu0 0
  %4152 = vmatpush1.bf16.msra.mxu0 0
  %4153 = vmatprep.subr.bf16.mxu0 0
  %4154 = vmatpush1.bf16.msra.mxu0 0
  %4155 = vmatprep.subr.bf16.mxu0 0
  %4156 = vmatpush1.bf16.msra.mxu0 0
  %4157 = vmatprep.subr.bf16.mxu0 0
  %4158 = vmatpush1.bf16.msra.mxu0 0
  %4159 = vmatprep.subr.bf16.mxu0 0
  %4160 = vmatpush1.bf16.msra.mxu0 0
  %4161 = vmatprep.subr.bf16.mxu0 0
  %4162 = vmatpush1.bf16.msra.mxu0 0
  %4163 = vmatprep.subr.bf16.mxu0 0
  %4164 = vmatpush1.bf16.msra.mxu0 0
  %4165 = vmatprep.subr.bf16.mxu0 0
  %4166 = vmatpush1.bf16.msra.mxu0 0
  %4167 = vmatprep.mubr.bf16.mxu0 0
  %4168 = vmatmul.mubr.bf16.gmra.mrb[0].mxu0 %v3047
  %v4169 = vpop.f32.mrb[0].mxu0
  %v4170 = vadd.f32 0.0, %v4169
  %v4171 = vpop.f32.mrb[0].mxu0
  %v4172 = vpop.f32.mrb[0].mxu0
  %v4173 = vpop.f32.mrb[0].mxu0
  %4174 = vdwg.mxu0
  %v4175 = vadd.f32 %v4074, %v4129
  %v4176 = vadd.f32 %v4075, %v4131
  %v4177 = vadd.f32 %v4076, %v4170
  %4178 = vrot.lane.b32.xlu0 %v3381, 90
  %v4179 = vpop.permute.xlu0 %4178
  %4180 = vrot.lane.b32.xlu0 %v3382, 90
  %v4181 = vpop.permute.xlu0 %4180
  %4182 = vrot.lane.b32.xlu0 %v3383, 90
  %v4183 = vpop.permute.xlu0 %4182
  %v4184 = vsel %vm1128, %v4179, %v4181
  %v4185 = vsel %vm1128, %v4181, %v4183
  %v4187 = vsel %vm2322, %v4184, 0
  %v4190 = vsel %vm2322, %v4185, 0
  %v4193 = vsel %vm2322, %v4183, 0
  %4195 = vmatprep.subr.bf16.mxu0 %v4190
  %4196 = vmatpush1.bf16.msra.mxu0 %v4187
  %4197 = vmatprep.subr.bf16.mxu0 0
  %4198 = vmatpush1.bf16.msra.mxu0 0
  %4199 = vmatprep.subr.bf16.mxu0 0
  %4200 = vmatpush1.bf16.msra.mxu0 0
  %4201 = vmatprep.subr.bf16.mxu0 0
  %4202 = vmatpush1.bf16.msra.mxu0 0
  %4203 = vmatprep.subr.bf16.mxu0 0
  %4204 = vmatpush1.bf16.msra.mxu0 0
  %4205 = vmatprep.subr.bf16.mxu0 0
  %4206 = vmatpush1.bf16.msra.mxu0 0
  %4207 = vmatprep.subr.bf16.mxu0 0
  %4208 = vmatpush1.bf16.msra.mxu0 0
  %4209 = vmatprep.subr.bf16.mxu0 0
  %4210 = vmatpush1.bf16.msra.mxu0 0
  %4211 = vmatprep.subr.bf16.mxu0 0
  %4212 = vmatpush1.bf16.msra.mxu0 0
  %4213 = vmatprep.subr.bf16.mxu0 0
  %4214 = vmatpush1.bf16.msra.mxu0 0
  %4215 = vmatprep.subr.bf16.mxu0 0
  %4216 = vmatpush1.bf16.msra.mxu0 0
  %4217 = vmatprep.subr.bf16.mxu0 0
  %4218 = vmatpush1.bf16.msra.mxu0 0
  %4219 = vmatprep.subr.bf16.mxu0 0
  %4220 = vmatpush1.bf16.msra.mxu0 0
  %4221 = vmatprep.subr.bf16.mxu0 0
  %4222 = vmatpush1.bf16.msra.mxu0 0
  %4223 = vmatprep.subr.bf16.mxu0 0
  %4224 = vmatpush1.bf16.msra.mxu0 0
  %4225 = vmatprep.subr.bf16.mxu0 0
  %4226 = vmatpush1.bf16.msra.mxu0 0
  %4227 = vmatprep.mubr.bf16.mxu0 0
  %4228 = vmatmul.mubr.bf16.gmra.mrb[0].mxu0 %v3153
  %v4229 = vpop.f32.mrb[0].mxu0
  %v4230 = vadd.f32 0.0, %v4229
  %v4231 = vpop.f32.mrb[0].mxu0
  %v4232 = vadd.f32 0.0, %v4231
  %v4233 = vpop.f32.mrb[0].mxu0
  %v4234 = vpop.f32.mrb[0].mxu0
  %4235 = vdwg.mxu0
  %4236 = vmatprep.subr.bf16.mxu0 0
  %4237 = vmatpush1.bf16.msra.mxu0 %v4193
  %4238 = vmatprep.subr.bf16.mxu0 0
  %4239 = vmatpush1.bf16.msra.mxu0 0
  %4240 = vmatprep.subr.bf16.mxu0 0
  %4241 = vmatpush1.bf16.msra.mxu0 0
  %4242 = vmatprep.subr.bf16.mxu0 0
  %4243 = vmatpush1.bf16.msra.mxu0 0
  %4244 = vmatprep.subr.bf16.mxu0 0
  %4245 = vmatpush1.bf16.msra.mxu0 0
  %4246 = vmatprep.subr.bf16.mxu0 0
  %4247 = vmatpush1.bf16.msra.mxu0 0
  %4248 = vmatprep.subr.bf16.mxu0 0
  %4249 = vmatpush1.bf16.msra.mxu0 0
  %4250 = vmatprep.subr.bf16.mxu0 0
  %4251 = vmatpush1.bf16.msra.mxu0 0
  %4252 = vmatprep.subr.bf16.mxu0 0
  %4253 = vmatpush1.bf16.msra.mxu0 0
  %4254 = vmatprep.subr.bf16.mxu0 0
  %4255 = vmatpush1.bf16.msra.mxu0 0
  %4256 = vmatprep.subr.bf16.mxu0 0
  %4257 = vmatpush1.bf16.msra.mxu0 0
  %4258 = vmatprep.subr.bf16.mxu0 0
  %4259 = vmatpush1.bf16.msra.mxu0 0
  %4260 = vmatprep.subr.bf16.mxu0 0
  %4261 = vmatpush1.bf16.msra.mxu0 0
  %4262 = vmatprep.subr.bf16.mxu0 0
  %4263 = vmatpush1.bf16.msra.mxu0 0
  %4264 = vmatprep.subr.bf16.mxu0 0
  %4265 = vmatpush1.bf16.msra.mxu0 0
  %4266 = vmatprep.subr.bf16.mxu0 0
  %4267 = vmatpush1.bf16.msra.mxu0 0
  %4268 = vmatprep.mubr.bf16.mxu0 0
  %4269 = vmatmul.mubr.bf16.gmra.mrb[0].mxu0 %v3153
  %v4270 = vpop.f32.mrb[0].mxu0
  %v4271 = vadd.f32 0.0, %v4270
  %v4272 = vpop.f32.mrb[0].mxu0
  %v4273 = vpop.f32.mrb[0].mxu0
  %v4274 = vpop.f32.mrb[0].mxu0
  %4275 = vdwg.mxu0
  %v4276 = vadd.f32 %v4175, %v4230
  %v4277 = vadd.f32 %v4176, %v4232
  %v4278 = vadd.f32 %v4177, %v4271
  %v4279 = vadd.f32 %v4276, %v3251
  %v4280 = vadd.f32 %v4277, %v3251
  %v4281 = vadd.f32 %v4278, %v3251
  %v4282 = vpack.c.bf16 %v4279, %v4279
  %s4283 = scalar_lea.vmem %s5, 4
  %4284 = vst.msk [vmem:[%s4283] sm:$0x3] %vm3257, %v4282
  %v4287 = vunpack.c.l.s4 1983009808
  %v4288 = vunpack.c.0.s8 %v4287
  %v4289 = vlaneseq
  %v4290 = vshrl.u32 %v4289, 7
  %v4291 = vsub.s32 %v4288, %v4290
  %v4292 = vrot.slane %v4282, %v4291
  %4293 = vrot.lane.b32.xlu0 %v4292, 126
  %v4294 = vpop.permute.xlu0 %4293
  %4296 = vst.msk [vmem:[%s4283] sm:$0x3] %vm3270, %v4294
  %4297 = vrot.lane.b32.xlu0 %v4292, 124
  %v4298 = vpop.permute.xlu0 %4297
  %4300 = vst.msk [vmem:[%s4283] sm:$0x3] %vm3275, %v4298
  %4301 = vrot.lane.b32.xlu0 %v4292, 122
  %v4302 = vpop.permute.xlu0 %4301
  %4304 = vst.msk [vmem:[%s4283] sm:$0x3] %vm3280, %v4302
  %4305 = vrot.lane.b32.xlu0 %v4292, 120
  %v4306 = vpop.permute.xlu0 %4305
  %4308 = vst.msk [vmem:[%s4283] sm:$0x3] %vm3285, %v4306
  %4309 = vrot.lane.b32.xlu0 %v4292, 118
  %v4310 = vpop.permute.xlu0 %4309
  %4312 = vst.msk [vmem:[%s4283] sm:$0x3] %vm3290, %v4310
  %4313 = vrot.lane.b32.xlu0 %v4292, 116
  %v4314 = vpop.permute.xlu0 %4313
  %4316 = vst.msk [vmem:[%s4283] sm:$0x3] %vm3295, %v4314
  %v4317 = vpack.c.bf16 %v4280, %v4280
  %v4319 = vcombine.low %v4282, %v4317
  %v4321 = vunpack.c.l.s4 1983009808
  %v4322 = vunpack.c.0.s8 %v4321
  %v4323 = vlaneseq
  %v4324 = vshrl.u32 %v4323, 7
  %v4325 = vsub.s32 %v4322, %v4324
  %v4326 = vrot.slane %v4319, %v4325
  %4327 = vrot.lane.b32.xlu0 %v4326, 114
  %v4328 = vpop.permute.xlu0 %4327
  %v4329 = vrot.slane %v4328, 2
  %v4330 = vsel %vm3310, %v4328, %v4329
  %4332 = vst.msk [vmem:[%s4283] sm:$0x3] %vm3313, %v4330
  %v4334 = vunpack.c.l.s4 1983009808
  %v4335 = vunpack.c.0.s8 %v4334
  %v4336 = vlaneseq
  %v4337 = vshrl.u32 %v4336, 7
  %v4338 = vsub.s32 %v4335, %v4337
  %v4339 = vrot.slane %v4317, %v4338
  %4340 = vrot.lane.b32.xlu0 %v4339, 112
  %v4341 = vpop.permute.xlu0 %4340
  %4343 = vst.msk [vmem:[%s4283 + $0x2] sm:$0x3] %vm3257, %v4341
  %4344 = vrot.lane.b32.xlu0 %v4339, 110
  %v4345 = vpop.permute.xlu0 %4344
  %4347 = vst.msk [vmem:[%s4283 + $0x2] sm:$0x3] %vm3270, %v4345
  %4348 = vrot.lane.b32.xlu0 %v4339, 108
  %v4349 = vpop.permute.xlu0 %4348
  %4351 = vst.msk [vmem:[%s4283 + $0x2] sm:$0x3] %vm3275, %v4349
  %4352 = vrot.lane.b32.xlu0 %v4339, 106
  %v4353 = vpop.permute.xlu0 %4352
  %4355 = vst.msk [vmem:[%s4283 + $0x2] sm:$0x3] %vm3280, %v4353
  %4356 = vrot.lane.b32.xlu0 %v4339, 104
  %v4357 = vpop.permute.xlu0 %4356
  %4359 = vst.msk [vmem:[%s4283 + $0x2] sm:$0x3] %vm3285, %v4357
  %4360 = vrot.lane.b32.xlu0 %v4339, 102
  %v4361 = vpop.permute.xlu0 %4360
  %4363 = vst.msk [vmem:[%s4283 + $0x2] sm:$0x3] %vm3290, %v4361
  %v4364 = vpack.c.bf16 %v4281, %v4281
  %v4366 = vcombine.low %v4317, %v4364
  %v4368 = vunpack.c.l.s4 1983009808
  %v4369 = vunpack.c.0.s8 %v4368
  %v4370 = vlaneseq
  %v4371 = vshrl.u32 %v4370, 7
  %v4372 = vsub.s32 %v4369, %v4371
  %v4373 = vrot.slane %v4366, %v4372
  %4374 = vrot.lane.b32.xlu0 %v4373, 100
  %v4375 = vpop.permute.xlu0 %4374
  %v4376 = vrot.slane %v4375, 2
  %v4377 = vsel %vm3359, %v4375, %v4376
  %4379 = vst.msk [vmem:[%s4283 + $0x2] sm:$0x3] %vm3295, %v4377
  %v4381 = vunpack.c.l.s4 1983009808
  %v4382 = vunpack.c.0.s8 %v4381
  %v4383 = vlaneseq
  %v4384 = vshrl.u32 %v4383, 7
  %v4385 = vsub.s32 %v4382, %v4384
  %v4386 = vrot.slane %v4364, %v4385
  %4387 = vrot.lane.b32.xlu0 %v4386, 98
  %v4388 = vpop.permute.xlu0 %4387
  %4390 = vst.msk [vmem:[%s4283 + $0x2] sm:$0x3] %vm3313, %v4388
  // Predicated region
  $region22: #{global_dim_forward.3} parent=0 // pred_check
    _
  $region23: #{global_dim_forward.3} parent=0 // pred_check_branch
    %4392 = sbr.rel (0) target = $region25
  $region24: #{global_dim_forward.3} parent=0 // pred_region
    _
  $region25: #{global_dim_forward.3} parent=0 // pred_fallthru
    _
  // Predicated region
  $region26: #{global_dim_forward.3} parent=0 // pred_check
    _
  $region27: #{global_dim_forward.3} parent=0 // pred_check_branch
    %4394 = sbr.rel (0) target = $region29
  $region28: #{global_dim_forward.3} parent=0 // pred_region
    _
  $region29: #{global_dim_forward.3} parent=0 // pred_fallthru
    _

</llo_original>
